<compile_context>
chip_gen: v6e
topology: v6e:2x2x1
jax: 0.10.0
libtpu: 0.0.40
codegen_flags: <defaults>
</compile_context>

<pallas_src>
import functools
import math

import jax
import jax.numpy as jnp
from jax import lax
from jax.experimental import pallas as pl
from jax.experimental.pallas import tpu as pltpu


def _decoder_block_kernel(
    x_ref, enc_ref,
    wq_ref, wk_ref, wv_ref, wo_ref, bo_ref,
    ln_w_ref, ln_b_ref,
    w1_ref, b1_ref, w2_ref, b2_ref,
    out_ref,
    *, head_num, approx_recip):
    bb, L, D = x_ref.shape                  # batch rows handled by this grid step
    H = head_num
    dk = D // H
    N = bb * L                              # token rows in this step
    G = bb * H                              # (batch, head) groups
    cdt = wq_ref.dtype                      # MXU operand dtype (bf16 or f32)

    x2 = x_ref[...].reshape(N, D)           # f32 residual stream
    enc_c = enc_ref[...].reshape(N, D).astype(cdt)
    wq, wk, wv, wo = wq_ref[...], wk_ref[...], wv_ref[...], wo_ref[...]
    bo, ln_w, ln_b = bo_ref[...], ln_w_ref[...], ln_b_ref[...]
    w1, b1, w2, b2 = w1_ref[...], b1_ref[...], w2_ref[...], b2_ref[...]

    def split_heads(t2):
        # (N, D) -> (G, L, dk) head-major via static lane slices + major-axis
        # concat (only minor-preserving reshapes; no sublane-axis transposes).
        heads = [t2[:, h * dk:(h + 1) * dk].reshape(bb, 1, L, dk)
                 for h in range(H)]
        if H == 1:
            return heads[0].reshape(G, L, dk)
        return jnp.concatenate(heads, axis=1).reshape(G, L, dk)

    def mha(q_c, kv_c):
        # Shared-weight multi-head attention.  No mask is ever applied: in the
        # PyTorch module masking needs BOTH mask and attention_mask, and
        # DecoderBlock never supplies attention_mask.
        # q_c / kv_c: (N, D) activations in the compute dtype.
        # NOTE: 1/sqrt(d_k) is already folded into wq on the host.
        Qh = split_heads(jnp.dot(q_c, wq, preferred_element_type=cdt))
        Kh = split_heads(jnp.dot(kv_c, wk, preferred_element_type=cdt))
        Vh = split_heads(jnp.dot(kv_c, wv, preferred_element_type=cdt))
        s = jnp.einsum('glk,gmk->glm', Qh, Kh,
                       preferred_element_type=jnp.float32)
        # softmax in f32; normalization on the EUP reciprocal slot
        s = s - jnp.max(s, axis=-1, keepdims=True)
        p = jnp.exp(s)
        p = (p * pl.reciprocal(jnp.sum(p, axis=-1, keepdims=True),
                               approx=approx_recip)).astype(cdt)
        ctx = jnp.einsum('glm,gmk->glk', p, Vh, preferred_element_type=cdt)
        ctx4 = ctx.reshape(bb, H, L, dk)
        if dk % 128 == 0 or H == 1:
            # Lane-aligned head merge -> single full-width (N,D)@(D,D)
            # output projection (full-D contraction on the MXU).
            ctx2 = jnp.concatenate(
                [ctx4[:, h].reshape(N, dk) for h in range(H)], axis=-1)
            o = jnp.dot(ctx2, wo, preferred_element_type=jnp.float32)
        else:
            # TODO(synk): unaligned-d_k fallback (toy shapes); deployment d_k
            # should be a multiple of 128 so the merged single-matmul path is
            # taken.  Still accumulates straight into one (N, D) f32 buffer.
            o = jnp.dot(ctx4[:, 0].reshape(N, dk), wo[0:dk, :],
                        preferred_element_type=jnp.float32)
            for h in range(1, H):
                o = o + jnp.dot(ctx4[:, h].reshape(N, dk),
                                wo[h * dk:(h + 1) * dk, :],
                                preferred_element_type=jnp.float32)
        return o + bo

    def add_and_layernorm(res_x, sub):
        r = sub + res_x
        mu = jnp.mean(r, axis=-1, keepdims=True)
        c = r - mu
        var = jnp.mean(c * c, axis=-1, keepdims=True)     # biased, like torch
        return c * lax.rsqrt(var + 1e-5) * ln_w + ln_b

    def ffn(z_c):
        h = jnp.dot(z_c, w1, preferred_element_type=jnp.float32) + b1
        h = jnp.maximum(h, 0.0)
        return jnp.dot(h.astype(cdt), w2, preferred_element_type=jnp.float32) + b2

    Xc = x2.astype(cdt)
    X = add_and_layernorm(x2, mha(Xc, Xc))                       # self-attention
    Xc = X.astype(cdt)
    X = add_and_layernorm(X, jnp.maximum(mha(Xc, enc_c), 0.0))   # cross-attn + relu
    Xc = X.astype(cdt)
    X = add_and_layernorm(X, ffn(Xc))                            # position-wise FFN
    out_ref[...] = X.reshape(bb, L, D).astype(out_ref.dtype)


def _vmem_limit_bytes(bb, L, D, Dff, H, cdt_itemsize, weight_bytes):
    f32 = 4
    N, G = bb * L, bb * H
    act_io = 3 * 2 * bb * L * D * f32               # x, enc, out (double-buffered)
    scores = G * L * L * (2 * f32 + cdt_itemsize)   # shifted scores + exp + cast probs
    proj = 4 * N * D * cdt_itemsize                 # Q, K, V, merged ctx
    ffn = N * Dff * (f32 + cdt_itemsize)            # FFN hidden (f32 + cast)
    ln = 6 * N * D * f32                            # residual / LayerNorm temporaries
    est = act_io + 2 * weight_bytes + scores + proj + ffn + ln
    try:
        phys = pltpu.get_tpu_info().vmem_capacity_bytes
    except Exception:
        phys = 64 * 1024 * 1024                     # conservative (v7x per-core VMEM)
    return int(min(max(int(est * 1.3), 32 * 1024 * 1024), int(phys * 0.9)))


def decoder_block(x, encoder_res, params, head_num, *,
                  compute_dtype=jnp.bfloat16, batch_block=1,
                  approx_recip=True, out_dtype=jnp.float32):
    B, L, D = x.shape
    assert D % head_num == 0
    d_k = D // head_num
    bb = batch_block
    assert B % bb == 0, "batch_block must divide the batch size"
    # NOTE: keep bb small enough that B // bb >= 2 so the "parallel" batch axis
    # can actually shard across both TensorCores on v7x.
    cdt = jnp.dtype(compute_dtype)

    # Host-side weight prep: fold 1/sqrt(d_k) into Wq; cast MXU operands to the
    # compute dtype (bf16 halves weight DMA + VMEM footprint).
    wq = (params['wq'] * (1.0 / math.sqrt(d_k))).astype(cdt)
    wk = params['wk'].astype(cdt)
    wv = params['wv'].astype(cdt)
    wo = params['wo'].astype(cdt)
    w1 = params['w1'].astype(cdt)
    w2 = params['w2'].astype(cdt)
    Dff = w1.shape[-1]
    # Biases / LayerNorm params stay f32 (added to f32 accumulators).
    bo = params['bo'].reshape(1, D).astype(jnp.float32)
    ln_w = params['ln_w'].reshape(1, D).astype(jnp.float32)
    ln_b = params['ln_b'].reshape(1, D).astype(jnp.float32)
    b1 = params['b1'].reshape(1, Dff).astype(jnp.float32)
    b2 = params['b2'].reshape(1, D).astype(jnp.float32)

    weights = [wq, wk, wv, wo, bo, ln_w, ln_b, w1, b1, w2, b2]
    weight_bytes = sum(int(w.size) * w.dtype.itemsize for w in weights)
    vmem_limit = _vmem_limit_bytes(bb, L, D, Dff, head_num,
                                   cdt.itemsize, weight_bytes)

    kern = functools.partial(_decoder_block_kernel, head_num=head_num,
                             approx_recip=bool(approx_recip))

    def build(weight_pipeline_mode):
        def wspec(arr):
            n = arr.ndim
            if weight_pipeline_mode is None:
                return pl.BlockSpec(arr.shape, lambda b, _n=n: (0,) * _n)
            return pl.BlockSpec(arr.shape, lambda b, _n=n: (0,) * _n,
                                pipeline_mode=weight_pipeline_mode)

        in_specs = (
            [pl.BlockSpec((bb, L, D), lambda b: (b, 0, 0)),   # x, one batch block
             pl.BlockSpec((bb, L, D), lambda b: (b, 0, 0))]   # encoder_res
            + [wspec(w) for w in weights])

        return pl.pallas_call(
            kern,
            out_shape=jax.ShapeDtypeStruct((B, L, D), jnp.dtype(out_dtype)),
            grid=(B // bb,),
            in_specs=in_specs,
            out_specs=pl.BlockSpec((bb, L, D), lambda b: (b, 0, 0)),
            compiler_params=pltpu.CompilerParams(
                dimension_semantics=("parallel",),   # batch blocks independent
                vmem_limit_bytes=vmem_limit),
        )

    try:
        # Constant-index weight blocks never change across the grid: single-
        # buffer them to halve their VMEM footprint.
        single_buf = pl.Buffered(1)
        return build(single_buf)(x, encoder_res, *weights)
    except Exception:
        # TODO(synk): pl.Buffered pipeline_mode unsupported on this jax version;
        # fall back to default double-buffered weight blocks.
        return build(None)(x, encoder_res, *weights)


def reference(x, enc, p, head_num):
    # Pure-JAX f32 reference mirroring the PyTorch forward (eval mode).
    B, L, D = x.shape
    d_k = D // head_num

    def mha(q, k, v):
        Q = (q @ p['wq']).reshape(B, L, head_num, d_k).transpose(0, 2, 1, 3)
        K = (k @ p['wk']).reshape(B, L, head_num, d_k).transpose(0, 2, 1, 3)
        V = (v @ p['wv']).reshape(B, L, head_num, d_k).transpose(0, 2, 1, 3)
        s = jnp.einsum('bhld,bhmd->bhlm', Q, K) / math.sqrt(d_k)
        a = jax.nn.softmax(s, axis=-1)
        o = jnp.einsum('bhlm,bhmd->bhld', a, V).transpose(0, 2, 1, 3).reshape(B, L, D)
        return o @ p['wo'] + p['bo']

    def aln(res_x, sub):
        r = sub + res_x
        mu = r.mean(-1, keepdims=True)
        var = ((r - mu) ** 2).mean(-1, keepdims=True)
        return (r - mu) / jnp.sqrt(var + 1e-5) * p['ln_w'] + p['ln_b']

    def ffn(z):
        return jnp.maximum(z @ p['w1'] + p['b1'], 0.0) @ p['w2'] + p['b2']

    X = x
    X = aln(X, mha(X, X, X))
    X = aln(X, jnp.maximum(mha(X, enc, enc), 0.0))
    X = aln(X, ffn(X))
    return X


def _make_params(key, D, Dff):
    ks = jax.random.split(key, 13)
    s = 0.1
    return {
        'wq':   jax.random.normal(ks[0],  (D, D),   jnp.float32) * s,
        'wk':   jax.random.normal(ks[1],  (D, D),   jnp.float32) * s,
        'wv':   jax.random.normal(ks[2],  (D, D),   jnp.float32) * s,
        'wo':   jax.random.normal(ks[3],  (D, D),   jnp.float32) * s,
        'bo':   jax.random.normal(ks[4],  (1, D),   jnp.float32) * s,
        'ln_w': 1.0 + jax.random.normal(ks[5], (1, D), jnp.float32) * s,
        'ln_b': jax.random.normal(ks[6],  (1, D),   jnp.float32) * s,
        'w1':   jax.random.normal(ks[7],  (D, Dff), jnp.float32) * s,
        'b1':   jax.random.normal(ks[8],  (1, Dff), jnp.float32) * s,
        'w2':   jax.random.normal(ks[9],  (Dff, D), jnp.float32) * s,
        'b2':   jax.random.normal(ks[10], (1, D),   jnp.float32) * s,
    }, ks[11], ks[12]


def _check_config(key, B, L, D, H, Dff, f32_tol):
    params, kx, ke = _make_params(key, D, Dff)
    x = jax.random.normal(kx, (B, L, D), jnp.float32)
    encoder_res = jax.random.normal(ke, (B, L, D), jnp.float32)
    ref = reference(x, encoder_res, params, H)

    # Exact-precision path (f32 MXU operands, exact reciprocal).
    out_f32 = jax.block_until_ready(
        decoder_block(x, encoder_res, params, H,
                      compute_dtype=jnp.float32, approx_recip=False))
    assert out_f32.shape == (B, L, D)
    assert jnp.allclose(out_f32, ref, atol=f32_tol, rtol=f32_tol), (
        f"f32 max abs err = {jnp.max(jnp.abs(out_f32 - ref))}")

    # Fast path (bf16 MXU operands, f32 accumulation/softmax/LayerNorm,
    # approx EUP reciprocal for the softmax normalization).
    out_bf16 = jax.block_until_ready(
        decoder_block(x, encoder_res, params, H))
    assert out_bf16.shape == (B, L, D)
    assert jnp.allclose(out_bf16, ref, atol=5e-2, rtol=5e-2), (
        f"bf16 max abs err = {jnp.max(jnp.abs(out_bf16 - ref))}")


if __name__ == "__main__":
    key = jax.random.PRNGKey(0)
    k1, k2 = jax.random.split(key)
    # Config 1: unaligned d_k (=8) -> per-head fallback output projection.
    _check_config(k1, B=2, L=8, D=32, H=4, Dff=64, f32_tol=2e-4)
    # Config 2: lane-aligned d_k (=128) -> merged single-matmul projection path.
    _check_config(k2, B=2, L=8, D=256, H=2, Dff=128, f32_tol=1e-3)
    print("KERNEL_OK")
</pallas_src>

<mosaic_0001>
module attributes {stable_mosaic.version = 11 : i64} {
  func.func @_decoder_block_kernel(%arg0: i32, %arg1: memref<1x8x32xf32, #tpu.memory_space<vmem>>, %arg2: memref<1x8x32xf32, #tpu.memory_space<vmem>>, %arg3: memref<32x32xf32, #tpu.memory_space<vmem>>, %arg4: memref<32x32xf32, #tpu.memory_space<vmem>>, %arg5: memref<32x32xf32, #tpu.memory_space<vmem>>, %arg6: memref<32x32xf32, #tpu.memory_space<vmem>>, %arg7: memref<1x32xf32, #tpu.memory_space<vmem>>, %arg8: memref<1x32xf32, #tpu.memory_space<vmem>>, %arg9: memref<1x32xf32, #tpu.memory_space<vmem>>, %arg10: memref<32x64xf32, #tpu.memory_space<vmem>>, %arg11: memref<1x64xf32, #tpu.memory_space<vmem>>, %arg12: memref<64x32xf32, #tpu.memory_space<vmem>>, %arg13: memref<1x32xf32, #tpu.memory_space<vmem>>, %arg14: memref<1x8x32xf32, #tpu.memory_space<vmem>>) attributes {dimension_semantics = [#tpu.dimension_semantics<parallel>], iteration_bounds = array<i64: 2>, scalar_prefetch = 0 : i64, scratch_operands = 0 : i64, tpu.core_type = #tpu.core_type<tc>, window_params = [{transform_indices = @transform_0, window_bounds = array<i64: 1, 8, 32>}, {transform_indices = @transform_1, window_bounds = array<i64: 1, 8, 32>}, {pipeline_mode = #tpu.pipeline_mode<synchronous>, transform_indices = @transform_2, window_bounds = array<i64: 32, 32>}, {pipeline_mode = #tpu.pipeline_mode<synchronous>, transform_indices = @transform_3, window_bounds = array<i64: 32, 32>}, {pipeline_mode = #tpu.pipeline_mode<synchronous>, transform_indices = @transform_4, window_bounds = array<i64: 32, 32>}, {pipeline_mode = #tpu.pipeline_mode<synchronous>, transform_indices = @transform_5, window_bounds = array<i64: 32, 32>}, {pipeline_mode = #tpu.pipeline_mode<synchronous>, transform_indices = @transform_6, window_bounds = array<i64: 1, 32>}, {pipeline_mode = #tpu.pipeline_mode<synchronous>, transform_indices = @transform_7, window_bounds = array<i64: 1, 32>}, {pipeline_mode = #tpu.pipeline_mode<synchronous>, transform_indices = @transform_8, window_bounds = array<i64: 1, 32>}, {pipeline_mode = #tpu.pipeline_mode<synchronous>, transform_indices = @transform_9, window_bounds = array<i64: 32, 64>}, {pipeline_mode = #tpu.pipeline_mode<synchronous>, transform_indices = @transform_10, window_bounds = array<i64: 1, 64>}, {pipeline_mode = #tpu.pipeline_mode<synchronous>, transform_indices = @transform_11, window_bounds = array<i64: 64, 32>}, {pipeline_mode = #tpu.pipeline_mode<synchronous>, transform_indices = @transform_12, window_bounds = array<i64: 1, 32>}, {transform_indices = @transform_13, window_bounds = array<i64: 1, 8, 32>}]} {
    %c0 = arith.constant 0 : index
    %c0_0 = arith.constant 0 : index
    %c0_1 = arith.constant 0 : index
    %0 = vector.load %arg1[%c0, %c0_0, %c0_1] : memref<1x8x32xf32, #tpu.memory_space<vmem>>, vector<1x8x32xf32>
    %1 = vector.shape_cast %0 : vector<1x8x32xf32> to vector<8x32xf32>
    %c0_2 = arith.constant 0 : index
    %c0_3 = arith.constant 0 : index
    %c0_4 = arith.constant 0 : index
    %2 = vector.load %arg2[%c0_2, %c0_3, %c0_4] : memref<1x8x32xf32, #tpu.memory_space<vmem>>, vector<1x8x32xf32>
    %3 = vector.shape_cast %2 : vector<1x8x32xf32> to vector<8x32xf32>
    %c0_5 = arith.constant 0 : index
    %c0_6 = arith.constant 0 : index
    %4 = vector.load %arg3[%c0_5, %c0_6] : memref<32x32xf32, #tpu.memory_space<vmem>>, vector<32x32xf32>
    %c0_7 = arith.constant 0 : index
    %c0_8 = arith.constant 0 : index
    %5 = vector.load %arg4[%c0_7, %c0_8] : memref<32x32xf32, #tpu.memory_space<vmem>>, vector<32x32xf32>
    %c0_9 = arith.constant 0 : index
    %c0_10 = arith.constant 0 : index
    %6 = vector.load %arg5[%c0_9, %c0_10] : memref<32x32xf32, #tpu.memory_space<vmem>>, vector<32x32xf32>
    %c0_11 = arith.constant 0 : index
    %c0_12 = arith.constant 0 : index
    %7 = vector.load %arg6[%c0_11, %c0_12] : memref<32x32xf32, #tpu.memory_space<vmem>>, vector<32x32xf32>
    %c0_13 = arith.constant 0 : index
    %c0_14 = arith.constant 0 : index
    %8 = vector.load %arg7[%c0_13, %c0_14] : memref<1x32xf32, #tpu.memory_space<vmem>>, vector<1x32xf32>
    %c0_15 = arith.constant 0 : index
    %c0_16 = arith.constant 0 : index
    %9 = vector.load %arg8[%c0_15, %c0_16] : memref<1x32xf32, #tpu.memory_space<vmem>>, vector<1x32xf32>
    %c0_17 = arith.constant 0 : index
    %c0_18 = arith.constant 0 : index
    %10 = vector.load %arg9[%c0_17, %c0_18] : memref<1x32xf32, #tpu.memory_space<vmem>>, vector<1x32xf32>
    %c0_19 = arith.constant 0 : index
    %c0_20 = arith.constant 0 : index
    %11 = vector.load %arg10[%c0_19, %c0_20] : memref<32x64xf32, #tpu.memory_space<vmem>>, vector<32x64xf32>
    %c0_21 = arith.constant 0 : index
    %c0_22 = arith.constant 0 : index
    %12 = vector.load %arg11[%c0_21, %c0_22] : memref<1x64xf32, #tpu.memory_space<vmem>>, vector<1x64xf32>
    %c0_23 = arith.constant 0 : index
    %c0_24 = arith.constant 0 : index
    %13 = vector.load %arg12[%c0_23, %c0_24] : memref<64x32xf32, #tpu.memory_space<vmem>>, vector<64x32xf32>
    %c0_25 = arith.constant 0 : index
    %c0_26 = arith.constant 0 : index
    %14 = vector.load %arg13[%c0_25, %c0_26] : memref<1x32xf32, #tpu.memory_space<vmem>>, vector<1x32xf32>
    %cst = arith.constant dense<0.000000e+00> : vector<8x32xf32>
    %15 = tpu.matmul %1, %4, %cst {dimension_numbers = #tpu.dot_dimension_numbers<[1], [0], [0], [1], [0, 0, 1, 1], [], []>} : vector<8x32xf32>, vector<32x32xf32>, vector<8x32xf32> -> vector<8x32xf32>
    %16 = vector.extract_strided_slice %15 {offsets = [0, 0], sizes = [8, 8], strides = [1, 1]} : vector<8x32xf32> to vector<8x8xf32>
    %17 = vector.shape_cast %16 : vector<8x8xf32> to vector<1x1x8x8xf32>
    %18 = vector.extract_strided_slice %15 {offsets = [0, 8], sizes = [8, 8], strides = [1, 1]} : vector<8x32xf32> to vector<8x8xf32>
    %19 = vector.shape_cast %18 : vector<8x8xf32> to vector<1x1x8x8xf32>
    %20 = vector.extract_strided_slice %15 {offsets = [0, 16], sizes = [8, 8], strides = [1, 1]} : vector<8x32xf32> to vector<8x8xf32>
    %21 = vector.shape_cast %20 : vector<8x8xf32> to vector<1x1x8x8xf32>
    %22 = vector.extract_strided_slice %15 {offsets = [0, 24], sizes = [8, 8], strides = [1, 1]} : vector<8x32xf32> to vector<8x8xf32>
    %23 = vector.shape_cast %22 : vector<8x8xf32> to vector<1x1x8x8xf32>
    %24 = tpu.concatenate %17, %19, %21, %23 in 1 : vector<1x1x8x8xf32>, vector<1x1x8x8xf32>, vector<1x1x8x8xf32>, vector<1x1x8x8xf32> -> vector<1x4x8x8xf32>
    %25 = vector.shape_cast %24 : vector<1x4x8x8xf32> to vector<4x8x8xf32>
    %cst_27 = arith.constant dense<0.000000e+00> : vector<8x32xf32>
    %26 = tpu.matmul %1, %5, %cst_27 {dimension_numbers = #tpu.dot_dimension_numbers<[1], [0], [0], [1], [0, 0, 1, 1], [], []>} : vector<8x32xf32>, vector<32x32xf32>, vector<8x32xf32> -> vector<8x32xf32>
    %27 = vector.extract_strided_slice %26 {offsets = [0, 0], sizes = [8, 8], strides = [1, 1]} : vector<8x32xf32> to vector<8x8xf32>
    %28 = vector.shape_cast %27 : vector<8x8xf32> to vector<1x1x8x8xf32>
    %29 = vector.extract_strided_slice %26 {offsets = [0, 8], sizes = [8, 8], strides = [1, 1]} : vector<8x32xf32> to vector<8x8xf32>
    %30 = vector.shape_cast %29 : vector<8x8xf32> to vector<1x1x8x8xf32>
    %31 = vector.extract_strided_slice %26 {offsets = [0, 16], sizes = [8, 8], strides = [1, 1]} : vector<8x32xf32> to vector<8x8xf32>
    %32 = vector.shape_cast %31 : vector<8x8xf32> to vector<1x1x8x8xf32>
    %33 = vector.extract_strided_slice %26 {offsets = [0, 24], sizes = [8, 8], strides = [1, 1]} : vector<8x32xf32> to vector<8x8xf32>
    %34 = vector.shape_cast %33 : vector<8x8xf32> to vector<1x1x8x8xf32>
    %35 = tpu.concatenate %28, %30, %32, %34 in 1 : vector<1x1x8x8xf32>, vector<1x1x8x8xf32>, vector<1x1x8x8xf32>, vector<1x1x8x8xf32> -> vector<1x4x8x8xf32>
    %36 = vector.shape_cast %35 : vector<1x4x8x8xf32> to vector<4x8x8xf32>
    %cst_28 = arith.constant dense<0.000000e+00> : vector<8x32xf32>
    %37 = tpu.matmul %1, %6, %cst_28 {dimension_numbers = #tpu.dot_dimension_numbers<[1], [0], [0], [1], [0, 0, 1, 1], [], []>} : vector<8x32xf32>, vector<32x32xf32>, vector<8x32xf32> -> vector<8x32xf32>
    %38 = vector.extract_strided_slice %37 {offsets = [0, 0], sizes = [8, 8], strides = [1, 1]} : vector<8x32xf32> to vector<8x8xf32>
    %39 = vector.shape_cast %38 : vector<8x8xf32> to vector<1x1x8x8xf32>
    %40 = vector.extract_strided_slice %37 {offsets = [0, 8], sizes = [8, 8], strides = [1, 1]} : vector<8x32xf32> to vector<8x8xf32>
    %41 = vector.shape_cast %40 : vector<8x8xf32> to vector<1x1x8x8xf32>
    %42 = vector.extract_strided_slice %37 {offsets = [0, 16], sizes = [8, 8], strides = [1, 1]} : vector<8x32xf32> to vector<8x8xf32>
    %43 = vector.shape_cast %42 : vector<8x8xf32> to vector<1x1x8x8xf32>
    %44 = vector.extract_strided_slice %37 {offsets = [0, 24], sizes = [8, 8], strides = [1, 1]} : vector<8x32xf32> to vector<8x8xf32>
    %45 = vector.shape_cast %44 : vector<8x8xf32> to vector<1x1x8x8xf32>
    %46 = tpu.concatenate %39, %41, %43, %45 in 1 : vector<1x1x8x8xf32>, vector<1x1x8x8xf32>, vector<1x1x8x8xf32>, vector<1x1x8x8xf32> -> vector<1x4x8x8xf32>
    %47 = vector.shape_cast %46 : vector<1x4x8x8xf32> to vector<4x8x8xf32>
    "tpu.trace_start"() <{level = 10 : i32, message = "glk,gmk->glm"}> : () -> ()
    %cst_29 = arith.constant dense<0.000000e+00> : vector<4x8x8xf32>
    %48 = tpu.matmul %25, %36, %cst_29 {dimension_numbers = #tpu.dot_dimension_numbers<[2], [2], [1], [1], [0, 0, 0, 1, 1, 1], [0], [0]>} : vector<4x8x8xf32>, vector<4x8x8xf32>, vector<4x8x8xf32> -> vector<4x8x8xf32>
    "tpu.trace_stop"() : () -> ()
    %cst_30 = arith.constant dense<0xFF800000> : vector<4x8xf32>
    %49 = vector.multi_reduction <maximumf>, %48, %cst_30 [2] : vector<4x8x8xf32> to vector<4x8xf32>
    %50 = vector.shape_cast %49 : vector<4x8xf32> to vector<4x8x1xf32>
    %51 = vector.broadcast %50 : vector<4x8x1xf32> to vector<4x8x8xf32>
    %52 = arith.subf %48, %51 : vector<4x8x8xf32>
    %53 = math.exp %52 : vector<4x8x8xf32>
    %cst_31 = arith.constant dense<0.000000e+00> : vector<4x8xf32>
    %54 = vector.multi_reduction <add>, %53, %cst_31 [2] : vector<4x8x8xf32> to vector<4x8xf32>
    %55 = vector.shape_cast %54 : vector<4x8xf32> to vector<4x8x1xf32>
    %56 = tpu.reciprocal %55 : vector<4x8x1xf32> -> vector<4x8x1xf32>
    %57 = vector.broadcast %56 : vector<4x8x1xf32> to vector<4x8x8xf32>
    %58 = arith.mulf %53, %57 : vector<4x8x8xf32>
    "tpu.trace_start"() <{level = 10 : i32, message = "glm,gmk->glk"}> : () -> ()
    %cst_32 = arith.constant dense<0.000000e+00> : vector<4x8x8xf32>
    %59 = tpu.matmul %58, %47, %cst_32 {dimension_numbers = #tpu.dot_dimension_numbers<[2], [1], [1], [2], [0, 0, 0, 1, 1, 2], [0], [0]>} : vector<4x8x8xf32>, vector<4x8x8xf32>, vector<4x8x8xf32> -> vector<4x8x8xf32>
    "tpu.trace_stop"() : () -> ()
    %60 = vector.shape_cast %59 : vector<4x8x8xf32> to vector<1x4x8x8xf32>
    %61 = vector.extract_strided_slice %60 {offsets = [0, 0, 0, 0], sizes = [1, 1, 8, 8], strides = [1, 1, 1, 1]} : vector<1x4x8x8xf32> to vector<1x1x8x8xf32>
    %62 = vector.shape_cast %61 : vector<1x1x8x8xf32> to vector<1x8x8xf32>
    %63 = vector.shape_cast %62 : vector<1x8x8xf32> to vector<8x8xf32>
    %64 = vector.extract_strided_slice %7 {offsets = [0, 0], sizes = [8, 32], strides = [1, 1]} : vector<32x32xf32> to vector<8x32xf32>
    %cst_33 = arith.constant dense<0.000000e+00> : vector<8x32xf32>
    %65 = tpu.matmul %63, %64, %cst_33 {dimension_numbers = #tpu.dot_dimension_numbers<[1], [0], [0], [1], [0, 0, 1, 1], [], []>} : vector<8x8xf32>, vector<8x32xf32>, vector<8x32xf32> -> vector<8x32xf32>
    %66 = vector.extract_strided_slice %60 {offsets = [0, 1, 0, 0], sizes = [1, 1, 8, 8], strides = [1, 1, 1, 1]} : vector<1x4x8x8xf32> to vector<1x1x8x8xf32>
    %67 = vector.shape_cast %66 : vector<1x1x8x8xf32> to vector<1x8x8xf32>
    %68 = vector.shape_cast %67 : vector<1x8x8xf32> to vector<8x8xf32>
    %69 = vector.extract_strided_slice %7 {offsets = [8, 0], sizes = [8, 32], strides = [1, 1]} : vector<32x32xf32> to vector<8x32xf32>
    %cst_34 = arith.constant dense<0.000000e+00> : vector<8x32xf32>
    %70 = tpu.matmul %68, %69, %cst_34 {dimension_numbers = #tpu.dot_dimension_numbers<[1], [0], [0], [1], [0, 0, 1, 1], [], []>} : vector<8x8xf32>, vector<8x32xf32>, vector<8x32xf32> -> vector<8x32xf32>
    %71 = arith.addf %65, %70 : vector<8x32xf32>
    %72 = vector.extract_strided_slice %60 {offsets = [0, 2, 0, 0], sizes = [1, 1, 8, 8], strides = [1, 1, 1, 1]} : vector<1x4x8x8xf32> to vector<1x1x8x8xf32>
    %73 = vector.shape_cast %72 : vector<1x1x8x8xf32> to vector<1x8x8xf32>
    %74 = vector.shape_cast %73 : vector<1x8x8xf32> to vector<8x8xf32>
    %75 = vector.extract_strided_slice %7 {offsets = [16, 0], sizes = [8, 32], strides = [1, 1]} : vector<32x32xf32> to vector<8x32xf32>
    %cst_35 = arith.constant dense<0.000000e+00> : vector<8x32xf32>
    %76 = tpu.matmul %74, %75, %cst_35 {dimension_numbers = #tpu.dot_dimension_numbers<[1], [0], [0], [1], [0, 0, 1, 1], [], []>} : vector<8x8xf32>, vector<8x32xf32>, vector<8x32xf32> -> vector<8x32xf32>
    %77 = arith.addf %71, %76 : vector<8x32xf32>
    %78 = vector.extract_strided_slice %60 {offsets = [0, 3, 0, 0], sizes = [1, 1, 8, 8], strides = [1, 1, 1, 1]} : vector<1x4x8x8xf32> to vector<1x1x8x8xf32>
    %79 = vector.shape_cast %78 : vector<1x1x8x8xf32> to vector<1x8x8xf32>
    %80 = vector.shape_cast %79 : vector<1x8x8xf32> to vector<8x8xf32>
    %81 = vector.extract_strided_slice %7 {offsets = [24, 0], sizes = [8, 32], strides = [1, 1]} : vector<32x32xf32> to vector<8x32xf32>
    %cst_36 = arith.constant dense<0.000000e+00> : vector<8x32xf32>
    %82 = tpu.matmul %80, %81, %cst_36 {dimension_numbers = #tpu.dot_dimension_numbers<[1], [0], [0], [1], [0, 0, 1, 1], [], []>} : vector<8x8xf32>, vector<8x32xf32>, vector<8x32xf32> -> vector<8x32xf32>
    %83 = arith.addf %77, %82 : vector<8x32xf32>
    %84 = vector.broadcast %8 : vector<1x32xf32> to vector<8x32xf32>
    %85 = arith.addf %83, %84 : vector<8x32xf32>
    %86 = arith.addf %85, %1 : vector<8x32xf32>
    %cst_37 = arith.constant dense<0.000000e+00> : vector<8xf32>
    %87 = vector.multi_reduction <add>, %86, %cst_37 [1] : vector<8x32xf32> to vector<8xf32>
    %88 = vector.shape_cast %87 : vector<8xf32> to vector<8x1xf32>
    %cst_38 = arith.constant 3.200000e+01 : f32
    %89 = vector.broadcast %cst_38 : f32 to vector<8x1xf32>
    %90 = arith.divf %88, %89 : vector<8x1xf32>
    %91 = vector.broadcast %90 : vector<8x1xf32> to vector<8x32xf32>
    %92 = arith.subf %86, %91 : vector<8x32xf32>
    %93 = arith.mulf %92, %92 : vector<8x32xf32>
    %cst_39 = arith.constant dense<0.000000e+00> : vector<8xf32>
    %94 = vector.multi_reduction <add>, %93, %cst_39 [1] : vector<8x32xf32> to vector<8xf32>
    %95 = vector.shape_cast %94 : vector<8xf32> to vector<8x1xf32>
    %cst_40 = arith.constant 3.200000e+01 : f32
    %96 = vector.broadcast %cst_40 : f32 to vector<8x1xf32>
    %97 = arith.divf %95, %96 : vector<8x1xf32>
    %cst_41 = arith.constant 9.99999974E-6 : f32
    %98 = vector.broadcast %cst_41 : f32 to vector<8x1xf32>
    %99 = arith.addf %97, %98 : vector<8x1xf32>
    %100 = math.rsqrt %99 : vector<8x1xf32>
    %101 = vector.broadcast %100 : vector<8x1xf32> to vector<8x32xf32>
    %102 = arith.mulf %92, %101 : vector<8x32xf32>
    %103 = vector.broadcast %9 : vector<1x32xf32> to vector<8x32xf32>
    %104 = arith.mulf %102, %103 : vector<8x32xf32>
    %105 = vector.broadcast %10 : vector<1x32xf32> to vector<8x32xf32>
    %106 = arith.addf %104, %105 : vector<8x32xf32>
    %cst_42 = arith.constant dense<0.000000e+00> : vector<8x32xf32>
    %107 = tpu.matmul %106, %4, %cst_42 {dimension_numbers = #tpu.dot_dimension_numbers<[1], [0], [0], [1], [0, 0, 1, 1], [], []>} : vector<8x32xf32>, vector<32x32xf32>, vector<8x32xf32> -> vector<8x32xf32>
    %108 = vector.extract_strided_slice %107 {offsets = [0, 0], sizes = [8, 8], strides = [1, 1]} : vector<8x32xf32> to vector<8x8xf32>
    %109 = vector.shape_cast %108 : vector<8x8xf32> to vector<1x1x8x8xf32>
    %110 = vector.extract_strided_slice %107 {offsets = [0, 8], sizes = [8, 8], strides = [1, 1]} : vector<8x32xf32> to vector<8x8xf32>
    %111 = vector.shape_cast %110 : vector<8x8xf32> to vector<1x1x8x8xf32>
    %112 = vector.extract_strided_slice %107 {offsets = [0, 16], sizes = [8, 8], strides = [1, 1]} : vector<8x32xf32> to vector<8x8xf32>
    %113 = vector.shape_cast %112 : vector<8x8xf32> to vector<1x1x8x8xf32>
    %114 = vector.extract_strided_slice %107 {offsets = [0, 24], sizes = [8, 8], strides = [1, 1]} : vector<8x32xf32> to vector<8x8xf32>
    %115 = vector.shape_cast %114 : vector<8x8xf32> to vector<1x1x8x8xf32>
    %116 = tpu.concatenate %109, %111, %113, %115 in 1 : vector<1x1x8x8xf32>, vector<1x1x8x8xf32>, vector<1x1x8x8xf32>, vector<1x1x8x8xf32> -> vector<1x4x8x8xf32>
    %117 = vector.shape_cast %116 : vector<1x4x8x8xf32> to vector<4x8x8xf32>
    %cst_43 = arith.constant dense<0.000000e+00> : vector<8x32xf32>
    %118 = tpu.matmul %3, %5, %cst_43 {dimension_numbers = #tpu.dot_dimension_numbers<[1], [0], [0], [1], [0, 0, 1, 1], [], []>} : vector<8x32xf32>, vector<32x32xf32>, vector<8x32xf32> -> vector<8x32xf32>
    %119 = vector.extract_strided_slice %118 {offsets = [0, 0], sizes = [8, 8], strides = [1, 1]} : vector<8x32xf32> to vector<8x8xf32>
    %120 = vector.shape_cast %119 : vector<8x8xf32> to vector<1x1x8x8xf32>
    %121 = vector.extract_strided_slice %118 {offsets = [0, 8], sizes = [8, 8], strides = [1, 1]} : vector<8x32xf32> to vector<8x8xf32>
    %122 = vector.shape_cast %121 : vector<8x8xf32> to vector<1x1x8x8xf32>
    %123 = vector.extract_strided_slice %118 {offsets = [0, 16], sizes = [8, 8], strides = [1, 1]} : vector<8x32xf32> to vector<8x8xf32>
    %124 = vector.shape_cast %123 : vector<8x8xf32> to vector<1x1x8x8xf32>
    %125 = vector.extract_strided_slice %118 {offsets = [0, 24], sizes = [8, 8], strides = [1, 1]} : vector<8x32xf32> to vector<8x8xf32>
    %126 = vector.shape_cast %125 : vector<8x8xf32> to vector<1x1x8x8xf32>
    %127 = tpu.concatenate %120, %122, %124, %126 in 1 : vector<1x1x8x8xf32>, vector<1x1x8x8xf32>, vector<1x1x8x8xf32>, vector<1x1x8x8xf32> -> vector<1x4x8x8xf32>
    %128 = vector.shape_cast %127 : vector<1x4x8x8xf32> to vector<4x8x8xf32>
    %cst_44 = arith.constant dense<0.000000e+00> : vector<8x32xf32>
    %129 = tpu.matmul %3, %6, %cst_44 {dimension_numbers = #tpu.dot_dimension_numbers<[1], [0], [0], [1], [0, 0, 1, 1], [], []>} : vector<8x32xf32>, vector<32x32xf32>, vector<8x32xf32> -> vector<8x32xf32>
    %130 = vector.extract_strided_slice %129 {offsets = [0, 0], sizes = [8, 8], strides = [1, 1]} : vector<8x32xf32> to vector<8x8xf32>
    %131 = vector.shape_cast %130 : vector<8x8xf32> to vector<1x1x8x8xf32>
    %132 = vector.extract_strided_slice %129 {offsets = [0, 8], sizes = [8, 8], strides = [1, 1]} : vector<8x32xf32> to vector<8x8xf32>
    %133 = vector.shape_cast %132 : vector<8x8xf32> to vector<1x1x8x8xf32>
    %134 = vector.extract_strided_slice %129 {offsets = [0, 16], sizes = [8, 8], strides = [1, 1]} : vector<8x32xf32> to vector<8x8xf32>
    %135 = vector.shape_cast %134 : vector<8x8xf32> to vector<1x1x8x8xf32>
    %136 = vector.extract_strided_slice %129 {offsets = [0, 24], sizes = [8, 8], strides = [1, 1]} : vector<8x32xf32> to vector<8x8xf32>
    %137 = vector.shape_cast %136 : vector<8x8xf32> to vector<1x1x8x8xf32>
    %138 = tpu.concatenate %131, %133, %135, %137 in 1 : vector<1x1x8x8xf32>, vector<1x1x8x8xf32>, vector<1x1x8x8xf32>, vector<1x1x8x8xf32> -> vector<1x4x8x8xf32>
    %139 = vector.shape_cast %138 : vector<1x4x8x8xf32> to vector<4x8x8xf32>
    "tpu.trace_start"() <{level = 10 : i32, message = "glk,gmk->glm"}> : () -> ()
    %cst_45 = arith.constant dense<0.000000e+00> : vector<4x8x8xf32>
    %140 = tpu.matmul %117, %128, %cst_45 {dimension_numbers = #tpu.dot_dimension_numbers<[2], [2], [1], [1], [0, 0, 0, 1, 1, 1], [0], [0]>} : vector<4x8x8xf32>, vector<4x8x8xf32>, vector<4x8x8xf32> -> vector<4x8x8xf32>
    "tpu.trace_stop"() : () -> ()
    %cst_46 = arith.constant dense<0xFF800000> : vector<4x8xf32>
    %141 = vector.multi_reduction <maximumf>, %140, %cst_46 [2] : vector<4x8x8xf32> to vector<4x8xf32>
    %142 = vector.shape_cast %141 : vector<4x8xf32> to vector<4x8x1xf32>
    %143 = vector.broadcast %142 : vector<4x8x1xf32> to vector<4x8x8xf32>
    %144 = arith.subf %140, %143 : vector<4x8x8xf32>
    %145 = math.exp %144 : vector<4x8x8xf32>
    %cst_47 = arith.constant dense<0.000000e+00> : vector<4x8xf32>
    %146 = vector.multi_reduction <add>, %145, %cst_47 [2] : vector<4x8x8xf32> to vector<4x8xf32>
    %147 = vector.shape_cast %146 : vector<4x8xf32> to vector<4x8x1xf32>
    %148 = tpu.reciprocal %147 : vector<4x8x1xf32> -> vector<4x8x1xf32>
    %149 = vector.broadcast %148 : vector<4x8x1xf32> to vector<4x8x8xf32>
    %150 = arith.mulf %145, %149 : vector<4x8x8xf32>
    "tpu.trace_start"() <{level = 10 : i32, message = "glm,gmk->glk"}> : () -> ()
    %cst_48 = arith.constant dense<0.000000e+00> : vector<4x8x8xf32>
    %151 = tpu.matmul %150, %139, %cst_48 {dimension_numbers = #tpu.dot_dimension_numbers<[2], [1], [1], [2], [0, 0, 0, 1, 1, 2], [0], [0]>} : vector<4x8x8xf32>, vector<4x8x8xf32>, vector<4x8x8xf32> -> vector<4x8x8xf32>
    "tpu.trace_stop"() : () -> ()
    %152 = vector.shape_cast %151 : vector<4x8x8xf32> to vector<1x4x8x8xf32>
    %153 = vector.extract_strided_slice %152 {offsets = [0, 0, 0, 0], sizes = [1, 1, 8, 8], strides = [1, 1, 1, 1]} : vector<1x4x8x8xf32> to vector<1x1x8x8xf32>
    %154 = vector.shape_cast %153 : vector<1x1x8x8xf32> to vector<1x8x8xf32>
    %155 = vector.shape_cast %154 : vector<1x8x8xf32> to vector<8x8xf32>
    %156 = vector.extract_strided_slice %7 {offsets = [0, 0], sizes = [8, 32], strides = [1, 1]} : vector<32x32xf32> to vector<8x32xf32>
    %cst_49 = arith.constant dense<0.000000e+00> : vector<8x32xf32>
    %157 = tpu.matmul %155, %156, %cst_49 {dimension_numbers = #tpu.dot_dimension_numbers<[1], [0], [0], [1], [0, 0, 1, 1], [], []>} : vector<8x8xf32>, vector<8x32xf32>, vector<8x32xf32> -> vector<8x32xf32>
    %158 = vector.extract_strided_slice %152 {offsets = [0, 1, 0, 0], sizes = [1, 1, 8, 8], strides = [1, 1, 1, 1]} : vector<1x4x8x8xf32> to vector<1x1x8x8xf32>
    %159 = vector.shape_cast %158 : vector<1x1x8x8xf32> to vector<1x8x8xf32>
    %160 = vector.shape_cast %159 : vector<1x8x8xf32> to vector<8x8xf32>
    %161 = vector.extract_strided_slice %7 {offsets = [8, 0], sizes = [8, 32], strides = [1, 1]} : vector<32x32xf32> to vector<8x32xf32>
    %cst_50 = arith.constant dense<0.000000e+00> : vector<8x32xf32>
    %162 = tpu.matmul %160, %161, %cst_50 {dimension_numbers = #tpu.dot_dimension_numbers<[1], [0], [0], [1], [0, 0, 1, 1], [], []>} : vector<8x8xf32>, vector<8x32xf32>, vector<8x32xf32> -> vector<8x32xf32>
    %163 = arith.addf %157, %162 : vector<8x32xf32>
    %164 = vector.extract_strided_slice %152 {offsets = [0, 2, 0, 0], sizes = [1, 1, 8, 8], strides = [1, 1, 1, 1]} : vector<1x4x8x8xf32> to vector<1x1x8x8xf32>
    %165 = vector.shape_cast %164 : vector<1x1x8x8xf32> to vector<1x8x8xf32>
    %166 = vector.shape_cast %165 : vector<1x8x8xf32> to vector<8x8xf32>
    %167 = vector.extract_strided_slice %7 {offsets = [16, 0], sizes = [8, 32], strides = [1, 1]} : vector<32x32xf32> to vector<8x32xf32>
    %cst_51 = arith.constant dense<0.000000e+00> : vector<8x32xf32>
    %168 = tpu.matmul %166, %167, %cst_51 {dimension_numbers = #tpu.dot_dimension_numbers<[1], [0], [0], [1], [0, 0, 1, 1], [], []>} : vector<8x8xf32>, vector<8x32xf32>, vector<8x32xf32> -> vector<8x32xf32>
    %169 = arith.addf %163, %168 : vector<8x32xf32>
    %170 = vector.extract_strided_slice %152 {offsets = [0, 3, 0, 0], sizes = [1, 1, 8, 8], strides = [1, 1, 1, 1]} : vector<1x4x8x8xf32> to vector<1x1x8x8xf32>
    %171 = vector.shape_cast %170 : vector<1x1x8x8xf32> to vector<1x8x8xf32>
    %172 = vector.shape_cast %171 : vector<1x8x8xf32> to vector<8x8xf32>
    %173 = vector.extract_strided_slice %7 {offsets = [24, 0], sizes = [8, 32], strides = [1, 1]} : vector<32x32xf32> to vector<8x32xf32>
    %cst_52 = arith.constant dense<0.000000e+00> : vector<8x32xf32>
    %174 = tpu.matmul %172, %173, %cst_52 {dimension_numbers = #tpu.dot_dimension_numbers<[1], [0], [0], [1], [0, 0, 1, 1], [], []>} : vector<8x8xf32>, vector<8x32xf32>, vector<8x32xf32> -> vector<8x32xf32>
    %175 = arith.addf %169, %174 : vector<8x32xf32>
    %176 = vector.broadcast %8 : vector<1x32xf32> to vector<8x32xf32>
    %177 = arith.addf %175, %176 : vector<8x32xf32>
    %cst_53 = arith.constant 0.000000e+00 : f32
    %178 = vector.broadcast %cst_53 : f32 to vector<8x32xf32>
    %179 = arith.maximumf %177, %178 : vector<8x32xf32>
    %180 = arith.addf %179, %106 : vector<8x32xf32>
    %cst_54 = arith.constant dense<0.000000e+00> : vector<8xf32>
    %181 = vector.multi_reduction <add>, %180, %cst_54 [1] : vector<8x32xf32> to vector<8xf32>
    %182 = vector.shape_cast %181 : vector<8xf32> to vector<8x1xf32>
    %cst_55 = arith.constant 3.200000e+01 : f32
    %183 = vector.broadcast %cst_55 : f32 to vector<8x1xf32>
    %184 = arith.divf %182, %183 : vector<8x1xf32>
    %185 = vector.broadcast %184 : vector<8x1xf32> to vector<8x32xf32>
    %186 = arith.subf %180, %185 : vector<8x32xf32>
    %187 = arith.mulf %186, %186 : vector<8x32xf32>
    %cst_56 = arith.constant dense<0.000000e+00> : vector<8xf32>
    %188 = vector.multi_reduction <add>, %187, %cst_56 [1] : vector<8x32xf32> to vector<8xf32>
    %189 = vector.shape_cast %188 : vector<8xf32> to vector<8x1xf32>
    %cst_57 = arith.constant 3.200000e+01 : f32
    %190 = vector.broadcast %cst_57 : f32 to vector<8x1xf32>
    %191 = arith.divf %189, %190 : vector<8x1xf32>
    %cst_58 = arith.constant 9.99999974E-6 : f32
    %192 = vector.broadcast %cst_58 : f32 to vector<8x1xf32>
    %193 = arith.addf %191, %192 : vector<8x1xf32>
    %194 = math.rsqrt %193 : vector<8x1xf32>
    %195 = vector.broadcast %194 : vector<8x1xf32> to vector<8x32xf32>
    %196 = arith.mulf %186, %195 : vector<8x32xf32>
    %197 = vector.broadcast %9 : vector<1x32xf32> to vector<8x32xf32>
    %198 = arith.mulf %196, %197 : vector<8x32xf32>
    %199 = vector.broadcast %10 : vector<1x32xf32> to vector<8x32xf32>
    %200 = arith.addf %198, %199 : vector<8x32xf32>
    %cst_59 = arith.constant dense<0.000000e+00> : vector<8x64xf32>
    %201 = tpu.matmul %200, %11, %cst_59 {dimension_numbers = #tpu.dot_dimension_numbers<[1], [0], [0], [1], [0, 0, 1, 1], [], []>} : vector<8x32xf32>, vector<32x64xf32>, vector<8x64xf32> -> vector<8x64xf32>
    %202 = vector.broadcast %12 : vector<1x64xf32> to vector<8x64xf32>
    %203 = arith.addf %201, %202 : vector<8x64xf32>
    %cst_60 = arith.constant 0.000000e+00 : f32
    %204 = vector.broadcast %cst_60 : f32 to vector<8x64xf32>
    %205 = arith.maximumf %203, %204 : vector<8x64xf32>
    %cst_61 = arith.constant dense<0.000000e+00> : vector<8x32xf32>
    %206 = tpu.matmul %205, %13, %cst_61 {dimension_numbers = #tpu.dot_dimension_numbers<[1], [0], [0], [1], [0, 0, 1, 1], [], []>} : vector<8x64xf32>, vector<64x32xf32>, vector<8x32xf32> -> vector<8x32xf32>
    %207 = vector.broadcast %14 : vector<1x32xf32> to vector<8x32xf32>
    %208 = arith.addf %206, %207 : vector<8x32xf32>
    %209 = arith.addf %208, %200 : vector<8x32xf32>
    %cst_62 = arith.constant dense<0.000000e+00> : vector<8xf32>
    %210 = vector.multi_reduction <add>, %209, %cst_62 [1] : vector<8x32xf32> to vector<8xf32>
    %211 = vector.shape_cast %210 : vector<8xf32> to vector<8x1xf32>
    %cst_63 = arith.constant 3.200000e+01 : f32
    %212 = vector.broadcast %cst_63 : f32 to vector<8x1xf32>
    %213 = arith.divf %211, %212 : vector<8x1xf32>
    %214 = vector.broadcast %213 : vector<8x1xf32> to vector<8x32xf32>
    %215 = arith.subf %209, %214 : vector<8x32xf32>
    %216 = arith.mulf %215, %215 : vector<8x32xf32>
    %cst_64 = arith.constant dense<0.000000e+00> : vector<8xf32>
    %217 = vector.multi_reduction <add>, %216, %cst_64 [1] : vector<8x32xf32> to vector<8xf32>
    %218 = vector.shape_cast %217 : vector<8xf32> to vector<8x1xf32>
    %cst_65 = arith.constant 3.200000e+01 : f32
    %219 = vector.broadcast %cst_65 : f32 to vector<8x1xf32>
    %220 = arith.divf %218, %219 : vector<8x1xf32>
    %cst_66 = arith.constant 9.99999974E-6 : f32
    %221 = vector.broadcast %cst_66 : f32 to vector<8x1xf32>
    %222 = arith.addf %220, %221 : vector<8x1xf32>
    %223 = math.rsqrt %222 : vector<8x1xf32>
    %224 = vector.broadcast %223 : vector<8x1xf32> to vector<8x32xf32>
    %225 = arith.mulf %215, %224 : vector<8x32xf32>
    %226 = vector.broadcast %9 : vector<1x32xf32> to vector<8x32xf32>
    %227 = arith.mulf %225, %226 : vector<8x32xf32>
    %228 = vector.broadcast %10 : vector<1x32xf32> to vector<8x32xf32>
    %229 = arith.addf %227, %228 : vector<8x32xf32>
    %230 = vector.shape_cast %229 : vector<8x32xf32> to vector<1x8x32xf32>
    %c0_67 = arith.constant 0 : index
    %c0_68 = arith.constant 0 : index
    %c0_69 = arith.constant 0 : index
    %231 = vector.load %arg14[%c0_67, %c0_68, %c0_69] : memref<1x8x32xf32, #tpu.memory_space<vmem>>, vector<1x8x32xf32>
    tpu.vector_store %arg14[%c0_67, %c0_68, %c0_69], %230 {strides = array<i32>} : memref<1x8x32xf32, #tpu.memory_space<vmem>>, vector<1x8x32xf32>,
    return
  }
  func.func @transform_0(%arg0: i32) -> (i32, i32, i32) {
    %c0_i32 = arith.constant 0 : i32
    %c0_i32_0 = arith.constant 0 : i32
    %c0_i32_1 = arith.constant 0 : i32
    return %arg0, %c0_i32, %c0_i32_0 : i32, i32, i32
  }
  func.func @transform_1(%arg0: i32) -> (i32, i32, i32) {
    %c0_i32 = arith.constant 0 : i32
    %c0_i32_0 = arith.constant 0 : i32
    %c0_i32_1 = arith.constant 0 : i32
    return %arg0, %c0_i32, %c0_i32_0 : i32, i32, i32
  }
  func.func @transform_2(%arg0: i32) -> (i32, i32) {
    %c0_i32 = arith.constant 0 : i32
    %c0_i32_0 = arith.constant 0 : i32
    %c0_i32_1 = arith.constant 0 : i32
    return %c0_i32, %c0_i32_0 : i32, i32
  }
  func.func @transform_3(%arg0: i32) -> (i32, i32) {
    %c0_i32 = arith.constant 0 : i32
    %c0_i32_0 = arith.constant 0 : i32
    %c0_i32_1 = arith.constant 0 : i32
    return %c0_i32, %c0_i32_0 : i32, i32
  }
  func.func @transform_4(%arg0: i32) -> (i32, i32) {
    %c0_i32 = arith.constant 0 : i32
    %c0_i32_0 = arith.constant 0 : i32
    %c0_i32_1 = arith.constant 0 : i32
    return %c0_i32, %c0_i32_0 : i32, i32
  }
  func.func @transform_5(%arg0: i32) -> (i32, i32) {
    %c0_i32 = arith.constant 0 : i32
    %c0_i32_0 = arith.constant 0 : i32
    %c0_i32_1 = arith.constant 0 : i32
    return %c0_i32, %c0_i32_0 : i32, i32
  }
  func.func @transform_6(%arg0: i32) -> (i32, i32) {
    %c0_i32 = arith.constant 0 : i32
    %c0_i32_0 = arith.constant 0 : i32
    %c0_i32_1 = arith.constant 0 : i32
    return %c0_i32, %c0_i32_0 : i32, i32
  }
  func.func @transform_7(%arg0: i32) -> (i32, i32) {
    %c0_i32 = arith.constant 0 : i32
    %c0_i32_0 = arith.constant 0 : i32
    %c0_i32_1 = arith.constant 0 : i32
    return %c0_i32, %c0_i32_0 : i32, i32
  }
  func.func @transform_8(%arg0: i32) -> (i32, i32) {
    %c0_i32 = arith.constant 0 : i32
    %c0_i32_0 = arith.constant 0 : i32
    %c0_i32_1 = arith.constant 0 : i32
    return %c0_i32, %c0_i32_0 : i32, i32
  }
  func.func @transform_9(%arg0: i32) -> (i32, i32) {
    %c0_i32 = arith.constant 0 : i32
    %c0_i32_0 = arith.constant 0 : i32
    %c0_i32_1 = arith.constant 0 : i32
    return %c0_i32, %c0_i32_0 : i32, i32
  }
  func.func @transform_10(%arg0: i32) -> (i32, i32) {
    %c0_i32 = arith.constant 0 : i32
    %c0_i32_0 = arith.constant 0 : i32
    %c0_i32_1 = arith.constant 0 : i32
    return %c0_i32, %c0_i32_0 : i32, i32
  }
  func.func @transform_11(%arg0: i32) -> (i32, i32) {
    %c0_i32 = arith.constant 0 : i32
    %c0_i32_0 = arith.constant 0 : i32
    %c0_i32_1 = arith.constant 0 : i32
    return %c0_i32, %c0_i32_0 : i32, i32
  }
  func.func @transform_12(%arg0: i32) -> (i32, i32) {
    %c0_i32 = arith.constant 0 : i32
    %c0_i32_0 = arith.constant 0 : i32
    %c0_i32_1 = arith.constant 0 : i32
    return %c0_i32, %c0_i32_0 : i32, i32
  }
  func.func @transform_13(%arg0: i32) -> (i32, i32, i32) {
    %c0_i32 = arith.constant 0 : i32
    %c0_i32_0 = arith.constant 0 : i32
    %c0_i32_1 = arith.constant 0 : i32
    return %arg0, %c0_i32, %c0_i32_0 : i32, i32, i32
  }
}

module attributes {stable_mosaic.version = 11 : i64} {
  func.func @_decoder_block_kernel(%arg0: i32, %arg1: memref<1x8x32xf32, #tpu.memory_space<vmem>>, %arg2: memref<1x8x32xf32, #tpu.memory_space<vmem>>, %arg3: memref<32x32xf32, #tpu.memory_space<vmem>>, %arg4: memref<32x32xf32, #tpu.memory_space<vmem>>, %arg5: memref<32x32xf32, #tpu.memory_space<vmem>>, %arg6: memref<32x32xf32, #tpu.memory_space<vmem>>, %arg7: memref<1x32xf32, #tpu.memory_space<vmem>>, %arg8: memref<1x32xf32, #tpu.memory_space<vmem>>, %arg9: memref<1x32xf32, #tpu.memory_space<vmem>>, %arg10: memref<32x64xf32, #tpu.memory_space<vmem>>, %arg11: memref<1x64xf32, #tpu.memory_space<vmem>>, %arg12: memref<64x32xf32, #tpu.memory_space<vmem>>, %arg13: memref<1x32xf32, #tpu.memory_space<vmem>>, %arg14: memref<1x8x32xf32, #tpu.memory_space<vmem>>) attributes {dimension_semantics = [#tpu.dimension_semantics<parallel>], iteration_bounds = array<i64: 2>, scalar_prefetch = 0 : i64, scratch_operands = 0 : i64, tpu.core_type = #tpu.core_type<tc>, window_params = [{transform_indices = @transform_0, window_bounds = array<i64: 1, 8, 32>}, {transform_indices = @transform_1, window_bounds = array<i64: 1, 8, 32>}, {pipeline_mode = #tpu.pipeline_mode<synchronous>, transform_indices = @transform_2, window_bounds = array<i64: 32, 32>}, {pipeline_mode = #tpu.pipeline_mode<synchronous>, transform_indices = @transform_3, window_bounds = array<i64: 32, 32>}, {pipeline_mode = #tpu.pipeline_mode<synchronous>, transform_indices = @transform_4, window_bounds = array<i64: 32, 32>}, {pipeline_mode = #tpu.pipeline_mode<synchronous>, transform_indices = @transform_5, window_bounds = array<i64: 32, 32>}, {pipeline_mode = #tpu.pipeline_mode<synchronous>, transform_indices = @transform_6, window_bounds = array<i64: 1, 32>}, {pipeline_mode = #tpu.pipeline_mode<synchronous>, transform_indices = @transform_7, window_bounds = array<i64: 1, 32>}, {pipeline_mode = #tpu.pipeline_mode<synchronous>, transform_indices = @transform_8, window_bounds = array<i64: 1, 32>}, {pipeline_mode = #tpu.pipeline_mode<synchronous>, transform_indices = @transform_9, window_bounds = array<i64: 32, 64>}, {pipeline_mode = #tpu.pipeline_mode<synchronous>, transform_indices = @transform_10, window_bounds = array<i64: 1, 64>}, {pipeline_mode = #tpu.pipeline_mode<synchronous>, transform_indices = @transform_11, window_bounds = array<i64: 64, 32>}, {pipeline_mode = #tpu.pipeline_mode<synchronous>, transform_indices = @transform_12, window_bounds = array<i64: 1, 32>}, {transform_indices = @transform_13, window_bounds = array<i64: 1, 8, 32>}]} {
    %c0 = arith.constant 0 : index
    %c0_0 = arith.constant 0 : index
    %c0_1 = arith.constant 0 : index
    %0 = vector.load %arg1[%c0, %c0_0, %c0_1] : memref<1x8x32xf32, #tpu.memory_space<vmem>>, vector<1x8x32xf32>
    %1 = vector.shape_cast %0 : vector<1x8x32xf32> to vector<8x32xf32>
    %c0_2 = arith.constant 0 : index
    %c0_3 = arith.constant 0 : index
    %c0_4 = arith.constant 0 : index
    %2 = vector.load %arg2[%c0_2, %c0_3, %c0_4] : memref<1x8x32xf32, #tpu.memory_space<vmem>>, vector<1x8x32xf32>
    %3 = vector.shape_cast %2 : vector<1x8x32xf32> to vector<8x32xf32>
    %c0_5 = arith.constant 0 : index
    %c0_6 = arith.constant 0 : index
    %4 = vector.load %arg3[%c0_5, %c0_6] : memref<32x32xf32, #tpu.memory_space<vmem>>, vector<32x32xf32>
    %c0_7 = arith.constant 0 : index
    %c0_8 = arith.constant 0 : index
    %5 = vector.load %arg4[%c0_7, %c0_8] : memref<32x32xf32, #tpu.memory_space<vmem>>, vector<32x32xf32>
    %c0_9 = arith.constant 0 : index
    %c0_10 = arith.constant 0 : index
    %6 = vector.load %arg5[%c0_9, %c0_10] : memref<32x32xf32, #tpu.memory_space<vmem>>, vector<32x32xf32>
    %c0_11 = arith.constant 0 : index
    %c0_12 = arith.constant 0 : index
    %7 = vector.load %arg6[%c0_11, %c0_12] : memref<32x32xf32, #tpu.memory_space<vmem>>, vector<32x32xf32>
    %c0_13 = arith.constant 0 : index
    %c0_14 = arith.constant 0 : index
    %8 = vector.load %arg7[%c0_13, %c0_14] : memref<1x32xf32, #tpu.memory_space<vmem>>, vector<1x32xf32>
    %c0_15 = arith.constant 0 : index
    %c0_16 = arith.constant 0 : index
    %9 = vector.load %arg8[%c0_15, %c0_16] : memref<1x32xf32, #tpu.memory_space<vmem>>, vector<1x32xf32>
    %c0_17 = arith.constant 0 : index
    %c0_18 = arith.constant 0 : index
    %10 = vector.load %arg9[%c0_17, %c0_18] : memref<1x32xf32, #tpu.memory_space<vmem>>, vector<1x32xf32>
    %c0_19 = arith.constant 0 : index
    %c0_20 = arith.constant 0 : index
    %11 = vector.load %arg10[%c0_19, %c0_20] : memref<32x64xf32, #tpu.memory_space<vmem>>, vector<32x64xf32>
    %c0_21 = arith.constant 0 : index
    %c0_22 = arith.constant 0 : index
    %12 = vector.load %arg11[%c0_21, %c0_22] : memref<1x64xf32, #tpu.memory_space<vmem>>, vector<1x64xf32>
    %c0_23 = arith.constant 0 : index
    %c0_24 = arith.constant 0 : index
    %13 = vector.load %arg12[%c0_23, %c0_24] : memref<64x32xf32, #tpu.memory_space<vmem>>, vector<64x32xf32>
    %c0_25 = arith.constant 0 : index
    %c0_26 = arith.constant 0 : index
    %14 = vector.load %arg13[%c0_25, %c0_26] : memref<1x32xf32, #tpu.memory_space<vmem>>, vector<1x32xf32>
    %cst = arith.constant dense<0.000000e+00> : vector<8x32xf32>
    %15 = tpu.matmul %1, %4, %cst {dimension_numbers = #tpu.dot_dimension_numbers<[1], [0], [0], [1], [0, 0, 1, 1], [], []>} : vector<8x32xf32>, vector<32x32xf32>, vector<8x32xf32> -> vector<8x32xf32>
    %16 = vector.extract_strided_slice %15 {offsets = [0, 0], sizes = [8, 8], strides = [1, 1]} : vector<8x32xf32> to vector<8x8xf32>
    %17 = vector.shape_cast %16 : vector<8x8xf32> to vector<1x1x8x8xf32>
    %18 = vector.extract_strided_slice %15 {offsets = [0, 8], sizes = [8, 8], strides = [1, 1]} : vector<8x32xf32> to vector<8x8xf32>
    %19 = vector.shape_cast %18 : vector<8x8xf32> to vector<1x1x8x8xf32>
    %20 = vector.extract_strided_slice %15 {offsets = [0, 16], sizes = [8, 8], strides = [1, 1]} : vector<8x32xf32> to vector<8x8xf32>
    %21 = vector.shape_cast %20 : vector<8x8xf32> to vector<1x1x8x8xf32>
    %22 = vector.extract_strided_slice %15 {offsets = [0, 24], sizes = [8, 8], strides = [1, 1]} : vector<8x32xf32> to vector<8x8xf32>
    %23 = vector.shape_cast %22 : vector<8x8xf32> to vector<1x1x8x8xf32>
    %24 = tpu.concatenate %17, %19, %21, %23 in 1 : vector<1x1x8x8xf32>, vector<1x1x8x8xf32>, vector<1x1x8x8xf32>, vector<1x1x8x8xf32> -> vector<1x4x8x8xf32>
    %25 = vector.shape_cast %24 : vector<1x4x8x8xf32> to vector<4x8x8xf32>
    %cst_27 = arith.constant dense<0.000000e+00> : vector<8x32xf32>
    %26 = tpu.matmul %1, %5, %cst_27 {dimension_numbers = #tpu.dot_dimension_numbers<[1], [0], [0], [1], [0, 0, 1, 1], [], []>} : vector<8x32xf32>, vector<32x32xf32>, vector<8x32xf32> -> vector<8x32xf32>
    %27 = vector.extract_strided_slice %26 {offsets = [0, 0], sizes = [8, 8], strides = [1, 1]} : vector<8x32xf32> to vector<8x8xf32>
    %28 = vector.shape_cast %27 : vector<8x8xf32> to vector<1x1x8x8xf32>
    %29 = vector.extract_strided_slice %26 {offsets = [0, 8], sizes = [8, 8], strides = [1, 1]} : vector<8x32xf32> to vector<8x8xf32>
    %30 = vector.shape_cast %29 : vector<8x8xf32> to vector<1x1x8x8xf32>
    %31 = vector.extract_strided_slice %26 {offsets = [0, 16], sizes = [8, 8], strides = [1, 1]} : vector<8x32xf32> to vector<8x8xf32>
    %32 = vector.shape_cast %31 : vector<8x8xf32> to vector<1x1x8x8xf32>
    %33 = vector.extract_strided_slice %26 {offsets = [0, 24], sizes = [8, 8], strides = [1, 1]} : vector<8x32xf32> to vector<8x8xf32>
    %34 = vector.shape_cast %33 : vector<8x8xf32> to vector<1x1x8x8xf32>
    %35 = tpu.concatenate %28, %30, %32, %34 in 1 : vector<1x1x8x8xf32>, vector<1x1x8x8xf32>, vector<1x1x8x8xf32>, vector<1x1x8x8xf32> -> vector<1x4x8x8xf32>
    %36 = vector.shape_cast %35 : vector<1x4x8x8xf32> to vector<4x8x8xf32>
    %cst_28 = arith.constant dense<0.000000e+00> : vector<8x32xf32>
    %37 = tpu.matmul %1, %6, %cst_28 {dimension_numbers = #tpu.dot_dimension_numbers<[1], [0], [0], [1], [0, 0, 1, 1], [], []>} : vector<8x32xf32>, vector<32x32xf32>, vector<8x32xf32> -> vector<8x32xf32>
    %38 = vector.extract_strided_slice %37 {offsets = [0, 0], sizes = [8, 8], strides = [1, 1]} : vector<8x32xf32> to vector<8x8xf32>
    %39 = vector.shape_cast %38 : vector<8x8xf32> to vector<1x1x8x8xf32>
    %40 = vector.extract_strided_slice %37 {offsets = [0, 8], sizes = [8, 8], strides = [1, 1]} : vector<8x32xf32> to vector<8x8xf32>
    %41 = vector.shape_cast %40 : vector<8x8xf32> to vector<1x1x8x8xf32>
    %42 = vector.extract_strided_slice %37 {offsets = [0, 16], sizes = [8, 8], strides = [1, 1]} : vector<8x32xf32> to vector<8x8xf32>
    %43 = vector.shape_cast %42 : vector<8x8xf32> to vector<1x1x8x8xf32>
    %44 = vector.extract_strided_slice %37 {offsets = [0, 24], sizes = [8, 8], strides = [1, 1]} : vector<8x32xf32> to vector<8x8xf32>
    %45 = vector.shape_cast %44 : vector<8x8xf32> to vector<1x1x8x8xf32>
    %46 = tpu.concatenate %39, %41, %43, %45 in 1 : vector<1x1x8x8xf32>, vector<1x1x8x8xf32>, vector<1x1x8x8xf32>, vector<1x1x8x8xf32> -> vector<1x4x8x8xf32>
    %47 = vector.shape_cast %46 : vector<1x4x8x8xf32> to vector<4x8x8xf32>
    "tpu.trace_start"() <{level = 10 : i32, message = "glk,gmk->glm"}> : () -> ()
    %cst_29 = arith.constant dense<0.000000e+00> : vector<4x8x8xf32>
    %48 = tpu.matmul %25, %36, %cst_29 {dimension_numbers = #tpu.dot_dimension_numbers<[2], [2], [1], [1], [0, 0, 0, 1, 1, 1], [0], [0]>} : vector<4x8x8xf32>, vector<4x8x8xf32>, vector<4x8x8xf32> -> vector<4x8x8xf32>
    "tpu.trace_stop"() : () -> ()
    %cst_30 = arith.constant dense<0xFF800000> : vector<4x8xf32>
    %49 = vector.multi_reduction <maximumf>, %48, %cst_30 [2] : vector<4x8x8xf32> to vector<4x8xf32>
    %50 = vector.shape_cast %49 : vector<4x8xf32> to vector<4x8x1xf32>
    %51 = vector.broadcast %50 : vector<4x8x1xf32> to vector<4x8x8xf32>
    %52 = arith.subf %48, %51 : vector<4x8x8xf32>
    %53 = math.exp %52 : vector<4x8x8xf32>
    %cst_31 = arith.constant dense<0.000000e+00> : vector<4x8xf32>
    %54 = vector.multi_reduction <add>, %53, %cst_31 [2] : vector<4x8x8xf32> to vector<4x8xf32>
    %55 = vector.shape_cast %54 : vector<4x8xf32> to vector<4x8x1xf32>
    %56 = tpu.reciprocal %55 : vector<4x8x1xf32> -> vector<4x8x1xf32>
    %57 = vector.broadcast %56 : vector<4x8x1xf32> to vector<4x8x8xf32>
    %58 = arith.mulf %53, %57 : vector<4x8x8xf32>
    "tpu.trace_start"() <{level = 10 : i32, message = "glm,gmk->glk"}> : () -> ()
    %cst_32 = arith.constant dense<0.000000e+00> : vector<4x8x8xf32>
    %59 = tpu.matmul %58, %47, %cst_32 {dimension_numbers = #tpu.dot_dimension_numbers<[2], [1], [1], [2], [0, 0, 0, 1, 1, 2], [0], [0]>} : vector<4x8x8xf32>, vector<4x8x8xf32>, vector<4x8x8xf32> -> vector<4x8x8xf32>
    "tpu.trace_stop"() : () -> ()
    %60 = vector.shape_cast %59 : vector<4x8x8xf32> to vector<1x4x8x8xf32>
    %61 = vector.extract_strided_slice %60 {offsets = [0, 0, 0, 0], sizes = [1, 1, 8, 8], strides = [1, 1, 1, 1]} : vector<1x4x8x8xf32> to vector<1x1x8x8xf32>
    %62 = vector.shape_cast %61 : vector<1x1x8x8xf32> to vector<1x8x8xf32>
    %63 = vector.shape_cast %62 : vector<1x8x8xf32> to vector<8x8xf32>
    %64 = vector.extract_strided_slice %7 {offsets = [0, 0], sizes = [8, 32], strides = [1, 1]} : vector<32x32xf32> to vector<8x32xf32>
    %cst_33 = arith.constant dense<0.000000e+00> : vector<8x32xf32>
    %65 = tpu.matmul %63, %64, %cst_33 {dimension_numbers = #tpu.dot_dimension_numbers<[1], [0], [0], [1], [0, 0, 1, 1], [], []>} : vector<8x8xf32>, vector<8x32xf32>, vector<8x32xf32> -> vector<8x32xf32>
    %66 = vector.extract_strided_slice %60 {offsets = [0, 1, 0, 0], sizes = [1, 1, 8, 8], strides = [1, 1, 1, 1]} : vector<1x4x8x8xf32> to vector<1x1x8x8xf32>
    %67 = vector.shape_cast %66 : vector<1x1x8x8xf32> to vector<1x8x8xf32>
    %68 = vector.shape_cast %67 : vector<1x8x8xf32> to vector<8x8xf32>
    %69 = vector.extract_strided_slice %7 {offsets = [8, 0], sizes = [8, 32], strides = [1, 1]} : vector<32x32xf32> to vector<8x32xf32>
    %cst_34 = arith.constant dense<0.000000e+00> : vector<8x32xf32>
    %70 = tpu.matmul %68, %69, %cst_34 {dimension_numbers = #tpu.dot_dimension_numbers<[1], [0], [0], [1], [0, 0, 1, 1], [], []>} : vector<8x8xf32>, vector<8x32xf32>, vector<8x32xf32> -> vector<8x32xf32>
    %71 = arith.addf %65, %70 : vector<8x32xf32>
    %72 = vector.extract_strided_slice %60 {offsets = [0, 2, 0, 0], sizes = [1, 1, 8, 8], strides = [1, 1, 1, 1]} : vector<1x4x8x8xf32> to vector<1x1x8x8xf32>
    %73 = vector.shape_cast %72 : vector<1x1x8x8xf32> to vector<1x8x8xf32>
    %74 = vector.shape_cast %73 : vector<1x8x8xf32> to vector<8x8xf32>
    %75 = vector.extract_strided_slice %7 {offsets = [16, 0], sizes = [8, 32], strides = [1, 1]} : vector<32x32xf32> to vector<8x32xf32>
    %cst_35 = arith.constant dense<0.000000e+00> : vector<8x32xf32>
    %76 = tpu.matmul %74, %75, %cst_35 {dimension_numbers = #tpu.dot_dimension_numbers<[1], [0], [0], [1], [0, 0, 1, 1], [], []>} : vector<8x8xf32>, vector<8x32xf32>, vector<8x32xf32> -> vector<8x32xf32>
    %77 = arith.addf %71, %76 : vector<8x32xf32>
    %78 = vector.extract_strided_slice %60 {offsets = [0, 3, 0, 0], sizes = [1, 1, 8, 8], strides = [1, 1, 1, 1]} : vector<1x4x8x8xf32> to vector<1x1x8x8xf32>
    %79 = vector.shape_cast %78 : vector<1x1x8x8xf32> to vector<1x8x8xf32>
    %80 = vector.shape_cast %79 : vector<1x8x8xf32> to vector<8x8xf32>
    %81 = vector.extract_strided_slice %7 {offsets = [24, 0], sizes = [8, 32], strides = [1, 1]} : vector<32x32xf32> to vector<8x32xf32>
    %cst_36 = arith.constant dense<0.000000e+00> : vector<8x32xf32>
    %82 = tpu.matmul %80, %81, %cst_36 {dimension_numbers = #tpu.dot_dimension_numbers<[1], [0], [0], [1], [0, 0, 1, 1], [], []>} : vector<8x8xf32>, vector<8x32xf32>, vector<8x32xf32> -> vector<8x32xf32>
    %83 = arith.addf %77, %82 : vector<8x32xf32>
    %84 = vector.broadcast %8 : vector<1x32xf32> to vector<8x32xf32>
    %85 = arith.addf %83, %84 : vector<8x32xf32>
    %86 = arith.addf %85, %1 : vector<8x32xf32>
    %cst_37 = arith.constant dense<0.000000e+00> : vector<8xf32>
    %87 = vector.multi_reduction <add>, %86, %cst_37 [1] : vector<8x32xf32> to vector<8xf32>
    %88 = vector.shape_cast %87 : vector<8xf32> to vector<8x1xf32>
    %cst_38 = arith.constant 3.200000e+01 : f32
    %89 = vector.broadcast %cst_38 : f32 to vector<8x1xf32>
    %90 = arith.divf %88, %89 : vector<8x1xf32>
    %91 = vector.broadcast %90 : vector<8x1xf32> to vector<8x32xf32>
    %92 = arith.subf %86, %91 : vector<8x32xf32>
    %93 = arith.mulf %92, %92 : vector<8x32xf32>
    %cst_39 = arith.constant dense<0.000000e+00> : vector<8xf32>
    %94 = vector.multi_reduction <add>, %93, %cst_39 [1] : vector<8x32xf32> to vector<8xf32>
    %95 = vector.shape_cast %94 : vector<8xf32> to vector<8x1xf32>
    %cst_40 = arith.constant 3.200000e+01 : f32
    %96 = vector.broadcast %cst_40 : f32 to vector<8x1xf32>
    %97 = arith.divf %95, %96 : vector<8x1xf32>
    %cst_41 = arith.constant 9.99999974E-6 : f32
    %98 = vector.broadcast %cst_41 : f32 to vector<8x1xf32>
    %99 = arith.addf %97, %98 : vector<8x1xf32>
    %100 = math.rsqrt %99 : vector<8x1xf32>
    %101 = vector.broadcast %100 : vector<8x1xf32> to vector<8x32xf32>
    %102 = arith.mulf %92, %101 : vector<8x32xf32>
    %103 = vector.broadcast %9 : vector<1x32xf32> to vector<8x32xf32>
    %104 = arith.mulf %102, %103 : vector<8x32xf32>
    %105 = vector.broadcast %10 : vector<1x32xf32> to vector<8x32xf32>
    %106 = arith.addf %104, %105 : vector<8x32xf32>
    %cst_42 = arith.constant dense<0.000000e+00> : vector<8x32xf32>
    %107 = tpu.matmul %106, %4, %cst_42 {dimension_numbers = #tpu.dot_dimension_numbers<[1], [0], [0], [1], [0, 0, 1, 1], [], []>} : vector<8x32xf32>, vector<32x32xf32>, vector<8x32xf32> -> vector<8x32xf32>
    %108 = vector.extract_strided_slice %107 {offsets = [0, 0], sizes = [8, 8], strides = [1, 1]} : vector<8x32xf32> to vector<8x8xf32>
    %109 = vector.shape_cast %108 : vector<8x8xf32> to vector<1x1x8x8xf32>
    %110 = vector.extract_strided_slice %107 {offsets = [0, 8], sizes = [8, 8], strides = [1, 1]} : vector<8x32xf32> to vector<8x8xf32>
    %111 = vector.shape_cast %110 : vector<8x8xf32> to vector<1x1x8x8xf32>
    %112 = vector.extract_strided_slice %107 {offsets = [0, 16], sizes = [8, 8], strides = [1, 1]} : vector<8x32xf32> to vector<8x8xf32>
    %113 = vector.shape_cast %112 : vector<8x8xf32> to vector<1x1x8x8xf32>
    %114 = vector.extract_strided_slice %107 {offsets = [0, 24], sizes = [8, 8], strides = [1, 1]} : vector<8x32xf32> to vector<8x8xf32>
    %115 = vector.shape_cast %114 : vector<8x8xf32> to vector<1x1x8x8xf32>
    %116 = tpu.concatenate %109, %111, %113, %115 in 1 : vector<1x1x8x8xf32>, vector<1x1x8x8xf32>, vector<1x1x8x8xf32>, vector<1x1x8x8xf32> -> vector<1x4x8x8xf32>
    %117 = vector.shape_cast %116 : vector<1x4x8x8xf32> to vector<4x8x8xf32>
    %cst_43 = arith.constant dense<0.000000e+00> : vector<8x32xf32>
    %118 = tpu.matmul %3, %5, %cst_43 {dimension_numbers = #tpu.dot_dimension_numbers<[1], [0], [0], [1], [0, 0, 1, 1], [], []>} : vector<8x32xf32>, vector<32x32xf32>, vector<8x32xf32> -> vector<8x32xf32>
    %119 = vector.extract_strided_slice %118 {offsets = [0, 0], sizes = [8, 8], strides = [1, 1]} : vector<8x32xf32> to vector<8x8xf32>
    %120 = vector.shape_cast %119 : vector<8x8xf32> to vector<1x1x8x8xf32>
    %121 = vector.extract_strided_slice %118 {offsets = [0, 8], sizes = [8, 8], strides = [1, 1]} : vector<8x32xf32> to vector<8x8xf32>
    %122 = vector.shape_cast %121 : vector<8x8xf32> to vector<1x1x8x8xf32>
    %123 = vector.extract_strided_slice %118 {offsets = [0, 16], sizes = [8, 8], strides = [1, 1]} : vector<8x32xf32> to vector<8x8xf32>
    %124 = vector.shape_cast %123 : vector<8x8xf32> to vector<1x1x8x8xf32>
    %125 = vector.extract_strided_slice %118 {offsets = [0, 24], sizes = [8, 8], strides = [1, 1]} : vector<8x32xf32> to vector<8x8xf32>
    %126 = vector.shape_cast %125 : vector<8x8xf32> to vector<1x1x8x8xf32>
    %127 = tpu.concatenate %120, %122, %124, %126 in 1 : vector<1x1x8x8xf32>, vector<1x1x8x8xf32>, vector<1x1x8x8xf32>, vector<1x1x8x8xf32> -> vector<1x4x8x8xf32>
    %128 = vector.shape_cast %127 : vector<1x4x8x8xf32> to vector<4x8x8xf32>
    %cst_44 = arith.constant dense<0.000000e+00> : vector<8x32xf32>
    %129 = tpu.matmul %3, %6, %cst_44 {dimension_numbers = #tpu.dot_dimension_numbers<[1], [0], [0], [1], [0, 0, 1, 1], [], []>} : vector<8x32xf32>, vector<32x32xf32>, vector<8x32xf32> -> vector<8x32xf32>
    %130 = vector.extract_strided_slice %129 {offsets = [0, 0], sizes = [8, 8], strides = [1, 1]} : vector<8x32xf32> to vector<8x8xf32>
    %131 = vector.shape_cast %130 : vector<8x8xf32> to vector<1x1x8x8xf32>
    %132 = vector.extract_strided_slice %129 {offsets = [0, 8], sizes = [8, 8], strides = [1, 1]} : vector<8x32xf32> to vector<8x8xf32>
    %133 = vector.shape_cast %132 : vector<8x8xf32> to vector<1x1x8x8xf32>
    %134 = vector.extract_strided_slice %129 {offsets = [0, 16], sizes = [8, 8], strides = [1, 1]} : vector<8x32xf32> to vector<8x8xf32>
    %135 = vector.shape_cast %134 : vector<8x8xf32> to vector<1x1x8x8xf32>
    %136 = vector.extract_strided_slice %129 {offsets = [0, 24], sizes = [8, 8], strides = [1, 1]} : vector<8x32xf32> to vector<8x8xf32>
    %137 = vector.shape_cast %136 : vector<8x8xf32> to vector<1x1x8x8xf32>
    %138 = tpu.concatenate %131, %133, %135, %137 in 1 : vector<1x1x8x8xf32>, vector<1x1x8x8xf32>, vector<1x1x8x8xf32>, vector<1x1x8x8xf32> -> vector<1x4x8x8xf32>
    %139 = vector.shape_cast %138 : vector<1x4x8x8xf32> to vector<4x8x8xf32>
    "tpu.trace_start"() <{level = 10 : i32, message = "glk,gmk->glm"}> : () -> ()
    %cst_45 = arith.constant dense<0.000000e+00> : vector<4x8x8xf32>
    %140 = tpu.matmul %117, %128, %cst_45 {dimension_numbers = #tpu.dot_dimension_numbers<[2], [2], [1], [1], [0, 0, 0, 1, 1, 1], [0], [0]>} : vector<4x8x8xf32>, vector<4x8x8xf32>, vector<4x8x8xf32> -> vector<4x8x8xf32>
    "tpu.trace_stop"() : () -> ()
    %cst_46 = arith.constant dense<0xFF800000> : vector<4x8xf32>
    %141 = vector.multi_reduction <maximumf>, %140, %cst_46 [2] : vector<4x8x8xf32> to vector<4x8xf32>
    %142 = vector.shape_cast %141 : vector<4x8xf32> to vector<4x8x1xf32>
    %143 = vector.broadcast %142 : vector<4x8x1xf32> to vector<4x8x8xf32>
    %144 = arith.subf %140, %143 : vector<4x8x8xf32>
    %145 = math.exp %144 : vector<4x8x8xf32>
    %cst_47 = arith.constant dense<0.000000e+00> : vector<4x8xf32>
    %146 = vector.multi_reduction <add>, %145, %cst_47 [2] : vector<4x8x8xf32> to vector<4x8xf32>
    %147 = vector.shape_cast %146 : vector<4x8xf32> to vector<4x8x1xf32>
    %148 = tpu.reciprocal %147 : vector<4x8x1xf32> -> vector<4x8x1xf32>
    %149 = vector.broadcast %148 : vector<4x8x1xf32> to vector<4x8x8xf32>
    %150 = arith.mulf %145, %149 : vector<4x8x8xf32>
    "tpu.trace_start"() <{level = 10 : i32, message = "glm,gmk->glk"}> : () -> ()
    %cst_48 = arith.constant dense<0.000000e+00> : vector<4x8x8xf32>
    %151 = tpu.matmul %150, %139, %cst_48 {dimension_numbers = #tpu.dot_dimension_numbers<[2], [1], [1], [2], [0, 0, 0, 1, 1, 2], [0], [0]>} : vector<4x8x8xf32>, vector<4x8x8xf32>, vector<4x8x8xf32> -> vector<4x8x8xf32>
    "tpu.trace_stop"() : () -> ()
    %152 = vector.shape_cast %151 : vector<4x8x8xf32> to vector<1x4x8x8xf32>
    %153 = vector.extract_strided_slice %152 {offsets = [0, 0, 0, 0], sizes = [1, 1, 8, 8], strides = [1, 1, 1, 1]} : vector<1x4x8x8xf32> to vector<1x1x8x8xf32>
    %154 = vector.shape_cast %153 : vector<1x1x8x8xf32> to vector<1x8x8xf32>
    %155 = vector.shape_cast %154 : vector<1x8x8xf32> to vector<8x8xf32>
    %156 = vector.extract_strided_slice %7 {offsets = [0, 0], sizes = [8, 32], strides = [1, 1]} : vector<32x32xf32> to vector<8x32xf32>
    %cst_49 = arith.constant dense<0.000000e+00> : vector<8x32xf32>
    %157 = tpu.matmul %155, %156, %cst_49 {dimension_numbers = #tpu.dot_dimension_numbers<[1], [0], [0], [1], [0, 0, 1, 1], [], []>} : vector<8x8xf32>, vector<8x32xf32>, vector<8x32xf32> -> vector<8x32xf32>
    %158 = vector.extract_strided_slice %152 {offsets = [0, 1, 0, 0], sizes = [1, 1, 8, 8], strides = [1, 1, 1, 1]} : vector<1x4x8x8xf32> to vector<1x1x8x8xf32>
    %159 = vector.shape_cast %158 : vector<1x1x8x8xf32> to vector<1x8x8xf32>
    %160 = vector.shape_cast %159 : vector<1x8x8xf32> to vector<8x8xf32>
    %161 = vector.extract_strided_slice %7 {offsets = [8, 0], sizes = [8, 32], strides = [1, 1]} : vector<32x32xf32> to vector<8x32xf32>
    %cst_50 = arith.constant dense<0.000000e+00> : vector<8x32xf32>
    %162 = tpu.matmul %160, %161, %cst_50 {dimension_numbers = #tpu.dot_dimension_numbers<[1], [0], [0], [1], [0, 0, 1, 1], [], []>} : vector<8x8xf32>, vector<8x32xf32>, vector<8x32xf32> -> vector<8x32xf32>
    %163 = arith.addf %157, %162 : vector<8x32xf32>
    %164 = vector.extract_strided_slice %152 {offsets = [0, 2, 0, 0], sizes = [1, 1, 8, 8], strides = [1, 1, 1, 1]} : vector<1x4x8x8xf32> to vector<1x1x8x8xf32>
    %165 = vector.shape_cast %164 : vector<1x1x8x8xf32> to vector<1x8x8xf32>
    %166 = vector.shape_cast %165 : vector<1x8x8xf32> to vector<8x8xf32>
    %167 = vector.extract_strided_slice %7 {offsets = [16, 0], sizes = [8, 32], strides = [1, 1]} : vector<32x32xf32> to vector<8x32xf32>
    %cst_51 = arith.constant dense<0.000000e+00> : vector<8x32xf32>
    %168 = tpu.matmul %166, %167, %cst_51 {dimension_numbers = #tpu.dot_dimension_numbers<[1], [0], [0], [1], [0, 0, 1, 1], [], []>} : vector<8x8xf32>, vector<8x32xf32>, vector<8x32xf32> -> vector<8x32xf32>
    %169 = arith.addf %163, %168 : vector<8x32xf32>
    %170 = vector.extract_strided_slice %152 {offsets = [0, 3, 0, 0], sizes = [1, 1, 8, 8], strides = [1, 1, 1, 1]} : vector<1x4x8x8xf32> to vector<1x1x8x8xf32>
    %171 = vector.shape_cast %170 : vector<1x1x8x8xf32> to vector<1x8x8xf32>
    %172 = vector.shape_cast %171 : vector<1x8x8xf32> to vector<8x8xf32>
    %173 = vector.extract_strided_slice %7 {offsets = [24, 0], sizes = [8, 32], strides = [1, 1]} : vector<32x32xf32> to vector<8x32xf32>
    %cst_52 = arith.constant dense<0.000000e+00> : vector<8x32xf32>
    %174 = tpu.matmul %172, %173, %cst_52 {dimension_numbers = #tpu.dot_dimension_numbers<[1], [0], [0], [1], [0, 0, 1, 1], [], []>} : vector<8x8xf32>, vector<8x32xf32>, vector<8x32xf32> -> vector<8x32xf32>
    %175 = arith.addf %169, %174 : vector<8x32xf32>
    %176 = vector.broadcast %8 : vector<1x32xf32> to vector<8x32xf32>
    %177 = arith.addf %175, %176 : vector<8x32xf32>
    %cst_53 = arith.constant 0.000000e+00 : f32
    %178 = vector.broadcast %cst_53 : f32 to vector<8x32xf32>
    %179 = arith.maximumf %177, %178 : vector<8x32xf32>
    %180 = arith.addf %179, %106 : vector<8x32xf32>
    %cst_54 = arith.constant dense<0.000000e+00> : vector<8xf32>
    %181 = vector.multi_reduction <add>, %180, %cst_54 [1] : vector<8x32xf32> to vector<8xf32>
    %182 = vector.shape_cast %181 : vector<8xf32> to vector<8x1xf32>
    %cst_55 = arith.constant 3.200000e+01 : f32
    %183 = vector.broadcast %cst_55 : f32 to vector<8x1xf32>
    %184 = arith.divf %182, %183 : vector<8x1xf32>
    %185 = vector.broadcast %184 : vector<8x1xf32> to vector<8x32xf32>
    %186 = arith.subf %180, %185 : vector<8x32xf32>
    %187 = arith.mulf %186, %186 : vector<8x32xf32>
    %cst_56 = arith.constant dense<0.000000e+00> : vector<8xf32>
    %188 = vector.multi_reduction <add>, %187, %cst_56 [1] : vector<8x32xf32> to vector<8xf32>
    %189 = vector.shape_cast %188 : vector<8xf32> to vector<8x1xf32>
    %cst_57 = arith.constant 3.200000e+01 : f32
    %190 = vector.broadcast %cst_57 : f32 to vector<8x1xf32>
    %191 = arith.divf %189, %190 : vector<8x1xf32>
    %cst_58 = arith.constant 9.99999974E-6 : f32
    %192 = vector.broadcast %cst_58 : f32 to vector<8x1xf32>
    %193 = arith.addf %191, %192 : vector<8x1xf32>
    %194 = math.rsqrt %193 : vector<8x1xf32>
    %195 = vector.broadcast %194 : vector<8x1xf32> to vector<8x32xf32>
    %196 = arith.mulf %186, %195 : vector<8x32xf32>
    %197 = vector.broadcast %9 : vector<1x32xf32> to vector<8x32xf32>
    %198 = arith.mulf %196, %197 : vector<8x32xf32>
    %199 = vector.broadcast %10 : vector<1x32xf32> to vector<8x32xf32>
    %200 = arith.addf %198, %199 : vector<8x32xf32>
    %cst_59 = arith.constant dense<0.000000e+00> : vector<8x64xf32>
    %201 = tpu.matmul %200, %11, %cst_59 {dimension_numbers = #tpu.dot_dimension_numbers<[1], [0], [0], [1], [0, 0, 1, 1], [], []>} : vector<8x32xf32>, vector<32x64xf32>, vector<8x64xf32> -> vector<8x64xf32>
    %202 = vector.broadcast %12 : vector<1x64xf32> to vector<8x64xf32>
    %203 = arith.addf %201, %202 : vector<8x64xf32>
    %cst_60 = arith.constant 0.000000e+00 : f32
    %204 = vector.broadcast %cst_60 : f32 to vector<8x64xf32>
    %205 = arith.maximumf %203, %204 : vector<8x64xf32>
    %cst_61 = arith.constant dense<0.000000e+00> : vector<8x32xf32>
    %206 = tpu.matmul %205, %13, %cst_61 {dimension_numbers = #tpu.dot_dimension_numbers<[1], [0], [0], [1], [0, 0, 1, 1], [], []>} : vector<8x64xf32>, vector<64x32xf32>, vector<8x32xf32> -> vector<8x32xf32>
    %207 = vector.broadcast %14 : vector<1x32xf32> to vector<8x32xf32>
    %208 = arith.addf %206, %207 : vector<8x32xf32>
    %209 = arith.addf %208, %200 : vector<8x32xf32>
    %cst_62 = arith.constant dense<0.000000e+00> : vector<8xf32>
    %210 = vector.multi_reduction <add>, %209, %cst_62 [1] : vector<8x32xf32> to vector<8xf32>
    %211 = vector.shape_cast %210 : vector<8xf32> to vector<8x1xf32>
    %cst_63 = arith.constant 3.200000e+01 : f32
    %212 = vector.broadcast %cst_63 : f32 to vector<8x1xf32>
    %213 = arith.divf %211, %212 : vector<8x1xf32>
    %214 = vector.broadcast %213 : vector<8x1xf32> to vector<8x32xf32>
    %215 = arith.subf %209, %214 : vector<8x32xf32>
    %216 = arith.mulf %215, %215 : vector<8x32xf32>
    %cst_64 = arith.constant dense<0.000000e+00> : vector<8xf32>
    %217 = vector.multi_reduction <add>, %216, %cst_64 [1] : vector<8x32xf32> to vector<8xf32>
    %218 = vector.shape_cast %217 : vector<8xf32> to vector<8x1xf32>
    %cst_65 = arith.constant 3.200000e+01 : f32
    %219 = vector.broadcast %cst_65 : f32 to vector<8x1xf32>
    %220 = arith.divf %218, %219 : vector<8x1xf32>
    %cst_66 = arith.constant 9.99999974E-6 : f32
    %221 = vector.broadcast %cst_66 : f32 to vector<8x1xf32>
    %222 = arith.addf %220, %221 : vector<8x1xf32>
    %223 = math.rsqrt %222 : vector<8x1xf32>
    %224 = vector.broadcast %223 : vector<8x1xf32> to vector<8x32xf32>
    %225 = arith.mulf %215, %224 : vector<8x32xf32>
    %226 = vector.broadcast %9 : vector<1x32xf32> to vector<8x32xf32>
    %227 = arith.mulf %225, %226 : vector<8x32xf32>
    %228 = vector.broadcast %10 : vector<1x32xf32> to vector<8x32xf32>
    %229 = arith.addf %227, %228 : vector<8x32xf32>
    %230 = vector.shape_cast %229 : vector<8x32xf32> to vector<1x8x32xf32>
    %c0_67 = arith.constant 0 : index
    %c0_68 = arith.constant 0 : index
    %c0_69 = arith.constant 0 : index
    %231 = vector.load %arg14[%c0_67, %c0_68, %c0_69] : memref<1x8x32xf32, #tpu.memory_space<vmem>>, vector<1x8x32xf32>
    tpu.vector_store %arg14[%c0_67, %c0_68, %c0_69], %230 {strides = array<i32>} : memref<1x8x32xf32, #tpu.memory_space<vmem>>, vector<1x8x32xf32>,
    return
  }
  func.func @transform_0(%arg0: i32) -> (i32, i32, i32) {
    %c0_i32 = arith.constant 0 : i32
    %c0_i32_0 = arith.constant 0 : i32
    %c0_i32_1 = arith.constant 0 : i32
    return %arg0, %c0_i32, %c0_i32_0 : i32, i32, i32
  }
  func.func @transform_1(%arg0: i32) -> (i32, i32, i32) {
    %c0_i32 = arith.constant 0 : i32
    %c0_i32_0 = arith.constant 0 : i32
    %c0_i32_1 = arith.constant 0 : i32
    return %arg0, %c0_i32, %c0_i32_0 : i32, i32, i32
  }
  func.func @transform_2(%arg0: i32) -> (i32, i32) {
    %c0_i32 = arith.constant 0 : i32
    %c0_i32_0 = arith.constant 0 : i32
    %c0_i32_1 = arith.constant 0 : i32
    return %c0_i32, %c0_i32_0 : i32, i32
  }
  func.func @transform_3(%arg0: i32) -> (i32, i32) {
    %c0_i32 = arith.constant 0 : i32
    %c0_i32_0 = arith.constant 0 : i32
    %c0_i32_1 = arith.constant 0 : i32
    return %c0_i32, %c0_i32_0 : i32, i32
  }
  func.func @transform_4(%arg0: i32) -> (i32, i32) {
    %c0_i32 = arith.constant 0 : i32
    %c0_i32_0 = arith.constant 0 : i32
    %c0_i32_1 = arith.constant 0 : i32
    return %c0_i32, %c0_i32_0 : i32, i32
  }
  func.func @transform_5(%arg0: i32) -> (i32, i32) {
    %c0_i32 = arith.constant 0 : i32
    %c0_i32_0 = arith.constant 0 : i32
    %c0_i32_1 = arith.constant 0 : i32
    return %c0_i32, %c0_i32_0 : i32, i32
  }
  func.func @transform_6(%arg0: i32) -> (i32, i32) {
    %c0_i32 = arith.constant 0 : i32
    %c0_i32_0 = arith.constant 0 : i32
    %c0_i32_1 = arith.constant 0 : i32
    return %c0_i32, %c0_i32_0 : i32, i32
  }
  func.func @transform_7(%arg0: i32) -> (i32, i32) {
    %c0_i32 = arith.constant 0 : i32
    %c0_i32_0 = arith.constant 0 : i32
    %c0_i32_1 = arith.constant 0 : i32
    return %c0_i32, %c0_i32_0 : i32, i32
  }
  func.func @transform_8(%arg0: i32) -> (i32, i32) {
    %c0_i32 = arith.constant 0 : i32
    %c0_i32_0 = arith.constant 0 : i32
    %c0_i32_1 = arith.constant 0 : i32
    return %c0_i32, %c0_i32_0 : i32, i32
  }
  func.func @transform_9(%arg0: i32) -> (i32, i32) {
    %c0_i32 = arith.constant 0 : i32
    %c0_i32_0 = arith.constant 0 : i32
    %c0_i32_1 = arith.constant 0 : i32
    return %c0_i32, %c0_i32_0 : i32, i32
  }
  func.func @transform_10(%arg0: i32) -> (i32, i32) {
    %c0_i32 = arith.constant 0 : i32
    %c0_i32_0 = arith.constant 0 : i32
    %c0_i32_1 = arith.constant 0 : i32
    return %c0_i32, %c0_i32_0 : i32, i32
  }
  func.func @transform_11(%arg0: i32) -> (i32, i32) {
    %c0_i32 = arith.constant 0 : i32
    %c0_i32_0 = arith.constant 0 : i32
    %c0_i32_1 = arith.constant 0 : i32
    return %c0_i32, %c0_i32_0 : i32, i32
  }
  func.func @transform_12(%arg0: i32) -> (i32, i32) {
    %c0_i32 = arith.constant 0 : i32
    %c0_i32_0 = arith.constant 0 : i32
    %c0_i32_1 = arith.constant 0 : i32
    return %c0_i32, %c0_i32_0 : i32, i32
  }
  func.func @transform_13(%arg0: i32) -> (i32, i32, i32) {
    %c0_i32 = arith.constant 0 : i32
    %c0_i32_0 = arith.constant 0 : i32
    %c0_i32_1 = arith.constant 0 : i32
    return %arg0, %c0_i32, %c0_i32_0 : i32, i32, i32
  }
}

</mosaic_0001>

<llo_original>
// kernel: tpu_custom_call.1
$region0: #{tpu_custom_call.1}
  #allocation0 [shape = 'u32[]', space=smem, size = 0x4, offset = 0x4, fixed_abs, tag = 'smem constant byte address 0x4 - core index']
  #allocation1 [shape = 'u32[144,128]{1,0:T(1,128)}', space=vmem, size = 0x12000, scoped, tag = 'internal scratch']
  %s0 = inlined_call_operand.hbm [shape: f32[2,8,32], index: 0, kind: input, shape index: {}]
  %s1 = inlined_call_operand.hbm [shape: f32[2,8,32], index: 1, kind: input, shape index: {}]
  %s2 = inlined_call_operand.vmem [shape: f32[32,32], index: 2, kind: input, shape index: {}]
  %s3 = inlined_call_operand.vmem [shape: f32[32,32], index: 3, kind: input, shape index: {}]
  %s4 = inlined_call_operand.vmem [shape: f32[32,32], index: 4, kind: input, shape index: {}]
  %s5 = inlined_call_operand.hbm [shape: f32[32,32], index: 5, kind: input, shape index: {}]
  %s6 = inlined_call_operand.vmem [shape: f32[1,32], index: 6, kind: input, shape index: {}]
  %s7 = inlined_call_operand.vmem [shape: f32[1,32], index: 7, kind: input, shape index: {}]
  %s8 = inlined_call_operand.vmem [shape: f32[1,32], index: 8, kind: input, shape index: {}]
  %s9 = inlined_call_operand.hbm [shape: f32[32,64], index: 9, kind: input, shape index: {}]
  %s10 = inlined_call_operand.vmem [shape: f32[1,64], index: 10, kind: input, shape index: {}]
  %s11 = inlined_call_operand.vmem [shape: f32[64,32], index: 11, kind: input, shape index: {}]
  %s12 = inlined_call_operand.vmem [shape: f32[1,32], index: 12, kind: input, shape index: {}]
  %s13 = inlined_call_operand.hbm [shape: f32[2,8,32], index: 13, kind: output, shape index: {}]
  %s14 = sld [smem:[#allocation0]]
  $region101: #{tpu_custom_call.1} parent=0
    _
  %s16 = ssub.s32 1, %s14
  %s17 = scalar_select 0, %s16, %s14
  $region1: #{tpu_custom_call.1} parent=0
    #allocation2 [shape = 'u8[8192]{0}', space=vmem, size = 0x2000, scoped, tag = 'input window, operand 0']
    #allocation3 [shape = 's32[2]{0}', space=sflag, size = 0x8, scoped, tag = 'scoped memory for tpu_custom_call.1']
    #allocation4 [shape = 's32[2]{0}', space=sflag, size = 0x8, scoped, tag = 'scoped memory for tpu_custom_call.1']
    #allocation5 [shape = 'u8[8192]{0}', space=vmem, size = 0x2000, scoped, tag = 'input window, operand 1']
    #allocation6 [shape = 's32[2]{0}', space=sflag, size = 0x8, scoped, tag = 'scoped memory for tpu_custom_call.1']
    #allocation7 [shape = 'u8[16384]{0}', space=vmem, size = 0x4000, scoped, tag = 'input window, operand 5, single buffered']
    #allocation8 [shape = 'u8[16384]{0}', space=vmem, size = 0x4000, scoped, tag = 'input window, operand 9, single buffered']
    #allocation9 [shape = 's32[1]{0}', space=sflag, size = 0x4, scoped, tag = 'scoped memory for tpu_custom_call.1']
    #allocation10 [shape = 'u8[8192]{0}', space=vmem, size = 0x2000, scoped, tag = 'output window, operand 0']
    %18 = vsyncpa [#allocation3], 0
    %s19 = scalar_lea.sflag [#allocation3], 1
    %20 = vsyncpa %s19, 0
    %21 = vsyncpa [#allocation6], 0
    %s22 = scalar_lea.sflag [#allocation6], 1
    %23 = vsyncpa %s22, 0
    %24 = vsyncpa [#allocation9], 0
    %25 = vsyncpa [#allocation4], 0
    %s26 = scalar_lea.sflag [#allocation4], 1
    %27 = vsyncpa %s26, 0
    loop: start=0, step=1, limit=4
    $region2: #{tpu_custom_call.1} parent=1 // loop_pre_header
      _
    $region3: #{tpu_custom_call.1} parent=1 // loop_header
      %s29 = sphi 0, %s33
      %p30 = scmp.ge.s32.totalorder %s29, 4
      %s39 = sphi 0, %s41
      %s42 = sphi 0, %s39
      %s43 = sphi 0, %s42
      %s59 = sphi 0, %s43
      %s65 = sphi 0, %s67
      %s68 = sphi 0, %s65
      %s69 = sphi 0, %s68
      %s85 = sphi 0, %s69
      %s89 = sphi 0, %s89
      %s91 = sphi 0, %s89
      %s92 = sphi 0, %s91
      %s106 = sphi 0, %s92
      %s110 = sphi 0, %s110
      %s112 = sphi 0, %s110
      %s113 = sphi 0, %s112
      %s127 = sphi 0, %s113
      %s131 = sphi 0, %s131
      %s133 = sphi 0, %s131
      %s134 = sphi 0, %s133
      %s148 = sphi 0, %s134
      %s152 = sphi 0, %s152
      %s154 = sphi 0, %s152
      %s155 = sphi 0, %s154
      %s169 = sphi 0, %s155
      %s173 = sphi 0, %s173
      %s175 = sphi 0, %s173
      %s176 = sphi 0, %s175
      %s190 = sphi 0, %s176
      %s194 = sphi 0, %s194
      %s196 = sphi 0, %s194
      %s197 = sphi 0, %s196
      %s211 = sphi 0, %s197
      %s215 = sphi 0, %s215
      %s217 = sphi 0, %s215
      %s218 = sphi 0, %s217
      %s232 = sphi 0, %s218
      %s236 = sphi 0, %s236
      %s238 = sphi 0, %s236
      %s239 = sphi 0, %s238
      %s253 = sphi 0, %s239
      %s257 = sphi 0, %s257
      %s259 = sphi 0, %s257
      %s260 = sphi 0, %s259
      %s274 = sphi 0, %s260
      %s278 = sphi 0, %s278
      %s280 = sphi 0, %s278
      %s281 = sphi 0, %s280
      %s295 = sphi 0, %s281
      %s299 = sphi 0, %s299
      %s301 = sphi 0, %s299
      %s302 = sphi 0, %s301
      %s316 = sphi 0, %s302
      %s322 = sphi 0, %s324
      %s325 = sphi 0, %s322
      %s326 = sphi 0, %s325
      %s342 = sphi 0, %s326
    $region4: #{tpu_custom_call.1} parent=1 // loop_header_branch
      %32 = sbr.rel (%p30) target = $region8
    $region5: #{tpu_custom_call.1} parent=1 // loop_body
      %s34 = ssub.s32 %s29, 1
      %s35 = ssub.s32 %s29, 2
      %s36 = sadd.s32 %s29, 1
      %s37 = ssub.s32 %s29, %s36
      %p38 = scmp.eq.s32.totalorder %s37, 0
      %s40 = sadd.s32 %s39, 1
      %s41 = scalar_select %p38, %s39, %s40
      %p44 = pneg %p38
      %p45 = scmp.eq.s32.totalorder %s29, 1
      %p46 = por %p44, %p45
      %p47 = scmp.ne.s32.totalorder %s39, %s42
      %p48 = scmp.eq.s32.totalorder %s29, 0
      %p49 = por %p47, %p48
      %p50 = scmp.ne.s32.totalorder %s39, %s42
      %p51 = scmp.eq.s32.totalorder %s34, 1
      %p52 = por %p50, %p51
      %p53 = scmp.ne.s32.totalorder %s42, %s43
      %p54 = scmp.eq.s32.totalorder %s34, 0
      %p55 = por %p53, %p54
      %p56 = scmp.ne.s32.totalorder %s42, %s43
      %p57 = scmp.eq.s32.totalorder %s35, 1
      %p58 = por %p56, %p57
      %p60 = scmp.ne.s32.totalorder %s43, %s59
      %p61 = scmp.eq.s32.totalorder %s35, 0
      %p62 = por %p60, %p61
      %s63 = ssub.s32 %s29, %s36
      %p64 = scmp.eq.s32.totalorder %s63, 0
      %s66 = sadd.s32 %s65, 1
      %s67 = scalar_select %p64, %s65, %s66
      %p70 = pneg %p64
      %p71 = scmp.eq.s32.totalorder %s29, 1
      %p72 = por %p70, %p71
      %p73 = scmp.ne.s32.totalorder %s65, %s68
      %p74 = scmp.eq.s32.totalorder %s29, 0
      %p75 = por %p73, %p74
      %p76 = scmp.ne.s32.totalorder %s65, %s68
      %p77 = scmp.eq.s32.totalorder %s34, 1
      %p78 = por %p76, %p77
      %p79 = scmp.ne.s32.totalorder %s68, %s69
      %p80 = scmp.eq.s32.totalorder %s34, 0
      %p81 = por %p79, %p80
      %p82 = scmp.ne.s32.totalorder %s68, %s69
      %p83 = scmp.eq.s32.totalorder %s35, 1
      %p84 = por %p82, %p83
      %p86 = scmp.ne.s32.totalorder %s69, %s85
      %p87 = scmp.eq.s32.totalorder %s35, 0
      %p88 = por %p86, %p87
      %s90 = sadd.s32 %s89, 1
      %p93 = scmp.eq.s32.totalorder %s29, 1
      %p94 = scmp.ne.s32.totalorder %s89, %s91
      %p95 = scmp.eq.s32.totalorder %s29, 0
      %p96 = por %p94, %p95
      %p97 = scmp.ne.s32.totalorder %s89, %s91
      %p98 = scmp.eq.s32.totalorder %s34, 1
      %p99 = por %p97, %p98
      %p100 = scmp.ne.s32.totalorder %s91, %s92
      %p101 = scmp.eq.s32.totalorder %s34, 0
      %p102 = por %p100, %p101
      %p103 = scmp.ne.s32.totalorder %s91, %s92
      %p104 = scmp.eq.s32.totalorder %s35, 1
      %p105 = por %p103, %p104
      %p107 = scmp.ne.s32.totalorder %s92, %s106
      %p108 = scmp.eq.s32.totalorder %s35, 0
      %p109 = por %p107, %p108
      %s111 = sadd.s32 %s110, 1
      %p114 = scmp.eq.s32.totalorder %s29, 1
      %p115 = scmp.ne.s32.totalorder %s110, %s112
      %p116 = scmp.eq.s32.totalorder %s29, 0
      %p117 = por %p115, %p116
      %p118 = scmp.ne.s32.totalorder %s110, %s112
      %p119 = scmp.eq.s32.totalorder %s34, 1
      %p120 = por %p118, %p119
      %p121 = scmp.ne.s32.totalorder %s112, %s113
      %p122 = scmp.eq.s32.totalorder %s34, 0
      %p123 = por %p121, %p122
      %p124 = scmp.ne.s32.totalorder %s112, %s113
      %p125 = scmp.eq.s32.totalorder %s35, 1
      %p126 = por %p124, %p125
      %p128 = scmp.ne.s32.totalorder %s113, %s127
      %p129 = scmp.eq.s32.totalorder %s35, 0
      %p130 = por %p128, %p129
      %s132 = sadd.s32 %s131, 1
      %p135 = scmp.eq.s32.totalorder %s29, 1
      %p136 = scmp.ne.s32.totalorder %s131, %s133
      %p137 = scmp.eq.s32.totalorder %s29, 0
      %p138 = por %p136, %p137
      %p139 = scmp.ne.s32.totalorder %s131, %s133
      %p140 = scmp.eq.s32.totalorder %s34, 1
      %p141 = por %p139, %p140
      %p142 = scmp.ne.s32.totalorder %s133, %s134
      %p143 = scmp.eq.s32.totalorder %s34, 0
      %p144 = por %p142, %p143
      %p145 = scmp.ne.s32.totalorder %s133, %s134
      %p146 = scmp.eq.s32.totalorder %s35, 1
      %p147 = por %p145, %p146
      %p149 = scmp.ne.s32.totalorder %s134, %s148
      %p150 = scmp.eq.s32.totalorder %s35, 0
      %p151 = por %p149, %p150
      %s153 = sadd.s32 %s152, 1
      %p156 = scmp.eq.s32.totalorder %s29, 1
      %p157 = scmp.ne.s32.totalorder %s152, %s154
      %p158 = scmp.eq.s32.totalorder %s29, 0
      %p159 = por %p157, %p158
      %p160 = scmp.ne.s32.totalorder %s152, %s154
      %p161 = scmp.eq.s32.totalorder %s34, 1
      %p162 = por %p160, %p161
      %p163 = scmp.ne.s32.totalorder %s154, %s155
      %p164 = scmp.eq.s32.totalorder %s34, 0
      %p165 = por %p163, %p164
      %p166 = scmp.ne.s32.totalorder %s154, %s155
      %p167 = scmp.eq.s32.totalorder %s35, 1
      %p168 = por %p166, %p167
      %p170 = scmp.ne.s32.totalorder %s155, %s169
      %p171 = scmp.eq.s32.totalorder %s35, 0
      %p172 = por %p170, %p171
      %s174 = sadd.s32 %s173, 1
      %p177 = scmp.eq.s32.totalorder %s29, 1
      %p178 = scmp.ne.s32.totalorder %s173, %s175
      %p179 = scmp.eq.s32.totalorder %s29, 0
      %p180 = por %p178, %p179
      %p181 = scmp.ne.s32.totalorder %s173, %s175
      %p182 = scmp.eq.s32.totalorder %s34, 1
      %p183 = por %p181, %p182
      %p184 = scmp.ne.s32.totalorder %s175, %s176
      %p185 = scmp.eq.s32.totalorder %s34, 0
      %p186 = por %p184, %p185
      %p187 = scmp.ne.s32.totalorder %s175, %s176
      %p188 = scmp.eq.s32.totalorder %s35, 1
      %p189 = por %p187, %p188
      %p191 = scmp.ne.s32.totalorder %s176, %s190
      %p192 = scmp.eq.s32.totalorder %s35, 0
      %p193 = por %p191, %p192
      %s195 = sadd.s32 %s194, 1
      %p198 = scmp.eq.s32.totalorder %s29, 1
      %p199 = scmp.ne.s32.totalorder %s194, %s196
      %p200 = scmp.eq.s32.totalorder %s29, 0
      %p201 = por %p199, %p200
      %p202 = scmp.ne.s32.totalorder %s194, %s196
      %p203 = scmp.eq.s32.totalorder %s34, 1
      %p204 = por %p202, %p203
      %p205 = scmp.ne.s32.totalorder %s196, %s197
      %p206 = scmp.eq.s32.totalorder %s34, 0
      %p207 = por %p205, %p206
      %p208 = scmp.ne.s32.totalorder %s196, %s197
      %p209 = scmp.eq.s32.totalorder %s35, 1
      %p210 = por %p208, %p209
      %p212 = scmp.ne.s32.totalorder %s197, %s211
      %p213 = scmp.eq.s32.totalorder %s35, 0
      %p214 = por %p212, %p213
      %s216 = sadd.s32 %s215, 1
      %p219 = scmp.eq.s32.totalorder %s29, 1
      %p220 = scmp.ne.s32.totalorder %s215, %s217
      %p221 = scmp.eq.s32.totalorder %s29, 0
      %p222 = por %p220, %p221
      %p223 = scmp.ne.s32.totalorder %s215, %s217
      %p224 = scmp.eq.s32.totalorder %s34, 1
      %p225 = por %p223, %p224
      %p226 = scmp.ne.s32.totalorder %s217, %s218
      %p227 = scmp.eq.s32.totalorder %s34, 0
      %p228 = por %p226, %p227
      %p229 = scmp.ne.s32.totalorder %s217, %s218
      %p230 = scmp.eq.s32.totalorder %s35, 1
      %p231 = por %p229, %p230
      %p233 = scmp.ne.s32.totalorder %s218, %s232
      %p234 = scmp.eq.s32.totalorder %s35, 0
      %p235 = por %p233, %p234
      %s237 = sadd.s32 %s236, 1
      %p240 = scmp.eq.s32.totalorder %s29, 1
      %p241 = scmp.ne.s32.totalorder %s236, %s238
      %p242 = scmp.eq.s32.totalorder %s29, 0
      %p243 = por %p241, %p242
      %p244 = scmp.ne.s32.totalorder %s236, %s238
      %p245 = scmp.eq.s32.totalorder %s34, 1
      %p246 = por %p244, %p245
      %p247 = scmp.ne.s32.totalorder %s238, %s239
      %p248 = scmp.eq.s32.totalorder %s34, 0
      %p249 = por %p247, %p248
      %p250 = scmp.ne.s32.totalorder %s238, %s239
      %p251 = scmp.eq.s32.totalorder %s35, 1
      %p252 = por %p250, %p251
      %p254 = scmp.ne.s32.totalorder %s239, %s253
      %p255 = scmp.eq.s32.totalorder %s35, 0
      %p256 = por %p254, %p255
      %s258 = sadd.s32 %s257, 1
      %p261 = scmp.eq.s32.totalorder %s29, 1
      %p262 = scmp.ne.s32.totalorder %s257, %s259
      %p263 = scmp.eq.s32.totalorder %s29, 0
      %p264 = por %p262, %p263
      %p265 = scmp.ne.s32.totalorder %s257, %s259
      %p266 = scmp.eq.s32.totalorder %s34, 1
      %p267 = por %p265, %p266
      %p268 = scmp.ne.s32.totalorder %s259, %s260
      %p269 = scmp.eq.s32.totalorder %s34, 0
      %p270 = por %p268, %p269
      %p271 = scmp.ne.s32.totalorder %s259, %s260
      %p272 = scmp.eq.s32.totalorder %s35, 1
      %p273 = por %p271, %p272
      %p275 = scmp.ne.s32.totalorder %s260, %s274
      %p276 = scmp.eq.s32.totalorder %s35, 0
      %p277 = por %p275, %p276
      %s279 = sadd.s32 %s278, 1
      %p282 = scmp.eq.s32.totalorder %s29, 1
      %p283 = scmp.ne.s32.totalorder %s278, %s280
      %p284 = scmp.eq.s32.totalorder %s29, 0
      %p285 = por %p283, %p284
      %p286 = scmp.ne.s32.totalorder %s278, %s280
      %p287 = scmp.eq.s32.totalorder %s34, 1
      %p288 = por %p286, %p287
      %p289 = scmp.ne.s32.totalorder %s280, %s281
      %p290 = scmp.eq.s32.totalorder %s34, 0
      %p291 = por %p289, %p290
      %p292 = scmp.ne.s32.totalorder %s280, %s281
      %p293 = scmp.eq.s32.totalorder %s35, 1
      %p294 = por %p292, %p293
      %p296 = scmp.ne.s32.totalorder %s281, %s295
      %p297 = scmp.eq.s32.totalorder %s35, 0
      %p298 = por %p296, %p297
      %s300 = sadd.s32 %s299, 1
      %p303 = scmp.eq.s32.totalorder %s29, 1
      %p304 = scmp.ne.s32.totalorder %s299, %s301
      %p305 = scmp.eq.s32.totalorder %s29, 0
      %p306 = por %p304, %p305
      %p307 = scmp.ne.s32.totalorder %s299, %s301
      %p308 = scmp.eq.s32.totalorder %s34, 1
      %p309 = por %p307, %p308
      %p310 = scmp.ne.s32.totalorder %s301, %s302
      %p311 = scmp.eq.s32.totalorder %s34, 0
      %p312 = por %p310, %p311
      %p313 = scmp.ne.s32.totalorder %s301, %s302
      %p314 = scmp.eq.s32.totalorder %s35, 1
      %p315 = por %p313, %p314
      %p317 = scmp.ne.s32.totalorder %s302, %s316
      %p318 = scmp.eq.s32.totalorder %s35, 0
      %p319 = por %p317, %p318
      %s320 = ssub.s32 %s29, %s36
      %p321 = scmp.eq.s32.totalorder %s320, 0
      %s323 = sadd.s32 %s322, 1
      %s324 = scalar_select %p321, %s322, %s323
      %p327 = pneg %p321
      %p328 = scmp.eq.s32.totalorder %s29, 1
      %p329 = por %p327, %p328
      %p330 = scmp.ne.s32.totalorder %s322, %s325
      %p331 = scmp.eq.s32.totalorder %s29, 0
      %p332 = por %p330, %p331
      %p333 = scmp.ne.s32.totalorder %s322, %s325
      %p334 = scmp.eq.s32.totalorder %s34, 1
      %p335 = por %p333, %p334
      %p336 = scmp.ne.s32.totalorder %s325, %s326
      %p337 = scmp.eq.s32.totalorder %s34, 0
      %p338 = por %p336, %p337
      %p339 = scmp.ne.s32.totalorder %s325, %s326
      %p340 = scmp.eq.s32.totalorder %s35, 1
      %p341 = por %p339, %p340
      %p343 = scmp.ne.s32.totalorder %s326, %s342
      %p344 = scmp.eq.s32.totalorder %s35, 0
      %p345 = por %p343, %p344
      %p346 = scmp.le.s32.totalorder 1, %s29
      %p347 = scmp.lt.s32.totalorder %s29, 3
      %p348 = pnand %p346, %p347
      %p349 = pneg %p348
      // Predicated region
      $region9: #{tpu_custom_call.1} parent=5 // pred_check
        _
      $region10: #{tpu_custom_call.1} parent=5 // pred_check_branch
        %351 = sbr.rel (%p348) target = $region12
      $region11: #{tpu_custom_call.1} parent=5 // pred_region
        %s352 = ssub.s32 %s29, 1
        // Predicated region
        $region13: #{tpu_custom_call.1} parent=11 // pred_check
          %p353 = pneg %p102
        $region14: #{tpu_custom_call.1} parent=11 // pred_check_branch
          %355 = sbr.rel (%p353) target = $region16
        $region15: #{tpu_custom_call.1} parent=11 // pred_region
          _
        $region16: #{tpu_custom_call.1} parent=11 // pred_fallthru
          _
        // Predicated region
        $region17: #{tpu_custom_call.1} parent=11 // pred_check
          %p356 = pneg %p123
        $region18: #{tpu_custom_call.1} parent=11 // pred_check_branch
          %358 = sbr.rel (%p356) target = $region20
        $region19: #{tpu_custom_call.1} parent=11 // pred_region
          _
        $region20: #{tpu_custom_call.1} parent=11 // pred_fallthru
          _
        // Predicated region
        $region21: #{tpu_custom_call.1} parent=11 // pred_check
          %p359 = pneg %p144
        $region22: #{tpu_custom_call.1} parent=11 // pred_check_branch
          %361 = sbr.rel (%p359) target = $region24
        $region23: #{tpu_custom_call.1} parent=11 // pred_region
          _
        $region24: #{tpu_custom_call.1} parent=11 // pred_fallthru
          _
        // Predicated region
        $region25: #{tpu_custom_call.1} parent=11 // pred_check
          %p362 = pneg %p165
        $region26: #{tpu_custom_call.1} parent=11 // pred_check_branch
          %364 = sbr.rel (%p362) target = $region28
        $region27: #{tpu_custom_call.1} parent=11 // pred_region
          %s366 = ssub.s32 512, 512
          %367 = vsyncadd [#allocation6], %s366
          %s368 = sshll.u32 [#allocation7], 4
          %s369 = int_to_ptr.vmem [resolvable:$true] %s368
          %374 = dma.hbm_to_vmem [thread:$0]  %s5, 512, %s369, [#allocation6], 128, 128, 8
        $region28: #{tpu_custom_call.1} parent=11 // pred_fallthru
          _
        // Predicated region
        $region29: #{tpu_custom_call.1} parent=11 // pred_check
          %p375 = pneg %p186
        $region30: #{tpu_custom_call.1} parent=11 // pred_check_branch
          %377 = sbr.rel (%p375) target = $region32
        $region31: #{tpu_custom_call.1} parent=11 // pred_region
          _
        $region32: #{tpu_custom_call.1} parent=11 // pred_fallthru
          _
        // Predicated region
        $region33: #{tpu_custom_call.1} parent=11 // pred_check
          %p378 = pneg %p207
        $region34: #{tpu_custom_call.1} parent=11 // pred_check_branch
          %380 = sbr.rel (%p378) target = $region36
        $region35: #{tpu_custom_call.1} parent=11 // pred_region
          _
        $region36: #{tpu_custom_call.1} parent=11 // pred_fallthru
          _
        // Predicated region
        $region37: #{tpu_custom_call.1} parent=11 // pred_check
          %p381 = pneg %p228
        $region38: #{tpu_custom_call.1} parent=11 // pred_check_branch
          %383 = sbr.rel (%p381) target = $region40
        $region39: #{tpu_custom_call.1} parent=11 // pred_region
          _
        $region40: #{tpu_custom_call.1} parent=11 // pred_fallthru
          _
        // Predicated region
        $region41: #{tpu_custom_call.1} parent=11 // pred_check
          %p384 = pneg %p249
        $region42: #{tpu_custom_call.1} parent=11 // pred_check_branch
          %386 = sbr.rel (%p384) target = $region44
        $region43: #{tpu_custom_call.1} parent=11 // pred_region
          %s388 = ssub.s32 512, 512
          %389 = vsyncadd [#allocation9], %s388
          %s390 = sshll.u32 [#allocation8], 4
          %s391 = int_to_ptr.vmem [resolvable:$true] %s390
          %396 = dma.hbm_to_vmem [thread:$0]  %s9, 512, %s391, [#allocation9], 128, 128, 8
        $region44: #{tpu_custom_call.1} parent=11 // pred_fallthru
          _
        // Predicated region
        $region45: #{tpu_custom_call.1} parent=11 // pred_check
          %p397 = pneg %p270
        $region46: #{tpu_custom_call.1} parent=11 // pred_check_branch
          %399 = sbr.rel (%p397) target = $region48
        $region47: #{tpu_custom_call.1} parent=11 // pred_region
          _
        $region48: #{tpu_custom_call.1} parent=11 // pred_fallthru
          _
        // Predicated region
        $region49: #{tpu_custom_call.1} parent=11 // pred_check
          %p400 = pneg %p291
        $region50: #{tpu_custom_call.1} parent=11 // pred_check_branch
          %402 = sbr.rel (%p400) target = $region52
        $region51: #{tpu_custom_call.1} parent=11 // pred_region
          _
        $region52: #{tpu_custom_call.1} parent=11 // pred_fallthru
          _
        // Predicated region
        $region53: #{tpu_custom_call.1} parent=11 // pred_check
          %p403 = pneg %p312
        $region54: #{tpu_custom_call.1} parent=11 // pred_check_branch
          %405 = sbr.rel (%p403) target = $region56
        $region55: #{tpu_custom_call.1} parent=11 // pred_region
          _
        $region56: #{tpu_custom_call.1} parent=11 // pred_fallthru
          _
      $region12: #{tpu_custom_call.1} parent=5 // pred_fallthru
        _
      %p406 = scmp.lt.s32.totalorder %s29, 2
      // Predicated region
      $region57: #{tpu_custom_call.1} parent=5 // pred_check
        %p407 = pneg %p406
      $region58: #{tpu_custom_call.1} parent=5 // pred_check_branch
        %409 = sbr.rel (%p407) target = $region60
      $region59: #{tpu_custom_call.1} parent=5 // pred_region
        // Predicated region
        $region61: #{tpu_custom_call.1} parent=59 // pred_check
          %p410 = pneg %p49
        $region62: #{tpu_custom_call.1} parent=59 // pred_check_branch
          %412 = sbr.rel (%p410) target = $region64
        $region63: #{tpu_custom_call.1} parent=59 // pred_region
          %s413 = sand.u32 %s39, 1
          %s414 = scalar_lea.sflag [#allocation3], %s413
          %s415 = sand.u32 %s39, 1
          %s416 = smul.addr %s415, 8
          %s417 = scalar_lea.vmem [#allocation2], %s416
          %s419 = ssub.s32 128, 128
          %420 = vsyncadd %s414, %s419
          %s421 = smul.addr %s29, 128
          %s422 = scalar_lea.hbm %s0, %s421
          %s424 = sshll.u32 %s417, 4
          %s425 = int_to_ptr.vmem [resolvable:$true] %s424
          %427 = dma.hbm_to_vmem [thread:$0]  %s422, 128, %s425, %s414
        $region64: #{tpu_custom_call.1} parent=59 // pred_fallthru
          _
        // Predicated region
        $region65: #{tpu_custom_call.1} parent=59 // pred_check
          %p428 = pneg %p75
        $region66: #{tpu_custom_call.1} parent=59 // pred_check_branch
          %430 = sbr.rel (%p428) target = $region68
        $region67: #{tpu_custom_call.1} parent=59 // pred_region
          %s431 = sand.u32 %s29, 1
          %s432 = scalar_lea.sflag [#allocation6], %s431
          %s433 = sand.u32 %s65, 1
          %s434 = smul.addr %s433, 8
          %s435 = scalar_lea.vmem [#allocation5], %s434
          %s437 = ssub.s32 128, 128
          %438 = vsyncadd %s432, %s437
          %s439 = smul.addr %s29, 128
          %s440 = scalar_lea.hbm %s1, %s439
          %s442 = sshll.u32 %s435, 4
          %s443 = int_to_ptr.vmem [resolvable:$true] %s442
          %445 = dma.hbm_to_vmem [thread:$0]  %s440, 128, %s443, %s432
        $region68: #{tpu_custom_call.1} parent=59 // pred_fallthru
          _
      $region60: #{tpu_custom_call.1} parent=5 // pred_fallthru
        _
      %p446 = scmp.le.s32.totalorder 1, %s29
      %p447 = scmp.lt.s32.totalorder %s29, 3
      %p448 = pnand %p446, %p447
      %p449 = pneg %p448
      // Predicated region
      $region69: #{tpu_custom_call.1} parent=5 // pred_check
        _
      $region70: #{tpu_custom_call.1} parent=5 // pred_check_branch
        %451 = sbr.rel (%p448) target = $region72
      $region71: #{tpu_custom_call.1} parent=5 // pred_region
        %s452 = ssub.s32 %s29, 1
        %s453 = sand.u32 %s42, 1
        %s454 = scalar_lea.sflag [#allocation3], %s453
        %s455 = sand.u32 %s42, 1
        %s456 = smul.addr %s455, 8
        %s457 = scalar_lea.vmem [#allocation2], %s456
        // Predicated region
        $region73: #{tpu_custom_call.1} parent=71 // pred_check
          %p458 = pneg %p55
        $region74: #{tpu_custom_call.1} parent=71 // pred_check_branch
          %460 = sbr.rel (%p458) target = $region76
        $region75: #{tpu_custom_call.1} parent=71 // pred_region
          %461 = dma.done %s454, 128
        $region76: #{tpu_custom_call.1} parent=71 // pred_fallthru
          _
        %s462 = sand.u32 %s34, 1
        %s463 = scalar_lea.sflag [#allocation6], %s462
        %s464 = sand.u32 %s68, 1
        %s465 = smul.addr %s464, 8
        %s466 = scalar_lea.vmem [#allocation5], %s465
        // Predicated region
        $region77: #{tpu_custom_call.1} parent=71 // pred_check
          %p467 = pneg %p81
        $region78: #{tpu_custom_call.1} parent=71 // pred_check_branch
          %469 = sbr.rel (%p467) target = $region80
        $region79: #{tpu_custom_call.1} parent=71 // pred_region
          %470 = dma.done %s463, 128
        $region80: #{tpu_custom_call.1} parent=71 // pred_fallthru
          _
        // Predicated region
        $region81: #{tpu_custom_call.1} parent=71 // pred_check
          %p471 = pneg %p165
        $region82: #{tpu_custom_call.1} parent=71 // pred_check_branch
          %473 = sbr.rel (%p471) target = $region84
        $region83: #{tpu_custom_call.1} parent=71 // pred_region
          %474 = dma.done [#allocation6], 512
        $region84: #{tpu_custom_call.1} parent=71 // pred_fallthru
          _
        // Predicated region
        $region85: #{tpu_custom_call.1} parent=71 // pred_check
          %p475 = pneg %p249
        $region86: #{tpu_custom_call.1} parent=71 // pred_check_branch
          %477 = sbr.rel (%p475) target = $region88
        $region87: #{tpu_custom_call.1} parent=71 // pred_region
          %478 = dma.done [#allocation9], 512
        $region88: #{tpu_custom_call.1} parent=71 // pred_fallthru
          _
        %s479 = sand.u32 %s42, 1
        %s480 = scalar_lea.sflag [#allocation3], %s479
        %s481 = sand.u32 %s42, 1
        %s482 = smul.addr %s481, 8
        %s483 = scalar_lea.vmem [#allocation2], %s482
        %p484 = pneg %p55
        %p485 = pneg %p52
        %s486 = sand.u32 %s34, 1
        %s487 = scalar_lea.sflag [#allocation6], %s486
        %s488 = sand.u32 %s68, 1
        %s489 = smul.addr %s488, 8
        %s490 = scalar_lea.vmem [#allocation5], %s489
        %p491 = pneg %p81
        %p492 = pneg %p78
        %p493 = pneg %p102
        %p494 = pneg %p99
        %p495 = pneg %p123
        %p496 = pneg %p120
        %p497 = pneg %p144
        %p498 = pneg %p141
        %p499 = pneg %p165
        %p500 = pneg %p162
        %p501 = pneg %p186
        %p502 = pneg %p183
        %p503 = pneg %p207
        %p504 = pneg %p204
        %p505 = pneg %p228
        %p506 = pneg %p225
        %p507 = pneg %p249
        %p508 = pneg %p246
        %p509 = pneg %p270
        %p510 = pneg %p267
        %p511 = pneg %p291
        %p512 = pneg %p288
        %p513 = pneg %p312
        %p514 = pneg %p309
        %p515 = pneg %p338
        %p516 = pneg %p335
        %s517 = sand.u32 %s325, 1
        %s518 = scalar_lea.sflag [#allocation4], %s517
        %s519 = sand.u32 %s325, 1
        %s520 = smul.addr %s519, 8
        %s521 = scalar_lea.vmem [#allocation10], %s520
        %v522 = vld [vmem:[%s457] sm:$0xff]
        %v523 = vld [vmem:[%s466] sm:$0xff]
        %v524 = vld [vmem:[%s2] sm:$0xff]
        %v525 = vld [vmem:[%s2 + $0x8] sm:$0xff]
        %v526 = vld [vmem:[%s2 + $0x10] sm:$0xff]
        %v527 = vld [vmem:[%s2 + $0x18] sm:$0xff]
        %v528 = vld [vmem:[%s3] sm:$0xff]
        %v529 = vld [vmem:[%s3 + $0x8] sm:$0xff]
        %v530 = vld [vmem:[%s3 + $0x10] sm:$0xff]
        %v531 = vld [vmem:[%s3 + $0x18] sm:$0xff]
        %v532 = vld [vmem:[%s4] sm:$0xff]
        %v533 = vld [vmem:[%s4 + $0x8] sm:$0xff]
        %v534 = vld [vmem:[%s4 + $0x10] sm:$0xff]
        %v535 = vld [vmem:[%s4 + $0x18] sm:$0xff]
        %v536 = vld [vmem:[#allocation7] sm:$0xff]
        %v537 = vld [vmem:[#allocation7 + $0x8] sm:$0xff]
        %v538 = vld [vmem:[#allocation7 + $0x10] sm:$0xff]
        %v539 = vld [vmem:[#allocation7 + $0x18] sm:$0xff]
        %v540 = vld [vmem:[%s6] sm:$0x1]
        %v541 = vld [vmem:[%s7] sm:$0x1]
        %v542 = vld [vmem:[%s8] sm:$0x1]
        %v543 = vld [vmem:[#allocation8] sm:$0xff]
        %v544 = vld [vmem:[#allocation8 + $0x8] sm:$0xff]
        %v545 = vld [vmem:[#allocation8 + $0x10] sm:$0xff]
        %v546 = vld [vmem:[#allocation8 + $0x18] sm:$0xff]
        %v547 = vld [vmem:[%s10] sm:$0x1]
        %v548 = vld [vmem:[%s11] sm:$0xff]
        %v549 = vld [vmem:[%s11 + $0x8] sm:$0xff]
        %v550 = vld [vmem:[%s11 + $0x10] sm:$0xff]
        %v551 = vld [vmem:[%s11 + $0x18] sm:$0xff]
        %v552 = vld [vmem:[%s11 + $0x20] sm:$0xff]
        %v553 = vld [vmem:[%s11 + $0x28] sm:$0xff]
        %v554 = vld [vmem:[%s11 + $0x30] sm:$0xff]
        %v555 = vld [vmem:[%s11 + $0x38] sm:$0xff]
        %v556 = vld [vmem:[%s12] sm:$0x1]
        %vm557 = vcmask 261120
        %v559 = vsel %vm557, %v522, 0
        %561 = vmatprep.subr.mxu0 0.0
        %562 = vmatpush1.msra.mxu0 0.0
        %563 = vmatprep.subr.mxu0 0.0
        %564 = vmatpush1.msra.mxu0 0.0
        %565 = vmatprep.subr.mxu0 0.0
        %566 = vmatpush1.msra.mxu0 0.0
        %567 = vmatprep.subr.mxu0 0.0
        %568 = vmatpush1.msra.mxu0 0.0
        %569 = vmatprep.subr.mxu0 0.0
        %570 = vmatpush1.msra.mxu0 0.0
        %571 = vmatprep.subr.mxu0 0.0
        %572 = vmatpush1.msra.mxu0 0.0
        %573 = vmatprep.subr.mxu0 0.0
        %574 = vmatpush1.msra.mxu0 0.0
        %575 = vmatprep.subr.mxu0 0.0
        %576 = vmatpush1.msra.mxu0 0.0
        %577 = vmatprep.subr.mxu0 0.0
        %578 = vmatpush1.msra.mxu0 0.0
        %579 = vmatprep.subr.mxu0 0.0
        %580 = vmatpush1.msra.mxu0 0.0
        %581 = vmatprep.subr.mxu0 0.0
        %582 = vmatpush1.msra.mxu0 0.0
        %583 = vmatprep.subr.mxu0 0.0
        %584 = vmatpush1.msra.mxu0 0.0
        %585 = vmatprep.subr.mxu0 0.0
        %586 = vmatpush1.msra.mxu0 %v527
        %587 = vmatprep.subr.mxu0 0.0
        %588 = vmatpush1.msra.mxu0 %v526
        %589 = vmatprep.subr.mxu0 0.0
        %590 = vmatpush1.msra.mxu0 %v525
        %591 = vmatprep.subr.mxu0 0.0
        %592 = vmatpush1.msra.mxu0 %v524
        %593 = vmatprep.subr.mxu0 0.0
        %594 = vmatpush2.msra.mxu0 0.0
        %595 = vmatprep.subr.mxu0 0.0
        %596 = vmatpush2.msra.mxu0 0.0
        %597 = vmatprep.subr.mxu0 0.0
        %598 = vmatpush2.msra.mxu0 0.0
        %599 = vmatprep.subr.mxu0 0.0
        %600 = vmatpush2.msra.mxu0 0.0
        %601 = vmatprep.subr.mxu0 0.0
        %602 = vmatpush2.msra.mxu0 0.0
        %603 = vmatprep.subr.mxu0 0.0
        %604 = vmatpush2.msra.mxu0 0.0
        %605 = vmatprep.subr.mxu0 0.0
        %606 = vmatpush2.msra.mxu0 0.0
        %607 = vmatprep.subr.mxu0 0.0
        %608 = vmatpush2.msra.mxu0 0.0
        %609 = vmatprep.subr.mxu0 0.0
        %610 = vmatpush2.msra.mxu0 0.0
        %611 = vmatprep.subr.mxu0 0.0
        %612 = vmatpush2.msra.mxu0 0.0
        %613 = vmatprep.subr.mxu0 0.0
        %614 = vmatpush2.msra.mxu0 0.0
        %615 = vmatprep.subr.mxu0 0.0
        %616 = vmatpush2.msra.mxu0 0.0
        %617 = vmatprep.subr.mxu0 0.0
        %618 = vmatpush2.msra.mxu0 0.0
        %619 = vmatprep.subr.mxu0 0.0
        %620 = vmatpush2.msra.mxu0 0.0
        %621 = vmatprep.subr.mxu0 0.0
        %622 = vmatpush2.msra.mxu0 0.0
        %623 = vmatprep.subr.mxu0 0.0
        %624 = vmatpush2.msra.mxu0 0.0
        %625 = vmatprep.mubr.f32.mxu0 0.0
        %626 = vmatmul.mubr.f32.gmra.mxu0 %v559
        %v627 = vpop.f32.mrf.mxu0
        %v628 = vadd.f32 0.0, %v627
        %v629 = vpop.f32.mrf.mxu0
        %630 = vdwg.mxu0
        %632 = vrot.lane.b32.xlu0 %v628, 120
        %v633 = vpop.permute.xlu0 %632
        %634 = vrot.lane.b32.xlu0 %v628, 112
        %v635 = vpop.permute.xlu0 %634
        %636 = vrot.lane.b32.xlu0 %v628, 104
        %v637 = vpop.permute.xlu0 %636
        %638 = vmatprep.subr.mxu0 0.0
        %639 = vmatpush1.msra.mxu0 0.0
        %640 = vmatprep.subr.mxu0 0.0
        %641 = vmatpush1.msra.mxu0 0.0
        %642 = vmatprep.subr.mxu0 0.0
        %643 = vmatpush1.msra.mxu0 0.0
        %644 = vmatprep.subr.mxu0 0.0
        %645 = vmatpush1.msra.mxu0 0.0
        %646 = vmatprep.subr.mxu0 0.0
        %647 = vmatpush1.msra.mxu0 0.0
        %648 = vmatprep.subr.mxu0 0.0
        %649 = vmatpush1.msra.mxu0 0.0
        %650 = vmatprep.subr.mxu0 0.0
        %651 = vmatpush1.msra.mxu0 0.0
        %652 = vmatprep.subr.mxu0 0.0
        %653 = vmatpush1.msra.mxu0 0.0
        %654 = vmatprep.subr.mxu0 0.0
        %655 = vmatpush1.msra.mxu0 0.0
        %656 = vmatprep.subr.mxu0 0.0
        %657 = vmatpush1.msra.mxu0 0.0
        %658 = vmatprep.subr.mxu0 0.0
        %659 = vmatpush1.msra.mxu0 0.0
        %660 = vmatprep.subr.mxu0 0.0
        %661 = vmatpush1.msra.mxu0 0.0
        %662 = vmatprep.subr.mxu0 0.0
        %663 = vmatpush1.msra.mxu0 %v531
        %664 = vmatprep.subr.mxu0 0.0
        %665 = vmatpush1.msra.mxu0 %v530
        %666 = vmatprep.subr.mxu0 0.0
        %667 = vmatpush1.msra.mxu0 %v529
        %668 = vmatprep.subr.mxu0 0.0
        %669 = vmatpush1.msra.mxu0 %v528
        %670 = vmatprep.subr.mxu0 0.0
        %671 = vmatpush2.msra.mxu0 0.0
        %672 = vmatprep.subr.mxu0 0.0
        %673 = vmatpush2.msra.mxu0 0.0
        %674 = vmatprep.subr.mxu0 0.0
        %675 = vmatpush2.msra.mxu0 0.0
        %676 = vmatprep.subr.mxu0 0.0
        %677 = vmatpush2.msra.mxu0 0.0
        %678 = vmatprep.subr.mxu0 0.0
        %679 = vmatpush2.msra.mxu0 0.0
        %680 = vmatprep.subr.mxu0 0.0
        %681 = vmatpush2.msra.mxu0 0.0
        %682 = vmatprep.subr.mxu0 0.0
        %683 = vmatpush2.msra.mxu0 0.0
        %684 = vmatprep.subr.mxu0 0.0
        %685 = vmatpush2.msra.mxu0 0.0
        %686 = vmatprep.subr.mxu0 0.0
        %687 = vmatpush2.msra.mxu0 0.0
        %688 = vmatprep.subr.mxu0 0.0
        %689 = vmatpush2.msra.mxu0 0.0
        %690 = vmatprep.subr.mxu0 0.0
        %691 = vmatpush2.msra.mxu0 0.0
        %692 = vmatprep.subr.mxu0 0.0
        %693 = vmatpush2.msra.mxu0 0.0
        %694 = vmatprep.subr.mxu0 0.0
        %695 = vmatpush2.msra.mxu0 0.0
        %696 = vmatprep.subr.mxu0 0.0
        %697 = vmatpush2.msra.mxu0 0.0
        %698 = vmatprep.subr.mxu0 0.0
        %699 = vmatpush2.msra.mxu0 0.0
        %700 = vmatprep.subr.mxu0 0.0
        %701 = vmatpush2.msra.mxu0 0.0
        %702 = vmatprep.mubr.f32.mxu0 0.0
        %703 = vmatmul.mubr.f32.gmra.mxu0 %v559
        %v704 = vpop.f32.mrf.mxu0
        %v705 = vadd.f32 0.0, %v704
        %v706 = vpop.f32.mrf.mxu0
        %707 = vdwg.mxu0
        %709 = vrot.lane.b32.xlu0 %v705, 120
        %v710 = vpop.permute.xlu0 %709
        %711 = vrot.lane.b32.xlu0 %v705, 112
        %v712 = vpop.permute.xlu0 %711
        %713 = vrot.lane.b32.xlu0 %v705, 104
        %v714 = vpop.permute.xlu0 %713
        %715 = vmatprep.subr.mxu0 0.0
        %716 = vmatpush1.msra.mxu0 0.0
        %717 = vmatprep.subr.mxu0 0.0
        %718 = vmatpush1.msra.mxu0 0.0
        %719 = vmatprep.subr.mxu0 0.0
        %720 = vmatpush1.msra.mxu0 0.0
        %721 = vmatprep.subr.mxu0 0.0
        %722 = vmatpush1.msra.mxu0 0.0
        %723 = vmatprep.subr.mxu0 0.0
        %724 = vmatpush1.msra.mxu0 0.0
        %725 = vmatprep.subr.mxu0 0.0
        %726 = vmatpush1.msra.mxu0 0.0
        %727 = vmatprep.subr.mxu0 0.0
        %728 = vmatpush1.msra.mxu0 0.0
        %729 = vmatprep.subr.mxu0 0.0
        %730 = vmatpush1.msra.mxu0 0.0
        %731 = vmatprep.subr.mxu0 0.0
        %732 = vmatpush1.msra.mxu0 0.0
        %733 = vmatprep.subr.mxu0 0.0
        %734 = vmatpush1.msra.mxu0 0.0
        %735 = vmatprep.subr.mxu0 0.0
        %736 = vmatpush1.msra.mxu0 0.0
        %737 = vmatprep.subr.mxu0 0.0
        %738 = vmatpush1.msra.mxu0 0.0
        %739 = vmatprep.subr.mxu0 0.0
        %740 = vmatpush1.msra.mxu0 %v535
        %741 = vmatprep.subr.mxu0 0.0
        %742 = vmatpush1.msra.mxu0 %v534
        %743 = vmatprep.subr.mxu0 0.0
        %744 = vmatpush1.msra.mxu0 %v533
        %745 = vmatprep.subr.mxu0 0.0
        %746 = vmatpush1.msra.mxu0 %v532
        %747 = vmatprep.subr.mxu0 0.0
        %748 = vmatpush2.msra.mxu0 0.0
        %749 = vmatprep.subr.mxu0 0.0
        %750 = vmatpush2.msra.mxu0 0.0
        %751 = vmatprep.subr.mxu0 0.0
        %752 = vmatpush2.msra.mxu0 0.0
        %753 = vmatprep.subr.mxu0 0.0
        %754 = vmatpush2.msra.mxu0 0.0
        %755 = vmatprep.subr.mxu0 0.0
        %756 = vmatpush2.msra.mxu0 0.0
        %757 = vmatprep.subr.mxu0 0.0
        %758 = vmatpush2.msra.mxu0 0.0
        %759 = vmatprep.subr.mxu0 0.0
        %760 = vmatpush2.msra.mxu0 0.0
        %761 = vmatprep.subr.mxu0 0.0
        %762 = vmatpush2.msra.mxu0 0.0
        %763 = vmatprep.subr.mxu0 0.0
        %764 = vmatpush2.msra.mxu0 0.0
        %765 = vmatprep.subr.mxu0 0.0
        %766 = vmatpush2.msra.mxu0 0.0
        %767 = vmatprep.subr.mxu0 0.0
        %768 = vmatpush2.msra.mxu0 0.0
        %769 = vmatprep.subr.mxu0 0.0
        %770 = vmatpush2.msra.mxu0 0.0
        %771 = vmatprep.subr.mxu0 0.0
        %772 = vmatpush2.msra.mxu0 0.0
        %773 = vmatprep.subr.mxu0 0.0
        %774 = vmatpush2.msra.mxu0 0.0
        %775 = vmatprep.subr.mxu0 0.0
        %776 = vmatpush2.msra.mxu0 0.0
        %777 = vmatprep.subr.mxu0 0.0
        %778 = vmatpush2.msra.mxu0 0.0
        %779 = vmatprep.mubr.f32.mxu0 0.0
        %780 = vmatmul.mubr.f32.gmra.mxu0 %v559
        %v781 = vpop.f32.mrf.mxu0
        %v782 = vadd.f32 0.0, %v781
        %v783 = vpop.f32.mrf.mxu0
        %784 = vdwg.mxu0
        %786 = vrot.lane.b32.xlu0 %v782, 120
        %v787 = vpop.permute.xlu0 %786
        %789 = vrot.lane.b32.xlu0 %v782, 112
        %v790 = vpop.permute.xlu0 %789
        %792 = vrot.lane.b32.xlu0 %v782, 104
        %v793 = vpop.permute.xlu0 %792
        %vm795 = vcmask 64512
        %v796 = vsel %vm795, %v628, 0
        %v798 = vsel %vm795, %v705, 0
        %800 = vmatprep.subr.mxu0 0.0
        %801 = vmatpush1.xpose.msra.mxu0 0.0
        %802 = vmatprep.subr.mxu0 0.0
        %803 = vmatpush1.xpose.msra.mxu0 0.0
        %804 = vmatprep.subr.mxu0 0.0
        %805 = vmatpush1.xpose.msra.mxu0 0.0
        %806 = vmatprep.subr.mxu0 0.0
        %807 = vmatpush1.xpose.msra.mxu0 0.0
        %808 = vmatprep.subr.mxu0 0.0
        %809 = vmatpush1.xpose.msra.mxu0 0.0
        %810 = vmatprep.subr.mxu0 0.0
        %811 = vmatpush1.xpose.msra.mxu0 0.0
        %812 = vmatprep.subr.mxu0 0.0
        %813 = vmatpush1.xpose.msra.mxu0 0.0
        %814 = vmatprep.subr.mxu0 0.0
        %815 = vmatpush1.xpose.msra.mxu0 0.0
        %816 = vmatprep.subr.mxu0 0.0
        %817 = vmatpush1.xpose.msra.mxu0 0.0
        %818 = vmatprep.subr.mxu0 0.0
        %819 = vmatpush1.xpose.msra.mxu0 0.0
        %820 = vmatprep.subr.mxu0 0.0
        %821 = vmatpush1.xpose.msra.mxu0 0.0
        %822 = vmatprep.subr.mxu0 0.0
        %823 = vmatpush1.xpose.msra.mxu0 0.0
        %824 = vmatprep.subr.mxu0 0.0
        %825 = vmatpush1.xpose.msra.mxu0 0.0
        %826 = vmatprep.subr.mxu0 0.0
        %827 = vmatpush1.xpose.msra.mxu0 0.0
        %828 = vmatprep.subr.mxu0 0.0
        %829 = vmatpush1.xpose.msra.mxu0 0.0
        %830 = vmatprep.subr.mxu0 0.0
        %831 = vmatpush1.xpose.msra.mxu0 %v798
        %832 = vmatprep.subr.mxu0 0.0
        %833 = vmatpush2.xpose.msra.mxu0 0.0
        %834 = vmatprep.subr.mxu0 0.0
        %835 = vmatpush2.xpose.msra.mxu0 0.0
        %836 = vmatprep.subr.mxu0 0.0
        %837 = vmatpush2.xpose.msra.mxu0 0.0
        %838 = vmatprep.subr.mxu0 0.0
        %839 = vmatpush2.xpose.msra.mxu0 0.0
        %840 = vmatprep.subr.mxu0 0.0
        %841 = vmatpush2.xpose.msra.mxu0 0.0
        %842 = vmatprep.subr.mxu0 0.0
        %843 = vmatpush2.xpose.msra.mxu0 0.0
        %844 = vmatprep.subr.mxu0 0.0
        %845 = vmatpush2.xpose.msra.mxu0 0.0
        %846 = vmatprep.subr.mxu0 0.0
        %847 = vmatpush2.xpose.msra.mxu0 0.0
        %848 = vmatprep.subr.mxu0 0.0
        %849 = vmatpush2.xpose.msra.mxu0 0.0
        %850 = vmatprep.subr.mxu0 0.0
        %851 = vmatpush2.xpose.msra.mxu0 0.0
        %852 = vmatprep.subr.mxu0 0.0
        %853 = vmatpush2.xpose.msra.mxu0 0.0
        %854 = vmatprep.subr.mxu0 0.0
        %855 = vmatpush2.xpose.msra.mxu0 0.0
        %856 = vmatprep.subr.mxu0 0.0
        %857 = vmatpush2.xpose.msra.mxu0 0.0
        %858 = vmatprep.subr.mxu0 0.0
        %859 = vmatpush2.xpose.msra.mxu0 0.0
        %860 = vmatprep.subr.mxu0 0.0
        %861 = vmatpush2.xpose.msra.mxu0 0.0
        %862 = vmatprep.subr.mxu0 0.0
        %863 = vmatpush2.xpose.msra.mxu0 0.0
        %864 = vmatprep.mubr.f32.mxu0 0.0
        %865 = vmatmul.mubr.f32.gmra.mxu0 %v796
        %v866 = vpop.f32.mrf.mxu0
        %v867 = vadd.f32 0.0, %v866
        %v868 = vpop.f32.mrf.mxu0
        %869 = vdwg.mxu0
        %v870 = vsel %vm795, %v633, 0
        %v872 = vsel %vm795, %v710, 0
        %874 = vmatprep.subr.mxu0 0.0
        %875 = vmatpush1.xpose.msra.mxu0 0.0
        %876 = vmatprep.subr.mxu0 0.0
        %877 = vmatpush1.xpose.msra.mxu0 0.0
        %878 = vmatprep.subr.mxu0 0.0
        %879 = vmatpush1.xpose.msra.mxu0 0.0
        %880 = vmatprep.subr.mxu0 0.0
        %881 = vmatpush1.xpose.msra.mxu0 0.0
        %882 = vmatprep.subr.mxu0 0.0
        %883 = vmatpush1.xpose.msra.mxu0 0.0
        %884 = vmatprep.subr.mxu0 0.0
        %885 = vmatpush1.xpose.msra.mxu0 0.0
        %886 = vmatprep.subr.mxu0 0.0
        %887 = vmatpush1.xpose.msra.mxu0 0.0
        %888 = vmatprep.subr.mxu0 0.0
        %889 = vmatpush1.xpose.msra.mxu0 0.0
        %890 = vmatprep.subr.mxu0 0.0
        %891 = vmatpush1.xpose.msra.mxu0 0.0
        %892 = vmatprep.subr.mxu0 0.0
        %893 = vmatpush1.xpose.msra.mxu0 0.0
        %894 = vmatprep.subr.mxu0 0.0
        %895 = vmatpush1.xpose.msra.mxu0 0.0
        %896 = vmatprep.subr.mxu0 0.0
        %897 = vmatpush1.xpose.msra.mxu0 0.0
        %898 = vmatprep.subr.mxu0 0.0
        %899 = vmatpush1.xpose.msra.mxu0 0.0
        %900 = vmatprep.subr.mxu0 0.0
        %901 = vmatpush1.xpose.msra.mxu0 0.0
        %902 = vmatprep.subr.mxu0 0.0
        %903 = vmatpush1.xpose.msra.mxu0 0.0
        %904 = vmatprep.subr.mxu0 0.0
        %905 = vmatpush1.xpose.msra.mxu0 %v872
        %906 = vmatprep.subr.mxu0 0.0
        %907 = vmatpush2.xpose.msra.mxu0 0.0
        %908 = vmatprep.subr.mxu0 0.0
        %909 = vmatpush2.xpose.msra.mxu0 0.0
        %910 = vmatprep.subr.mxu0 0.0
        %911 = vmatpush2.xpose.msra.mxu0 0.0
        %912 = vmatprep.subr.mxu0 0.0
        %913 = vmatpush2.xpose.msra.mxu0 0.0
        %914 = vmatprep.subr.mxu0 0.0
        %915 = vmatpush2.xpose.msra.mxu0 0.0
        %916 = vmatprep.subr.mxu0 0.0
        %917 = vmatpush2.xpose.msra.mxu0 0.0
        %918 = vmatprep.subr.mxu0 0.0
        %919 = vmatpush2.xpose.msra.mxu0 0.0
        %920 = vmatprep.subr.mxu0 0.0
        %921 = vmatpush2.xpose.msra.mxu0 0.0
        %922 = vmatprep.subr.mxu0 0.0
        %923 = vmatpush2.xpose.msra.mxu0 0.0
        %924 = vmatprep.subr.mxu0 0.0
        %925 = vmatpush2.xpose.msra.mxu0 0.0
        %926 = vmatprep.subr.mxu0 0.0
        %927 = vmatpush2.xpose.msra.mxu0 0.0
        %928 = vmatprep.subr.mxu0 0.0
        %929 = vmatpush2.xpose.msra.mxu0 0.0
        %930 = vmatprep.subr.mxu0 0.0
        %931 = vmatpush2.xpose.msra.mxu0 0.0
        %932 = vmatprep.subr.mxu0 0.0
        %933 = vmatpush2.xpose.msra.mxu0 0.0
        %934 = vmatprep.subr.mxu0 0.0
        %935 = vmatpush2.xpose.msra.mxu0 0.0
        %936 = vmatprep.subr.mxu0 0.0
        %937 = vmatpush2.xpose.msra.mxu0 0.0
        %938 = vmatprep.mubr.f32.mxu0 0.0
        %939 = vmatmul.mubr.f32.gmra.mxu0 %v870
        %v940 = vpop.f32.mrf.mxu0
        %v941 = vadd.f32 0.0, %v940
        %v942 = vpop.f32.mrf.mxu0
        %943 = vdwg.mxu0
        %v944 = vsel %vm795, %v635, 0
        %v946 = vsel %vm795, %v712, 0
        %948 = vmatprep.subr.mxu0 0.0
        %949 = vmatpush1.xpose.msra.mxu0 0.0
        %950 = vmatprep.subr.mxu0 0.0
        %951 = vmatpush1.xpose.msra.mxu0 0.0
        %952 = vmatprep.subr.mxu0 0.0
        %953 = vmatpush1.xpose.msra.mxu0 0.0
        %954 = vmatprep.subr.mxu0 0.0
        %955 = vmatpush1.xpose.msra.mxu0 0.0
        %956 = vmatprep.subr.mxu0 0.0
        %957 = vmatpush1.xpose.msra.mxu0 0.0
        %958 = vmatprep.subr.mxu0 0.0
        %959 = vmatpush1.xpose.msra.mxu0 0.0
        %960 = vmatprep.subr.mxu0 0.0
        %961 = vmatpush1.xpose.msra.mxu0 0.0
        %962 = vmatprep.subr.mxu0 0.0
        %963 = vmatpush1.xpose.msra.mxu0 0.0
        %964 = vmatprep.subr.mxu0 0.0
        %965 = vmatpush1.xpose.msra.mxu0 0.0
        %966 = vmatprep.subr.mxu0 0.0
        %967 = vmatpush1.xpose.msra.mxu0 0.0
        %968 = vmatprep.subr.mxu0 0.0
        %969 = vmatpush1.xpose.msra.mxu0 0.0
        %970 = vmatprep.subr.mxu0 0.0
        %971 = vmatpush1.xpose.msra.mxu0 0.0
        %972 = vmatprep.subr.mxu0 0.0
        %973 = vmatpush1.xpose.msra.mxu0 0.0
        %974 = vmatprep.subr.mxu0 0.0
        %975 = vmatpush1.xpose.msra.mxu0 0.0
        %976 = vmatprep.subr.mxu0 0.0
        %977 = vmatpush1.xpose.msra.mxu0 0.0
        %978 = vmatprep.subr.mxu0 0.0
        %979 = vmatpush1.xpose.msra.mxu0 %v946
        %980 = vmatprep.subr.mxu0 0.0
        %981 = vmatpush2.xpose.msra.mxu0 0.0
        %982 = vmatprep.subr.mxu0 0.0
        %983 = vmatpush2.xpose.msra.mxu0 0.0
        %984 = vmatprep.subr.mxu0 0.0
        %985 = vmatpush2.xpose.msra.mxu0 0.0
        %986 = vmatprep.subr.mxu0 0.0
        %987 = vmatpush2.xpose.msra.mxu0 0.0
        %988 = vmatprep.subr.mxu0 0.0
        %989 = vmatpush2.xpose.msra.mxu0 0.0
        %990 = vmatprep.subr.mxu0 0.0
        %991 = vmatpush2.xpose.msra.mxu0 0.0
        %992 = vmatprep.subr.mxu0 0.0
        %993 = vmatpush2.xpose.msra.mxu0 0.0
        %994 = vmatprep.subr.mxu0 0.0
        %995 = vmatpush2.xpose.msra.mxu0 0.0
        %996 = vmatprep.subr.mxu0 0.0
        %997 = vmatpush2.xpose.msra.mxu0 0.0
        %998 = vmatprep.subr.mxu0 0.0
        %999 = vmatpush2.xpose.msra.mxu0 0.0
        %1000 = vmatprep.subr.mxu0 0.0
        %1001 = vmatpush2.xpose.msra.mxu0 0.0
        %1002 = vmatprep.subr.mxu0 0.0
        %1003 = vmatpush2.xpose.msra.mxu0 0.0
        %1004 = vmatprep.subr.mxu0 0.0
        %1005 = vmatpush2.xpose.msra.mxu0 0.0
        %1006 = vmatprep.subr.mxu0 0.0
        %1007 = vmatpush2.xpose.msra.mxu0 0.0
        %1008 = vmatprep.subr.mxu0 0.0
        %1009 = vmatpush2.xpose.msra.mxu0 0.0
        %1010 = vmatprep.subr.mxu0 0.0
        %1011 = vmatpush2.xpose.msra.mxu0 0.0
        %1012 = vmatprep.mubr.f32.mxu0 0.0
        %1013 = vmatmul.mubr.f32.gmra.mxu0 %v944
        %v1014 = vpop.f32.mrf.mxu0
        %v1015 = vadd.f32 0.0, %v1014
        %v1016 = vpop.f32.mrf.mxu0
        %1017 = vdwg.mxu0
        %v1018 = vsel %vm795, %v637, 0
        %v1020 = vsel %vm795, %v714, 0
        %1022 = vmatprep.subr.mxu0 0.0
        %1023 = vmatpush1.xpose.msra.mxu0 0.0
        %1024 = vmatprep.subr.mxu0 0.0
        %1025 = vmatpush1.xpose.msra.mxu0 0.0
        %1026 = vmatprep.subr.mxu0 0.0
        %1027 = vmatpush1.xpose.msra.mxu0 0.0
        %1028 = vmatprep.subr.mxu0 0.0
        %1029 = vmatpush1.xpose.msra.mxu0 0.0
        %1030 = vmatprep.subr.mxu0 0.0
        %1031 = vmatpush1.xpose.msra.mxu0 0.0
        %1032 = vmatprep.subr.mxu0 0.0
        %1033 = vmatpush1.xpose.msra.mxu0 0.0
        %1034 = vmatprep.subr.mxu0 0.0
        %1035 = vmatpush1.xpose.msra.mxu0 0.0
        %1036 = vmatprep.subr.mxu0 0.0
        %1037 = vmatpush1.xpose.msra.mxu0 0.0
        %1038 = vmatprep.subr.mxu0 0.0
        %1039 = vmatpush1.xpose.msra.mxu0 0.0
        %1040 = vmatprep.subr.mxu0 0.0
        %1041 = vmatpush1.xpose.msra.mxu0 0.0
        %1042 = vmatprep.subr.mxu0 0.0
        %1043 = vmatpush1.xpose.msra.mxu0 0.0
        %1044 = vmatprep.subr.mxu0 0.0
        %1045 = vmatpush1.xpose.msra.mxu0 0.0
        %1046 = vmatprep.subr.mxu0 0.0
        %1047 = vmatpush1.xpose.msra.mxu0 0.0
        %1048 = vmatprep.subr.mxu0 0.0
        %1049 = vmatpush1.xpose.msra.mxu0 0.0
        %1050 = vmatprep.subr.mxu0 0.0
        %1051 = vmatpush1.xpose.msra.mxu0 0.0
        %1052 = vmatprep.subr.mxu0 0.0
        %1053 = vmatpush1.xpose.msra.mxu0 %v1020
        %1054 = vmatprep.subr.mxu0 0.0
        %1055 = vmatpush2.xpose.msra.mxu0 0.0
        %1056 = vmatprep.subr.mxu0 0.0
        %1057 = vmatpush2.xpose.msra.mxu0 0.0
        %1058 = vmatprep.subr.mxu0 0.0
        %1059 = vmatpush2.xpose.msra.mxu0 0.0
        %1060 = vmatprep.subr.mxu0 0.0
        %1061 = vmatpush2.xpose.msra.mxu0 0.0
        %1062 = vmatprep.subr.mxu0 0.0
        %1063 = vmatpush2.xpose.msra.mxu0 0.0
        %1064 = vmatprep.subr.mxu0 0.0
        %1065 = vmatpush2.xpose.msra.mxu0 0.0
        %1066 = vmatprep.subr.mxu0 0.0
        %1067 = vmatpush2.xpose.msra.mxu0 0.0
        %1068 = vmatprep.subr.mxu0 0.0
        %1069 = vmatpush2.xpose.msra.mxu0 0.0
        %1070 = vmatprep.subr.mxu0 0.0
        %1071 = vmatpush2.xpose.msra.mxu0 0.0
        %1072 = vmatprep.subr.mxu0 0.0
        %1073 = vmatpush2.xpose.msra.mxu0 0.0
        %1074 = vmatprep.subr.mxu0 0.0
        %1075 = vmatpush2.xpose.msra.mxu0 0.0
        %1076 = vmatprep.subr.mxu0 0.0
        %1077 = vmatpush2.xpose.msra.mxu0 0.0
        %1078 = vmatprep.subr.mxu0 0.0
        %1079 = vmatpush2.xpose.msra.mxu0 0.0
        %1080 = vmatprep.subr.mxu0 0.0
        %1081 = vmatpush2.xpose.msra.mxu0 0.0
        %1082 = vmatprep.subr.mxu0 0.0
        %1083 = vmatpush2.xpose.msra.mxu0 0.0
        %1084 = vmatprep.subr.mxu0 0.0
        %1085 = vmatpush2.xpose.msra.mxu0 0.0
        %1086 = vmatprep.mubr.f32.mxu0 0.0
        %1087 = vmatmul.mubr.f32.gmra.mxu0 %v1018
        %v1088 = vpop.f32.mrf.mxu0
        %v1089 = vadd.f32 0.0, %v1088
        %v1090 = vpop.f32.mrf.mxu0
        %1091 = vdwg.mxu0
        %v1092 = vsel %vm795, %v867, -inf
        %1093 = vmax.xlane.f32.xlu0 %v1092
        %v1094 = vpop.xlane.xlu0 %1093
        %v1095 = vsel %vm795, %v941, -inf
        %1096 = vmax.xlane.f32.xlu0 %v1095
        %v1097 = vpop.xlane.xlu0 %1096
        %v1098 = vsel %vm795, %v1015, -inf
        %1099 = vmax.xlane.f32.xlu0 %v1098
        %v1100 = vpop.xlane.xlu0 %1099
        %v1101 = vsel %vm795, %v1089, -inf
        %1102 = vmax.xlane.f32.xlu0 %v1101
        %v1103 = vpop.xlane.xlu0 %1102
        %v1104 = vsub.f32 %v867, %v1094
        %v1105 = vsub.f32 %v941, %v1097
        %v1106 = vsub.f32 %v1015, %v1100
        %v1107 = vsub.f32 %v1089, %v1103
        %v1108 = vmul.f32 %v1104, 1.442695
        %v1109 = vpow.pop %v1108
        %v1110 = vmul.f32 %v1105, 1.442695
        %v1111 = vpow.pop %v1110
        %v1112 = vmul.f32 %v1106, 1.442695
        %v1113 = vpow.pop %v1112
        %v1114 = vmul.f32 %v1107, 1.442695
        %v1115 = vpow.pop %v1114
        %v1116 = vsel %vm795, %v1109, 0.0
        %1117 = vadd.xlane.f32.xlu0 %v1116
        %v1118 = vpop.xlane.xlu0 %1117
        %v1119 = vsel %vm795, %v1111, 0.0
        %1120 = vadd.xlane.f32.xlu0 %v1119
        %v1121 = vpop.xlane.xlu0 %1120
        %v1122 = vsel %vm795, %v1113, 0.0
        %1123 = vadd.xlane.f32.xlu0 %v1122
        %v1124 = vpop.xlane.xlu0 %1123
        %v1125 = vsel %vm795, %v1115, 0.0
        %1126 = vadd.xlane.f32.xlu0 %v1125
        %v1127 = vpop.xlane.xlu0 %1126
        %v1128 = vrcp.pop %v1118
        %v1129 = vrcp.pop %v1121
        %v1130 = vrcp.pop %v1124
        %v1131 = vrcp.pop %v1127
        %v1132 = vmul.f32 %v1109, %v1128
        %v1133 = vmul.f32 %v1111, %v1129
        %v1134 = vmul.f32 %v1113, %v1130
        %v1135 = vmul.f32 %v1115, %v1131
        %v1137 = vsel %vm795, %v1132, 0
        %1139 = vmatprep.subr.mxu0 0.0
        %1140 = vmatpush1.msra.mxu0 0.0
        %1141 = vmatprep.subr.mxu0 0.0
        %1142 = vmatpush1.msra.mxu0 0.0
        %1143 = vmatprep.subr.mxu0 0.0
        %1144 = vmatpush1.msra.mxu0 0.0
        %1145 = vmatprep.subr.mxu0 0.0
        %1146 = vmatpush1.msra.mxu0 0.0
        %1147 = vmatprep.subr.mxu0 0.0
        %1148 = vmatpush1.msra.mxu0 0.0
        %1149 = vmatprep.subr.mxu0 0.0
        %1150 = vmatpush1.msra.mxu0 0.0
        %1151 = vmatprep.subr.mxu0 0.0
        %1152 = vmatpush1.msra.mxu0 0.0
        %1153 = vmatprep.subr.mxu0 0.0
        %1154 = vmatpush1.msra.mxu0 0.0
        %1155 = vmatprep.subr.mxu0 0.0
        %1156 = vmatpush1.msra.mxu0 0.0
        %1157 = vmatprep.subr.mxu0 0.0
        %1158 = vmatpush1.msra.mxu0 0.0
        %1159 = vmatprep.subr.mxu0 0.0
        %1160 = vmatpush1.msra.mxu0 0.0
        %1161 = vmatprep.subr.mxu0 0.0
        %1162 = vmatpush1.msra.mxu0 0.0
        %1163 = vmatprep.subr.mxu0 0.0
        %1164 = vmatpush1.msra.mxu0 0.0
        %1165 = vmatprep.subr.mxu0 0.0
        %1166 = vmatpush1.msra.mxu0 0.0
        %1167 = vmatprep.subr.mxu0 0.0
        %1168 = vmatpush1.msra.mxu0 0.0
        %1169 = vmatprep.subr.mxu0 0.0
        %1170 = vmatpush1.msra.mxu0 %v782
        %1171 = vmatprep.subr.mxu0 0.0
        %1172 = vmatpush2.msra.mxu0 0.0
        %1173 = vmatprep.subr.mxu0 0.0
        %1174 = vmatpush2.msra.mxu0 0.0
        %1175 = vmatprep.subr.mxu0 0.0
        %1176 = vmatpush2.msra.mxu0 0.0
        %1177 = vmatprep.subr.mxu0 0.0
        %1178 = vmatpush2.msra.mxu0 0.0
        %1179 = vmatprep.subr.mxu0 0.0
        %1180 = vmatpush2.msra.mxu0 0.0
        %1181 = vmatprep.subr.mxu0 0.0
        %1182 = vmatpush2.msra.mxu0 0.0
        %1183 = vmatprep.subr.mxu0 0.0
        %1184 = vmatpush2.msra.mxu0 0.0
        %1185 = vmatprep.subr.mxu0 0.0
        %1186 = vmatpush2.msra.mxu0 0.0
        %1187 = vmatprep.subr.mxu0 0.0
        %1188 = vmatpush2.msra.mxu0 0.0
        %1189 = vmatprep.subr.mxu0 0.0
        %1190 = vmatpush2.msra.mxu0 0.0
        %1191 = vmatprep.subr.mxu0 0.0
        %1192 = vmatpush2.msra.mxu0 0.0
        %1193 = vmatprep.subr.mxu0 0.0
        %1194 = vmatpush2.msra.mxu0 0.0
        %1195 = vmatprep.subr.mxu0 0.0
        %1196 = vmatpush2.msra.mxu0 0.0
        %1197 = vmatprep.subr.mxu0 0.0
        %1198 = vmatpush2.msra.mxu0 0.0
        %1199 = vmatprep.subr.mxu0 0.0
        %1200 = vmatpush2.msra.mxu0 0.0
        %1201 = vmatprep.subr.mxu0 0.0
        %1202 = vmatpush2.msra.mxu0 0.0
        %1203 = vmatprep.mubr.f32.mxu0 0.0
        %1204 = vmatmul.mubr.f32.gmra.mxu0 %v1137
        %v1205 = vpop.f32.mrf.mxu0
        %v1206 = vadd.f32 0.0, %v1205
        %v1207 = vpop.f32.mrf.mxu0
        %1208 = vdwg.mxu0
        %v1210 = vsel %vm795, %v1133, 0
        %1212 = vmatprep.subr.mxu0 0.0
        %1213 = vmatpush1.msra.mxu0 0.0
        %1214 = vmatprep.subr.mxu0 0.0
        %1215 = vmatpush1.msra.mxu0 0.0
        %1216 = vmatprep.subr.mxu0 0.0
        %1217 = vmatpush1.msra.mxu0 0.0
        %1218 = vmatprep.subr.mxu0 0.0
        %1219 = vmatpush1.msra.mxu0 0.0
        %1220 = vmatprep.subr.mxu0 0.0
        %1221 = vmatpush1.msra.mxu0 0.0
        %1222 = vmatprep.subr.mxu0 0.0
        %1223 = vmatpush1.msra.mxu0 0.0
        %1224 = vmatprep.subr.mxu0 0.0
        %1225 = vmatpush1.msra.mxu0 0.0
        %1226 = vmatprep.subr.mxu0 0.0
        %1227 = vmatpush1.msra.mxu0 0.0
        %1228 = vmatprep.subr.mxu0 0.0
        %1229 = vmatpush1.msra.mxu0 0.0
        %1230 = vmatprep.subr.mxu0 0.0
        %1231 = vmatpush1.msra.mxu0 0.0
        %1232 = vmatprep.subr.mxu0 0.0
        %1233 = vmatpush1.msra.mxu0 0.0
        %1234 = vmatprep.subr.mxu0 0.0
        %1235 = vmatpush1.msra.mxu0 0.0
        %1236 = vmatprep.subr.mxu0 0.0
        %1237 = vmatpush1.msra.mxu0 0.0
        %1238 = vmatprep.subr.mxu0 0.0
        %1239 = vmatpush1.msra.mxu0 0.0
        %1240 = vmatprep.subr.mxu0 0.0
        %1241 = vmatpush1.msra.mxu0 0.0
        %1242 = vmatprep.subr.mxu0 0.0
        %1243 = vmatpush1.msra.mxu0 %v787
        %1244 = vmatprep.subr.mxu0 0.0
        %1245 = vmatpush2.msra.mxu0 0.0
        %1246 = vmatprep.subr.mxu0 0.0
        %1247 = vmatpush2.msra.mxu0 0.0
        %1248 = vmatprep.subr.mxu0 0.0
        %1249 = vmatpush2.msra.mxu0 0.0
        %1250 = vmatprep.subr.mxu0 0.0
        %1251 = vmatpush2.msra.mxu0 0.0
        %1252 = vmatprep.subr.mxu0 0.0
        %1253 = vmatpush2.msra.mxu0 0.0
        %1254 = vmatprep.subr.mxu0 0.0
        %1255 = vmatpush2.msra.mxu0 0.0
        %1256 = vmatprep.subr.mxu0 0.0
        %1257 = vmatpush2.msra.mxu0 0.0
        %1258 = vmatprep.subr.mxu0 0.0
        %1259 = vmatpush2.msra.mxu0 0.0
        %1260 = vmatprep.subr.mxu0 0.0
        %1261 = vmatpush2.msra.mxu0 0.0
        %1262 = vmatprep.subr.mxu0 0.0
        %1263 = vmatpush2.msra.mxu0 0.0
        %1264 = vmatprep.subr.mxu0 0.0
        %1265 = vmatpush2.msra.mxu0 0.0
        %1266 = vmatprep.subr.mxu0 0.0
        %1267 = vmatpush2.msra.mxu0 0.0
        %1268 = vmatprep.subr.mxu0 0.0
        %1269 = vmatpush2.msra.mxu0 0.0
        %1270 = vmatprep.subr.mxu0 0.0
        %1271 = vmatpush2.msra.mxu0 0.0
        %1272 = vmatprep.subr.mxu0 0.0
        %1273 = vmatpush2.msra.mxu0 0.0
        %1274 = vmatprep.subr.mxu0 0.0
        %1275 = vmatpush2.msra.mxu0 0.0
        %1276 = vmatprep.mubr.f32.mxu0 0.0
        %1277 = vmatmul.mubr.f32.gmra.mxu0 %v1210
        %v1278 = vpop.f32.mrf.mxu0
        %v1279 = vadd.f32 0.0, %v1278
        %v1280 = vpop.f32.mrf.mxu0
        %1281 = vdwg.mxu0
        %v1283 = vsel %vm795, %v1134, 0
        %1285 = vmatprep.subr.mxu0 0.0
        %1286 = vmatpush1.msra.mxu0 0.0
        %1287 = vmatprep.subr.mxu0 0.0
        %1288 = vmatpush1.msra.mxu0 0.0
        %1289 = vmatprep.subr.mxu0 0.0
        %1290 = vmatpush1.msra.mxu0 0.0
        %1291 = vmatprep.subr.mxu0 0.0
        %1292 = vmatpush1.msra.mxu0 0.0
        %1293 = vmatprep.subr.mxu0 0.0
        %1294 = vmatpush1.msra.mxu0 0.0
        %1295 = vmatprep.subr.mxu0 0.0
        %1296 = vmatpush1.msra.mxu0 0.0
        %1297 = vmatprep.subr.mxu0 0.0
        %1298 = vmatpush1.msra.mxu0 0.0
        %1299 = vmatprep.subr.mxu0 0.0
        %1300 = vmatpush1.msra.mxu0 0.0
        %1301 = vmatprep.subr.mxu0 0.0
        %1302 = vmatpush1.msra.mxu0 0.0
        %1303 = vmatprep.subr.mxu0 0.0
        %1304 = vmatpush1.msra.mxu0 0.0
        %1305 = vmatprep.subr.mxu0 0.0
        %1306 = vmatpush1.msra.mxu0 0.0
        %1307 = vmatprep.subr.mxu0 0.0
        %1308 = vmatpush1.msra.mxu0 0.0
        %1309 = vmatprep.subr.mxu0 0.0
        %1310 = vmatpush1.msra.mxu0 0.0
        %1311 = vmatprep.subr.mxu0 0.0
        %1312 = vmatpush1.msra.mxu0 0.0
        %1313 = vmatprep.subr.mxu0 0.0
        %1314 = vmatpush1.msra.mxu0 0.0
        %1315 = vmatprep.subr.mxu0 0.0
        %1316 = vmatpush1.msra.mxu0 %v790
        %1317 = vmatprep.subr.mxu0 0.0
        %1318 = vmatpush2.msra.mxu0 0.0
        %1319 = vmatprep.subr.mxu0 0.0
        %1320 = vmatpush2.msra.mxu0 0.0
        %1321 = vmatprep.subr.mxu0 0.0
        %1322 = vmatpush2.msra.mxu0 0.0
        %1323 = vmatprep.subr.mxu0 0.0
        %1324 = vmatpush2.msra.mxu0 0.0
        %1325 = vmatprep.subr.mxu0 0.0
        %1326 = vmatpush2.msra.mxu0 0.0
        %1327 = vmatprep.subr.mxu0 0.0
        %1328 = vmatpush2.msra.mxu0 0.0
        %1329 = vmatprep.subr.mxu0 0.0
        %1330 = vmatpush2.msra.mxu0 0.0
        %1331 = vmatprep.subr.mxu0 0.0
        %1332 = vmatpush2.msra.mxu0 0.0
        %1333 = vmatprep.subr.mxu0 0.0
        %1334 = vmatpush2.msra.mxu0 0.0
        %1335 = vmatprep.subr.mxu0 0.0
        %1336 = vmatpush2.msra.mxu0 0.0
        %1337 = vmatprep.subr.mxu0 0.0
        %1338 = vmatpush2.msra.mxu0 0.0
        %1339 = vmatprep.subr.mxu0 0.0
        %1340 = vmatpush2.msra.mxu0 0.0
        %1341 = vmatprep.subr.mxu0 0.0
        %1342 = vmatpush2.msra.mxu0 0.0
        %1343 = vmatprep.subr.mxu0 0.0
        %1344 = vmatpush2.msra.mxu0 0.0
        %1345 = vmatprep.subr.mxu0 0.0
        %1346 = vmatpush2.msra.mxu0 0.0
        %1347 = vmatprep.subr.mxu0 0.0
        %1348 = vmatpush2.msra.mxu0 0.0
        %1349 = vmatprep.mubr.f32.mxu0 0.0
        %1350 = vmatmul.mubr.f32.gmra.mxu0 %v1283
        %v1351 = vpop.f32.mrf.mxu0
        %v1352 = vadd.f32 0.0, %v1351
        %v1353 = vpop.f32.mrf.mxu0
        %1354 = vdwg.mxu0
        %v1356 = vsel %vm795, %v1135, 0
        %1358 = vmatprep.subr.mxu0 0.0
        %1359 = vmatpush1.msra.mxu0 0.0
        %1360 = vmatprep.subr.mxu0 0.0
        %1361 = vmatpush1.msra.mxu0 0.0
        %1362 = vmatprep.subr.mxu0 0.0
        %1363 = vmatpush1.msra.mxu0 0.0
        %1364 = vmatprep.subr.mxu0 0.0
        %1365 = vmatpush1.msra.mxu0 0.0
        %1366 = vmatprep.subr.mxu0 0.0
        %1367 = vmatpush1.msra.mxu0 0.0
        %1368 = vmatprep.subr.mxu0 0.0
        %1369 = vmatpush1.msra.mxu0 0.0
        %1370 = vmatprep.subr.mxu0 0.0
        %1371 = vmatpush1.msra.mxu0 0.0
        %1372 = vmatprep.subr.mxu0 0.0
        %1373 = vmatpush1.msra.mxu0 0.0
        %1374 = vmatprep.subr.mxu0 0.0
        %1375 = vmatpush1.msra.mxu0 0.0
        %1376 = vmatprep.subr.mxu0 0.0
        %1377 = vmatpush1.msra.mxu0 0.0
        %1378 = vmatprep.subr.mxu0 0.0
        %1379 = vmatpush1.msra.mxu0 0.0
        %1380 = vmatprep.subr.mxu0 0.0
        %1381 = vmatpush1.msra.mxu0 0.0
        %1382 = vmatprep.subr.mxu0 0.0
        %1383 = vmatpush1.msra.mxu0 0.0
        %1384 = vmatprep.subr.mxu0 0.0
        %1385 = vmatpush1.msra.mxu0 0.0
        %1386 = vmatprep.subr.mxu0 0.0
        %1387 = vmatpush1.msra.mxu0 0.0
        %1388 = vmatprep.subr.mxu0 0.0
        %1389 = vmatpush1.msra.mxu0 %v793
        %1390 = vmatprep.subr.mxu0 0.0
        %1391 = vmatpush2.msra.mxu0 0.0
        %1392 = vmatprep.subr.mxu0 0.0
        %1393 = vmatpush2.msra.mxu0 0.0
        %1394 = vmatprep.subr.mxu0 0.0
        %1395 = vmatpush2.msra.mxu0 0.0
        %1396 = vmatprep.subr.mxu0 0.0
        %1397 = vmatpush2.msra.mxu0 0.0
        %1398 = vmatprep.subr.mxu0 0.0
        %1399 = vmatpush2.msra.mxu0 0.0
        %1400 = vmatprep.subr.mxu0 0.0
        %1401 = vmatpush2.msra.mxu0 0.0
        %1402 = vmatprep.subr.mxu0 0.0
        %1403 = vmatpush2.msra.mxu0 0.0
        %1404 = vmatprep.subr.mxu0 0.0
        %1405 = vmatpush2.msra.mxu0 0.0
        %1406 = vmatprep.subr.mxu0 0.0
        %1407 = vmatpush2.msra.mxu0 0.0
        %1408 = vmatprep.subr.mxu0 0.0
        %1409 = vmatpush2.msra.mxu0 0.0
        %1410 = vmatprep.subr.mxu0 0.0
        %1411 = vmatpush2.msra.mxu0 0.0
        %1412 = vmatprep.subr.mxu0 0.0
        %1413 = vmatpush2.msra.mxu0 0.0
        %1414 = vmatprep.subr.mxu0 0.0
        %1415 = vmatpush2.msra.mxu0 0.0
        %1416 = vmatprep.subr.mxu0 0.0
        %1417 = vmatpush2.msra.mxu0 0.0
        %1418 = vmatprep.subr.mxu0 0.0
        %1419 = vmatpush2.msra.mxu0 0.0
        %1420 = vmatprep.subr.mxu0 0.0
        %1421 = vmatpush2.msra.mxu0 0.0
        %1422 = vmatprep.mubr.f32.mxu0 0.0
        %1423 = vmatmul.mubr.f32.gmra.mxu0 %v1356
        %v1424 = vpop.f32.mrf.mxu0
        %v1425 = vadd.f32 0.0, %v1424
        %v1426 = vpop.f32.mrf.mxu0
        %1427 = vdwg.mxu0
        %v1429 = vsel %vm795, %v1279, 0
        %1431 = vmatprep.subr.mxu0 0.0
        %1432 = vmatpush1.msra.mxu0 0.0
        %1433 = vmatprep.subr.mxu0 0.0
        %1434 = vmatpush1.msra.mxu0 0.0
        %1435 = vmatprep.subr.mxu0 0.0
        %1436 = vmatpush1.msra.mxu0 0.0
        %1437 = vmatprep.subr.mxu0 0.0
        %1438 = vmatpush1.msra.mxu0 0.0
        %1439 = vmatprep.subr.mxu0 0.0
        %1440 = vmatpush1.msra.mxu0 0.0
        %1441 = vmatprep.subr.mxu0 0.0
        %1442 = vmatpush1.msra.mxu0 0.0
        %1443 = vmatprep.subr.mxu0 0.0
        %1444 = vmatpush1.msra.mxu0 0.0
        %1445 = vmatprep.subr.mxu0 0.0
        %1446 = vmatpush1.msra.mxu0 0.0
        %1447 = vmatprep.subr.mxu0 0.0
        %1448 = vmatpush1.msra.mxu0 0.0
        %1449 = vmatprep.subr.mxu0 0.0
        %1450 = vmatpush1.msra.mxu0 0.0
        %1451 = vmatprep.subr.mxu0 0.0
        %1452 = vmatpush1.msra.mxu0 0.0
        %1453 = vmatprep.subr.mxu0 0.0
        %1454 = vmatpush1.msra.mxu0 0.0
        %1455 = vmatprep.subr.mxu0 0.0
        %1456 = vmatpush1.msra.mxu0 0.0
        %1457 = vmatprep.subr.mxu0 0.0
        %1458 = vmatpush1.msra.mxu0 0.0
        %1459 = vmatprep.subr.mxu0 0.0
        %1460 = vmatpush1.msra.mxu0 0.0
        %1461 = vmatprep.subr.mxu0 0.0
        %1462 = vmatpush1.msra.mxu0 %v537
        %1463 = vmatprep.subr.mxu0 0.0
        %1464 = vmatpush2.msra.mxu0 0.0
        %1465 = vmatprep.subr.mxu0 0.0
        %1466 = vmatpush2.msra.mxu0 0.0
        %1467 = vmatprep.subr.mxu0 0.0
        %1468 = vmatpush2.msra.mxu0 0.0
        %1469 = vmatprep.subr.mxu0 0.0
        %1470 = vmatpush2.msra.mxu0 0.0
        %1471 = vmatprep.subr.mxu0 0.0
        %1472 = vmatpush2.msra.mxu0 0.0
        %1473 = vmatprep.subr.mxu0 0.0
        %1474 = vmatpush2.msra.mxu0 0.0
        %1475 = vmatprep.subr.mxu0 0.0
        %1476 = vmatpush2.msra.mxu0 0.0
        %1477 = vmatprep.subr.mxu0 0.0
        %1478 = vmatpush2.msra.mxu0 0.0
        %1479 = vmatprep.subr.mxu0 0.0
        %1480 = vmatpush2.msra.mxu0 0.0
        %1481 = vmatprep.subr.mxu0 0.0
        %1482 = vmatpush2.msra.mxu0 0.0
        %1483 = vmatprep.subr.mxu0 0.0
        %1484 = vmatpush2.msra.mxu0 0.0
        %1485 = vmatprep.subr.mxu0 0.0
        %1486 = vmatpush2.msra.mxu0 0.0
        %1487 = vmatprep.subr.mxu0 0.0
        %1488 = vmatpush2.msra.mxu0 0.0
        %1489 = vmatprep.subr.mxu0 0.0
        %1490 = vmatpush2.msra.mxu0 0.0
        %1491 = vmatprep.subr.mxu0 0.0
        %1492 = vmatpush2.msra.mxu0 0.0
        %1493 = vmatprep.subr.mxu0 0.0
        %1494 = vmatpush2.msra.mxu0 0.0
        %1495 = vmatprep.mubr.f32.mxu0 0.0
        %1496 = vmatmul.mubr.f32.gmra.mxu0 %v1429
        %v1497 = vpop.f32.mrf.mxu0
        %v1498 = vadd.f32 0.0, %v1497
        %v1499 = vpop.f32.mrf.mxu0
        %1500 = vdwg.mxu0
        %v1502 = vsel %vm795, %v1206, 0
        %1504 = vmatprep.subr.mxu0 0.0
        %1505 = vmatpush1.msra.mxu0 0.0
        %1506 = vmatprep.subr.mxu0 0.0
        %1507 = vmatpush1.msra.mxu0 0.0
        %1508 = vmatprep.subr.mxu0 0.0
        %1509 = vmatpush1.msra.mxu0 0.0
        %1510 = vmatprep.subr.mxu0 0.0
        %1511 = vmatpush1.msra.mxu0 0.0
        %1512 = vmatprep.subr.mxu0 0.0
        %1513 = vmatpush1.msra.mxu0 0.0
        %1514 = vmatprep.subr.mxu0 0.0
        %1515 = vmatpush1.msra.mxu0 0.0
        %1516 = vmatprep.subr.mxu0 0.0
        %1517 = vmatpush1.msra.mxu0 0.0
        %1518 = vmatprep.subr.mxu0 0.0
        %1519 = vmatpush1.msra.mxu0 0.0
        %1520 = vmatprep.subr.mxu0 0.0
        %1521 = vmatpush1.msra.mxu0 0.0
        %1522 = vmatprep.subr.mxu0 0.0
        %1523 = vmatpush1.msra.mxu0 0.0
        %1524 = vmatprep.subr.mxu0 0.0
        %1525 = vmatpush1.msra.mxu0 0.0
        %1526 = vmatprep.subr.mxu0 0.0
        %1527 = vmatpush1.msra.mxu0 0.0
        %1528 = vmatprep.subr.mxu0 0.0
        %1529 = vmatpush1.msra.mxu0 0.0
        %1530 = vmatprep.subr.mxu0 0.0
        %1531 = vmatpush1.msra.mxu0 0.0
        %1532 = vmatprep.subr.mxu0 0.0
        %1533 = vmatpush1.msra.mxu0 0.0
        %1534 = vmatprep.subr.mxu0 0.0
        %1535 = vmatpush1.msra.mxu0 %v536
        %1536 = vmatprep.subr.mxu0 0.0
        %1537 = vmatpush2.msra.mxu0 0.0
        %1538 = vmatprep.subr.mxu0 0.0
        %1539 = vmatpush2.msra.mxu0 0.0
        %1540 = vmatprep.subr.mxu0 0.0
        %1541 = vmatpush2.msra.mxu0 0.0
        %1542 = vmatprep.subr.mxu0 0.0
        %1543 = vmatpush2.msra.mxu0 0.0
        %1544 = vmatprep.subr.mxu0 0.0
        %1545 = vmatpush2.msra.mxu0 0.0
        %1546 = vmatprep.subr.mxu0 0.0
        %1547 = vmatpush2.msra.mxu0 0.0
        %1548 = vmatprep.subr.mxu0 0.0
        %1549 = vmatpush2.msra.mxu0 0.0
        %1550 = vmatprep.subr.mxu0 0.0
        %1551 = vmatpush2.msra.mxu0 0.0
        %1552 = vmatprep.subr.mxu0 0.0
        %1553 = vmatpush2.msra.mxu0 0.0
        %1554 = vmatprep.subr.mxu0 0.0
        %1555 = vmatpush2.msra.mxu0 0.0
        %1556 = vmatprep.subr.mxu0 0.0
        %1557 = vmatpush2.msra.mxu0 0.0
        %1558 = vmatprep.subr.mxu0 0.0
        %1559 = vmatpush2.msra.mxu0 0.0
        %1560 = vmatprep.subr.mxu0 0.0
        %1561 = vmatpush2.msra.mxu0 0.0
        %1562 = vmatprep.subr.mxu0 0.0
        %1563 = vmatpush2.msra.mxu0 0.0
        %1564 = vmatprep.subr.mxu0 0.0
        %1565 = vmatpush2.msra.mxu0 0.0
        %1566 = vmatprep.subr.mxu0 0.0
        %1567 = vmatpush2.msra.mxu0 0.0
        %1568 = vmatprep.mubr.f32.mxu0 0.0
        %1569 = vmatmul.mubr.f32.gmra.mxu0 %v1502
        %v1570 = vpop.f32.mrf.mxu0
        %v1571 = vadd.f32 %v1498, %v1570
        %v1572 = vpop.f32.mrf.mxu0
        %1573 = vdwg.mxu0
        %v1575 = vsel %vm795, %v1352, 0
        %1577 = vmatprep.subr.mxu0 0.0
        %1578 = vmatpush1.msra.mxu0 0.0
        %1579 = vmatprep.subr.mxu0 0.0
        %1580 = vmatpush1.msra.mxu0 0.0
        %1581 = vmatprep.subr.mxu0 0.0
        %1582 = vmatpush1.msra.mxu0 0.0
        %1583 = vmatprep.subr.mxu0 0.0
        %1584 = vmatpush1.msra.mxu0 0.0
        %1585 = vmatprep.subr.mxu0 0.0
        %1586 = vmatpush1.msra.mxu0 0.0
        %1587 = vmatprep.subr.mxu0 0.0
        %1588 = vmatpush1.msra.mxu0 0.0
        %1589 = vmatprep.subr.mxu0 0.0
        %1590 = vmatpush1.msra.mxu0 0.0
        %1591 = vmatprep.subr.mxu0 0.0
        %1592 = vmatpush1.msra.mxu0 0.0
        %1593 = vmatprep.subr.mxu0 0.0
        %1594 = vmatpush1.msra.mxu0 0.0
        %1595 = vmatprep.subr.mxu0 0.0
        %1596 = vmatpush1.msra.mxu0 0.0
        %1597 = vmatprep.subr.mxu0 0.0
        %1598 = vmatpush1.msra.mxu0 0.0
        %1599 = vmatprep.subr.mxu0 0.0
        %1600 = vmatpush1.msra.mxu0 0.0
        %1601 = vmatprep.subr.mxu0 0.0
        %1602 = vmatpush1.msra.mxu0 0.0
        %1603 = vmatprep.subr.mxu0 0.0
        %1604 = vmatpush1.msra.mxu0 0.0
        %1605 = vmatprep.subr.mxu0 0.0
        %1606 = vmatpush1.msra.mxu0 0.0
        %1607 = vmatprep.subr.mxu0 0.0
        %1608 = vmatpush1.msra.mxu0 %v538
        %1609 = vmatprep.subr.mxu0 0.0
        %1610 = vmatpush2.msra.mxu0 0.0
        %1611 = vmatprep.subr.mxu0 0.0
        %1612 = vmatpush2.msra.mxu0 0.0
        %1613 = vmatprep.subr.mxu0 0.0
        %1614 = vmatpush2.msra.mxu0 0.0
        %1615 = vmatprep.subr.mxu0 0.0
        %1616 = vmatpush2.msra.mxu0 0.0
        %1617 = vmatprep.subr.mxu0 0.0
        %1618 = vmatpush2.msra.mxu0 0.0
        %1619 = vmatprep.subr.mxu0 0.0
        %1620 = vmatpush2.msra.mxu0 0.0
        %1621 = vmatprep.subr.mxu0 0.0
        %1622 = vmatpush2.msra.mxu0 0.0
        %1623 = vmatprep.subr.mxu0 0.0
        %1624 = vmatpush2.msra.mxu0 0.0
        %1625 = vmatprep.subr.mxu0 0.0
        %1626 = vmatpush2.msra.mxu0 0.0
        %1627 = vmatprep.subr.mxu0 0.0
        %1628 = vmatpush2.msra.mxu0 0.0
        %1629 = vmatprep.subr.mxu0 0.0
        %1630 = vmatpush2.msra.mxu0 0.0
        %1631 = vmatprep.subr.mxu0 0.0
        %1632 = vmatpush2.msra.mxu0 0.0
        %1633 = vmatprep.subr.mxu0 0.0
        %1634 = vmatpush2.msra.mxu0 0.0
        %1635 = vmatprep.subr.mxu0 0.0
        %1636 = vmatpush2.msra.mxu0 0.0
        %1637 = vmatprep.subr.mxu0 0.0
        %1638 = vmatpush2.msra.mxu0 0.0
        %1639 = vmatprep.subr.mxu0 0.0
        %1640 = vmatpush2.msra.mxu0 0.0
        %1641 = vmatprep.mubr.f32.mxu0 0.0
        %1642 = vmatmul.mubr.f32.gmra.mxu0 %v1575
        %v1643 = vpop.f32.mrf.mxu0
        %v1644 = vadd.f32 0.0, %v1643
        %v1645 = vpop.f32.mrf.mxu0
        %1646 = vdwg.mxu0
        %v1647 = vadd.f32 %v1571, %v1644
        %v1649 = vsel %vm795, %v1425, 0
        %1651 = vmatprep.subr.mxu0 0.0
        %1652 = vmatpush1.msra.mxu0 0.0
        %1653 = vmatprep.subr.mxu0 0.0
        %1654 = vmatpush1.msra.mxu0 0.0
        %1655 = vmatprep.subr.mxu0 0.0
        %1656 = vmatpush1.msra.mxu0 0.0
        %1657 = vmatprep.subr.mxu0 0.0
        %1658 = vmatpush1.msra.mxu0 0.0
        %1659 = vmatprep.subr.mxu0 0.0
        %1660 = vmatpush1.msra.mxu0 0.0
        %1661 = vmatprep.subr.mxu0 0.0
        %1662 = vmatpush1.msra.mxu0 0.0
        %1663 = vmatprep.subr.mxu0 0.0
        %1664 = vmatpush1.msra.mxu0 0.0
        %1665 = vmatprep.subr.mxu0 0.0
        %1666 = vmatpush1.msra.mxu0 0.0
        %1667 = vmatprep.subr.mxu0 0.0
        %1668 = vmatpush1.msra.mxu0 0.0
        %1669 = vmatprep.subr.mxu0 0.0
        %1670 = vmatpush1.msra.mxu0 0.0
        %1671 = vmatprep.subr.mxu0 0.0
        %1672 = vmatpush1.msra.mxu0 0.0
        %1673 = vmatprep.subr.mxu0 0.0
        %1674 = vmatpush1.msra.mxu0 0.0
        %1675 = vmatprep.subr.mxu0 0.0
        %1676 = vmatpush1.msra.mxu0 0.0
        %1677 = vmatprep.subr.mxu0 0.0
        %1678 = vmatpush1.msra.mxu0 0.0
        %1679 = vmatprep.subr.mxu0 0.0
        %1680 = vmatpush1.msra.mxu0 0.0
        %1681 = vmatprep.subr.mxu0 0.0
        %1682 = vmatpush1.msra.mxu0 %v539
        %1683 = vmatprep.subr.mxu0 0.0
        %1684 = vmatpush2.msra.mxu0 0.0
        %1685 = vmatprep.subr.mxu0 0.0
        %1686 = vmatpush2.msra.mxu0 0.0
        %1687 = vmatprep.subr.mxu0 0.0
        %1688 = vmatpush2.msra.mxu0 0.0
        %1689 = vmatprep.subr.mxu0 0.0
        %1690 = vmatpush2.msra.mxu0 0.0
        %1691 = vmatprep.subr.mxu0 0.0
        %1692 = vmatpush2.msra.mxu0 0.0
        %1693 = vmatprep.subr.mxu0 0.0
        %1694 = vmatpush2.msra.mxu0 0.0
        %1695 = vmatprep.subr.mxu0 0.0
        %1696 = vmatpush2.msra.mxu0 0.0
        %1697 = vmatprep.subr.mxu0 0.0
        %1698 = vmatpush2.msra.mxu0 0.0
        %1699 = vmatprep.subr.mxu0 0.0
        %1700 = vmatpush2.msra.mxu0 0.0
        %1701 = vmatprep.subr.mxu0 0.0
        %1702 = vmatpush2.msra.mxu0 0.0
        %1703 = vmatprep.subr.mxu0 0.0
        %1704 = vmatpush2.msra.mxu0 0.0
        %1705 = vmatprep.subr.mxu0 0.0
        %1706 = vmatpush2.msra.mxu0 0.0
        %1707 = vmatprep.subr.mxu0 0.0
        %1708 = vmatpush2.msra.mxu0 0.0
        %1709 = vmatprep.subr.mxu0 0.0
        %1710 = vmatpush2.msra.mxu0 0.0
        %1711 = vmatprep.subr.mxu0 0.0
        %1712 = vmatpush2.msra.mxu0 0.0
        %1713 = vmatprep.subr.mxu0 0.0
        %1714 = vmatpush2.msra.mxu0 0.0
        %1715 = vmatprep.mubr.f32.mxu0 0.0
        %1716 = vmatmul.mubr.f32.gmra.mxu0 %v1649
        %v1717 = vpop.f32.mrf.mxu0
        %v1718 = vadd.f32 0.0, %v1717
        %v1719 = vpop.f32.mrf.mxu0
        %1720 = vdwg.mxu0
        %v1721 = vadd.f32 %v1647, %v1718
        %v1723 = vlaneseq
        %v1724 = vshrl.u32 %v1723, 7
        %v1725 = vsub.s32 0, %v1724
        %v1726 = vrot.slane %v540, %v1725
        %v1728 = vadd.f32 %v1721, %v1726
        %v1729 = vadd.f32 %v1728, %v522
        %v1730 = vsel %vm557, %v1729, 0.0
        %1731 = vadd.xlane.f32.xlu0 %v1730
        %v1732 = vpop.xlane.xlu0 %1731
        %v1733 = vrcp.pop 32.0
        %v1734 = vmul.f32 %v1732, %v1733
        %v1735 = vsub.f32 %v1729, %v1734
        %v1736 = vmul.f32 %v1735, %v1735
        %v1737 = vsel %vm557, %v1736, 0.0
        %1738 = vadd.xlane.f32.xlu0 %v1737
        %v1739 = vpop.xlane.xlu0 %1738
        %v1740 = vmul.f32 %v1739, %v1733
        %v1741 = vadd.f32 %v1740, 1e-05
        %v1742 = vrsqrt.pop %v1741
        %v1743 = vmul.f32 %v1735, %v1742
        %v1745 = vlaneseq
        %v1746 = vshrl.u32 %v1745, 7
        %v1747 = vsub.s32 0, %v1746
        %v1748 = vrot.slane %v541, %v1747
        %v1750 = vmul.f32 %v1743, %v1748
        %v1752 = vlaneseq
        %v1753 = vshrl.u32 %v1752, 7
        %v1754 = vsub.s32 0, %v1753
        %v1755 = vrot.slane %v542, %v1754
        %v1757 = vadd.f32 %v1750, %v1755
        %v1759 = vsel %vm557, %v1757, 0
        %1761 = vmatprep.subr.mxu0 0.0
        %1762 = vmatpush1.msra.mxu0 0.0
        %1763 = vmatprep.subr.mxu0 0.0
        %1764 = vmatpush1.msra.mxu0 0.0
        %1765 = vmatprep.subr.mxu0 0.0
        %1766 = vmatpush1.msra.mxu0 0.0
        %1767 = vmatprep.subr.mxu0 0.0
        %1768 = vmatpush1.msra.mxu0 0.0
        %1769 = vmatprep.subr.mxu0 0.0
        %1770 = vmatpush1.msra.mxu0 0.0
        %1771 = vmatprep.subr.mxu0 0.0
        %1772 = vmatpush1.msra.mxu0 0.0
        %1773 = vmatprep.subr.mxu0 0.0
        %1774 = vmatpush1.msra.mxu0 0.0
        %1775 = vmatprep.subr.mxu0 0.0
        %1776 = vmatpush1.msra.mxu0 0.0
        %1777 = vmatprep.subr.mxu0 0.0
        %1778 = vmatpush1.msra.mxu0 0.0
        %1779 = vmatprep.subr.mxu0 0.0
        %1780 = vmatpush1.msra.mxu0 0.0
        %1781 = vmatprep.subr.mxu0 0.0
        %1782 = vmatpush1.msra.mxu0 0.0
        %1783 = vmatprep.subr.mxu0 0.0
        %1784 = vmatpush1.msra.mxu0 0.0
        %1785 = vmatprep.subr.mxu0 0.0
        %1786 = vmatpush1.msra.mxu0 %v527
        %1787 = vmatprep.subr.mxu0 0.0
        %1788 = vmatpush1.msra.mxu0 %v526
        %1789 = vmatprep.subr.mxu0 0.0
        %1790 = vmatpush1.msra.mxu0 %v525
        %1791 = vmatprep.subr.mxu0 0.0
        %1792 = vmatpush1.msra.mxu0 %v524
        %1793 = vmatprep.subr.mxu0 0.0
        %1794 = vmatpush2.msra.mxu0 0.0
        %1795 = vmatprep.subr.mxu0 0.0
        %1796 = vmatpush2.msra.mxu0 0.0
        %1797 = vmatprep.subr.mxu0 0.0
        %1798 = vmatpush2.msra.mxu0 0.0
        %1799 = vmatprep.subr.mxu0 0.0
        %1800 = vmatpush2.msra.mxu0 0.0
        %1801 = vmatprep.subr.mxu0 0.0
        %1802 = vmatpush2.msra.mxu0 0.0
        %1803 = vmatprep.subr.mxu0 0.0
        %1804 = vmatpush2.msra.mxu0 0.0
        %1805 = vmatprep.subr.mxu0 0.0
        %1806 = vmatpush2.msra.mxu0 0.0
        %1807 = vmatprep.subr.mxu0 0.0
        %1808 = vmatpush2.msra.mxu0 0.0
        %1809 = vmatprep.subr.mxu0 0.0
        %1810 = vmatpush2.msra.mxu0 0.0
        %1811 = vmatprep.subr.mxu0 0.0
        %1812 = vmatpush2.msra.mxu0 0.0
        %1813 = vmatprep.subr.mxu0 0.0
        %1814 = vmatpush2.msra.mxu0 0.0
        %1815 = vmatprep.subr.mxu0 0.0
        %1816 = vmatpush2.msra.mxu0 0.0
        %1817 = vmatprep.subr.mxu0 0.0
        %1818 = vmatpush2.msra.mxu0 0.0
        %1819 = vmatprep.subr.mxu0 0.0
        %1820 = vmatpush2.msra.mxu0 0.0
        %1821 = vmatprep.subr.mxu0 0.0
        %1822 = vmatpush2.msra.mxu0 0.0
        %1823 = vmatprep.subr.mxu0 0.0
        %1824 = vmatpush2.msra.mxu0 0.0
        %1825 = vmatprep.mubr.f32.mxu0 0.0
        %1826 = vmatmul.mubr.f32.gmra.mxu0 %v1759
        %v1827 = vpop.f32.mrf.mxu0
        %v1828 = vadd.f32 0.0, %v1827
        %v1829 = vpop.f32.mrf.mxu0
        %1830 = vdwg.mxu0
        %1832 = vrot.lane.b32.xlu0 %v1828, 120
        %v1833 = vpop.permute.xlu0 %1832
        %1834 = vrot.lane.b32.xlu0 %v1828, 112
        %v1835 = vpop.permute.xlu0 %1834
        %1836 = vrot.lane.b32.xlu0 %v1828, 104
        %v1837 = vpop.permute.xlu0 %1836
        %v1839 = vsel %vm557, %v523, 0
        %1841 = vmatprep.subr.mxu0 0.0
        %1842 = vmatpush1.msra.mxu0 0.0
        %1843 = vmatprep.subr.mxu0 0.0
        %1844 = vmatpush1.msra.mxu0 0.0
        %1845 = vmatprep.subr.mxu0 0.0
        %1846 = vmatpush1.msra.mxu0 0.0
        %1847 = vmatprep.subr.mxu0 0.0
        %1848 = vmatpush1.msra.mxu0 0.0
        %1849 = vmatprep.subr.mxu0 0.0
        %1850 = vmatpush1.msra.mxu0 0.0
        %1851 = vmatprep.subr.mxu0 0.0
        %1852 = vmatpush1.msra.mxu0 0.0
        %1853 = vmatprep.subr.mxu0 0.0
        %1854 = vmatpush1.msra.mxu0 0.0
        %1855 = vmatprep.subr.mxu0 0.0
        %1856 = vmatpush1.msra.mxu0 0.0
        %1857 = vmatprep.subr.mxu0 0.0
        %1858 = vmatpush1.msra.mxu0 0.0
        %1859 = vmatprep.subr.mxu0 0.0
        %1860 = vmatpush1.msra.mxu0 0.0
        %1861 = vmatprep.subr.mxu0 0.0
        %1862 = vmatpush1.msra.mxu0 0.0
        %1863 = vmatprep.subr.mxu0 0.0
        %1864 = vmatpush1.msra.mxu0 0.0
        %1865 = vmatprep.subr.mxu0 0.0
        %1866 = vmatpush1.msra.mxu0 %v531
        %1867 = vmatprep.subr.mxu0 0.0
        %1868 = vmatpush1.msra.mxu0 %v530
        %1869 = vmatprep.subr.mxu0 0.0
        %1870 = vmatpush1.msra.mxu0 %v529
        %1871 = vmatprep.subr.mxu0 0.0
        %1872 = vmatpush1.msra.mxu0 %v528
        %1873 = vmatprep.subr.mxu0 0.0
        %1874 = vmatpush2.msra.mxu0 0.0
        %1875 = vmatprep.subr.mxu0 0.0
        %1876 = vmatpush2.msra.mxu0 0.0
        %1877 = vmatprep.subr.mxu0 0.0
        %1878 = vmatpush2.msra.mxu0 0.0
        %1879 = vmatprep.subr.mxu0 0.0
        %1880 = vmatpush2.msra.mxu0 0.0
        %1881 = vmatprep.subr.mxu0 0.0
        %1882 = vmatpush2.msra.mxu0 0.0
        %1883 = vmatprep.subr.mxu0 0.0
        %1884 = vmatpush2.msra.mxu0 0.0
        %1885 = vmatprep.subr.mxu0 0.0
        %1886 = vmatpush2.msra.mxu0 0.0
        %1887 = vmatprep.subr.mxu0 0.0
        %1888 = vmatpush2.msra.mxu0 0.0
        %1889 = vmatprep.subr.mxu0 0.0
        %1890 = vmatpush2.msra.mxu0 0.0
        %1891 = vmatprep.subr.mxu0 0.0
        %1892 = vmatpush2.msra.mxu0 0.0
        %1893 = vmatprep.subr.mxu0 0.0
        %1894 = vmatpush2.msra.mxu0 0.0
        %1895 = vmatprep.subr.mxu0 0.0
        %1896 = vmatpush2.msra.mxu0 0.0
        %1897 = vmatprep.subr.mxu0 0.0
        %1898 = vmatpush2.msra.mxu0 0.0
        %1899 = vmatprep.subr.mxu0 0.0
        %1900 = vmatpush2.msra.mxu0 0.0
        %1901 = vmatprep.subr.mxu0 0.0
        %1902 = vmatpush2.msra.mxu0 0.0
        %1903 = vmatprep.subr.mxu0 0.0
        %1904 = vmatpush2.msra.mxu0 0.0
        %1905 = vmatprep.mubr.f32.mxu0 0.0
        %1906 = vmatmul.mubr.f32.gmra.mxu0 %v1839
        %v1907 = vpop.f32.mrf.mxu0
        %v1908 = vadd.f32 0.0, %v1907
        %v1909 = vpop.f32.mrf.mxu0
        %1910 = vdwg.mxu0
        %1912 = vrot.lane.b32.xlu0 %v1908, 120
        %v1913 = vpop.permute.xlu0 %1912
        %1914 = vrot.lane.b32.xlu0 %v1908, 112
        %v1915 = vpop.permute.xlu0 %1914
        %1916 = vrot.lane.b32.xlu0 %v1908, 104
        %v1917 = vpop.permute.xlu0 %1916
        %1918 = vmatprep.subr.mxu0 0.0
        %1919 = vmatpush1.msra.mxu0 0.0
        %1920 = vmatprep.subr.mxu0 0.0
        %1921 = vmatpush1.msra.mxu0 0.0
        %1922 = vmatprep.subr.mxu0 0.0
        %1923 = vmatpush1.msra.mxu0 0.0
        %1924 = vmatprep.subr.mxu0 0.0
        %1925 = vmatpush1.msra.mxu0 0.0
        %1926 = vmatprep.subr.mxu0 0.0
        %1927 = vmatpush1.msra.mxu0 0.0
        %1928 = vmatprep.subr.mxu0 0.0
        %1929 = vmatpush1.msra.mxu0 0.0
        %1930 = vmatprep.subr.mxu0 0.0
        %1931 = vmatpush1.msra.mxu0 0.0
        %1932 = vmatprep.subr.mxu0 0.0
        %1933 = vmatpush1.msra.mxu0 0.0
        %1934 = vmatprep.subr.mxu0 0.0
        %1935 = vmatpush1.msra.mxu0 0.0
        %1936 = vmatprep.subr.mxu0 0.0
        %1937 = vmatpush1.msra.mxu0 0.0
        %1938 = vmatprep.subr.mxu0 0.0
        %1939 = vmatpush1.msra.mxu0 0.0
        %1940 = vmatprep.subr.mxu0 0.0
        %1941 = vmatpush1.msra.mxu0 0.0
        %1942 = vmatprep.subr.mxu0 0.0
        %1943 = vmatpush1.msra.mxu0 %v535
        %1944 = vmatprep.subr.mxu0 0.0
        %1945 = vmatpush1.msra.mxu0 %v534
        %1946 = vmatprep.subr.mxu0 0.0
        %1947 = vmatpush1.msra.mxu0 %v533
        %1948 = vmatprep.subr.mxu0 0.0
        %1949 = vmatpush1.msra.mxu0 %v532
        %1950 = vmatprep.subr.mxu0 0.0
        %1951 = vmatpush2.msra.mxu0 0.0
        %1952 = vmatprep.subr.mxu0 0.0
        %1953 = vmatpush2.msra.mxu0 0.0
        %1954 = vmatprep.subr.mxu0 0.0
        %1955 = vmatpush2.msra.mxu0 0.0
        %1956 = vmatprep.subr.mxu0 0.0
        %1957 = vmatpush2.msra.mxu0 0.0
        %1958 = vmatprep.subr.mxu0 0.0
        %1959 = vmatpush2.msra.mxu0 0.0
        %1960 = vmatprep.subr.mxu0 0.0
        %1961 = vmatpush2.msra.mxu0 0.0
        %1962 = vmatprep.subr.mxu0 0.0
        %1963 = vmatpush2.msra.mxu0 0.0
        %1964 = vmatprep.subr.mxu0 0.0
        %1965 = vmatpush2.msra.mxu0 0.0
        %1966 = vmatprep.subr.mxu0 0.0
        %1967 = vmatpush2.msra.mxu0 0.0
        %1968 = vmatprep.subr.mxu0 0.0
        %1969 = vmatpush2.msra.mxu0 0.0
        %1970 = vmatprep.subr.mxu0 0.0
        %1971 = vmatpush2.msra.mxu0 0.0
        %1972 = vmatprep.subr.mxu0 0.0
        %1973 = vmatpush2.msra.mxu0 0.0
        %1974 = vmatprep.subr.mxu0 0.0
        %1975 = vmatpush2.msra.mxu0 0.0
        %1976 = vmatprep.subr.mxu0 0.0
        %1977 = vmatpush2.msra.mxu0 0.0
        %1978 = vmatprep.subr.mxu0 0.0
        %1979 = vmatpush2.msra.mxu0 0.0
        %1980 = vmatprep.subr.mxu0 0.0
        %1981 = vmatpush2.msra.mxu0 0.0
        %1982 = vmatprep.mubr.f32.mxu0 0.0
        %1983 = vmatmul.mubr.f32.gmra.mxu0 %v1839
        %v1984 = vpop.f32.mrf.mxu0
        %v1985 = vadd.f32 0.0, %v1984
        %v1986 = vpop.f32.mrf.mxu0
        %1987 = vdwg.mxu0
        %1989 = vrot.lane.b32.xlu0 %v1985, 120
        %v1990 = vpop.permute.xlu0 %1989
        %1992 = vrot.lane.b32.xlu0 %v1985, 112
        %v1993 = vpop.permute.xlu0 %1992
        %1995 = vrot.lane.b32.xlu0 %v1985, 104
        %v1996 = vpop.permute.xlu0 %1995
        %v1998 = vsel %vm795, %v1828, 0
        %v2000 = vsel %vm795, %v1908, 0
        %2002 = vmatprep.subr.mxu0 0.0
        %2003 = vmatpush1.xpose.msra.mxu0 0.0
        %2004 = vmatprep.subr.mxu0 0.0
        %2005 = vmatpush1.xpose.msra.mxu0 0.0
        %2006 = vmatprep.subr.mxu0 0.0
        %2007 = vmatpush1.xpose.msra.mxu0 0.0
        %2008 = vmatprep.subr.mxu0 0.0
        %2009 = vmatpush1.xpose.msra.mxu0 0.0
        %2010 = vmatprep.subr.mxu0 0.0
        %2011 = vmatpush1.xpose.msra.mxu0 0.0
        %2012 = vmatprep.subr.mxu0 0.0
        %2013 = vmatpush1.xpose.msra.mxu0 0.0
        %2014 = vmatprep.subr.mxu0 0.0
        %2015 = vmatpush1.xpose.msra.mxu0 0.0
        %2016 = vmatprep.subr.mxu0 0.0
        %2017 = vmatpush1.xpose.msra.mxu0 0.0
        %2018 = vmatprep.subr.mxu0 0.0
        %2019 = vmatpush1.xpose.msra.mxu0 0.0
        %2020 = vmatprep.subr.mxu0 0.0
        %2021 = vmatpush1.xpose.msra.mxu0 0.0
        %2022 = vmatprep.subr.mxu0 0.0
        %2023 = vmatpush1.xpose.msra.mxu0 0.0
        %2024 = vmatprep.subr.mxu0 0.0
        %2025 = vmatpush1.xpose.msra.mxu0 0.0
        %2026 = vmatprep.subr.mxu0 0.0
        %2027 = vmatpush1.xpose.msra.mxu0 0.0
        %2028 = vmatprep.subr.mxu0 0.0
        %2029 = vmatpush1.xpose.msra.mxu0 0.0
        %2030 = vmatprep.subr.mxu0 0.0
        %2031 = vmatpush1.xpose.msra.mxu0 0.0
        %2032 = vmatprep.subr.mxu0 0.0
        %2033 = vmatpush1.xpose.msra.mxu0 %v2000
        %2034 = vmatprep.subr.mxu0 0.0
        %2035 = vmatpush2.xpose.msra.mxu0 0.0
        %2036 = vmatprep.subr.mxu0 0.0
        %2037 = vmatpush2.xpose.msra.mxu0 0.0
        %2038 = vmatprep.subr.mxu0 0.0
        %2039 = vmatpush2.xpose.msra.mxu0 0.0
        %2040 = vmatprep.subr.mxu0 0.0
        %2041 = vmatpush2.xpose.msra.mxu0 0.0
        %2042 = vmatprep.subr.mxu0 0.0
        %2043 = vmatpush2.xpose.msra.mxu0 0.0
        %2044 = vmatprep.subr.mxu0 0.0
        %2045 = vmatpush2.xpose.msra.mxu0 0.0
        %2046 = vmatprep.subr.mxu0 0.0
        %2047 = vmatpush2.xpose.msra.mxu0 0.0
        %2048 = vmatprep.subr.mxu0 0.0
        %2049 = vmatpush2.xpose.msra.mxu0 0.0
        %2050 = vmatprep.subr.mxu0 0.0
        %2051 = vmatpush2.xpose.msra.mxu0 0.0
        %2052 = vmatprep.subr.mxu0 0.0
        %2053 = vmatpush2.xpose.msra.mxu0 0.0
        %2054 = vmatprep.subr.mxu0 0.0
        %2055 = vmatpush2.xpose.msra.mxu0 0.0
        %2056 = vmatprep.subr.mxu0 0.0
        %2057 = vmatpush2.xpose.msra.mxu0 0.0
        %2058 = vmatprep.subr.mxu0 0.0
        %2059 = vmatpush2.xpose.msra.mxu0 0.0
        %2060 = vmatprep.subr.mxu0 0.0
        %2061 = vmatpush2.xpose.msra.mxu0 0.0
        %2062 = vmatprep.subr.mxu0 0.0
        %2063 = vmatpush2.xpose.msra.mxu0 0.0
        %2064 = vmatprep.subr.mxu0 0.0
        %2065 = vmatpush2.xpose.msra.mxu0 0.0
        %2066 = vmatprep.mubr.f32.mxu0 0.0
        %2067 = vmatmul.mubr.f32.gmra.mxu0 %v1998
        %v2068 = vpop.f32.mrf.mxu0
        %v2069 = vadd.f32 0.0, %v2068
        %v2070 = vpop.f32.mrf.mxu0
        %2071 = vdwg.mxu0
        %v2072 = vsel %vm795, %v1833, 0
        %v2074 = vsel %vm795, %v1913, 0
        %2076 = vmatprep.subr.mxu0 0.0
        %2077 = vmatpush1.xpose.msra.mxu0 0.0
        %2078 = vmatprep.subr.mxu0 0.0
        %2079 = vmatpush1.xpose.msra.mxu0 0.0
        %2080 = vmatprep.subr.mxu0 0.0
        %2081 = vmatpush1.xpose.msra.mxu0 0.0
        %2082 = vmatprep.subr.mxu0 0.0
        %2083 = vmatpush1.xpose.msra.mxu0 0.0
        %2084 = vmatprep.subr.mxu0 0.0
        %2085 = vmatpush1.xpose.msra.mxu0 0.0
        %2086 = vmatprep.subr.mxu0 0.0
        %2087 = vmatpush1.xpose.msra.mxu0 0.0
        %2088 = vmatprep.subr.mxu0 0.0
        %2089 = vmatpush1.xpose.msra.mxu0 0.0
        %2090 = vmatprep.subr.mxu0 0.0
        %2091 = vmatpush1.xpose.msra.mxu0 0.0
        %2092 = vmatprep.subr.mxu0 0.0
        %2093 = vmatpush1.xpose.msra.mxu0 0.0
        %2094 = vmatprep.subr.mxu0 0.0
        %2095 = vmatpush1.xpose.msra.mxu0 0.0
        %2096 = vmatprep.subr.mxu0 0.0
        %2097 = vmatpush1.xpose.msra.mxu0 0.0
        %2098 = vmatprep.subr.mxu0 0.0
        %2099 = vmatpush1.xpose.msra.mxu0 0.0
        %2100 = vmatprep.subr.mxu0 0.0
        %2101 = vmatpush1.xpose.msra.mxu0 0.0
        %2102 = vmatprep.subr.mxu0 0.0
        %2103 = vmatpush1.xpose.msra.mxu0 0.0
        %2104 = vmatprep.subr.mxu0 0.0
        %2105 = vmatpush1.xpose.msra.mxu0 0.0
        %2106 = vmatprep.subr.mxu0 0.0
        %2107 = vmatpush1.xpose.msra.mxu0 %v2074
        %2108 = vmatprep.subr.mxu0 0.0
        %2109 = vmatpush2.xpose.msra.mxu0 0.0
        %2110 = vmatprep.subr.mxu0 0.0
        %2111 = vmatpush2.xpose.msra.mxu0 0.0
        %2112 = vmatprep.subr.mxu0 0.0
        %2113 = vmatpush2.xpose.msra.mxu0 0.0
        %2114 = vmatprep.subr.mxu0 0.0
        %2115 = vmatpush2.xpose.msra.mxu0 0.0
        %2116 = vmatprep.subr.mxu0 0.0
        %2117 = vmatpush2.xpose.msra.mxu0 0.0
        %2118 = vmatprep.subr.mxu0 0.0
        %2119 = vmatpush2.xpose.msra.mxu0 0.0
        %2120 = vmatprep.subr.mxu0 0.0
        %2121 = vmatpush2.xpose.msra.mxu0 0.0
        %2122 = vmatprep.subr.mxu0 0.0
        %2123 = vmatpush2.xpose.msra.mxu0 0.0
        %2124 = vmatprep.subr.mxu0 0.0
        %2125 = vmatpush2.xpose.msra.mxu0 0.0
        %2126 = vmatprep.subr.mxu0 0.0
        %2127 = vmatpush2.xpose.msra.mxu0 0.0
        %2128 = vmatprep.subr.mxu0 0.0
        %2129 = vmatpush2.xpose.msra.mxu0 0.0
        %2130 = vmatprep.subr.mxu0 0.0
        %2131 = vmatpush2.xpose.msra.mxu0 0.0
        %2132 = vmatprep.subr.mxu0 0.0
        %2133 = vmatpush2.xpose.msra.mxu0 0.0
        %2134 = vmatprep.subr.mxu0 0.0
        %2135 = vmatpush2.xpose.msra.mxu0 0.0
        %2136 = vmatprep.subr.mxu0 0.0
        %2137 = vmatpush2.xpose.msra.mxu0 0.0
        %2138 = vmatprep.subr.mxu0 0.0
        %2139 = vmatpush2.xpose.msra.mxu0 0.0
        %2140 = vmatprep.mubr.f32.mxu0 0.0
        %2141 = vmatmul.mubr.f32.gmra.mxu0 %v2072
        %v2142 = vpop.f32.mrf.mxu0
        %v2143 = vadd.f32 0.0, %v2142
        %v2144 = vpop.f32.mrf.mxu0
        %2145 = vdwg.mxu0
        %v2146 = vsel %vm795, %v1835, 0
        %v2148 = vsel %vm795, %v1915, 0
        %2150 = vmatprep.subr.mxu0 0.0
        %2151 = vmatpush1.xpose.msra.mxu0 0.0
        %2152 = vmatprep.subr.mxu0 0.0
        %2153 = vmatpush1.xpose.msra.mxu0 0.0
        %2154 = vmatprep.subr.mxu0 0.0
        %2155 = vmatpush1.xpose.msra.mxu0 0.0
        %2156 = vmatprep.subr.mxu0 0.0
        %2157 = vmatpush1.xpose.msra.mxu0 0.0
        %2158 = vmatprep.subr.mxu0 0.0
        %2159 = vmatpush1.xpose.msra.mxu0 0.0
        %2160 = vmatprep.subr.mxu0 0.0
        %2161 = vmatpush1.xpose.msra.mxu0 0.0
        %2162 = vmatprep.subr.mxu0 0.0
        %2163 = vmatpush1.xpose.msra.mxu0 0.0
        %2164 = vmatprep.subr.mxu0 0.0
        %2165 = vmatpush1.xpose.msra.mxu0 0.0
        %2166 = vmatprep.subr.mxu0 0.0
        %2167 = vmatpush1.xpose.msra.mxu0 0.0
        %2168 = vmatprep.subr.mxu0 0.0
        %2169 = vmatpush1.xpose.msra.mxu0 0.0
        %2170 = vmatprep.subr.mxu0 0.0
        %2171 = vmatpush1.xpose.msra.mxu0 0.0
        %2172 = vmatprep.subr.mxu0 0.0
        %2173 = vmatpush1.xpose.msra.mxu0 0.0
        %2174 = vmatprep.subr.mxu0 0.0
        %2175 = vmatpush1.xpose.msra.mxu0 0.0
        %2176 = vmatprep.subr.mxu0 0.0
        %2177 = vmatpush1.xpose.msra.mxu0 0.0
        %2178 = vmatprep.subr.mxu0 0.0
        %2179 = vmatpush1.xpose.msra.mxu0 0.0
        %2180 = vmatprep.subr.mxu0 0.0
        %2181 = vmatpush1.xpose.msra.mxu0 %v2148
        %2182 = vmatprep.subr.mxu0 0.0
        %2183 = vmatpush2.xpose.msra.mxu0 0.0
        %2184 = vmatprep.subr.mxu0 0.0
        %2185 = vmatpush2.xpose.msra.mxu0 0.0
        %2186 = vmatprep.subr.mxu0 0.0
        %2187 = vmatpush2.xpose.msra.mxu0 0.0
        %2188 = vmatprep.subr.mxu0 0.0
        %2189 = vmatpush2.xpose.msra.mxu0 0.0
        %2190 = vmatprep.subr.mxu0 0.0
        %2191 = vmatpush2.xpose.msra.mxu0 0.0
        %2192 = vmatprep.subr.mxu0 0.0
        %2193 = vmatpush2.xpose.msra.mxu0 0.0
        %2194 = vmatprep.subr.mxu0 0.0
        %2195 = vmatpush2.xpose.msra.mxu0 0.0
        %2196 = vmatprep.subr.mxu0 0.0
        %2197 = vmatpush2.xpose.msra.mxu0 0.0
        %2198 = vmatprep.subr.mxu0 0.0
        %2199 = vmatpush2.xpose.msra.mxu0 0.0
        %2200 = vmatprep.subr.mxu0 0.0
        %2201 = vmatpush2.xpose.msra.mxu0 0.0
        %2202 = vmatprep.subr.mxu0 0.0
        %2203 = vmatpush2.xpose.msra.mxu0 0.0
        %2204 = vmatprep.subr.mxu0 0.0
        %2205 = vmatpush2.xpose.msra.mxu0 0.0
        %2206 = vmatprep.subr.mxu0 0.0
        %2207 = vmatpush2.xpose.msra.mxu0 0.0
        %2208 = vmatprep.subr.mxu0 0.0
        %2209 = vmatpush2.xpose.msra.mxu0 0.0
        %2210 = vmatprep.subr.mxu0 0.0
        %2211 = vmatpush2.xpose.msra.mxu0 0.0
        %2212 = vmatprep.subr.mxu0 0.0
        %2213 = vmatpush2.xpose.msra.mxu0 0.0
        %2214 = vmatprep.mubr.f32.mxu0 0.0
        %2215 = vmatmul.mubr.f32.gmra.mxu0 %v2146
        %v2216 = vpop.f32.mrf.mxu0
        %v2217 = vadd.f32 0.0, %v2216
        %v2218 = vpop.f32.mrf.mxu0
        %2219 = vdwg.mxu0
        %v2220 = vsel %vm795, %v1837, 0
        %v2222 = vsel %vm795, %v1917, 0
        %2224 = vmatprep.subr.mxu0 0.0
        %2225 = vmatpush1.xpose.msra.mxu0 0.0
        %2226 = vmatprep.subr.mxu0 0.0
        %2227 = vmatpush1.xpose.msra.mxu0 0.0
        %2228 = vmatprep.subr.mxu0 0.0
        %2229 = vmatpush1.xpose.msra.mxu0 0.0
        %2230 = vmatprep.subr.mxu0 0.0
        %2231 = vmatpush1.xpose.msra.mxu0 0.0
        %2232 = vmatprep.subr.mxu0 0.0
        %2233 = vmatpush1.xpose.msra.mxu0 0.0
        %2234 = vmatprep.subr.mxu0 0.0
        %2235 = vmatpush1.xpose.msra.mxu0 0.0
        %2236 = vmatprep.subr.mxu0 0.0
        %2237 = vmatpush1.xpose.msra.mxu0 0.0
        %2238 = vmatprep.subr.mxu0 0.0
        %2239 = vmatpush1.xpose.msra.mxu0 0.0
        %2240 = vmatprep.subr.mxu0 0.0
        %2241 = vmatpush1.xpose.msra.mxu0 0.0
        %2242 = vmatprep.subr.mxu0 0.0
        %2243 = vmatpush1.xpose.msra.mxu0 0.0
        %2244 = vmatprep.subr.mxu0 0.0
        %2245 = vmatpush1.xpose.msra.mxu0 0.0
        %2246 = vmatprep.subr.mxu0 0.0
        %2247 = vmatpush1.xpose.msra.mxu0 0.0
        %2248 = vmatprep.subr.mxu0 0.0
        %2249 = vmatpush1.xpose.msra.mxu0 0.0
        %2250 = vmatprep.subr.mxu0 0.0
        %2251 = vmatpush1.xpose.msra.mxu0 0.0
        %2252 = vmatprep.subr.mxu0 0.0
        %2253 = vmatpush1.xpose.msra.mxu0 0.0
        %2254 = vmatprep.subr.mxu0 0.0
        %2255 = vmatpush1.xpose.msra.mxu0 %v2222
        %2256 = vmatprep.subr.mxu0 0.0
        %2257 = vmatpush2.xpose.msra.mxu0 0.0
        %2258 = vmatprep.subr.mxu0 0.0
        %2259 = vmatpush2.xpose.msra.mxu0 0.0
        %2260 = vmatprep.subr.mxu0 0.0
        %2261 = vmatpush2.xpose.msra.mxu0 0.0
        %2262 = vmatprep.subr.mxu0 0.0
        %2263 = vmatpush2.xpose.msra.mxu0 0.0
        %2264 = vmatprep.subr.mxu0 0.0
        %2265 = vmatpush2.xpose.msra.mxu0 0.0
        %2266 = vmatprep.subr.mxu0 0.0
        %2267 = vmatpush2.xpose.msra.mxu0 0.0
        %2268 = vmatprep.subr.mxu0 0.0
        %2269 = vmatpush2.xpose.msra.mxu0 0.0
        %2270 = vmatprep.subr.mxu0 0.0
        %2271 = vmatpush2.xpose.msra.mxu0 0.0
        %2272 = vmatprep.subr.mxu0 0.0
        %2273 = vmatpush2.xpose.msra.mxu0 0.0
        %2274 = vmatprep.subr.mxu0 0.0
        %2275 = vmatpush2.xpose.msra.mxu0 0.0
        %2276 = vmatprep.subr.mxu0 0.0
        %2277 = vmatpush2.xpose.msra.mxu0 0.0
        %2278 = vmatprep.subr.mxu0 0.0
        %2279 = vmatpush2.xpose.msra.mxu0 0.0
        %2280 = vmatprep.subr.mxu0 0.0
        %2281 = vmatpush2.xpose.msra.mxu0 0.0
        %2282 = vmatprep.subr.mxu0 0.0
        %2283 = vmatpush2.xpose.msra.mxu0 0.0
        %2284 = vmatprep.subr.mxu0 0.0
        %2285 = vmatpush2.xpose.msra.mxu0 0.0
        %2286 = vmatprep.subr.mxu0 0.0
        %2287 = vmatpush2.xpose.msra.mxu0 0.0
        %2288 = vmatprep.mubr.f32.mxu0 0.0
        %2289 = vmatmul.mubr.f32.gmra.mxu0 %v2220
        %v2290 = vpop.f32.mrf.mxu0
        %v2291 = vadd.f32 0.0, %v2290
        %v2292 = vpop.f32.mrf.mxu0
        %2293 = vdwg.mxu0
        %v2294 = vsel %vm795, %v2069, -inf
        %2295 = vmax.xlane.f32.xlu0 %v2294
        %v2296 = vpop.xlane.xlu0 %2295
        %v2297 = vsel %vm795, %v2143, -inf
        %2298 = vmax.xlane.f32.xlu0 %v2297
        %v2299 = vpop.xlane.xlu0 %2298
        %v2300 = vsel %vm795, %v2217, -inf
        %2301 = vmax.xlane.f32.xlu0 %v2300
        %v2302 = vpop.xlane.xlu0 %2301
        %v2303 = vsel %vm795, %v2291, -inf
        %2304 = vmax.xlane.f32.xlu0 %v2303
        %v2305 = vpop.xlane.xlu0 %2304
        %v2306 = vsub.f32 %v2069, %v2296
        %v2307 = vsub.f32 %v2143, %v2299
        %v2308 = vsub.f32 %v2217, %v2302
        %v2309 = vsub.f32 %v2291, %v2305
        %v2310 = vmul.f32 %v2306, 1.442695
        %v2311 = vpow.pop %v2310
        %v2312 = vmul.f32 %v2307, 1.442695
        %v2313 = vpow.pop %v2312
        %v2314 = vmul.f32 %v2308, 1.442695
        %v2315 = vpow.pop %v2314
        %v2316 = vmul.f32 %v2309, 1.442695
        %v2317 = vpow.pop %v2316
        %v2318 = vsel %vm795, %v2311, 0.0
        %2319 = vadd.xlane.f32.xlu0 %v2318
        %v2320 = vpop.xlane.xlu0 %2319
        %v2321 = vsel %vm795, %v2313, 0.0
        %2322 = vadd.xlane.f32.xlu0 %v2321
        %v2323 = vpop.xlane.xlu0 %2322
        %v2324 = vsel %vm795, %v2315, 0.0
        %2325 = vadd.xlane.f32.xlu0 %v2324
        %v2326 = vpop.xlane.xlu0 %2325
        %v2327 = vsel %vm795, %v2317, 0.0
        %2328 = vadd.xlane.f32.xlu0 %v2327
        %v2329 = vpop.xlane.xlu0 %2328
        %v2330 = vrcp.pop %v2320
        %v2331 = vrcp.pop %v2323
        %v2332 = vrcp.pop %v2326
        %v2333 = vrcp.pop %v2329
        %v2334 = vmul.f32 %v2311, %v2330
        %v2335 = vmul.f32 %v2313, %v2331
        %v2336 = vmul.f32 %v2315, %v2332
        %v2337 = vmul.f32 %v2317, %v2333
        %v2339 = vsel %vm795, %v2334, 0
        %2341 = vmatprep.subr.mxu0 0.0
        %2342 = vmatpush1.msra.mxu0 0.0
        %2343 = vmatprep.subr.mxu0 0.0
        %2344 = vmatpush1.msra.mxu0 0.0
        %2345 = vmatprep.subr.mxu0 0.0
        %2346 = vmatpush1.msra.mxu0 0.0
        %2347 = vmatprep.subr.mxu0 0.0
        %2348 = vmatpush1.msra.mxu0 0.0
        %2349 = vmatprep.subr.mxu0 0.0
        %2350 = vmatpush1.msra.mxu0 0.0
        %2351 = vmatprep.subr.mxu0 0.0
        %2352 = vmatpush1.msra.mxu0 0.0
        %2353 = vmatprep.subr.mxu0 0.0
        %2354 = vmatpush1.msra.mxu0 0.0
        %2355 = vmatprep.subr.mxu0 0.0
        %2356 = vmatpush1.msra.mxu0 0.0
        %2357 = vmatprep.subr.mxu0 0.0
        %2358 = vmatpush1.msra.mxu0 0.0
        %2359 = vmatprep.subr.mxu0 0.0
        %2360 = vmatpush1.msra.mxu0 0.0
        %2361 = vmatprep.subr.mxu0 0.0
        %2362 = vmatpush1.msra.mxu0 0.0
        %2363 = vmatprep.subr.mxu0 0.0
        %2364 = vmatpush1.msra.mxu0 0.0
        %2365 = vmatprep.subr.mxu0 0.0
        %2366 = vmatpush1.msra.mxu0 0.0
        %2367 = vmatprep.subr.mxu0 0.0
        %2368 = vmatpush1.msra.mxu0 0.0
        %2369 = vmatprep.subr.mxu0 0.0
        %2370 = vmatpush1.msra.mxu0 0.0
        %2371 = vmatprep.subr.mxu0 0.0
        %2372 = vmatpush1.msra.mxu0 %v1985
        %2373 = vmatprep.subr.mxu0 0.0
        %2374 = vmatpush2.msra.mxu0 0.0
        %2375 = vmatprep.subr.mxu0 0.0
        %2376 = vmatpush2.msra.mxu0 0.0
        %2377 = vmatprep.subr.mxu0 0.0
        %2378 = vmatpush2.msra.mxu0 0.0
        %2379 = vmatprep.subr.mxu0 0.0
        %2380 = vmatpush2.msra.mxu0 0.0
        %2381 = vmatprep.subr.mxu0 0.0
        %2382 = vmatpush2.msra.mxu0 0.0
        %2383 = vmatprep.subr.mxu0 0.0
        %2384 = vmatpush2.msra.mxu0 0.0
        %2385 = vmatprep.subr.mxu0 0.0
        %2386 = vmatpush2.msra.mxu0 0.0
        %2387 = vmatprep.subr.mxu0 0.0
        %2388 = vmatpush2.msra.mxu0 0.0
        %2389 = vmatprep.subr.mxu0 0.0
        %2390 = vmatpush2.msra.mxu0 0.0
        %2391 = vmatprep.subr.mxu0 0.0
        %2392 = vmatpush2.msra.mxu0 0.0
        %2393 = vmatprep.subr.mxu0 0.0
        %2394 = vmatpush2.msra.mxu0 0.0
        %2395 = vmatprep.subr.mxu0 0.0
        %2396 = vmatpush2.msra.mxu0 0.0
        %2397 = vmatprep.subr.mxu0 0.0
        %2398 = vmatpush2.msra.mxu0 0.0
        %2399 = vmatprep.subr.mxu0 0.0
        %2400 = vmatpush2.msra.mxu0 0.0
        %2401 = vmatprep.subr.mxu0 0.0
        %2402 = vmatpush2.msra.mxu0 0.0
        %2403 = vmatprep.subr.mxu0 0.0
        %2404 = vmatpush2.msra.mxu0 0.0
        %2405 = vmatprep.mubr.f32.mxu0 0.0
        %2406 = vmatmul.mubr.f32.gmra.mxu0 %v2339
        %v2407 = vpop.f32.mrf.mxu0
        %v2408 = vadd.f32 0.0, %v2407
        %v2409 = vpop.f32.mrf.mxu0
        %2410 = vdwg.mxu0
        %v2412 = vsel %vm795, %v2335, 0
        %2414 = vmatprep.subr.mxu0 0.0
        %2415 = vmatpush1.msra.mxu0 0.0
        %2416 = vmatprep.subr.mxu0 0.0
        %2417 = vmatpush1.msra.mxu0 0.0
        %2418 = vmatprep.subr.mxu0 0.0
        %2419 = vmatpush1.msra.mxu0 0.0
        %2420 = vmatprep.subr.mxu0 0.0
        %2421 = vmatpush1.msra.mxu0 0.0
        %2422 = vmatprep.subr.mxu0 0.0
        %2423 = vmatpush1.msra.mxu0 0.0
        %2424 = vmatprep.subr.mxu0 0.0
        %2425 = vmatpush1.msra.mxu0 0.0
        %2426 = vmatprep.subr.mxu0 0.0
        %2427 = vmatpush1.msra.mxu0 0.0
        %2428 = vmatprep.subr.mxu0 0.0
        %2429 = vmatpush1.msra.mxu0 0.0
        %2430 = vmatprep.subr.mxu0 0.0
        %2431 = vmatpush1.msra.mxu0 0.0
        %2432 = vmatprep.subr.mxu0 0.0
        %2433 = vmatpush1.msra.mxu0 0.0
        %2434 = vmatprep.subr.mxu0 0.0
        %2435 = vmatpush1.msra.mxu0 0.0
        %2436 = vmatprep.subr.mxu0 0.0
        %2437 = vmatpush1.msra.mxu0 0.0
        %2438 = vmatprep.subr.mxu0 0.0
        %2439 = vmatpush1.msra.mxu0 0.0
        %2440 = vmatprep.subr.mxu0 0.0
        %2441 = vmatpush1.msra.mxu0 0.0
        %2442 = vmatprep.subr.mxu0 0.0
        %2443 = vmatpush1.msra.mxu0 0.0
        %2444 = vmatprep.subr.mxu0 0.0
        %2445 = vmatpush1.msra.mxu0 %v1990
        %2446 = vmatprep.subr.mxu0 0.0
        %2447 = vmatpush2.msra.mxu0 0.0
        %2448 = vmatprep.subr.mxu0 0.0
        %2449 = vmatpush2.msra.mxu0 0.0
        %2450 = vmatprep.subr.mxu0 0.0
        %2451 = vmatpush2.msra.mxu0 0.0
        %2452 = vmatprep.subr.mxu0 0.0
        %2453 = vmatpush2.msra.mxu0 0.0
        %2454 = vmatprep.subr.mxu0 0.0
        %2455 = vmatpush2.msra.mxu0 0.0
        %2456 = vmatprep.subr.mxu0 0.0
        %2457 = vmatpush2.msra.mxu0 0.0
        %2458 = vmatprep.subr.mxu0 0.0
        %2459 = vmatpush2.msra.mxu0 0.0
        %2460 = vmatprep.subr.mxu0 0.0
        %2461 = vmatpush2.msra.mxu0 0.0
        %2462 = vmatprep.subr.mxu0 0.0
        %2463 = vmatpush2.msra.mxu0 0.0
        %2464 = vmatprep.subr.mxu0 0.0
        %2465 = vmatpush2.msra.mxu0 0.0
        %2466 = vmatprep.subr.mxu0 0.0
        %2467 = vmatpush2.msra.mxu0 0.0
        %2468 = vmatprep.subr.mxu0 0.0
        %2469 = vmatpush2.msra.mxu0 0.0
        %2470 = vmatprep.subr.mxu0 0.0
        %2471 = vmatpush2.msra.mxu0 0.0
        %2472 = vmatprep.subr.mxu0 0.0
        %2473 = vmatpush2.msra.mxu0 0.0
        %2474 = vmatprep.subr.mxu0 0.0
        %2475 = vmatpush2.msra.mxu0 0.0
        %2476 = vmatprep.subr.mxu0 0.0
        %2477 = vmatpush2.msra.mxu0 0.0
        %2478 = vmatprep.mubr.f32.mxu0 0.0
        %2479 = vmatmul.mubr.f32.gmra.mxu0 %v2412
        %v2480 = vpop.f32.mrf.mxu0
        %v2481 = vadd.f32 0.0, %v2480
        %v2482 = vpop.f32.mrf.mxu0
        %2483 = vdwg.mxu0
        %v2485 = vsel %vm795, %v2336, 0
        %2487 = vmatprep.subr.mxu0 0.0
        %2488 = vmatpush1.msra.mxu0 0.0
        %2489 = vmatprep.subr.mxu0 0.0
        %2490 = vmatpush1.msra.mxu0 0.0
        %2491 = vmatprep.subr.mxu0 0.0
        %2492 = vmatpush1.msra.mxu0 0.0
        %2493 = vmatprep.subr.mxu0 0.0
        %2494 = vmatpush1.msra.mxu0 0.0
        %2495 = vmatprep.subr.mxu0 0.0
        %2496 = vmatpush1.msra.mxu0 0.0
        %2497 = vmatprep.subr.mxu0 0.0
        %2498 = vmatpush1.msra.mxu0 0.0
        %2499 = vmatprep.subr.mxu0 0.0
        %2500 = vmatpush1.msra.mxu0 0.0
        %2501 = vmatprep.subr.mxu0 0.0
        %2502 = vmatpush1.msra.mxu0 0.0
        %2503 = vmatprep.subr.mxu0 0.0
        %2504 = vmatpush1.msra.mxu0 0.0
        %2505 = vmatprep.subr.mxu0 0.0
        %2506 = vmatpush1.msra.mxu0 0.0
        %2507 = vmatprep.subr.mxu0 0.0
        %2508 = vmatpush1.msra.mxu0 0.0
        %2509 = vmatprep.subr.mxu0 0.0
        %2510 = vmatpush1.msra.mxu0 0.0
        %2511 = vmatprep.subr.mxu0 0.0
        %2512 = vmatpush1.msra.mxu0 0.0
        %2513 = vmatprep.subr.mxu0 0.0
        %2514 = vmatpush1.msra.mxu0 0.0
        %2515 = vmatprep.subr.mxu0 0.0
        %2516 = vmatpush1.msra.mxu0 0.0
        %2517 = vmatprep.subr.mxu0 0.0
        %2518 = vmatpush1.msra.mxu0 %v1993
        %2519 = vmatprep.subr.mxu0 0.0
        %2520 = vmatpush2.msra.mxu0 0.0
        %2521 = vmatprep.subr.mxu0 0.0
        %2522 = vmatpush2.msra.mxu0 0.0
        %2523 = vmatprep.subr.mxu0 0.0
        %2524 = vmatpush2.msra.mxu0 0.0
        %2525 = vmatprep.subr.mxu0 0.0
        %2526 = vmatpush2.msra.mxu0 0.0
        %2527 = vmatprep.subr.mxu0 0.0
        %2528 = vmatpush2.msra.mxu0 0.0
        %2529 = vmatprep.subr.mxu0 0.0
        %2530 = vmatpush2.msra.mxu0 0.0
        %2531 = vmatprep.subr.mxu0 0.0
        %2532 = vmatpush2.msra.mxu0 0.0
        %2533 = vmatprep.subr.mxu0 0.0
        %2534 = vmatpush2.msra.mxu0 0.0
        %2535 = vmatprep.subr.mxu0 0.0
        %2536 = vmatpush2.msra.mxu0 0.0
        %2537 = vmatprep.subr.mxu0 0.0
        %2538 = vmatpush2.msra.mxu0 0.0
        %2539 = vmatprep.subr.mxu0 0.0
        %2540 = vmatpush2.msra.mxu0 0.0
        %2541 = vmatprep.subr.mxu0 0.0
        %2542 = vmatpush2.msra.mxu0 0.0
        %2543 = vmatprep.subr.mxu0 0.0
        %2544 = vmatpush2.msra.mxu0 0.0
        %2545 = vmatprep.subr.mxu0 0.0
        %2546 = vmatpush2.msra.mxu0 0.0
        %2547 = vmatprep.subr.mxu0 0.0
        %2548 = vmatpush2.msra.mxu0 0.0
        %2549 = vmatprep.subr.mxu0 0.0
        %2550 = vmatpush2.msra.mxu0 0.0
        %2551 = vmatprep.mubr.f32.mxu0 0.0
        %2552 = vmatmul.mubr.f32.gmra.mxu0 %v2485
        %v2553 = vpop.f32.mrf.mxu0
        %v2554 = vadd.f32 0.0, %v2553
        %v2555 = vpop.f32.mrf.mxu0
        %2556 = vdwg.mxu0
        %v2558 = vsel %vm795, %v2337, 0
        %2560 = vmatprep.subr.mxu0 0.0
        %2561 = vmatpush1.msra.mxu0 0.0
        %2562 = vmatprep.subr.mxu0 0.0
        %2563 = vmatpush1.msra.mxu0 0.0
        %2564 = vmatprep.subr.mxu0 0.0
        %2565 = vmatpush1.msra.mxu0 0.0
        %2566 = vmatprep.subr.mxu0 0.0
        %2567 = vmatpush1.msra.mxu0 0.0
        %2568 = vmatprep.subr.mxu0 0.0
        %2569 = vmatpush1.msra.mxu0 0.0
        %2570 = vmatprep.subr.mxu0 0.0
        %2571 = vmatpush1.msra.mxu0 0.0
        %2572 = vmatprep.subr.mxu0 0.0
        %2573 = vmatpush1.msra.mxu0 0.0
        %2574 = vmatprep.subr.mxu0 0.0
        %2575 = vmatpush1.msra.mxu0 0.0
        %2576 = vmatprep.subr.mxu0 0.0
        %2577 = vmatpush1.msra.mxu0 0.0
        %2578 = vmatprep.subr.mxu0 0.0
        %2579 = vmatpush1.msra.mxu0 0.0
        %2580 = vmatprep.subr.mxu0 0.0
        %2581 = vmatpush1.msra.mxu0 0.0
        %2582 = vmatprep.subr.mxu0 0.0
        %2583 = vmatpush1.msra.mxu0 0.0
        %2584 = vmatprep.subr.mxu0 0.0
        %2585 = vmatpush1.msra.mxu0 0.0
        %2586 = vmatprep.subr.mxu0 0.0
        %2587 = vmatpush1.msra.mxu0 0.0
        %2588 = vmatprep.subr.mxu0 0.0
        %2589 = vmatpush1.msra.mxu0 0.0
        %2590 = vmatprep.subr.mxu0 0.0
        %2591 = vmatpush1.msra.mxu0 %v1996
        %2592 = vmatprep.subr.mxu0 0.0
        %2593 = vmatpush2.msra.mxu0 0.0
        %2594 = vmatprep.subr.mxu0 0.0
        %2595 = vmatpush2.msra.mxu0 0.0
        %2596 = vmatprep.subr.mxu0 0.0
        %2597 = vmatpush2.msra.mxu0 0.0
        %2598 = vmatprep.subr.mxu0 0.0
        %2599 = vmatpush2.msra.mxu0 0.0
        %2600 = vmatprep.subr.mxu0 0.0
        %2601 = vmatpush2.msra.mxu0 0.0
        %2602 = vmatprep.subr.mxu0 0.0
        %2603 = vmatpush2.msra.mxu0 0.0
        %2604 = vmatprep.subr.mxu0 0.0
        %2605 = vmatpush2.msra.mxu0 0.0
        %2606 = vmatprep.subr.mxu0 0.0
        %2607 = vmatpush2.msra.mxu0 0.0
        %2608 = vmatprep.subr.mxu0 0.0
        %2609 = vmatpush2.msra.mxu0 0.0
        %2610 = vmatprep.subr.mxu0 0.0
        %2611 = vmatpush2.msra.mxu0 0.0
        %2612 = vmatprep.subr.mxu0 0.0
        %2613 = vmatpush2.msra.mxu0 0.0
        %2614 = vmatprep.subr.mxu0 0.0
        %2615 = vmatpush2.msra.mxu0 0.0
        %2616 = vmatprep.subr.mxu0 0.0
        %2617 = vmatpush2.msra.mxu0 0.0
        %2618 = vmatprep.subr.mxu0 0.0
        %2619 = vmatpush2.msra.mxu0 0.0
        %2620 = vmatprep.subr.mxu0 0.0
        %2621 = vmatpush2.msra.mxu0 0.0
        %2622 = vmatprep.subr.mxu0 0.0
        %2623 = vmatpush2.msra.mxu0 0.0
        %2624 = vmatprep.mubr.f32.mxu0 0.0
        %2625 = vmatmul.mubr.f32.gmra.mxu0 %v2558
        %v2626 = vpop.f32.mrf.mxu0
        %v2627 = vadd.f32 0.0, %v2626
        %v2628 = vpop.f32.mrf.mxu0
        %2629 = vdwg.mxu0
        %v2631 = vsel %vm795, %v2481, 0
        %2633 = vmatprep.subr.mxu0 0.0
        %2634 = vmatpush1.msra.mxu0 0.0
        %2635 = vmatprep.subr.mxu0 0.0
        %2636 = vmatpush1.msra.mxu0 0.0
        %2637 = vmatprep.subr.mxu0 0.0
        %2638 = vmatpush1.msra.mxu0 0.0
        %2639 = vmatprep.subr.mxu0 0.0
        %2640 = vmatpush1.msra.mxu0 0.0
        %2641 = vmatprep.subr.mxu0 0.0
        %2642 = vmatpush1.msra.mxu0 0.0
        %2643 = vmatprep.subr.mxu0 0.0
        %2644 = vmatpush1.msra.mxu0 0.0
        %2645 = vmatprep.subr.mxu0 0.0
        %2646 = vmatpush1.msra.mxu0 0.0
        %2647 = vmatprep.subr.mxu0 0.0
        %2648 = vmatpush1.msra.mxu0 0.0
        %2649 = vmatprep.subr.mxu0 0.0
        %2650 = vmatpush1.msra.mxu0 0.0
        %2651 = vmatprep.subr.mxu0 0.0
        %2652 = vmatpush1.msra.mxu0 0.0
        %2653 = vmatprep.subr.mxu0 0.0
        %2654 = vmatpush1.msra.mxu0 0.0
        %2655 = vmatprep.subr.mxu0 0.0
        %2656 = vmatpush1.msra.mxu0 0.0
        %2657 = vmatprep.subr.mxu0 0.0
        %2658 = vmatpush1.msra.mxu0 0.0
        %2659 = vmatprep.subr.mxu0 0.0
        %2660 = vmatpush1.msra.mxu0 0.0
        %2661 = vmatprep.subr.mxu0 0.0
        %2662 = vmatpush1.msra.mxu0 0.0
        %2663 = vmatprep.subr.mxu0 0.0
        %2664 = vmatpush1.msra.mxu0 %v537
        %2665 = vmatprep.subr.mxu0 0.0
        %2666 = vmatpush2.msra.mxu0 0.0
        %2667 = vmatprep.subr.mxu0 0.0
        %2668 = vmatpush2.msra.mxu0 0.0
        %2669 = vmatprep.subr.mxu0 0.0
        %2670 = vmatpush2.msra.mxu0 0.0
        %2671 = vmatprep.subr.mxu0 0.0
        %2672 = vmatpush2.msra.mxu0 0.0
        %2673 = vmatprep.subr.mxu0 0.0
        %2674 = vmatpush2.msra.mxu0 0.0
        %2675 = vmatprep.subr.mxu0 0.0
        %2676 = vmatpush2.msra.mxu0 0.0
        %2677 = vmatprep.subr.mxu0 0.0
        %2678 = vmatpush2.msra.mxu0 0.0
        %2679 = vmatprep.subr.mxu0 0.0
        %2680 = vmatpush2.msra.mxu0 0.0
        %2681 = vmatprep.subr.mxu0 0.0
        %2682 = vmatpush2.msra.mxu0 0.0
        %2683 = vmatprep.subr.mxu0 0.0
        %2684 = vmatpush2.msra.mxu0 0.0
        %2685 = vmatprep.subr.mxu0 0.0
        %2686 = vmatpush2.msra.mxu0 0.0
        %2687 = vmatprep.subr.mxu0 0.0
        %2688 = vmatpush2.msra.mxu0 0.0
        %2689 = vmatprep.subr.mxu0 0.0
        %2690 = vmatpush2.msra.mxu0 0.0
        %2691 = vmatprep.subr.mxu0 0.0
        %2692 = vmatpush2.msra.mxu0 0.0
        %2693 = vmatprep.subr.mxu0 0.0
        %2694 = vmatpush2.msra.mxu0 0.0
        %2695 = vmatprep.subr.mxu0 0.0
        %2696 = vmatpush2.msra.mxu0 0.0
        %2697 = vmatprep.mubr.f32.mxu0 0.0
        %2698 = vmatmul.mubr.f32.gmra.mxu0 %v2631
        %v2699 = vpop.f32.mrf.mxu0
        %v2700 = vadd.f32 0.0, %v2699
        %v2701 = vpop.f32.mrf.mxu0
        %2702 = vdwg.mxu0
        %v2704 = vsel %vm795, %v2408, 0
        %2706 = vmatprep.subr.mxu0 0.0
        %2707 = vmatpush1.msra.mxu0 0.0
        %2708 = vmatprep.subr.mxu0 0.0
        %2709 = vmatpush1.msra.mxu0 0.0
        %2710 = vmatprep.subr.mxu0 0.0
        %2711 = vmatpush1.msra.mxu0 0.0
        %2712 = vmatprep.subr.mxu0 0.0
        %2713 = vmatpush1.msra.mxu0 0.0
        %2714 = vmatprep.subr.mxu0 0.0
        %2715 = vmatpush1.msra.mxu0 0.0
        %2716 = vmatprep.subr.mxu0 0.0
        %2717 = vmatpush1.msra.mxu0 0.0
        %2718 = vmatprep.subr.mxu0 0.0
        %2719 = vmatpush1.msra.mxu0 0.0
        %2720 = vmatprep.subr.mxu0 0.0
        %2721 = vmatpush1.msra.mxu0 0.0
        %2722 = vmatprep.subr.mxu0 0.0
        %2723 = vmatpush1.msra.mxu0 0.0
        %2724 = vmatprep.subr.mxu0 0.0
        %2725 = vmatpush1.msra.mxu0 0.0
        %2726 = vmatprep.subr.mxu0 0.0
        %2727 = vmatpush1.msra.mxu0 0.0
        %2728 = vmatprep.subr.mxu0 0.0
        %2729 = vmatpush1.msra.mxu0 0.0
        %2730 = vmatprep.subr.mxu0 0.0
        %2731 = vmatpush1.msra.mxu0 0.0
        %2732 = vmatprep.subr.mxu0 0.0
        %2733 = vmatpush1.msra.mxu0 0.0
        %2734 = vmatprep.subr.mxu0 0.0
        %2735 = vmatpush1.msra.mxu0 0.0
        %2736 = vmatprep.subr.mxu0 0.0
        %2737 = vmatpush1.msra.mxu0 %v536
        %2738 = vmatprep.subr.mxu0 0.0
        %2739 = vmatpush2.msra.mxu0 0.0
        %2740 = vmatprep.subr.mxu0 0.0
        %2741 = vmatpush2.msra.mxu0 0.0
        %2742 = vmatprep.subr.mxu0 0.0
        %2743 = vmatpush2.msra.mxu0 0.0
        %2744 = vmatprep.subr.mxu0 0.0
        %2745 = vmatpush2.msra.mxu0 0.0
        %2746 = vmatprep.subr.mxu0 0.0
        %2747 = vmatpush2.msra.mxu0 0.0
        %2748 = vmatprep.subr.mxu0 0.0
        %2749 = vmatpush2.msra.mxu0 0.0
        %2750 = vmatprep.subr.mxu0 0.0
        %2751 = vmatpush2.msra.mxu0 0.0
        %2752 = vmatprep.subr.mxu0 0.0
        %2753 = vmatpush2.msra.mxu0 0.0
        %2754 = vmatprep.subr.mxu0 0.0
        %2755 = vmatpush2.msra.mxu0 0.0
        %2756 = vmatprep.subr.mxu0 0.0
        %2757 = vmatpush2.msra.mxu0 0.0
        %2758 = vmatprep.subr.mxu0 0.0
        %2759 = vmatpush2.msra.mxu0 0.0
        %2760 = vmatprep.subr.mxu0 0.0
        %2761 = vmatpush2.msra.mxu0 0.0
        %2762 = vmatprep.subr.mxu0 0.0
        %2763 = vmatpush2.msra.mxu0 0.0
        %2764 = vmatprep.subr.mxu0 0.0
        %2765 = vmatpush2.msra.mxu0 0.0
        %2766 = vmatprep.subr.mxu0 0.0
        %2767 = vmatpush2.msra.mxu0 0.0
        %2768 = vmatprep.subr.mxu0 0.0
        %2769 = vmatpush2.msra.mxu0 0.0
        %2770 = vmatprep.mubr.f32.mxu0 0.0
        %2771 = vmatmul.mubr.f32.gmra.mxu0 %v2704
        %v2772 = vpop.f32.mrf.mxu0
        %v2773 = vadd.f32 %v2700, %v2772
        %v2774 = vpop.f32.mrf.mxu0
        %2775 = vdwg.mxu0
        %v2777 = vsel %vm795, %v2554, 0
        %2779 = vmatprep.subr.mxu0 0.0
        %2780 = vmatpush1.msra.mxu0 0.0
        %2781 = vmatprep.subr.mxu0 0.0
        %2782 = vmatpush1.msra.mxu0 0.0
        %2783 = vmatprep.subr.mxu0 0.0
        %2784 = vmatpush1.msra.mxu0 0.0
        %2785 = vmatprep.subr.mxu0 0.0
        %2786 = vmatpush1.msra.mxu0 0.0
        %2787 = vmatprep.subr.mxu0 0.0
        %2788 = vmatpush1.msra.mxu0 0.0
        %2789 = vmatprep.subr.mxu0 0.0
        %2790 = vmatpush1.msra.mxu0 0.0
        %2791 = vmatprep.subr.mxu0 0.0
        %2792 = vmatpush1.msra.mxu0 0.0
        %2793 = vmatprep.subr.mxu0 0.0
        %2794 = vmatpush1.msra.mxu0 0.0
        %2795 = vmatprep.subr.mxu0 0.0
        %2796 = vmatpush1.msra.mxu0 0.0
        %2797 = vmatprep.subr.mxu0 0.0
        %2798 = vmatpush1.msra.mxu0 0.0
        %2799 = vmatprep.subr.mxu0 0.0
        %2800 = vmatpush1.msra.mxu0 0.0
        %2801 = vmatprep.subr.mxu0 0.0
        %2802 = vmatpush1.msra.mxu0 0.0
        %2803 = vmatprep.subr.mxu0 0.0
        %2804 = vmatpush1.msra.mxu0 0.0
        %2805 = vmatprep.subr.mxu0 0.0
        %2806 = vmatpush1.msra.mxu0 0.0
        %2807 = vmatprep.subr.mxu0 0.0
        %2808 = vmatpush1.msra.mxu0 0.0
        %2809 = vmatprep.subr.mxu0 0.0
        %2810 = vmatpush1.msra.mxu0 %v538
        %2811 = vmatprep.subr.mxu0 0.0
        %2812 = vmatpush2.msra.mxu0 0.0
        %2813 = vmatprep.subr.mxu0 0.0
        %2814 = vmatpush2.msra.mxu0 0.0
        %2815 = vmatprep.subr.mxu0 0.0
        %2816 = vmatpush2.msra.mxu0 0.0
        %2817 = vmatprep.subr.mxu0 0.0
        %2818 = vmatpush2.msra.mxu0 0.0
        %2819 = vmatprep.subr.mxu0 0.0
        %2820 = vmatpush2.msra.mxu0 0.0
        %2821 = vmatprep.subr.mxu0 0.0
        %2822 = vmatpush2.msra.mxu0 0.0
        %2823 = vmatprep.subr.mxu0 0.0
        %2824 = vmatpush2.msra.mxu0 0.0
        %2825 = vmatprep.subr.mxu0 0.0
        %2826 = vmatpush2.msra.mxu0 0.0
        %2827 = vmatprep.subr.mxu0 0.0
        %2828 = vmatpush2.msra.mxu0 0.0
        %2829 = vmatprep.subr.mxu0 0.0
        %2830 = vmatpush2.msra.mxu0 0.0
        %2831 = vmatprep.subr.mxu0 0.0
        %2832 = vmatpush2.msra.mxu0 0.0
        %2833 = vmatprep.subr.mxu0 0.0
        %2834 = vmatpush2.msra.mxu0 0.0
        %2835 = vmatprep.subr.mxu0 0.0
        %2836 = vmatpush2.msra.mxu0 0.0
        %2837 = vmatprep.subr.mxu0 0.0
        %2838 = vmatpush2.msra.mxu0 0.0
        %2839 = vmatprep.subr.mxu0 0.0
        %2840 = vmatpush2.msra.mxu0 0.0
        %2841 = vmatprep.subr.mxu0 0.0
        %2842 = vmatpush2.msra.mxu0 0.0
        %2843 = vmatprep.mubr.f32.mxu0 0.0
        %2844 = vmatmul.mubr.f32.gmra.mxu0 %v2777
        %v2845 = vpop.f32.mrf.mxu0
        %v2846 = vadd.f32 0.0, %v2845
        %v2847 = vpop.f32.mrf.mxu0
        %2848 = vdwg.mxu0
        %v2849 = vadd.f32 %v2773, %v2846
        %v2851 = vsel %vm795, %v2627, 0
        %2853 = vmatprep.subr.mxu0 0.0
        %2854 = vmatpush1.msra.mxu0 0.0
        %2855 = vmatprep.subr.mxu0 0.0
        %2856 = vmatpush1.msra.mxu0 0.0
        %2857 = vmatprep.subr.mxu0 0.0
        %2858 = vmatpush1.msra.mxu0 0.0
        %2859 = vmatprep.subr.mxu0 0.0
        %2860 = vmatpush1.msra.mxu0 0.0
        %2861 = vmatprep.subr.mxu0 0.0
        %2862 = vmatpush1.msra.mxu0 0.0
        %2863 = vmatprep.subr.mxu0 0.0
        %2864 = vmatpush1.msra.mxu0 0.0
        %2865 = vmatprep.subr.mxu0 0.0
        %2866 = vmatpush1.msra.mxu0 0.0
        %2867 = vmatprep.subr.mxu0 0.0
        %2868 = vmatpush1.msra.mxu0 0.0
        %2869 = vmatprep.subr.mxu0 0.0
        %2870 = vmatpush1.msra.mxu0 0.0
        %2871 = vmatprep.subr.mxu0 0.0
        %2872 = vmatpush1.msra.mxu0 0.0
        %2873 = vmatprep.subr.mxu0 0.0
        %2874 = vmatpush1.msra.mxu0 0.0
        %2875 = vmatprep.subr.mxu0 0.0
        %2876 = vmatpush1.msra.mxu0 0.0
        %2877 = vmatprep.subr.mxu0 0.0
        %2878 = vmatpush1.msra.mxu0 0.0
        %2879 = vmatprep.subr.mxu0 0.0
        %2880 = vmatpush1.msra.mxu0 0.0
        %2881 = vmatprep.subr.mxu0 0.0
        %2882 = vmatpush1.msra.mxu0 0.0
        %2883 = vmatprep.subr.mxu0 0.0
        %2884 = vmatpush1.msra.mxu0 %v539
        %2885 = vmatprep.subr.mxu0 0.0
        %2886 = vmatpush2.msra.mxu0 0.0
        %2887 = vmatprep.subr.mxu0 0.0
        %2888 = vmatpush2.msra.mxu0 0.0
        %2889 = vmatprep.subr.mxu0 0.0
        %2890 = vmatpush2.msra.mxu0 0.0
        %2891 = vmatprep.subr.mxu0 0.0
        %2892 = vmatpush2.msra.mxu0 0.0
        %2893 = vmatprep.subr.mxu0 0.0
        %2894 = vmatpush2.msra.mxu0 0.0
        %2895 = vmatprep.subr.mxu0 0.0
        %2896 = vmatpush2.msra.mxu0 0.0
        %2897 = vmatprep.subr.mxu0 0.0
        %2898 = vmatpush2.msra.mxu0 0.0
        %2899 = vmatprep.subr.mxu0 0.0
        %2900 = vmatpush2.msra.mxu0 0.0
        %2901 = vmatprep.subr.mxu0 0.0
        %2902 = vmatpush2.msra.mxu0 0.0
        %2903 = vmatprep.subr.mxu0 0.0
        %2904 = vmatpush2.msra.mxu0 0.0
        %2905 = vmatprep.subr.mxu0 0.0
        %2906 = vmatpush2.msra.mxu0 0.0
        %2907 = vmatprep.subr.mxu0 0.0
        %2908 = vmatpush2.msra.mxu0 0.0
        %2909 = vmatprep.subr.mxu0 0.0
        %2910 = vmatpush2.msra.mxu0 0.0
        %2911 = vmatprep.subr.mxu0 0.0
        %2912 = vmatpush2.msra.mxu0 0.0
        %2913 = vmatprep.subr.mxu0 0.0
        %2914 = vmatpush2.msra.mxu0 0.0
        %2915 = vmatprep.subr.mxu0 0.0
        %2916 = vmatpush2.msra.mxu0 0.0
        %2917 = vmatprep.mubr.f32.mxu0 0.0
        %2918 = vmatmul.mubr.f32.gmra.mxu0 %v2851
        %v2919 = vpop.f32.mrf.mxu0
        %v2920 = vadd.f32 0.0, %v2919
        %v2921 = vpop.f32.mrf.mxu0
        %2922 = vdwg.mxu0
        %v2923 = vadd.f32 %v2849, %v2920
        %v2924 = vadd.f32 %v2923, %v1726
        %v2925 = vmax.f32 %v2924, 0.0
        %v2926 = vadd.f32 %v2925, %v1757
        %v2927 = vsel %vm557, %v2926, 0.0
        %2928 = vadd.xlane.f32.xlu0 %v2927
        %v2929 = vpop.xlane.xlu0 %2928
        %v2930 = vmul.f32 %v2929, %v1733
        %v2931 = vsub.f32 %v2926, %v2930
        %v2932 = vmul.f32 %v2931, %v2931
        %v2933 = vsel %vm557, %v2932, 0.0
        %2934 = vadd.xlane.f32.xlu0 %v2933
        %v2935 = vpop.xlane.xlu0 %2934
        %v2936 = vmul.f32 %v2935, %v1733
        %v2937 = vadd.f32 %v2936, 1e-05
        %v2938 = vrsqrt.pop %v2937
        %v2939 = vmul.f32 %v2931, %v2938
        %v2940 = vmul.f32 %v2939, %v1748
        %v2941 = vadd.f32 %v2940, %v1755
        %v2943 = vlaneseq
        %v2944 = vshrl.u32 %v2943, 7
        %v2945 = vsub.s32 0, %v2944
        %v2946 = vrot.slane %v547, %v2945
        %v2949 = vsel %vm557, %v2941, 0
        %2951 = vmatprep.subr.mxu0 0.0
        %2952 = vmatpush1.msra.mxu0 0.0
        %2953 = vmatprep.subr.mxu0 0.0
        %2954 = vmatpush1.msra.mxu0 0.0
        %2955 = vmatprep.subr.mxu0 0.0
        %2956 = vmatpush1.msra.mxu0 0.0
        %2957 = vmatprep.subr.mxu0 0.0
        %2958 = vmatpush1.msra.mxu0 0.0
        %2959 = vmatprep.subr.mxu0 0.0
        %2960 = vmatpush1.msra.mxu0 0.0
        %2961 = vmatprep.subr.mxu0 0.0
        %2962 = vmatpush1.msra.mxu0 0.0
        %2963 = vmatprep.subr.mxu0 0.0
        %2964 = vmatpush1.msra.mxu0 0.0
        %2965 = vmatprep.subr.mxu0 0.0
        %2966 = vmatpush1.msra.mxu0 0.0
        %2967 = vmatprep.subr.mxu0 0.0
        %2968 = vmatpush1.msra.mxu0 0.0
        %2969 = vmatprep.subr.mxu0 0.0
        %2970 = vmatpush1.msra.mxu0 0.0
        %2971 = vmatprep.subr.mxu0 0.0
        %2972 = vmatpush1.msra.mxu0 0.0
        %2973 = vmatprep.subr.mxu0 0.0
        %2974 = vmatpush1.msra.mxu0 0.0
        %2975 = vmatprep.subr.mxu0 0.0
        %2976 = vmatpush1.msra.mxu0 %v546
        %2977 = vmatprep.subr.mxu0 0.0
        %2978 = vmatpush1.msra.mxu0 %v545
        %2979 = vmatprep.subr.mxu0 0.0
        %2980 = vmatpush1.msra.mxu0 %v544
        %2981 = vmatprep.subr.mxu0 0.0
        %2982 = vmatpush1.msra.mxu0 %v543
        %2983 = vmatprep.subr.mxu0 0.0
        %2984 = vmatpush2.msra.mxu0 0.0
        %2985 = vmatprep.subr.mxu0 0.0
        %2986 = vmatpush2.msra.mxu0 0.0
        %2987 = vmatprep.subr.mxu0 0.0
        %2988 = vmatpush2.msra.mxu0 0.0
        %2989 = vmatprep.subr.mxu0 0.0
        %2990 = vmatpush2.msra.mxu0 0.0
        %2991 = vmatprep.subr.mxu0 0.0
        %2992 = vmatpush2.msra.mxu0 0.0
        %2993 = vmatprep.subr.mxu0 0.0
        %2994 = vmatpush2.msra.mxu0 0.0
        %2995 = vmatprep.subr.mxu0 0.0
        %2996 = vmatpush2.msra.mxu0 0.0
        %2997 = vmatprep.subr.mxu0 0.0
        %2998 = vmatpush2.msra.mxu0 0.0
        %2999 = vmatprep.subr.mxu0 0.0
        %3000 = vmatpush2.msra.mxu0 0.0
        %3001 = vmatprep.subr.mxu0 0.0
        %3002 = vmatpush2.msra.mxu0 0.0
        %3003 = vmatprep.subr.mxu0 0.0
        %3004 = vmatpush2.msra.mxu0 0.0
        %3005 = vmatprep.subr.mxu0 0.0
        %3006 = vmatpush2.msra.mxu0 0.0
        %3007 = vmatprep.subr.mxu0 0.0
        %3008 = vmatpush2.msra.mxu0 0.0
        %3009 = vmatprep.subr.mxu0 0.0
        %3010 = vmatpush2.msra.mxu0 0.0
        %3011 = vmatprep.subr.mxu0 0.0
        %3012 = vmatpush2.msra.mxu0 0.0
        %3013 = vmatprep.subr.mxu0 0.0
        %3014 = vmatpush2.msra.mxu0 0.0
        %3015 = vmatprep.mubr.f32.mxu0 0.0
        %3016 = vmatmul.mubr.f32.gmra.mxu0 %v2949
        %v3017 = vpop.f32.mrf.mxu0
        %v3018 = vadd.f32 %v2946, %v3017
        %v3019 = vpop.f32.mrf.mxu0
        %3020 = vdwg.mxu0
        %v3021 = vmax.f32 %v3018, 0.0
        %v3023 = vlaneseq
        %v3024 = vshrl.u32 %v3023, 7
        %v3025 = vsub.s32 0, %v3024
        %v3026 = vrot.slane %v556, %v3025
        %vm3028 = vcmask 523264
        %v3030 = vsel %vm3028, %v3021, 0
        %3032 = vmatprep.subr.mxu0 0.0
        %3033 = vmatpush1.msra.mxu0 0.0
        %3034 = vmatprep.subr.mxu0 0.0
        %3035 = vmatpush1.msra.mxu0 0.0
        %3036 = vmatprep.subr.mxu0 0.0
        %3037 = vmatpush1.msra.mxu0 0.0
        %3038 = vmatprep.subr.mxu0 0.0
        %3039 = vmatpush1.msra.mxu0 0.0
        %3040 = vmatprep.subr.mxu0 0.0
        %3041 = vmatpush1.msra.mxu0 0.0
        %3042 = vmatprep.subr.mxu0 0.0
        %3043 = vmatpush1.msra.mxu0 0.0
        %3044 = vmatprep.subr.mxu0 0.0
        %3045 = vmatpush1.msra.mxu0 0.0
        %3046 = vmatprep.subr.mxu0 0.0
        %3047 = vmatpush1.msra.mxu0 0.0
        %3048 = vmatprep.subr.mxu0 0.0
        %3049 = vmatpush1.msra.mxu0 %v555
        %3050 = vmatprep.subr.mxu0 0.0
        %3051 = vmatpush1.msra.mxu0 %v554
        %3052 = vmatprep.subr.mxu0 0.0
        %3053 = vmatpush1.msra.mxu0 %v553
        %3054 = vmatprep.subr.mxu0 0.0
        %3055 = vmatpush1.msra.mxu0 %v552
        %3056 = vmatprep.subr.mxu0 0.0
        %3057 = vmatpush1.msra.mxu0 %v551
        %3058 = vmatprep.subr.mxu0 0.0
        %3059 = vmatpush1.msra.mxu0 %v550
        %3060 = vmatprep.subr.mxu0 0.0
        %3061 = vmatpush1.msra.mxu0 %v549
        %3062 = vmatprep.subr.mxu0 0.0
        %3063 = vmatpush1.msra.mxu0 %v548
        %3064 = vmatprep.subr.mxu0 0.0
        %3065 = vmatpush2.msra.mxu0 0.0
        %3066 = vmatprep.subr.mxu0 0.0
        %3067 = vmatpush2.msra.mxu0 0.0
        %3068 = vmatprep.subr.mxu0 0.0
        %3069 = vmatpush2.msra.mxu0 0.0
        %3070 = vmatprep.subr.mxu0 0.0
        %3071 = vmatpush2.msra.mxu0 0.0
        %3072 = vmatprep.subr.mxu0 0.0
        %3073 = vmatpush2.msra.mxu0 0.0
        %3074 = vmatprep.subr.mxu0 0.0
        %3075 = vmatpush2.msra.mxu0 0.0
        %3076 = vmatprep.subr.mxu0 0.0
        %3077 = vmatpush2.msra.mxu0 0.0
        %3078 = vmatprep.subr.mxu0 0.0
        %3079 = vmatpush2.msra.mxu0 0.0
        %3080 = vmatprep.subr.mxu0 0.0
        %3081 = vmatpush2.msra.mxu0 0.0
        %3082 = vmatprep.subr.mxu0 0.0
        %3083 = vmatpush2.msra.mxu0 0.0
        %3084 = vmatprep.subr.mxu0 0.0
        %3085 = vmatpush2.msra.mxu0 0.0
        %3086 = vmatprep.subr.mxu0 0.0
        %3087 = vmatpush2.msra.mxu0 0.0
        %3088 = vmatprep.subr.mxu0 0.0
        %3089 = vmatpush2.msra.mxu0 0.0
        %3090 = vmatprep.subr.mxu0 0.0
        %3091 = vmatpush2.msra.mxu0 0.0
        %3092 = vmatprep.subr.mxu0 0.0
        %3093 = vmatpush2.msra.mxu0 0.0
        %3094 = vmatprep.subr.mxu0 0.0
        %3095 = vmatpush2.msra.mxu0 0.0
        %3096 = vmatprep.mubr.f32.mxu0 0.0
        %3097 = vmatmul.mubr.f32.gmra.mxu0 %v3030
        %v3098 = vpop.f32.mrf.mxu0
        %v3099 = vadd.f32 %v3026, %v3098
        %v3100 = vpop.f32.mrf.mxu0
        %3101 = vdwg.mxu0
        %v3102 = vadd.f32 %v3099, %v2941
        %v3103 = vsel %vm557, %v3102, 0.0
        %3104 = vadd.xlane.f32.xlu0 %v3103
        %v3105 = vpop.xlane.xlu0 %3104
        %v3106 = vmul.f32 %v3105, %v1733
        %v3107 = vsub.f32 %v3102, %v3106
        %v3108 = vmul.f32 %v3107, %v3107
        %v3109 = vsel %vm557, %v3108, 0.0
        %3110 = vadd.xlane.f32.xlu0 %v3109
        %v3111 = vpop.xlane.xlu0 %3110
        %v3112 = vmul.f32 %v3111, %v1733
        %v3113 = vadd.f32 %v3112, 1e-05
        %v3114 = vrsqrt.pop %v3113
        %v3115 = vmul.f32 %v3107, %v3114
        %v3116 = vmul.f32 %v3115, %v1748
        %v3117 = vadd.f32 %v3116, %v1755
        %3118 = vst.msk [vmem:[%s521] sm:$0xff] %vm557, %v3117
        %s3119 = sand.u32 %s325, 1
        %s3120 = scalar_lea.sflag [#allocation4], %s3119
        %s3121 = sand.u32 %s325, 1
        %s3122 = smul.addr %s3121, 8
        %s3123 = scalar_lea.vmem [#allocation10], %s3122
        // Predicated region
        $region89: #{tpu_custom_call.1} parent=71 // pred_check
          %p3124 = pneg %p335
        $region90: #{tpu_custom_call.1} parent=71 // pred_check_branch
          %3126 = sbr.rel (%p3124) target = $region92
        $region91: #{tpu_custom_call.1} parent=71 // pred_region
          %s3128 = ssub.s32 128, 128
          %3129 = vsyncadd %s3120, %s3128
          %s3130 = smul.addr %s34, 128
          %s3131 = scalar_lea.hbm %s13, %s3130
          %s3133 = sshll.u32 %s3123, 4
          %s3134 = int_to_ptr.vmem [resolvable:$true] %s3133
          %3136 = dma.vmem_to_hbm [thread:$0]  %s3134, 128, %s3131, %s3120
        $region92: #{tpu_custom_call.1} parent=71 // pred_fallthru
          _
      $region72: #{tpu_custom_call.1} parent=5 // pred_fallthru
        _
      %p3137 = scmp.le.s32.totalorder 2, %s29
      // Predicated region
      $region93: #{tpu_custom_call.1} parent=5 // pred_check
        %p3138 = pneg %p3137
      $region94: #{tpu_custom_call.1} parent=5 // pred_check_branch
        %3140 = sbr.rel (%p3138) target = $region96
      $region95: #{tpu_custom_call.1} parent=5 // pred_region
        %s3141 = ssub.s32 %s29, 2
        // Predicated region
        $region97: #{tpu_custom_call.1} parent=95 // pred_check
          %p3142 = pneg %p341
        $region98: #{tpu_custom_call.1} parent=95 // pred_check_branch
          %3144 = sbr.rel (%p3142) target = $region100
        $region99: #{tpu_custom_call.1} parent=95 // pred_region
          %s3145 = sand.u32 %s326, 1
          %s3146 = scalar_lea.sflag [#allocation4], %s3145
          %s3147 = sand.u32 %s326, 1
          %s3148 = smul.addr %s3147, 8
          %s3149 = scalar_lea.vmem [#allocation10], %s3148
          %3150 = dma.done %s3146, 128
        $region100: #{tpu_custom_call.1} parent=95 // pred_fallthru
          _
      $region96: #{tpu_custom_call.1} parent=5 // pred_fallthru
        _
    $region6: #{tpu_custom_call.1} parent=1 // loop_footer
      %s33 = sadd.s32 1, %s29
    $region7: #{tpu_custom_call.1} parent=1 // loop_footer_branch
      %28 = sbr.rel target = $region3
    $region8: #{tpu_custom_call.1} parent=1 // loop_exit
      _
    %3151 = vsyncpa [#allocation3], 1
    %s3152 = scalar_lea.sflag [#allocation3], 1
    %3153 = vsyncpa %s3152, 1
    %3154 = vsyncpa [#allocation6], 1
    %s3155 = scalar_lea.sflag [#allocation6], 1
    %3156 = vsyncpa %s3155, 1
    %3157 = vsyncpa [#allocation9], 1
    %3158 = vsyncpa [#allocation4], 1
    %s3159 = scalar_lea.sflag [#allocation4], 1
    %3160 = vsyncpa %s3159, 1

// kernel: tpu_custom_call.1
$region0: #{tpu_custom_call.1}
  #allocation0 [shape = 'u32[]', space=smem, size = 0x4, offset = 0x4, fixed_abs, tag = 'smem constant byte address 0x4 - core index']
  #allocation1 [shape = 'u32[144,128]{1,0:T(1,128)}', space=vmem, size = 0x12000, scoped, tag = 'internal scratch']
  %s0 = inlined_call_operand.hbm [shape: f32[2,8,32], index: 0, kind: input, shape index: {}]
  %s1 = inlined_call_operand.hbm [shape: f32[2,8,32], index: 1, kind: input, shape index: {}]
  %s2 = inlined_call_operand.vmem [shape: f32[32,32], index: 2, kind: input, shape index: {}]
  %s3 = inlined_call_operand.vmem [shape: f32[32,32], index: 3, kind: input, shape index: {}]
  %s4 = inlined_call_operand.vmem [shape: f32[32,32], index: 4, kind: input, shape index: {}]
  %s5 = inlined_call_operand.hbm [shape: f32[32,32], index: 5, kind: input, shape index: {}]
  %s6 = inlined_call_operand.vmem [shape: f32[1,32], index: 6, kind: input, shape index: {}]
  %s7 = inlined_call_operand.vmem [shape: f32[1,32], index: 7, kind: input, shape index: {}]
  %s8 = inlined_call_operand.vmem [shape: f32[1,32], index: 8, kind: input, shape index: {}]
  %s9 = inlined_call_operand.hbm [shape: f32[32,64], index: 9, kind: input, shape index: {}]
  %s10 = inlined_call_operand.vmem [shape: f32[1,64], index: 10, kind: input, shape index: {}]
  %s11 = inlined_call_operand.vmem [shape: f32[64,32], index: 11, kind: input, shape index: {}]
  %s12 = inlined_call_operand.vmem [shape: f32[1,32], index: 12, kind: input, shape index: {}]
  %s13 = inlined_call_operand.hbm [shape: f32[2,8,32], index: 13, kind: output, shape index: {}]
  %s14 = sld [smem:[#allocation0]]
  $region101: #{tpu_custom_call.1} parent=0
    _
  %s16 = ssub.s32 1, %s14
  %s17 = scalar_select 0, %s16, %s14
  $region1: #{tpu_custom_call.1} parent=0
    #allocation2 [shape = 'u8[8192]{0}', space=vmem, size = 0x2000, scoped, tag = 'input window, operand 0']
    #allocation3 [shape = 's32[2]{0}', space=sflag, size = 0x8, scoped, tag = 'scoped memory for tpu_custom_call.1']
    #allocation4 [shape = 's32[2]{0}', space=sflag, size = 0x8, scoped, tag = 'scoped memory for tpu_custom_call.1']
    #allocation5 [shape = 'u8[8192]{0}', space=vmem, size = 0x2000, scoped, tag = 'input window, operand 1']
    #allocation6 [shape = 's32[2]{0}', space=sflag, size = 0x8, scoped, tag = 'scoped memory for tpu_custom_call.1']
    #allocation7 [shape = 'u8[16384]{0}', space=vmem, size = 0x4000, scoped, tag = 'input window, operand 5, single buffered']
    #allocation8 [shape = 'u8[16384]{0}', space=vmem, size = 0x4000, scoped, tag = 'input window, operand 9, single buffered']
    #allocation9 [shape = 's32[1]{0}', space=sflag, size = 0x4, scoped, tag = 'scoped memory for tpu_custom_call.1']
    #allocation10 [shape = 'u8[8192]{0}', space=vmem, size = 0x2000, scoped, tag = 'output window, operand 0']
    %18 = vsyncpa [#allocation3], 0
    %s19 = scalar_lea.sflag [#allocation3], 1
    %20 = vsyncpa %s19, 0
    %21 = vsyncpa [#allocation6], 0
    %s22 = scalar_lea.sflag [#allocation6], 1
    %23 = vsyncpa %s22, 0
    %24 = vsyncpa [#allocation9], 0
    %25 = vsyncpa [#allocation4], 0
    %s26 = scalar_lea.sflag [#allocation4], 1
    %27 = vsyncpa %s26, 0
    loop: start=0, step=1, limit=4
    $region2: #{tpu_custom_call.1} parent=1 // loop_pre_header
      _
    $region3: #{tpu_custom_call.1} parent=1 // loop_header
      %s29 = sphi 0, %s33
      %p30 = scmp.ge.s32.totalorder %s29, 4
      %s39 = sphi 0, %s41
      %s42 = sphi 0, %s39
      %s43 = sphi 0, %s42
      %s59 = sphi 0, %s43
      %s65 = sphi 0, %s67
      %s68 = sphi 0, %s65
      %s69 = sphi 0, %s68
      %s85 = sphi 0, %s69
      %s89 = sphi 0, %s89
      %s91 = sphi 0, %s89
      %s92 = sphi 0, %s91
      %s106 = sphi 0, %s92
      %s110 = sphi 0, %s110
      %s112 = sphi 0, %s110
      %s113 = sphi 0, %s112
      %s127 = sphi 0, %s113
      %s131 = sphi 0, %s131
      %s133 = sphi 0, %s131
      %s134 = sphi 0, %s133
      %s148 = sphi 0, %s134
      %s152 = sphi 0, %s152
      %s154 = sphi 0, %s152
      %s155 = sphi 0, %s154
      %s169 = sphi 0, %s155
      %s173 = sphi 0, %s173
      %s175 = sphi 0, %s173
      %s176 = sphi 0, %s175
      %s190 = sphi 0, %s176
      %s194 = sphi 0, %s194
      %s196 = sphi 0, %s194
      %s197 = sphi 0, %s196
      %s211 = sphi 0, %s197
      %s215 = sphi 0, %s215
      %s217 = sphi 0, %s215
      %s218 = sphi 0, %s217
      %s232 = sphi 0, %s218
      %s236 = sphi 0, %s236
      %s238 = sphi 0, %s236
      %s239 = sphi 0, %s238
      %s253 = sphi 0, %s239
      %s257 = sphi 0, %s257
      %s259 = sphi 0, %s257
      %s260 = sphi 0, %s259
      %s274 = sphi 0, %s260
      %s278 = sphi 0, %s278
      %s280 = sphi 0, %s278
      %s281 = sphi 0, %s280
      %s295 = sphi 0, %s281
      %s299 = sphi 0, %s299
      %s301 = sphi 0, %s299
      %s302 = sphi 0, %s301
      %s316 = sphi 0, %s302
      %s322 = sphi 0, %s324
      %s325 = sphi 0, %s322
      %s326 = sphi 0, %s325
      %s342 = sphi 0, %s326
    $region4: #{tpu_custom_call.1} parent=1 // loop_header_branch
      %32 = sbr.rel (%p30) target = $region8
    $region5: #{tpu_custom_call.1} parent=1 // loop_body
      %s34 = ssub.s32 %s29, 1
      %s35 = ssub.s32 %s29, 2
      %s36 = sadd.s32 %s29, 1
      %s37 = ssub.s32 %s29, %s36
      %p38 = scmp.eq.s32.totalorder %s37, 0
      %s40 = sadd.s32 %s39, 1
      %s41 = scalar_select %p38, %s39, %s40
      %p44 = pneg %p38
      %p45 = scmp.eq.s32.totalorder %s29, 1
      %p46 = por %p44, %p45
      %p47 = scmp.ne.s32.totalorder %s39, %s42
      %p48 = scmp.eq.s32.totalorder %s29, 0
      %p49 = por %p47, %p48
      %p50 = scmp.ne.s32.totalorder %s39, %s42
      %p51 = scmp.eq.s32.totalorder %s34, 1
      %p52 = por %p50, %p51
      %p53 = scmp.ne.s32.totalorder %s42, %s43
      %p54 = scmp.eq.s32.totalorder %s34, 0
      %p55 = por %p53, %p54
      %p56 = scmp.ne.s32.totalorder %s42, %s43
      %p57 = scmp.eq.s32.totalorder %s35, 1
      %p58 = por %p56, %p57
      %p60 = scmp.ne.s32.totalorder %s43, %s59
      %p61 = scmp.eq.s32.totalorder %s35, 0
      %p62 = por %p60, %p61
      %s63 = ssub.s32 %s29, %s36
      %p64 = scmp.eq.s32.totalorder %s63, 0
      %s66 = sadd.s32 %s65, 1
      %s67 = scalar_select %p64, %s65, %s66
      %p70 = pneg %p64
      %p71 = scmp.eq.s32.totalorder %s29, 1
      %p72 = por %p70, %p71
      %p73 = scmp.ne.s32.totalorder %s65, %s68
      %p74 = scmp.eq.s32.totalorder %s29, 0
      %p75 = por %p73, %p74
      %p76 = scmp.ne.s32.totalorder %s65, %s68
      %p77 = scmp.eq.s32.totalorder %s34, 1
      %p78 = por %p76, %p77
      %p79 = scmp.ne.s32.totalorder %s68, %s69
      %p80 = scmp.eq.s32.totalorder %s34, 0
      %p81 = por %p79, %p80
      %p82 = scmp.ne.s32.totalorder %s68, %s69
      %p83 = scmp.eq.s32.totalorder %s35, 1
      %p84 = por %p82, %p83
      %p86 = scmp.ne.s32.totalorder %s69, %s85
      %p87 = scmp.eq.s32.totalorder %s35, 0
      %p88 = por %p86, %p87
      %s90 = sadd.s32 %s89, 1
      %p93 = scmp.eq.s32.totalorder %s29, 1
      %p94 = scmp.ne.s32.totalorder %s89, %s91
      %p95 = scmp.eq.s32.totalorder %s29, 0
      %p96 = por %p94, %p95
      %p97 = scmp.ne.s32.totalorder %s89, %s91
      %p98 = scmp.eq.s32.totalorder %s34, 1
      %p99 = por %p97, %p98
      %p100 = scmp.ne.s32.totalorder %s91, %s92
      %p101 = scmp.eq.s32.totalorder %s34, 0
      %p102 = por %p100, %p101
      %p103 = scmp.ne.s32.totalorder %s91, %s92
      %p104 = scmp.eq.s32.totalorder %s35, 1
      %p105 = por %p103, %p104
      %p107 = scmp.ne.s32.totalorder %s92, %s106
      %p108 = scmp.eq.s32.totalorder %s35, 0
      %p109 = por %p107, %p108
      %s111 = sadd.s32 %s110, 1
      %p114 = scmp.eq.s32.totalorder %s29, 1
      %p115 = scmp.ne.s32.totalorder %s110, %s112
      %p116 = scmp.eq.s32.totalorder %s29, 0
      %p117 = por %p115, %p116
      %p118 = scmp.ne.s32.totalorder %s110, %s112
      %p119 = scmp.eq.s32.totalorder %s34, 1
      %p120 = por %p118, %p119
      %p121 = scmp.ne.s32.totalorder %s112, %s113
      %p122 = scmp.eq.s32.totalorder %s34, 0
      %p123 = por %p121, %p122
      %p124 = scmp.ne.s32.totalorder %s112, %s113
      %p125 = scmp.eq.s32.totalorder %s35, 1
      %p126 = por %p124, %p125
      %p128 = scmp.ne.s32.totalorder %s113, %s127
      %p129 = scmp.eq.s32.totalorder %s35, 0
      %p130 = por %p128, %p129
      %s132 = sadd.s32 %s131, 1
      %p135 = scmp.eq.s32.totalorder %s29, 1
      %p136 = scmp.ne.s32.totalorder %s131, %s133
      %p137 = scmp.eq.s32.totalorder %s29, 0
      %p138 = por %p136, %p137
      %p139 = scmp.ne.s32.totalorder %s131, %s133
      %p140 = scmp.eq.s32.totalorder %s34, 1
      %p141 = por %p139, %p140
      %p142 = scmp.ne.s32.totalorder %s133, %s134
      %p143 = scmp.eq.s32.totalorder %s34, 0
      %p144 = por %p142, %p143
      %p145 = scmp.ne.s32.totalorder %s133, %s134
      %p146 = scmp.eq.s32.totalorder %s35, 1
      %p147 = por %p145, %p146
      %p149 = scmp.ne.s32.totalorder %s134, %s148
      %p150 = scmp.eq.s32.totalorder %s35, 0
      %p151 = por %p149, %p150
      %s153 = sadd.s32 %s152, 1
      %p156 = scmp.eq.s32.totalorder %s29, 1
      %p157 = scmp.ne.s32.totalorder %s152, %s154
      %p158 = scmp.eq.s32.totalorder %s29, 0
      %p159 = por %p157, %p158
      %p160 = scmp.ne.s32.totalorder %s152, %s154
      %p161 = scmp.eq.s32.totalorder %s34, 1
      %p162 = por %p160, %p161
      %p163 = scmp.ne.s32.totalorder %s154, %s155
      %p164 = scmp.eq.s32.totalorder %s34, 0
      %p165 = por %p163, %p164
      %p166 = scmp.ne.s32.totalorder %s154, %s155
      %p167 = scmp.eq.s32.totalorder %s35, 1
      %p168 = por %p166, %p167
      %p170 = scmp.ne.s32.totalorder %s155, %s169
      %p171 = scmp.eq.s32.totalorder %s35, 0
      %p172 = por %p170, %p171
      %s174 = sadd.s32 %s173, 1
      %p177 = scmp.eq.s32.totalorder %s29, 1
      %p178 = scmp.ne.s32.totalorder %s173, %s175
      %p179 = scmp.eq.s32.totalorder %s29, 0
      %p180 = por %p178, %p179
      %p181 = scmp.ne.s32.totalorder %s173, %s175
      %p182 = scmp.eq.s32.totalorder %s34, 1
      %p183 = por %p181, %p182
      %p184 = scmp.ne.s32.totalorder %s175, %s176
      %p185 = scmp.eq.s32.totalorder %s34, 0
      %p186 = por %p184, %p185
      %p187 = scmp.ne.s32.totalorder %s175, %s176
      %p188 = scmp.eq.s32.totalorder %s35, 1
      %p189 = por %p187, %p188
      %p191 = scmp.ne.s32.totalorder %s176, %s190
      %p192 = scmp.eq.s32.totalorder %s35, 0
      %p193 = por %p191, %p192
      %s195 = sadd.s32 %s194, 1
      %p198 = scmp.eq.s32.totalorder %s29, 1
      %p199 = scmp.ne.s32.totalorder %s194, %s196
      %p200 = scmp.eq.s32.totalorder %s29, 0
      %p201 = por %p199, %p200
      %p202 = scmp.ne.s32.totalorder %s194, %s196
      %p203 = scmp.eq.s32.totalorder %s34, 1
      %p204 = por %p202, %p203
      %p205 = scmp.ne.s32.totalorder %s196, %s197
      %p206 = scmp.eq.s32.totalorder %s34, 0
      %p207 = por %p205, %p206
      %p208 = scmp.ne.s32.totalorder %s196, %s197
      %p209 = scmp.eq.s32.totalorder %s35, 1
      %p210 = por %p208, %p209
      %p212 = scmp.ne.s32.totalorder %s197, %s211
      %p213 = scmp.eq.s32.totalorder %s35, 0
      %p214 = por %p212, %p213
      %s216 = sadd.s32 %s215, 1
      %p219 = scmp.eq.s32.totalorder %s29, 1
      %p220 = scmp.ne.s32.totalorder %s215, %s217
      %p221 = scmp.eq.s32.totalorder %s29, 0
      %p222 = por %p220, %p221
      %p223 = scmp.ne.s32.totalorder %s215, %s217
      %p224 = scmp.eq.s32.totalorder %s34, 1
      %p225 = por %p223, %p224
      %p226 = scmp.ne.s32.totalorder %s217, %s218
      %p227 = scmp.eq.s32.totalorder %s34, 0
      %p228 = por %p226, %p227
      %p229 = scmp.ne.s32.totalorder %s217, %s218
      %p230 = scmp.eq.s32.totalorder %s35, 1
      %p231 = por %p229, %p230
      %p233 = scmp.ne.s32.totalorder %s218, %s232
      %p234 = scmp.eq.s32.totalorder %s35, 0
      %p235 = por %p233, %p234
      %s237 = sadd.s32 %s236, 1
      %p240 = scmp.eq.s32.totalorder %s29, 1
      %p241 = scmp.ne.s32.totalorder %s236, %s238
      %p242 = scmp.eq.s32.totalorder %s29, 0
      %p243 = por %p241, %p242
      %p244 = scmp.ne.s32.totalorder %s236, %s238
      %p245 = scmp.eq.s32.totalorder %s34, 1
      %p246 = por %p244, %p245
      %p247 = scmp.ne.s32.totalorder %s238, %s239
      %p248 = scmp.eq.s32.totalorder %s34, 0
      %p249 = por %p247, %p248
      %p250 = scmp.ne.s32.totalorder %s238, %s239
      %p251 = scmp.eq.s32.totalorder %s35, 1
      %p252 = por %p250, %p251
      %p254 = scmp.ne.s32.totalorder %s239, %s253
      %p255 = scmp.eq.s32.totalorder %s35, 0
      %p256 = por %p254, %p255
      %s258 = sadd.s32 %s257, 1
      %p261 = scmp.eq.s32.totalorder %s29, 1
      %p262 = scmp.ne.s32.totalorder %s257, %s259
      %p263 = scmp.eq.s32.totalorder %s29, 0
      %p264 = por %p262, %p263
      %p265 = scmp.ne.s32.totalorder %s257, %s259
      %p266 = scmp.eq.s32.totalorder %s34, 1
      %p267 = por %p265, %p266
      %p268 = scmp.ne.s32.totalorder %s259, %s260
      %p269 = scmp.eq.s32.totalorder %s34, 0
      %p270 = por %p268, %p269
      %p271 = scmp.ne.s32.totalorder %s259, %s260
      %p272 = scmp.eq.s32.totalorder %s35, 1
      %p273 = por %p271, %p272
      %p275 = scmp.ne.s32.totalorder %s260, %s274
      %p276 = scmp.eq.s32.totalorder %s35, 0
      %p277 = por %p275, %p276
      %s279 = sadd.s32 %s278, 1
      %p282 = scmp.eq.s32.totalorder %s29, 1
      %p283 = scmp.ne.s32.totalorder %s278, %s280
      %p284 = scmp.eq.s32.totalorder %s29, 0
      %p285 = por %p283, %p284
      %p286 = scmp.ne.s32.totalorder %s278, %s280
      %p287 = scmp.eq.s32.totalorder %s34, 1
      %p288 = por %p286, %p287
      %p289 = scmp.ne.s32.totalorder %s280, %s281
      %p290 = scmp.eq.s32.totalorder %s34, 0
      %p291 = por %p289, %p290
      %p292 = scmp.ne.s32.totalorder %s280, %s281
      %p293 = scmp.eq.s32.totalorder %s35, 1
      %p294 = por %p292, %p293
      %p296 = scmp.ne.s32.totalorder %s281, %s295
      %p297 = scmp.eq.s32.totalorder %s35, 0
      %p298 = por %p296, %p297
      %s300 = sadd.s32 %s299, 1
      %p303 = scmp.eq.s32.totalorder %s29, 1
      %p304 = scmp.ne.s32.totalorder %s299, %s301
      %p305 = scmp.eq.s32.totalorder %s29, 0
      %p306 = por %p304, %p305
      %p307 = scmp.ne.s32.totalorder %s299, %s301
      %p308 = scmp.eq.s32.totalorder %s34, 1
      %p309 = por %p307, %p308
      %p310 = scmp.ne.s32.totalorder %s301, %s302
      %p311 = scmp.eq.s32.totalorder %s34, 0
      %p312 = por %p310, %p311
      %p313 = scmp.ne.s32.totalorder %s301, %s302
      %p314 = scmp.eq.s32.totalorder %s35, 1
      %p315 = por %p313, %p314
      %p317 = scmp.ne.s32.totalorder %s302, %s316
      %p318 = scmp.eq.s32.totalorder %s35, 0
      %p319 = por %p317, %p318
      %s320 = ssub.s32 %s29, %s36
      %p321 = scmp.eq.s32.totalorder %s320, 0
      %s323 = sadd.s32 %s322, 1
      %s324 = scalar_select %p321, %s322, %s323
      %p327 = pneg %p321
      %p328 = scmp.eq.s32.totalorder %s29, 1
      %p329 = por %p327, %p328
      %p330 = scmp.ne.s32.totalorder %s322, %s325
      %p331 = scmp.eq.s32.totalorder %s29, 0
      %p332 = por %p330, %p331
      %p333 = scmp.ne.s32.totalorder %s322, %s325
      %p334 = scmp.eq.s32.totalorder %s34, 1
      %p335 = por %p333, %p334
      %p336 = scmp.ne.s32.totalorder %s325, %s326
      %p337 = scmp.eq.s32.totalorder %s34, 0
      %p338 = por %p336, %p337
      %p339 = scmp.ne.s32.totalorder %s325, %s326
      %p340 = scmp.eq.s32.totalorder %s35, 1
      %p341 = por %p339, %p340
      %p343 = scmp.ne.s32.totalorder %s326, %s342
      %p344 = scmp.eq.s32.totalorder %s35, 0
      %p345 = por %p343, %p344
      %p346 = scmp.le.s32.totalorder 1, %s29
      %p347 = scmp.lt.s32.totalorder %s29, 3
      %p348 = pnand %p346, %p347
      %p349 = pneg %p348
      // Predicated region
      $region9: #{tpu_custom_call.1} parent=5 // pred_check
        _
      $region10: #{tpu_custom_call.1} parent=5 // pred_check_branch
        %351 = sbr.rel (%p348) target = $region12
      $region11: #{tpu_custom_call.1} parent=5 // pred_region
        %s352 = ssub.s32 %s29, 1
        // Predicated region
        $region13: #{tpu_custom_call.1} parent=11 // pred_check
          %p353 = pneg %p102
        $region14: #{tpu_custom_call.1} parent=11 // pred_check_branch
          %355 = sbr.rel (%p353) target = $region16
        $region15: #{tpu_custom_call.1} parent=11 // pred_region
          _
        $region16: #{tpu_custom_call.1} parent=11 // pred_fallthru
          _
        // Predicated region
        $region17: #{tpu_custom_call.1} parent=11 // pred_check
          %p356 = pneg %p123
        $region18: #{tpu_custom_call.1} parent=11 // pred_check_branch
          %358 = sbr.rel (%p356) target = $region20
        $region19: #{tpu_custom_call.1} parent=11 // pred_region
          _
        $region20: #{tpu_custom_call.1} parent=11 // pred_fallthru
          _
        // Predicated region
        $region21: #{tpu_custom_call.1} parent=11 // pred_check
          %p359 = pneg %p144
        $region22: #{tpu_custom_call.1} parent=11 // pred_check_branch
          %361 = sbr.rel (%p359) target = $region24
        $region23: #{tpu_custom_call.1} parent=11 // pred_region
          _
        $region24: #{tpu_custom_call.1} parent=11 // pred_fallthru
          _
        // Predicated region
        $region25: #{tpu_custom_call.1} parent=11 // pred_check
          %p362 = pneg %p165
        $region26: #{tpu_custom_call.1} parent=11 // pred_check_branch
          %364 = sbr.rel (%p362) target = $region28
        $region27: #{tpu_custom_call.1} parent=11 // pred_region
          %s366 = ssub.s32 512, 512
          %367 = vsyncadd [#allocation6], %s366
          %s368 = sshll.u32 [#allocation7], 4
          %s369 = int_to_ptr.vmem [resolvable:$true] %s368
          %374 = dma.hbm_to_vmem [thread:$0]  %s5, 512, %s369, [#allocation6], 128, 128, 8
        $region28: #{tpu_custom_call.1} parent=11 // pred_fallthru
          _
        // Predicated region
        $region29: #{tpu_custom_call.1} parent=11 // pred_check
          %p375 = pneg %p186
        $region30: #{tpu_custom_call.1} parent=11 // pred_check_branch
          %377 = sbr.rel (%p375) target = $region32
        $region31: #{tpu_custom_call.1} parent=11 // pred_region
          _
        $region32: #{tpu_custom_call.1} parent=11 // pred_fallthru
          _
        // Predicated region
        $region33: #{tpu_custom_call.1} parent=11 // pred_check
          %p378 = pneg %p207
        $region34: #{tpu_custom_call.1} parent=11 // pred_check_branch
          %380 = sbr.rel (%p378) target = $region36
        $region35: #{tpu_custom_call.1} parent=11 // pred_region
          _
        $region36: #{tpu_custom_call.1} parent=11 // pred_fallthru
          _
        // Predicated region
        $region37: #{tpu_custom_call.1} parent=11 // pred_check
          %p381 = pneg %p228
        $region38: #{tpu_custom_call.1} parent=11 // pred_check_branch
          %383 = sbr.rel (%p381) target = $region40
        $region39: #{tpu_custom_call.1} parent=11 // pred_region
          _
        $region40: #{tpu_custom_call.1} parent=11 // pred_fallthru
          _
        // Predicated region
        $region41: #{tpu_custom_call.1} parent=11 // pred_check
          %p384 = pneg %p249
        $region42: #{tpu_custom_call.1} parent=11 // pred_check_branch
          %386 = sbr.rel (%p384) target = $region44
        $region43: #{tpu_custom_call.1} parent=11 // pred_region
          %s388 = ssub.s32 512, 512
          %389 = vsyncadd [#allocation9], %s388
          %s390 = sshll.u32 [#allocation8], 4
          %s391 = int_to_ptr.vmem [resolvable:$true] %s390
          %396 = dma.hbm_to_vmem [thread:$0]  %s9, 512, %s391, [#allocation9], 128, 128, 8
        $region44: #{tpu_custom_call.1} parent=11 // pred_fallthru
          _
        // Predicated region
        $region45: #{tpu_custom_call.1} parent=11 // pred_check
          %p397 = pneg %p270
        $region46: #{tpu_custom_call.1} parent=11 // pred_check_branch
          %399 = sbr.rel (%p397) target = $region48
        $region47: #{tpu_custom_call.1} parent=11 // pred_region
          _
        $region48: #{tpu_custom_call.1} parent=11 // pred_fallthru
          _
        // Predicated region
        $region49: #{tpu_custom_call.1} parent=11 // pred_check
          %p400 = pneg %p291
        $region50: #{tpu_custom_call.1} parent=11 // pred_check_branch
          %402 = sbr.rel (%p400) target = $region52
        $region51: #{tpu_custom_call.1} parent=11 // pred_region
          _
        $region52: #{tpu_custom_call.1} parent=11 // pred_fallthru
          _
        // Predicated region
        $region53: #{tpu_custom_call.1} parent=11 // pred_check
          %p403 = pneg %p312
        $region54: #{tpu_custom_call.1} parent=11 // pred_check_branch
          %405 = sbr.rel (%p403) target = $region56
        $region55: #{tpu_custom_call.1} parent=11 // pred_region
          _
        $region56: #{tpu_custom_call.1} parent=11 // pred_fallthru
          _
      $region12: #{tpu_custom_call.1} parent=5 // pred_fallthru
        _
      %p406 = scmp.lt.s32.totalorder %s29, 2
      // Predicated region
      $region57: #{tpu_custom_call.1} parent=5 // pred_check
        %p407 = pneg %p406
      $region58: #{tpu_custom_call.1} parent=5 // pred_check_branch
        %409 = sbr.rel (%p407) target = $region60
      $region59: #{tpu_custom_call.1} parent=5 // pred_region
        // Predicated region
        $region61: #{tpu_custom_call.1} parent=59 // pred_check
          %p410 = pneg %p49
        $region62: #{tpu_custom_call.1} parent=59 // pred_check_branch
          %412 = sbr.rel (%p410) target = $region64
        $region63: #{tpu_custom_call.1} parent=59 // pred_region
          %s413 = sand.u32 %s39, 1
          %s414 = scalar_lea.sflag [#allocation3], %s413
          %s415 = sand.u32 %s39, 1
          %s416 = smul.addr %s415, 8
          %s417 = scalar_lea.vmem [#allocation2], %s416
          %s419 = ssub.s32 128, 128
          %420 = vsyncadd %s414, %s419
          %s421 = smul.addr %s29, 128
          %s422 = scalar_lea.hbm %s0, %s421
          %s424 = sshll.u32 %s417, 4
          %s425 = int_to_ptr.vmem [resolvable:$true] %s424
          %427 = dma.hbm_to_vmem [thread:$0]  %s422, 128, %s425, %s414
        $region64: #{tpu_custom_call.1} parent=59 // pred_fallthru
          _
        // Predicated region
        $region65: #{tpu_custom_call.1} parent=59 // pred_check
          %p428 = pneg %p75
        $region66: #{tpu_custom_call.1} parent=59 // pred_check_branch
          %430 = sbr.rel (%p428) target = $region68
        $region67: #{tpu_custom_call.1} parent=59 // pred_region
          %s431 = sand.u32 %s29, 1
          %s432 = scalar_lea.sflag [#allocation6], %s431
          %s433 = sand.u32 %s65, 1
          %s434 = smul.addr %s433, 8
          %s435 = scalar_lea.vmem [#allocation5], %s434
          %s437 = ssub.s32 128, 128
          %438 = vsyncadd %s432, %s437
          %s439 = smul.addr %s29, 128
          %s440 = scalar_lea.hbm %s1, %s439
          %s442 = sshll.u32 %s435, 4
          %s443 = int_to_ptr.vmem [resolvable:$true] %s442
          %445 = dma.hbm_to_vmem [thread:$0]  %s440, 128, %s443, %s432
        $region68: #{tpu_custom_call.1} parent=59 // pred_fallthru
          _
      $region60: #{tpu_custom_call.1} parent=5 // pred_fallthru
        _
      %p446 = scmp.le.s32.totalorder 1, %s29
      %p447 = scmp.lt.s32.totalorder %s29, 3
      %p448 = pnand %p446, %p447
      %p449 = pneg %p448
      // Predicated region
      $region69: #{tpu_custom_call.1} parent=5 // pred_check
        _
      $region70: #{tpu_custom_call.1} parent=5 // pred_check_branch
        %451 = sbr.rel (%p448) target = $region72
      $region71: #{tpu_custom_call.1} parent=5 // pred_region
        %s452 = ssub.s32 %s29, 1
        %s453 = sand.u32 %s42, 1
        %s454 = scalar_lea.sflag [#allocation3], %s453
        %s455 = sand.u32 %s42, 1
        %s456 = smul.addr %s455, 8
        %s457 = scalar_lea.vmem [#allocation2], %s456
        // Predicated region
        $region73: #{tpu_custom_call.1} parent=71 // pred_check
          %p458 = pneg %p55
        $region74: #{tpu_custom_call.1} parent=71 // pred_check_branch
          %460 = sbr.rel (%p458) target = $region76
        $region75: #{tpu_custom_call.1} parent=71 // pred_region
          %461 = dma.done %s454, 128
        $region76: #{tpu_custom_call.1} parent=71 // pred_fallthru
          _
        %s462 = sand.u32 %s34, 1
        %s463 = scalar_lea.sflag [#allocation6], %s462
        %s464 = sand.u32 %s68, 1
        %s465 = smul.addr %s464, 8
        %s466 = scalar_lea.vmem [#allocation5], %s465
        // Predicated region
        $region77: #{tpu_custom_call.1} parent=71 // pred_check
          %p467 = pneg %p81
        $region78: #{tpu_custom_call.1} parent=71 // pred_check_branch
          %469 = sbr.rel (%p467) target = $region80
        $region79: #{tpu_custom_call.1} parent=71 // pred_region
          %470 = dma.done %s463, 128
        $region80: #{tpu_custom_call.1} parent=71 // pred_fallthru
          _
        // Predicated region
        $region81: #{tpu_custom_call.1} parent=71 // pred_check
          %p471 = pneg %p165
        $region82: #{tpu_custom_call.1} parent=71 // pred_check_branch
          %473 = sbr.rel (%p471) target = $region84
        $region83: #{tpu_custom_call.1} parent=71 // pred_region
          %474 = dma.done [#allocation6], 512
        $region84: #{tpu_custom_call.1} parent=71 // pred_fallthru
          _
        // Predicated region
        $region85: #{tpu_custom_call.1} parent=71 // pred_check
          %p475 = pneg %p249
        $region86: #{tpu_custom_call.1} parent=71 // pred_check_branch
          %477 = sbr.rel (%p475) target = $region88
        $region87: #{tpu_custom_call.1} parent=71 // pred_region
          %478 = dma.done [#allocation9], 512
        $region88: #{tpu_custom_call.1} parent=71 // pred_fallthru
          _
        %s479 = sand.u32 %s42, 1
        %s480 = scalar_lea.sflag [#allocation3], %s479
        %s481 = sand.u32 %s42, 1
        %s482 = smul.addr %s481, 8
        %s483 = scalar_lea.vmem [#allocation2], %s482
        %p484 = pneg %p55
        %p485 = pneg %p52
        %s486 = sand.u32 %s34, 1
        %s487 = scalar_lea.sflag [#allocation6], %s486
        %s488 = sand.u32 %s68, 1
        %s489 = smul.addr %s488, 8
        %s490 = scalar_lea.vmem [#allocation5], %s489
        %p491 = pneg %p81
        %p492 = pneg %p78
        %p493 = pneg %p102
        %p494 = pneg %p99
        %p495 = pneg %p123
        %p496 = pneg %p120
        %p497 = pneg %p144
        %p498 = pneg %p141
        %p499 = pneg %p165
        %p500 = pneg %p162
        %p501 = pneg %p186
        %p502 = pneg %p183
        %p503 = pneg %p207
        %p504 = pneg %p204
        %p505 = pneg %p228
        %p506 = pneg %p225
        %p507 = pneg %p249
        %p508 = pneg %p246
        %p509 = pneg %p270
        %p510 = pneg %p267
        %p511 = pneg %p291
        %p512 = pneg %p288
        %p513 = pneg %p312
        %p514 = pneg %p309
        %p515 = pneg %p338
        %p516 = pneg %p335
        %s517 = sand.u32 %s325, 1
        %s518 = scalar_lea.sflag [#allocation4], %s517
        %s519 = sand.u32 %s325, 1
        %s520 = smul.addr %s519, 8
        %s521 = scalar_lea.vmem [#allocation10], %s520
        %v522 = vld [vmem:[%s457] sm:$0xff]
        %v523 = vld [vmem:[%s466] sm:$0xff]
        %v524 = vld [vmem:[%s2] sm:$0xff]
        %v525 = vld [vmem:[%s2 + $0x8] sm:$0xff]
        %v526 = vld [vmem:[%s2 + $0x10] sm:$0xff]
        %v527 = vld [vmem:[%s2 + $0x18] sm:$0xff]
        %v528 = vld [vmem:[%s3] sm:$0xff]
        %v529 = vld [vmem:[%s3 + $0x8] sm:$0xff]
        %v530 = vld [vmem:[%s3 + $0x10] sm:$0xff]
        %v531 = vld [vmem:[%s3 + $0x18] sm:$0xff]
        %v532 = vld [vmem:[%s4] sm:$0xff]
        %v533 = vld [vmem:[%s4 + $0x8] sm:$0xff]
        %v534 = vld [vmem:[%s4 + $0x10] sm:$0xff]
        %v535 = vld [vmem:[%s4 + $0x18] sm:$0xff]
        %v536 = vld [vmem:[#allocation7] sm:$0xff]
        %v537 = vld [vmem:[#allocation7 + $0x8] sm:$0xff]
        %v538 = vld [vmem:[#allocation7 + $0x10] sm:$0xff]
        %v539 = vld [vmem:[#allocation7 + $0x18] sm:$0xff]
        %v540 = vld [vmem:[%s6] sm:$0x1]
        %v541 = vld [vmem:[%s7] sm:$0x1]
        %v542 = vld [vmem:[%s8] sm:$0x1]
        %v543 = vld [vmem:[#allocation8] sm:$0xff]
        %v544 = vld [vmem:[#allocation8 + $0x8] sm:$0xff]
        %v545 = vld [vmem:[#allocation8 + $0x10] sm:$0xff]
        %v546 = vld [vmem:[#allocation8 + $0x18] sm:$0xff]
        %v547 = vld [vmem:[%s10] sm:$0x1]
        %v548 = vld [vmem:[%s11] sm:$0xff]
        %v549 = vld [vmem:[%s11 + $0x8] sm:$0xff]
        %v550 = vld [vmem:[%s11 + $0x10] sm:$0xff]
        %v551 = vld [vmem:[%s11 + $0x18] sm:$0xff]
        %v552 = vld [vmem:[%s11 + $0x20] sm:$0xff]
        %v553 = vld [vmem:[%s11 + $0x28] sm:$0xff]
        %v554 = vld [vmem:[%s11 + $0x30] sm:$0xff]
        %v555 = vld [vmem:[%s11 + $0x38] sm:$0xff]
        %v556 = vld [vmem:[%s12] sm:$0x1]
        %vm557 = vcmask 261120
        %v559 = vsel %vm557, %v522, 0
        %561 = vmatprep.subr.mxu0 0.0
        %562 = vmatpush1.msra.mxu0 0.0
        %563 = vmatprep.subr.mxu0 0.0
        %564 = vmatpush1.msra.mxu0 0.0
        %565 = vmatprep.subr.mxu0 0.0
        %566 = vmatpush1.msra.mxu0 0.0
        %567 = vmatprep.subr.mxu0 0.0
        %568 = vmatpush1.msra.mxu0 0.0
        %569 = vmatprep.subr.mxu0 0.0
        %570 = vmatpush1.msra.mxu0 0.0
        %571 = vmatprep.subr.mxu0 0.0
        %572 = vmatpush1.msra.mxu0 0.0
        %573 = vmatprep.subr.mxu0 0.0
        %574 = vmatpush1.msra.mxu0 0.0
        %575 = vmatprep.subr.mxu0 0.0
        %576 = vmatpush1.msra.mxu0 0.0
        %577 = vmatprep.subr.mxu0 0.0
        %578 = vmatpush1.msra.mxu0 0.0
        %579 = vmatprep.subr.mxu0 0.0
        %580 = vmatpush1.msra.mxu0 0.0
        %581 = vmatprep.subr.mxu0 0.0
        %582 = vmatpush1.msra.mxu0 0.0
        %583 = vmatprep.subr.mxu0 0.0
        %584 = vmatpush1.msra.mxu0 0.0
        %585 = vmatprep.subr.mxu0 0.0
        %586 = vmatpush1.msra.mxu0 %v527
        %587 = vmatprep.subr.mxu0 0.0
        %588 = vmatpush1.msra.mxu0 %v526
        %589 = vmatprep.subr.mxu0 0.0
        %590 = vmatpush1.msra.mxu0 %v525
        %591 = vmatprep.subr.mxu0 0.0
        %592 = vmatpush1.msra.mxu0 %v524
        %593 = vmatprep.subr.mxu0 0.0
        %594 = vmatpush2.msra.mxu0 0.0
        %595 = vmatprep.subr.mxu0 0.0
        %596 = vmatpush2.msra.mxu0 0.0
        %597 = vmatprep.subr.mxu0 0.0
        %598 = vmatpush2.msra.mxu0 0.0
        %599 = vmatprep.subr.mxu0 0.0
        %600 = vmatpush2.msra.mxu0 0.0
        %601 = vmatprep.subr.mxu0 0.0
        %602 = vmatpush2.msra.mxu0 0.0
        %603 = vmatprep.subr.mxu0 0.0
        %604 = vmatpush2.msra.mxu0 0.0
        %605 = vmatprep.subr.mxu0 0.0
        %606 = vmatpush2.msra.mxu0 0.0
        %607 = vmatprep.subr.mxu0 0.0
        %608 = vmatpush2.msra.mxu0 0.0
        %609 = vmatprep.subr.mxu0 0.0
        %610 = vmatpush2.msra.mxu0 0.0
        %611 = vmatprep.subr.mxu0 0.0
        %612 = vmatpush2.msra.mxu0 0.0
        %613 = vmatprep.subr.mxu0 0.0
        %614 = vmatpush2.msra.mxu0 0.0
        %615 = vmatprep.subr.mxu0 0.0
        %616 = vmatpush2.msra.mxu0 0.0
        %617 = vmatprep.subr.mxu0 0.0
        %618 = vmatpush2.msra.mxu0 0.0
        %619 = vmatprep.subr.mxu0 0.0
        %620 = vmatpush2.msra.mxu0 0.0
        %621 = vmatprep.subr.mxu0 0.0
        %622 = vmatpush2.msra.mxu0 0.0
        %623 = vmatprep.subr.mxu0 0.0
        %624 = vmatpush2.msra.mxu0 0.0
        %625 = vmatprep.mubr.f32.mxu0 0.0
        %626 = vmatmul.mubr.f32.gmra.mxu0 %v559
        %v627 = vpop.f32.mrf.mxu0
        %v628 = vadd.f32 0.0, %v627
        %v629 = vpop.f32.mrf.mxu0
        %630 = vdwg.mxu0
        %632 = vrot.lane.b32.xlu0 %v628, 120
        %v633 = vpop.permute.xlu0 %632
        %634 = vrot.lane.b32.xlu0 %v628, 112
        %v635 = vpop.permute.xlu0 %634
        %636 = vrot.lane.b32.xlu0 %v628, 104
        %v637 = vpop.permute.xlu0 %636
        %638 = vmatprep.subr.mxu0 0.0
        %639 = vmatpush1.msra.mxu0 0.0
        %640 = vmatprep.subr.mxu0 0.0
        %641 = vmatpush1.msra.mxu0 0.0
        %642 = vmatprep.subr.mxu0 0.0
        %643 = vmatpush1.msra.mxu0 0.0
        %644 = vmatprep.subr.mxu0 0.0
        %645 = vmatpush1.msra.mxu0 0.0
        %646 = vmatprep.subr.mxu0 0.0
        %647 = vmatpush1.msra.mxu0 0.0
        %648 = vmatprep.subr.mxu0 0.0
        %649 = vmatpush1.msra.mxu0 0.0
        %650 = vmatprep.subr.mxu0 0.0
        %651 = vmatpush1.msra.mxu0 0.0
        %652 = vmatprep.subr.mxu0 0.0
        %653 = vmatpush1.msra.mxu0 0.0
        %654 = vmatprep.subr.mxu0 0.0
        %655 = vmatpush1.msra.mxu0 0.0
        %656 = vmatprep.subr.mxu0 0.0
        %657 = vmatpush1.msra.mxu0 0.0
        %658 = vmatprep.subr.mxu0 0.0
        %659 = vmatpush1.msra.mxu0 0.0
        %660 = vmatprep.subr.mxu0 0.0
        %661 = vmatpush1.msra.mxu0 0.0
        %662 = vmatprep.subr.mxu0 0.0
        %663 = vmatpush1.msra.mxu0 %v531
        %664 = vmatprep.subr.mxu0 0.0
        %665 = vmatpush1.msra.mxu0 %v530
        %666 = vmatprep.subr.mxu0 0.0
        %667 = vmatpush1.msra.mxu0 %v529
        %668 = vmatprep.subr.mxu0 0.0
        %669 = vmatpush1.msra.mxu0 %v528
        %670 = vmatprep.subr.mxu0 0.0
        %671 = vmatpush2.msra.mxu0 0.0
        %672 = vmatprep.subr.mxu0 0.0
        %673 = vmatpush2.msra.mxu0 0.0
        %674 = vmatprep.subr.mxu0 0.0
        %675 = vmatpush2.msra.mxu0 0.0
        %676 = vmatprep.subr.mxu0 0.0
        %677 = vmatpush2.msra.mxu0 0.0
        %678 = vmatprep.subr.mxu0 0.0
        %679 = vmatpush2.msra.mxu0 0.0
        %680 = vmatprep.subr.mxu0 0.0
        %681 = vmatpush2.msra.mxu0 0.0
        %682 = vmatprep.subr.mxu0 0.0
        %683 = vmatpush2.msra.mxu0 0.0
        %684 = vmatprep.subr.mxu0 0.0
        %685 = vmatpush2.msra.mxu0 0.0
        %686 = vmatprep.subr.mxu0 0.0
        %687 = vmatpush2.msra.mxu0 0.0
        %688 = vmatprep.subr.mxu0 0.0
        %689 = vmatpush2.msra.mxu0 0.0
        %690 = vmatprep.subr.mxu0 0.0
        %691 = vmatpush2.msra.mxu0 0.0
        %692 = vmatprep.subr.mxu0 0.0
        %693 = vmatpush2.msra.mxu0 0.0
        %694 = vmatprep.subr.mxu0 0.0
        %695 = vmatpush2.msra.mxu0 0.0
        %696 = vmatprep.subr.mxu0 0.0
        %697 = vmatpush2.msra.mxu0 0.0
        %698 = vmatprep.subr.mxu0 0.0
        %699 = vmatpush2.msra.mxu0 0.0
        %700 = vmatprep.subr.mxu0 0.0
        %701 = vmatpush2.msra.mxu0 0.0
        %702 = vmatprep.mubr.f32.mxu0 0.0
        %703 = vmatmul.mubr.f32.gmra.mxu0 %v559
        %v704 = vpop.f32.mrf.mxu0
        %v705 = vadd.f32 0.0, %v704
        %v706 = vpop.f32.mrf.mxu0
        %707 = vdwg.mxu0
        %709 = vrot.lane.b32.xlu0 %v705, 120
        %v710 = vpop.permute.xlu0 %709
        %711 = vrot.lane.b32.xlu0 %v705, 112
        %v712 = vpop.permute.xlu0 %711
        %713 = vrot.lane.b32.xlu0 %v705, 104
        %v714 = vpop.permute.xlu0 %713
        %715 = vmatprep.subr.mxu0 0.0
        %716 = vmatpush1.msra.mxu0 0.0
        %717 = vmatprep.subr.mxu0 0.0
        %718 = vmatpush1.msra.mxu0 0.0
        %719 = vmatprep.subr.mxu0 0.0
        %720 = vmatpush1.msra.mxu0 0.0
        %721 = vmatprep.subr.mxu0 0.0
        %722 = vmatpush1.msra.mxu0 0.0
        %723 = vmatprep.subr.mxu0 0.0
        %724 = vmatpush1.msra.mxu0 0.0
        %725 = vmatprep.subr.mxu0 0.0
        %726 = vmatpush1.msra.mxu0 0.0
        %727 = vmatprep.subr.mxu0 0.0
        %728 = vmatpush1.msra.mxu0 0.0
        %729 = vmatprep.subr.mxu0 0.0
        %730 = vmatpush1.msra.mxu0 0.0
        %731 = vmatprep.subr.mxu0 0.0
        %732 = vmatpush1.msra.mxu0 0.0
        %733 = vmatprep.subr.mxu0 0.0
        %734 = vmatpush1.msra.mxu0 0.0
        %735 = vmatprep.subr.mxu0 0.0
        %736 = vmatpush1.msra.mxu0 0.0
        %737 = vmatprep.subr.mxu0 0.0
        %738 = vmatpush1.msra.mxu0 0.0
        %739 = vmatprep.subr.mxu0 0.0
        %740 = vmatpush1.msra.mxu0 %v535
        %741 = vmatprep.subr.mxu0 0.0
        %742 = vmatpush1.msra.mxu0 %v534
        %743 = vmatprep.subr.mxu0 0.0
        %744 = vmatpush1.msra.mxu0 %v533
        %745 = vmatprep.subr.mxu0 0.0
        %746 = vmatpush1.msra.mxu0 %v532
        %747 = vmatprep.subr.mxu0 0.0
        %748 = vmatpush2.msra.mxu0 0.0
        %749 = vmatprep.subr.mxu0 0.0
        %750 = vmatpush2.msra.mxu0 0.0
        %751 = vmatprep.subr.mxu0 0.0
        %752 = vmatpush2.msra.mxu0 0.0
        %753 = vmatprep.subr.mxu0 0.0
        %754 = vmatpush2.msra.mxu0 0.0
        %755 = vmatprep.subr.mxu0 0.0
        %756 = vmatpush2.msra.mxu0 0.0
        %757 = vmatprep.subr.mxu0 0.0
        %758 = vmatpush2.msra.mxu0 0.0
        %759 = vmatprep.subr.mxu0 0.0
        %760 = vmatpush2.msra.mxu0 0.0
        %761 = vmatprep.subr.mxu0 0.0
        %762 = vmatpush2.msra.mxu0 0.0
        %763 = vmatprep.subr.mxu0 0.0
        %764 = vmatpush2.msra.mxu0 0.0
        %765 = vmatprep.subr.mxu0 0.0
        %766 = vmatpush2.msra.mxu0 0.0
        %767 = vmatprep.subr.mxu0 0.0
        %768 = vmatpush2.msra.mxu0 0.0
        %769 = vmatprep.subr.mxu0 0.0
        %770 = vmatpush2.msra.mxu0 0.0
        %771 = vmatprep.subr.mxu0 0.0
        %772 = vmatpush2.msra.mxu0 0.0
        %773 = vmatprep.subr.mxu0 0.0
        %774 = vmatpush2.msra.mxu0 0.0
        %775 = vmatprep.subr.mxu0 0.0
        %776 = vmatpush2.msra.mxu0 0.0
        %777 = vmatprep.subr.mxu0 0.0
        %778 = vmatpush2.msra.mxu0 0.0
        %779 = vmatprep.mubr.f32.mxu0 0.0
        %780 = vmatmul.mubr.f32.gmra.mxu0 %v559
        %v781 = vpop.f32.mrf.mxu0
        %v782 = vadd.f32 0.0, %v781
        %v783 = vpop.f32.mrf.mxu0
        %784 = vdwg.mxu0
        %786 = vrot.lane.b32.xlu0 %v782, 120
        %v787 = vpop.permute.xlu0 %786
        %789 = vrot.lane.b32.xlu0 %v782, 112
        %v790 = vpop.permute.xlu0 %789
        %792 = vrot.lane.b32.xlu0 %v782, 104
        %v793 = vpop.permute.xlu0 %792
        %vm795 = vcmask 64512
        %v796 = vsel %vm795, %v628, 0
        %v798 = vsel %vm795, %v705, 0
        %800 = vmatprep.subr.mxu0 0.0
        %801 = vmatpush1.xpose.msra.mxu0 0.0
        %802 = vmatprep.subr.mxu0 0.0
        %803 = vmatpush1.xpose.msra.mxu0 0.0
        %804 = vmatprep.subr.mxu0 0.0
        %805 = vmatpush1.xpose.msra.mxu0 0.0
        %806 = vmatprep.subr.mxu0 0.0
        %807 = vmatpush1.xpose.msra.mxu0 0.0
        %808 = vmatprep.subr.mxu0 0.0
        %809 = vmatpush1.xpose.msra.mxu0 0.0
        %810 = vmatprep.subr.mxu0 0.0
        %811 = vmatpush1.xpose.msra.mxu0 0.0
        %812 = vmatprep.subr.mxu0 0.0
        %813 = vmatpush1.xpose.msra.mxu0 0.0
        %814 = vmatprep.subr.mxu0 0.0
        %815 = vmatpush1.xpose.msra.mxu0 0.0
        %816 = vmatprep.subr.mxu0 0.0
        %817 = vmatpush1.xpose.msra.mxu0 0.0
        %818 = vmatprep.subr.mxu0 0.0
        %819 = vmatpush1.xpose.msra.mxu0 0.0
        %820 = vmatprep.subr.mxu0 0.0
        %821 = vmatpush1.xpose.msra.mxu0 0.0
        %822 = vmatprep.subr.mxu0 0.0
        %823 = vmatpush1.xpose.msra.mxu0 0.0
        %824 = vmatprep.subr.mxu0 0.0
        %825 = vmatpush1.xpose.msra.mxu0 0.0
        %826 = vmatprep.subr.mxu0 0.0
        %827 = vmatpush1.xpose.msra.mxu0 0.0
        %828 = vmatprep.subr.mxu0 0.0
        %829 = vmatpush1.xpose.msra.mxu0 0.0
        %830 = vmatprep.subr.mxu0 0.0
        %831 = vmatpush1.xpose.msra.mxu0 %v798
        %832 = vmatprep.subr.mxu0 0.0
        %833 = vmatpush2.xpose.msra.mxu0 0.0
        %834 = vmatprep.subr.mxu0 0.0
        %835 = vmatpush2.xpose.msra.mxu0 0.0
        %836 = vmatprep.subr.mxu0 0.0
        %837 = vmatpush2.xpose.msra.mxu0 0.0
        %838 = vmatprep.subr.mxu0 0.0
        %839 = vmatpush2.xpose.msra.mxu0 0.0
        %840 = vmatprep.subr.mxu0 0.0
        %841 = vmatpush2.xpose.msra.mxu0 0.0
        %842 = vmatprep.subr.mxu0 0.0
        %843 = vmatpush2.xpose.msra.mxu0 0.0
        %844 = vmatprep.subr.mxu0 0.0
        %845 = vmatpush2.xpose.msra.mxu0 0.0
        %846 = vmatprep.subr.mxu0 0.0
        %847 = vmatpush2.xpose.msra.mxu0 0.0
        %848 = vmatprep.subr.mxu0 0.0
        %849 = vmatpush2.xpose.msra.mxu0 0.0
        %850 = vmatprep.subr.mxu0 0.0
        %851 = vmatpush2.xpose.msra.mxu0 0.0
        %852 = vmatprep.subr.mxu0 0.0
        %853 = vmatpush2.xpose.msra.mxu0 0.0
        %854 = vmatprep.subr.mxu0 0.0
        %855 = vmatpush2.xpose.msra.mxu0 0.0
        %856 = vmatprep.subr.mxu0 0.0
        %857 = vmatpush2.xpose.msra.mxu0 0.0
        %858 = vmatprep.subr.mxu0 0.0
        %859 = vmatpush2.xpose.msra.mxu0 0.0
        %860 = vmatprep.subr.mxu0 0.0
        %861 = vmatpush2.xpose.msra.mxu0 0.0
        %862 = vmatprep.subr.mxu0 0.0
        %863 = vmatpush2.xpose.msra.mxu0 0.0
        %864 = vmatprep.mubr.f32.mxu0 0.0
        %865 = vmatmul.mubr.f32.gmra.mxu0 %v796
        %v866 = vpop.f32.mrf.mxu0
        %v867 = vadd.f32 0.0, %v866
        %v868 = vpop.f32.mrf.mxu0
        %869 = vdwg.mxu0
        %v870 = vsel %vm795, %v633, 0
        %v872 = vsel %vm795, %v710, 0
        %874 = vmatprep.subr.mxu0 0.0
        %875 = vmatpush1.xpose.msra.mxu0 0.0
        %876 = vmatprep.subr.mxu0 0.0
        %877 = vmatpush1.xpose.msra.mxu0 0.0
        %878 = vmatprep.subr.mxu0 0.0
        %879 = vmatpush1.xpose.msra.mxu0 0.0
        %880 = vmatprep.subr.mxu0 0.0
        %881 = vmatpush1.xpose.msra.mxu0 0.0
        %882 = vmatprep.subr.mxu0 0.0
        %883 = vmatpush1.xpose.msra.mxu0 0.0
        %884 = vmatprep.subr.mxu0 0.0
        %885 = vmatpush1.xpose.msra.mxu0 0.0
        %886 = vmatprep.subr.mxu0 0.0
        %887 = vmatpush1.xpose.msra.mxu0 0.0
        %888 = vmatprep.subr.mxu0 0.0
        %889 = vmatpush1.xpose.msra.mxu0 0.0
        %890 = vmatprep.subr.mxu0 0.0
        %891 = vmatpush1.xpose.msra.mxu0 0.0
        %892 = vmatprep.subr.mxu0 0.0
        %893 = vmatpush1.xpose.msra.mxu0 0.0
        %894 = vmatprep.subr.mxu0 0.0
        %895 = vmatpush1.xpose.msra.mxu0 0.0
        %896 = vmatprep.subr.mxu0 0.0
        %897 = vmatpush1.xpose.msra.mxu0 0.0
        %898 = vmatprep.subr.mxu0 0.0
        %899 = vmatpush1.xpose.msra.mxu0 0.0
        %900 = vmatprep.subr.mxu0 0.0
        %901 = vmatpush1.xpose.msra.mxu0 0.0
        %902 = vmatprep.subr.mxu0 0.0
        %903 = vmatpush1.xpose.msra.mxu0 0.0
        %904 = vmatprep.subr.mxu0 0.0
        %905 = vmatpush1.xpose.msra.mxu0 %v872
        %906 = vmatprep.subr.mxu0 0.0
        %907 = vmatpush2.xpose.msra.mxu0 0.0
        %908 = vmatprep.subr.mxu0 0.0
        %909 = vmatpush2.xpose.msra.mxu0 0.0
        %910 = vmatprep.subr.mxu0 0.0
        %911 = vmatpush2.xpose.msra.mxu0 0.0
        %912 = vmatprep.subr.mxu0 0.0
        %913 = vmatpush2.xpose.msra.mxu0 0.0
        %914 = vmatprep.subr.mxu0 0.0
        %915 = vmatpush2.xpose.msra.mxu0 0.0
        %916 = vmatprep.subr.mxu0 0.0
        %917 = vmatpush2.xpose.msra.mxu0 0.0
        %918 = vmatprep.subr.mxu0 0.0
        %919 = vmatpush2.xpose.msra.mxu0 0.0
        %920 = vmatprep.subr.mxu0 0.0
        %921 = vmatpush2.xpose.msra.mxu0 0.0
        %922 = vmatprep.subr.mxu0 0.0
        %923 = vmatpush2.xpose.msra.mxu0 0.0
        %924 = vmatprep.subr.mxu0 0.0
        %925 = vmatpush2.xpose.msra.mxu0 0.0
        %926 = vmatprep.subr.mxu0 0.0
        %927 = vmatpush2.xpose.msra.mxu0 0.0
        %928 = vmatprep.subr.mxu0 0.0
        %929 = vmatpush2.xpose.msra.mxu0 0.0
        %930 = vmatprep.subr.mxu0 0.0
        %931 = vmatpush2.xpose.msra.mxu0 0.0
        %932 = vmatprep.subr.mxu0 0.0
        %933 = vmatpush2.xpose.msra.mxu0 0.0
        %934 = vmatprep.subr.mxu0 0.0
        %935 = vmatpush2.xpose.msra.mxu0 0.0
        %936 = vmatprep.subr.mxu0 0.0
        %937 = vmatpush2.xpose.msra.mxu0 0.0
        %938 = vmatprep.mubr.f32.mxu0 0.0
        %939 = vmatmul.mubr.f32.gmra.mxu0 %v870
        %v940 = vpop.f32.mrf.mxu0
        %v941 = vadd.f32 0.0, %v940
        %v942 = vpop.f32.mrf.mxu0
        %943 = vdwg.mxu0
        %v944 = vsel %vm795, %v635, 0
        %v946 = vsel %vm795, %v712, 0
        %948 = vmatprep.subr.mxu0 0.0
        %949 = vmatpush1.xpose.msra.mxu0 0.0
        %950 = vmatprep.subr.mxu0 0.0
        %951 = vmatpush1.xpose.msra.mxu0 0.0
        %952 = vmatprep.subr.mxu0 0.0
        %953 = vmatpush1.xpose.msra.mxu0 0.0
        %954 = vmatprep.subr.mxu0 0.0
        %955 = vmatpush1.xpose.msra.mxu0 0.0
        %956 = vmatprep.subr.mxu0 0.0
        %957 = vmatpush1.xpose.msra.mxu0 0.0
        %958 = vmatprep.subr.mxu0 0.0
        %959 = vmatpush1.xpose.msra.mxu0 0.0
        %960 = vmatprep.subr.mxu0 0.0
        %961 = vmatpush1.xpose.msra.mxu0 0.0
        %962 = vmatprep.subr.mxu0 0.0
        %963 = vmatpush1.xpose.msra.mxu0 0.0
        %964 = vmatprep.subr.mxu0 0.0
        %965 = vmatpush1.xpose.msra.mxu0 0.0
        %966 = vmatprep.subr.mxu0 0.0
        %967 = vmatpush1.xpose.msra.mxu0 0.0
        %968 = vmatprep.subr.mxu0 0.0
        %969 = vmatpush1.xpose.msra.mxu0 0.0
        %970 = vmatprep.subr.mxu0 0.0
        %971 = vmatpush1.xpose.msra.mxu0 0.0
        %972 = vmatprep.subr.mxu0 0.0
        %973 = vmatpush1.xpose.msra.mxu0 0.0
        %974 = vmatprep.subr.mxu0 0.0
        %975 = vmatpush1.xpose.msra.mxu0 0.0
        %976 = vmatprep.subr.mxu0 0.0
        %977 = vmatpush1.xpose.msra.mxu0 0.0
        %978 = vmatprep.subr.mxu0 0.0
        %979 = vmatpush1.xpose.msra.mxu0 %v946
        %980 = vmatprep.subr.mxu0 0.0
        %981 = vmatpush2.xpose.msra.mxu0 0.0
        %982 = vmatprep.subr.mxu0 0.0
        %983 = vmatpush2.xpose.msra.mxu0 0.0
        %984 = vmatprep.subr.mxu0 0.0
        %985 = vmatpush2.xpose.msra.mxu0 0.0
        %986 = vmatprep.subr.mxu0 0.0
        %987 = vmatpush2.xpose.msra.mxu0 0.0
        %988 = vmatprep.subr.mxu0 0.0
        %989 = vmatpush2.xpose.msra.mxu0 0.0
        %990 = vmatprep.subr.mxu0 0.0
        %991 = vmatpush2.xpose.msra.mxu0 0.0
        %992 = vmatprep.subr.mxu0 0.0
        %993 = vmatpush2.xpose.msra.mxu0 0.0
        %994 = vmatprep.subr.mxu0 0.0
        %995 = vmatpush2.xpose.msra.mxu0 0.0
        %996 = vmatprep.subr.mxu0 0.0
        %997 = vmatpush2.xpose.msra.mxu0 0.0
        %998 = vmatprep.subr.mxu0 0.0
        %999 = vmatpush2.xpose.msra.mxu0 0.0
        %1000 = vmatprep.subr.mxu0 0.0
        %1001 = vmatpush2.xpose.msra.mxu0 0.0
        %1002 = vmatprep.subr.mxu0 0.0
        %1003 = vmatpush2.xpose.msra.mxu0 0.0
        %1004 = vmatprep.subr.mxu0 0.0
        %1005 = vmatpush2.xpose.msra.mxu0 0.0
        %1006 = vmatprep.subr.mxu0 0.0
        %1007 = vmatpush2.xpose.msra.mxu0 0.0
        %1008 = vmatprep.subr.mxu0 0.0
        %1009 = vmatpush2.xpose.msra.mxu0 0.0
        %1010 = vmatprep.subr.mxu0 0.0
        %1011 = vmatpush2.xpose.msra.mxu0 0.0
        %1012 = vmatprep.mubr.f32.mxu0 0.0
        %1013 = vmatmul.mubr.f32.gmra.mxu0 %v944
        %v1014 = vpop.f32.mrf.mxu0
        %v1015 = vadd.f32 0.0, %v1014
        %v1016 = vpop.f32.mrf.mxu0
        %1017 = vdwg.mxu0
        %v1018 = vsel %vm795, %v637, 0
        %v1020 = vsel %vm795, %v714, 0
        %1022 = vmatprep.subr.mxu0 0.0
        %1023 = vmatpush1.xpose.msra.mxu0 0.0
        %1024 = vmatprep.subr.mxu0 0.0
        %1025 = vmatpush1.xpose.msra.mxu0 0.0
        %1026 = vmatprep.subr.mxu0 0.0
        %1027 = vmatpush1.xpose.msra.mxu0 0.0
        %1028 = vmatprep.subr.mxu0 0.0
        %1029 = vmatpush1.xpose.msra.mxu0 0.0
        %1030 = vmatprep.subr.mxu0 0.0
        %1031 = vmatpush1.xpose.msra.mxu0 0.0
        %1032 = vmatprep.subr.mxu0 0.0
        %1033 = vmatpush1.xpose.msra.mxu0 0.0
        %1034 = vmatprep.subr.mxu0 0.0
        %1035 = vmatpush1.xpose.msra.mxu0 0.0
        %1036 = vmatprep.subr.mxu0 0.0
        %1037 = vmatpush1.xpose.msra.mxu0 0.0
        %1038 = vmatprep.subr.mxu0 0.0
        %1039 = vmatpush1.xpose.msra.mxu0 0.0
        %1040 = vmatprep.subr.mxu0 0.0
        %1041 = vmatpush1.xpose.msra.mxu0 0.0
        %1042 = vmatprep.subr.mxu0 0.0
        %1043 = vmatpush1.xpose.msra.mxu0 0.0
        %1044 = vmatprep.subr.mxu0 0.0
        %1045 = vmatpush1.xpose.msra.mxu0 0.0
        %1046 = vmatprep.subr.mxu0 0.0
        %1047 = vmatpush1.xpose.msra.mxu0 0.0
        %1048 = vmatprep.subr.mxu0 0.0
        %1049 = vmatpush1.xpose.msra.mxu0 0.0
        %1050 = vmatprep.subr.mxu0 0.0
        %1051 = vmatpush1.xpose.msra.mxu0 0.0
        %1052 = vmatprep.subr.mxu0 0.0
        %1053 = vmatpush1.xpose.msra.mxu0 %v1020
        %1054 = vmatprep.subr.mxu0 0.0
        %1055 = vmatpush2.xpose.msra.mxu0 0.0
        %1056 = vmatprep.subr.mxu0 0.0
        %1057 = vmatpush2.xpose.msra.mxu0 0.0
        %1058 = vmatprep.subr.mxu0 0.0
        %1059 = vmatpush2.xpose.msra.mxu0 0.0
        %1060 = vmatprep.subr.mxu0 0.0
        %1061 = vmatpush2.xpose.msra.mxu0 0.0
        %1062 = vmatprep.subr.mxu0 0.0
        %1063 = vmatpush2.xpose.msra.mxu0 0.0
        %1064 = vmatprep.subr.mxu0 0.0
        %1065 = vmatpush2.xpose.msra.mxu0 0.0
        %1066 = vmatprep.subr.mxu0 0.0
        %1067 = vmatpush2.xpose.msra.mxu0 0.0
        %1068 = vmatprep.subr.mxu0 0.0
        %1069 = vmatpush2.xpose.msra.mxu0 0.0
        %1070 = vmatprep.subr.mxu0 0.0
        %1071 = vmatpush2.xpose.msra.mxu0 0.0
        %1072 = vmatprep.subr.mxu0 0.0
        %1073 = vmatpush2.xpose.msra.mxu0 0.0
        %1074 = vmatprep.subr.mxu0 0.0
        %1075 = vmatpush2.xpose.msra.mxu0 0.0
        %1076 = vmatprep.subr.mxu0 0.0
        %1077 = vmatpush2.xpose.msra.mxu0 0.0
        %1078 = vmatprep.subr.mxu0 0.0
        %1079 = vmatpush2.xpose.msra.mxu0 0.0
        %1080 = vmatprep.subr.mxu0 0.0
        %1081 = vmatpush2.xpose.msra.mxu0 0.0
        %1082 = vmatprep.subr.mxu0 0.0
        %1083 = vmatpush2.xpose.msra.mxu0 0.0
        %1084 = vmatprep.subr.mxu0 0.0
        %1085 = vmatpush2.xpose.msra.mxu0 0.0
        %1086 = vmatprep.mubr.f32.mxu0 0.0
        %1087 = vmatmul.mubr.f32.gmra.mxu0 %v1018
        %v1088 = vpop.f32.mrf.mxu0
        %v1089 = vadd.f32 0.0, %v1088
        %v1090 = vpop.f32.mrf.mxu0
        %1091 = vdwg.mxu0
        %v1092 = vsel %vm795, %v867, -inf
        %1093 = vmax.xlane.f32.xlu0 %v1092
        %v1094 = vpop.xlane.xlu0 %1093
        %v1095 = vsel %vm795, %v941, -inf
        %1096 = vmax.xlane.f32.xlu0 %v1095
        %v1097 = vpop.xlane.xlu0 %1096
        %v1098 = vsel %vm795, %v1015, -inf
        %1099 = vmax.xlane.f32.xlu0 %v1098
        %v1100 = vpop.xlane.xlu0 %1099
        %v1101 = vsel %vm795, %v1089, -inf
        %1102 = vmax.xlane.f32.xlu0 %v1101
        %v1103 = vpop.xlane.xlu0 %1102
        %v1104 = vsub.f32 %v867, %v1094
        %v1105 = vsub.f32 %v941, %v1097
        %v1106 = vsub.f32 %v1015, %v1100
        %v1107 = vsub.f32 %v1089, %v1103
        %v1108 = vmul.f32 %v1104, 1.442695
        %v1109 = vpow.pop %v1108
        %v1110 = vmul.f32 %v1105, 1.442695
        %v1111 = vpow.pop %v1110
        %v1112 = vmul.f32 %v1106, 1.442695
        %v1113 = vpow.pop %v1112
        %v1114 = vmul.f32 %v1107, 1.442695
        %v1115 = vpow.pop %v1114
        %v1116 = vsel %vm795, %v1109, 0.0
        %1117 = vadd.xlane.f32.xlu0 %v1116
        %v1118 = vpop.xlane.xlu0 %1117
        %v1119 = vsel %vm795, %v1111, 0.0
        %1120 = vadd.xlane.f32.xlu0 %v1119
        %v1121 = vpop.xlane.xlu0 %1120
        %v1122 = vsel %vm795, %v1113, 0.0
        %1123 = vadd.xlane.f32.xlu0 %v1122
        %v1124 = vpop.xlane.xlu0 %1123
        %v1125 = vsel %vm795, %v1115, 0.0
        %1126 = vadd.xlane.f32.xlu0 %v1125
        %v1127 = vpop.xlane.xlu0 %1126
        %v1128 = vrcp.pop %v1118
        %v1129 = vrcp.pop %v1121
        %v1130 = vrcp.pop %v1124
        %v1131 = vrcp.pop %v1127
        %v1132 = vmul.f32 %v1109, %v1128
        %v1133 = vmul.f32 %v1111, %v1129
        %v1134 = vmul.f32 %v1113, %v1130
        %v1135 = vmul.f32 %v1115, %v1131
        %v1137 = vsel %vm795, %v1132, 0
        %1139 = vmatprep.subr.mxu0 0.0
        %1140 = vmatpush1.msra.mxu0 0.0
        %1141 = vmatprep.subr.mxu0 0.0
        %1142 = vmatpush1.msra.mxu0 0.0
        %1143 = vmatprep.subr.mxu0 0.0
        %1144 = vmatpush1.msra.mxu0 0.0
        %1145 = vmatprep.subr.mxu0 0.0
        %1146 = vmatpush1.msra.mxu0 0.0
        %1147 = vmatprep.subr.mxu0 0.0
        %1148 = vmatpush1.msra.mxu0 0.0
        %1149 = vmatprep.subr.mxu0 0.0
        %1150 = vmatpush1.msra.mxu0 0.0
        %1151 = vmatprep.subr.mxu0 0.0
        %1152 = vmatpush1.msra.mxu0 0.0
        %1153 = vmatprep.subr.mxu0 0.0
        %1154 = vmatpush1.msra.mxu0 0.0
        %1155 = vmatprep.subr.mxu0 0.0
        %1156 = vmatpush1.msra.mxu0 0.0
        %1157 = vmatprep.subr.mxu0 0.0
        %1158 = vmatpush1.msra.mxu0 0.0
        %1159 = vmatprep.subr.mxu0 0.0
        %1160 = vmatpush1.msra.mxu0 0.0
        %1161 = vmatprep.subr.mxu0 0.0
        %1162 = vmatpush1.msra.mxu0 0.0
        %1163 = vmatprep.subr.mxu0 0.0
        %1164 = vmatpush1.msra.mxu0 0.0
        %1165 = vmatprep.subr.mxu0 0.0
        %1166 = vmatpush1.msra.mxu0 0.0
        %1167 = vmatprep.subr.mxu0 0.0
        %1168 = vmatpush1.msra.mxu0 0.0
        %1169 = vmatprep.subr.mxu0 0.0
        %1170 = vmatpush1.msra.mxu0 %v782
        %1171 = vmatprep.subr.mxu0 0.0
        %1172 = vmatpush2.msra.mxu0 0.0
        %1173 = vmatprep.subr.mxu0 0.0
        %1174 = vmatpush2.msra.mxu0 0.0
        %1175 = vmatprep.subr.mxu0 0.0
        %1176 = vmatpush2.msra.mxu0 0.0
        %1177 = vmatprep.subr.mxu0 0.0
        %1178 = vmatpush2.msra.mxu0 0.0
        %1179 = vmatprep.subr.mxu0 0.0
        %1180 = vmatpush2.msra.mxu0 0.0
        %1181 = vmatprep.subr.mxu0 0.0
        %1182 = vmatpush2.msra.mxu0 0.0
        %1183 = vmatprep.subr.mxu0 0.0
        %1184 = vmatpush2.msra.mxu0 0.0
        %1185 = vmatprep.subr.mxu0 0.0
        %1186 = vmatpush2.msra.mxu0 0.0
        %1187 = vmatprep.subr.mxu0 0.0
        %1188 = vmatpush2.msra.mxu0 0.0
        %1189 = vmatprep.subr.mxu0 0.0
        %1190 = vmatpush2.msra.mxu0 0.0
        %1191 = vmatprep.subr.mxu0 0.0
        %1192 = vmatpush2.msra.mxu0 0.0
        %1193 = vmatprep.subr.mxu0 0.0
        %1194 = vmatpush2.msra.mxu0 0.0
        %1195 = vmatprep.subr.mxu0 0.0
        %1196 = vmatpush2.msra.mxu0 0.0
        %1197 = vmatprep.subr.mxu0 0.0
        %1198 = vmatpush2.msra.mxu0 0.0
        %1199 = vmatprep.subr.mxu0 0.0
        %1200 = vmatpush2.msra.mxu0 0.0
        %1201 = vmatprep.subr.mxu0 0.0
        %1202 = vmatpush2.msra.mxu0 0.0
        %1203 = vmatprep.mubr.f32.mxu0 0.0
        %1204 = vmatmul.mubr.f32.gmra.mxu0 %v1137
        %v1205 = vpop.f32.mrf.mxu0
        %v1206 = vadd.f32 0.0, %v1205
        %v1207 = vpop.f32.mrf.mxu0
        %1208 = vdwg.mxu0
        %v1210 = vsel %vm795, %v1133, 0
        %1212 = vmatprep.subr.mxu0 0.0
        %1213 = vmatpush1.msra.mxu0 0.0
        %1214 = vmatprep.subr.mxu0 0.0
        %1215 = vmatpush1.msra.mxu0 0.0
        %1216 = vmatprep.subr.mxu0 0.0
        %1217 = vmatpush1.msra.mxu0 0.0
        %1218 = vmatprep.subr.mxu0 0.0
        %1219 = vmatpush1.msra.mxu0 0.0
        %1220 = vmatprep.subr.mxu0 0.0
        %1221 = vmatpush1.msra.mxu0 0.0
        %1222 = vmatprep.subr.mxu0 0.0
        %1223 = vmatpush1.msra.mxu0 0.0
        %1224 = vmatprep.subr.mxu0 0.0
        %1225 = vmatpush1.msra.mxu0 0.0
        %1226 = vmatprep.subr.mxu0 0.0
        %1227 = vmatpush1.msra.mxu0 0.0
        %1228 = vmatprep.subr.mxu0 0.0
        %1229 = vmatpush1.msra.mxu0 0.0
        %1230 = vmatprep.subr.mxu0 0.0
        %1231 = vmatpush1.msra.mxu0 0.0
        %1232 = vmatprep.subr.mxu0 0.0
        %1233 = vmatpush1.msra.mxu0 0.0
        %1234 = vmatprep.subr.mxu0 0.0
        %1235 = vmatpush1.msra.mxu0 0.0
        %1236 = vmatprep.subr.mxu0 0.0
        %1237 = vmatpush1.msra.mxu0 0.0
        %1238 = vmatprep.subr.mxu0 0.0
        %1239 = vmatpush1.msra.mxu0 0.0
        %1240 = vmatprep.subr.mxu0 0.0
        %1241 = vmatpush1.msra.mxu0 0.0
        %1242 = vmatprep.subr.mxu0 0.0
        %1243 = vmatpush1.msra.mxu0 %v787
        %1244 = vmatprep.subr.mxu0 0.0
        %1245 = vmatpush2.msra.mxu0 0.0
        %1246 = vmatprep.subr.mxu0 0.0
        %1247 = vmatpush2.msra.mxu0 0.0
        %1248 = vmatprep.subr.mxu0 0.0
        %1249 = vmatpush2.msra.mxu0 0.0
        %1250 = vmatprep.subr.mxu0 0.0
        %1251 = vmatpush2.msra.mxu0 0.0
        %1252 = vmatprep.subr.mxu0 0.0
        %1253 = vmatpush2.msra.mxu0 0.0
        %1254 = vmatprep.subr.mxu0 0.0
        %1255 = vmatpush2.msra.mxu0 0.0
        %1256 = vmatprep.subr.mxu0 0.0
        %1257 = vmatpush2.msra.mxu0 0.0
        %1258 = vmatprep.subr.mxu0 0.0
        %1259 = vmatpush2.msra.mxu0 0.0
        %1260 = vmatprep.subr.mxu0 0.0
        %1261 = vmatpush2.msra.mxu0 0.0
        %1262 = vmatprep.subr.mxu0 0.0
        %1263 = vmatpush2.msra.mxu0 0.0
        %1264 = vmatprep.subr.mxu0 0.0
        %1265 = vmatpush2.msra.mxu0 0.0
        %1266 = vmatprep.subr.mxu0 0.0
        %1267 = vmatpush2.msra.mxu0 0.0
        %1268 = vmatprep.subr.mxu0 0.0
        %1269 = vmatpush2.msra.mxu0 0.0
        %1270 = vmatprep.subr.mxu0 0.0
        %1271 = vmatpush2.msra.mxu0 0.0
        %1272 = vmatprep.subr.mxu0 0.0
        %1273 = vmatpush2.msra.mxu0 0.0
        %1274 = vmatprep.subr.mxu0 0.0
        %1275 = vmatpush2.msra.mxu0 0.0
        %1276 = vmatprep.mubr.f32.mxu0 0.0
        %1277 = vmatmul.mubr.f32.gmra.mxu0 %v1210
        %v1278 = vpop.f32.mrf.mxu0
        %v1279 = vadd.f32 0.0, %v1278
        %v1280 = vpop.f32.mrf.mxu0
        %1281 = vdwg.mxu0
        %v1283 = vsel %vm795, %v1134, 0
        %1285 = vmatprep.subr.mxu0 0.0
        %1286 = vmatpush1.msra.mxu0 0.0
        %1287 = vmatprep.subr.mxu0 0.0
        %1288 = vmatpush1.msra.mxu0 0.0
        %1289 = vmatprep.subr.mxu0 0.0
        %1290 = vmatpush1.msra.mxu0 0.0
        %1291 = vmatprep.subr.mxu0 0.0
        %1292 = vmatpush1.msra.mxu0 0.0
        %1293 = vmatprep.subr.mxu0 0.0
        %1294 = vmatpush1.msra.mxu0 0.0
        %1295 = vmatprep.subr.mxu0 0.0
        %1296 = vmatpush1.msra.mxu0 0.0
        %1297 = vmatprep.subr.mxu0 0.0
        %1298 = vmatpush1.msra.mxu0 0.0
        %1299 = vmatprep.subr.mxu0 0.0
        %1300 = vmatpush1.msra.mxu0 0.0
        %1301 = vmatprep.subr.mxu0 0.0
        %1302 = vmatpush1.msra.mxu0 0.0
        %1303 = vmatprep.subr.mxu0 0.0
        %1304 = vmatpush1.msra.mxu0 0.0
        %1305 = vmatprep.subr.mxu0 0.0
        %1306 = vmatpush1.msra.mxu0 0.0
        %1307 = vmatprep.subr.mxu0 0.0
        %1308 = vmatpush1.msra.mxu0 0.0
        %1309 = vmatprep.subr.mxu0 0.0
        %1310 = vmatpush1.msra.mxu0 0.0
        %1311 = vmatprep.subr.mxu0 0.0
        %1312 = vmatpush1.msra.mxu0 0.0
        %1313 = vmatprep.subr.mxu0 0.0
        %1314 = vmatpush1.msra.mxu0 0.0
        %1315 = vmatprep.subr.mxu0 0.0
        %1316 = vmatpush1.msra.mxu0 %v790
        %1317 = vmatprep.subr.mxu0 0.0
        %1318 = vmatpush2.msra.mxu0 0.0
        %1319 = vmatprep.subr.mxu0 0.0
        %1320 = vmatpush2.msra.mxu0 0.0
        %1321 = vmatprep.subr.mxu0 0.0
        %1322 = vmatpush2.msra.mxu0 0.0
        %1323 = vmatprep.subr.mxu0 0.0
        %1324 = vmatpush2.msra.mxu0 0.0
        %1325 = vmatprep.subr.mxu0 0.0
        %1326 = vmatpush2.msra.mxu0 0.0
        %1327 = vmatprep.subr.mxu0 0.0
        %1328 = vmatpush2.msra.mxu0 0.0
        %1329 = vmatprep.subr.mxu0 0.0
        %1330 = vmatpush2.msra.mxu0 0.0
        %1331 = vmatprep.subr.mxu0 0.0
        %1332 = vmatpush2.msra.mxu0 0.0
        %1333 = vmatprep.subr.mxu0 0.0
        %1334 = vmatpush2.msra.mxu0 0.0
        %1335 = vmatprep.subr.mxu0 0.0
        %1336 = vmatpush2.msra.mxu0 0.0
        %1337 = vmatprep.subr.mxu0 0.0
        %1338 = vmatpush2.msra.mxu0 0.0
        %1339 = vmatprep.subr.mxu0 0.0
        %1340 = vmatpush2.msra.mxu0 0.0
        %1341 = vmatprep.subr.mxu0 0.0
        %1342 = vmatpush2.msra.mxu0 0.0
        %1343 = vmatprep.subr.mxu0 0.0
        %1344 = vmatpush2.msra.mxu0 0.0
        %1345 = vmatprep.subr.mxu0 0.0
        %1346 = vmatpush2.msra.mxu0 0.0
        %1347 = vmatprep.subr.mxu0 0.0
        %1348 = vmatpush2.msra.mxu0 0.0
        %1349 = vmatprep.mubr.f32.mxu0 0.0
        %1350 = vmatmul.mubr.f32.gmra.mxu0 %v1283
        %v1351 = vpop.f32.mrf.mxu0
        %v1352 = vadd.f32 0.0, %v1351
        %v1353 = vpop.f32.mrf.mxu0
        %1354 = vdwg.mxu0
        %v1356 = vsel %vm795, %v1135, 0
        %1358 = vmatprep.subr.mxu0 0.0
        %1359 = vmatpush1.msra.mxu0 0.0
        %1360 = vmatprep.subr.mxu0 0.0
        %1361 = vmatpush1.msra.mxu0 0.0
        %1362 = vmatprep.subr.mxu0 0.0
        %1363 = vmatpush1.msra.mxu0 0.0
        %1364 = vmatprep.subr.mxu0 0.0
        %1365 = vmatpush1.msra.mxu0 0.0
        %1366 = vmatprep.subr.mxu0 0.0
        %1367 = vmatpush1.msra.mxu0 0.0
        %1368 = vmatprep.subr.mxu0 0.0
        %1369 = vmatpush1.msra.mxu0 0.0
        %1370 = vmatprep.subr.mxu0 0.0
        %1371 = vmatpush1.msra.mxu0 0.0
        %1372 = vmatprep.subr.mxu0 0.0
        %1373 = vmatpush1.msra.mxu0 0.0
        %1374 = vmatprep.subr.mxu0 0.0
        %1375 = vmatpush1.msra.mxu0 0.0
        %1376 = vmatprep.subr.mxu0 0.0
        %1377 = vmatpush1.msra.mxu0 0.0
        %1378 = vmatprep.subr.mxu0 0.0
        %1379 = vmatpush1.msra.mxu0 0.0
        %1380 = vmatprep.subr.mxu0 0.0
        %1381 = vmatpush1.msra.mxu0 0.0
        %1382 = vmatprep.subr.mxu0 0.0
        %1383 = vmatpush1.msra.mxu0 0.0
        %1384 = vmatprep.subr.mxu0 0.0
        %1385 = vmatpush1.msra.mxu0 0.0
        %1386 = vmatprep.subr.mxu0 0.0
        %1387 = vmatpush1.msra.mxu0 0.0
        %1388 = vmatprep.subr.mxu0 0.0
        %1389 = vmatpush1.msra.mxu0 %v793
        %1390 = vmatprep.subr.mxu0 0.0
        %1391 = vmatpush2.msra.mxu0 0.0
        %1392 = vmatprep.subr.mxu0 0.0
        %1393 = vmatpush2.msra.mxu0 0.0
        %1394 = vmatprep.subr.mxu0 0.0
        %1395 = vmatpush2.msra.mxu0 0.0
        %1396 = vmatprep.subr.mxu0 0.0
        %1397 = vmatpush2.msra.mxu0 0.0
        %1398 = vmatprep.subr.mxu0 0.0
        %1399 = vmatpush2.msra.mxu0 0.0
        %1400 = vmatprep.subr.mxu0 0.0
        %1401 = vmatpush2.msra.mxu0 0.0
        %1402 = vmatprep.subr.mxu0 0.0
        %1403 = vmatpush2.msra.mxu0 0.0
        %1404 = vmatprep.subr.mxu0 0.0
        %1405 = vmatpush2.msra.mxu0 0.0
        %1406 = vmatprep.subr.mxu0 0.0
        %1407 = vmatpush2.msra.mxu0 0.0
        %1408 = vmatprep.subr.mxu0 0.0
        %1409 = vmatpush2.msra.mxu0 0.0
        %1410 = vmatprep.subr.mxu0 0.0
        %1411 = vmatpush2.msra.mxu0 0.0
        %1412 = vmatprep.subr.mxu0 0.0
        %1413 = vmatpush2.msra.mxu0 0.0
        %1414 = vmatprep.subr.mxu0 0.0
        %1415 = vmatpush2.msra.mxu0 0.0
        %1416 = vmatprep.subr.mxu0 0.0
        %1417 = vmatpush2.msra.mxu0 0.0
        %1418 = vmatprep.subr.mxu0 0.0
        %1419 = vmatpush2.msra.mxu0 0.0
        %1420 = vmatprep.subr.mxu0 0.0
        %1421 = vmatpush2.msra.mxu0 0.0
        %1422 = vmatprep.mubr.f32.mxu0 0.0
        %1423 = vmatmul.mubr.f32.gmra.mxu0 %v1356
        %v1424 = vpop.f32.mrf.mxu0
        %v1425 = vadd.f32 0.0, %v1424
        %v1426 = vpop.f32.mrf.mxu0
        %1427 = vdwg.mxu0
        %v1429 = vsel %vm795, %v1279, 0
        %1431 = vmatprep.subr.mxu0 0.0
        %1432 = vmatpush1.msra.mxu0 0.0
        %1433 = vmatprep.subr.mxu0 0.0
        %1434 = vmatpush1.msra.mxu0 0.0
        %1435 = vmatprep.subr.mxu0 0.0
        %1436 = vmatpush1.msra.mxu0 0.0
        %1437 = vmatprep.subr.mxu0 0.0
        %1438 = vmatpush1.msra.mxu0 0.0
        %1439 = vmatprep.subr.mxu0 0.0
        %1440 = vmatpush1.msra.mxu0 0.0
        %1441 = vmatprep.subr.mxu0 0.0
        %1442 = vmatpush1.msra.mxu0 0.0
        %1443 = vmatprep.subr.mxu0 0.0
        %1444 = vmatpush1.msra.mxu0 0.0
        %1445 = vmatprep.subr.mxu0 0.0
        %1446 = vmatpush1.msra.mxu0 0.0
        %1447 = vmatprep.subr.mxu0 0.0
        %1448 = vmatpush1.msra.mxu0 0.0
        %1449 = vmatprep.subr.mxu0 0.0
        %1450 = vmatpush1.msra.mxu0 0.0
        %1451 = vmatprep.subr.mxu0 0.0
        %1452 = vmatpush1.msra.mxu0 0.0
        %1453 = vmatprep.subr.mxu0 0.0
        %1454 = vmatpush1.msra.mxu0 0.0
        %1455 = vmatprep.subr.mxu0 0.0
        %1456 = vmatpush1.msra.mxu0 0.0
        %1457 = vmatprep.subr.mxu0 0.0
        %1458 = vmatpush1.msra.mxu0 0.0
        %1459 = vmatprep.subr.mxu0 0.0
        %1460 = vmatpush1.msra.mxu0 0.0
        %1461 = vmatprep.subr.mxu0 0.0
        %1462 = vmatpush1.msra.mxu0 %v537
        %1463 = vmatprep.subr.mxu0 0.0
        %1464 = vmatpush2.msra.mxu0 0.0
        %1465 = vmatprep.subr.mxu0 0.0
        %1466 = vmatpush2.msra.mxu0 0.0
        %1467 = vmatprep.subr.mxu0 0.0
        %1468 = vmatpush2.msra.mxu0 0.0
        %1469 = vmatprep.subr.mxu0 0.0
        %1470 = vmatpush2.msra.mxu0 0.0
        %1471 = vmatprep.subr.mxu0 0.0
        %1472 = vmatpush2.msra.mxu0 0.0
        %1473 = vmatprep.subr.mxu0 0.0
        %1474 = vmatpush2.msra.mxu0 0.0
        %1475 = vmatprep.subr.mxu0 0.0
        %1476 = vmatpush2.msra.mxu0 0.0
        %1477 = vmatprep.subr.mxu0 0.0
        %1478 = vmatpush2.msra.mxu0 0.0
        %1479 = vmatprep.subr.mxu0 0.0
        %1480 = vmatpush2.msra.mxu0 0.0
        %1481 = vmatprep.subr.mxu0 0.0
        %1482 = vmatpush2.msra.mxu0 0.0
        %1483 = vmatprep.subr.mxu0 0.0
        %1484 = vmatpush2.msra.mxu0 0.0
        %1485 = vmatprep.subr.mxu0 0.0
        %1486 = vmatpush2.msra.mxu0 0.0
        %1487 = vmatprep.subr.mxu0 0.0
        %1488 = vmatpush2.msra.mxu0 0.0
        %1489 = vmatprep.subr.mxu0 0.0
        %1490 = vmatpush2.msra.mxu0 0.0
        %1491 = vmatprep.subr.mxu0 0.0
        %1492 = vmatpush2.msra.mxu0 0.0
        %1493 = vmatprep.subr.mxu0 0.0
        %1494 = vmatpush2.msra.mxu0 0.0
        %1495 = vmatprep.mubr.f32.mxu0 0.0
        %1496 = vmatmul.mubr.f32.gmra.mxu0 %v1429
        %v1497 = vpop.f32.mrf.mxu0
        %v1498 = vadd.f32 0.0, %v1497
        %v1499 = vpop.f32.mrf.mxu0
        %1500 = vdwg.mxu0
        %v1502 = vsel %vm795, %v1206, 0
        %1504 = vmatprep.subr.mxu0 0.0
        %1505 = vmatpush1.msra.mxu0 0.0
        %1506 = vmatprep.subr.mxu0 0.0
        %1507 = vmatpush1.msra.mxu0 0.0
        %1508 = vmatprep.subr.mxu0 0.0
        %1509 = vmatpush1.msra.mxu0 0.0
        %1510 = vmatprep.subr.mxu0 0.0
        %1511 = vmatpush1.msra.mxu0 0.0
        %1512 = vmatprep.subr.mxu0 0.0
        %1513 = vmatpush1.msra.mxu0 0.0
        %1514 = vmatprep.subr.mxu0 0.0
        %1515 = vmatpush1.msra.mxu0 0.0
        %1516 = vmatprep.subr.mxu0 0.0
        %1517 = vmatpush1.msra.mxu0 0.0
        %1518 = vmatprep.subr.mxu0 0.0
        %1519 = vmatpush1.msra.mxu0 0.0
        %1520 = vmatprep.subr.mxu0 0.0
        %1521 = vmatpush1.msra.mxu0 0.0
        %1522 = vmatprep.subr.mxu0 0.0
        %1523 = vmatpush1.msra.mxu0 0.0
        %1524 = vmatprep.subr.mxu0 0.0
        %1525 = vmatpush1.msra.mxu0 0.0
        %1526 = vmatprep.subr.mxu0 0.0
        %1527 = vmatpush1.msra.mxu0 0.0
        %1528 = vmatprep.subr.mxu0 0.0
        %1529 = vmatpush1.msra.mxu0 0.0
        %1530 = vmatprep.subr.mxu0 0.0
        %1531 = vmatpush1.msra.mxu0 0.0
        %1532 = vmatprep.subr.mxu0 0.0
        %1533 = vmatpush1.msra.mxu0 0.0
        %1534 = vmatprep.subr.mxu0 0.0
        %1535 = vmatpush1.msra.mxu0 %v536
        %1536 = vmatprep.subr.mxu0 0.0
        %1537 = vmatpush2.msra.mxu0 0.0
        %1538 = vmatprep.subr.mxu0 0.0
        %1539 = vmatpush2.msra.mxu0 0.0
        %1540 = vmatprep.subr.mxu0 0.0
        %1541 = vmatpush2.msra.mxu0 0.0
        %1542 = vmatprep.subr.mxu0 0.0
        %1543 = vmatpush2.msra.mxu0 0.0
        %1544 = vmatprep.subr.mxu0 0.0
        %1545 = vmatpush2.msra.mxu0 0.0
        %1546 = vmatprep.subr.mxu0 0.0
        %1547 = vmatpush2.msra.mxu0 0.0
        %1548 = vmatprep.subr.mxu0 0.0
        %1549 = vmatpush2.msra.mxu0 0.0
        %1550 = vmatprep.subr.mxu0 0.0
        %1551 = vmatpush2.msra.mxu0 0.0
        %1552 = vmatprep.subr.mxu0 0.0
        %1553 = vmatpush2.msra.mxu0 0.0
        %1554 = vmatprep.subr.mxu0 0.0
        %1555 = vmatpush2.msra.mxu0 0.0
        %1556 = vmatprep.subr.mxu0 0.0
        %1557 = vmatpush2.msra.mxu0 0.0
        %1558 = vmatprep.subr.mxu0 0.0
        %1559 = vmatpush2.msra.mxu0 0.0
        %1560 = vmatprep.subr.mxu0 0.0
        %1561 = vmatpush2.msra.mxu0 0.0
        %1562 = vmatprep.subr.mxu0 0.0
        %1563 = vmatpush2.msra.mxu0 0.0
        %1564 = vmatprep.subr.mxu0 0.0
        %1565 = vmatpush2.msra.mxu0 0.0
        %1566 = vmatprep.subr.mxu0 0.0
        %1567 = vmatpush2.msra.mxu0 0.0
        %1568 = vmatprep.mubr.f32.mxu0 0.0
        %1569 = vmatmul.mubr.f32.gmra.mxu0 %v1502
        %v1570 = vpop.f32.mrf.mxu0
        %v1571 = vadd.f32 %v1498, %v1570
        %v1572 = vpop.f32.mrf.mxu0
        %1573 = vdwg.mxu0
        %v1575 = vsel %vm795, %v1352, 0
        %1577 = vmatprep.subr.mxu0 0.0
        %1578 = vmatpush1.msra.mxu0 0.0
        %1579 = vmatprep.subr.mxu0 0.0
        %1580 = vmatpush1.msra.mxu0 0.0
        %1581 = vmatprep.subr.mxu0 0.0
        %1582 = vmatpush1.msra.mxu0 0.0
        %1583 = vmatprep.subr.mxu0 0.0
        %1584 = vmatpush1.msra.mxu0 0.0
        %1585 = vmatprep.subr.mxu0 0.0
        %1586 = vmatpush1.msra.mxu0 0.0
        %1587 = vmatprep.subr.mxu0 0.0
        %1588 = vmatpush1.msra.mxu0 0.0
        %1589 = vmatprep.subr.mxu0 0.0
        %1590 = vmatpush1.msra.mxu0 0.0
        %1591 = vmatprep.subr.mxu0 0.0
        %1592 = vmatpush1.msra.mxu0 0.0
        %1593 = vmatprep.subr.mxu0 0.0
        %1594 = vmatpush1.msra.mxu0 0.0
        %1595 = vmatprep.subr.mxu0 0.0
        %1596 = vmatpush1.msra.mxu0 0.0
        %1597 = vmatprep.subr.mxu0 0.0
        %1598 = vmatpush1.msra.mxu0 0.0
        %1599 = vmatprep.subr.mxu0 0.0
        %1600 = vmatpush1.msra.mxu0 0.0
        %1601 = vmatprep.subr.mxu0 0.0
        %1602 = vmatpush1.msra.mxu0 0.0
        %1603 = vmatprep.subr.mxu0 0.0
        %1604 = vmatpush1.msra.mxu0 0.0
        %1605 = vmatprep.subr.mxu0 0.0
        %1606 = vmatpush1.msra.mxu0 0.0
        %1607 = vmatprep.subr.mxu0 0.0
        %1608 = vmatpush1.msra.mxu0 %v538
        %1609 = vmatprep.subr.mxu0 0.0
        %1610 = vmatpush2.msra.mxu0 0.0
        %1611 = vmatprep.subr.mxu0 0.0
        %1612 = vmatpush2.msra.mxu0 0.0
        %1613 = vmatprep.subr.mxu0 0.0
        %1614 = vmatpush2.msra.mxu0 0.0
        %1615 = vmatprep.subr.mxu0 0.0
        %1616 = vmatpush2.msra.mxu0 0.0
        %1617 = vmatprep.subr.mxu0 0.0
        %1618 = vmatpush2.msra.mxu0 0.0
        %1619 = vmatprep.subr.mxu0 0.0
        %1620 = vmatpush2.msra.mxu0 0.0
        %1621 = vmatprep.subr.mxu0 0.0
        %1622 = vmatpush2.msra.mxu0 0.0
        %1623 = vmatprep.subr.mxu0 0.0
        %1624 = vmatpush2.msra.mxu0 0.0
        %1625 = vmatprep.subr.mxu0 0.0
        %1626 = vmatpush2.msra.mxu0 0.0
        %1627 = vmatprep.subr.mxu0 0.0
        %1628 = vmatpush2.msra.mxu0 0.0
        %1629 = vmatprep.subr.mxu0 0.0
        %1630 = vmatpush2.msra.mxu0 0.0
        %1631 = vmatprep.subr.mxu0 0.0
        %1632 = vmatpush2.msra.mxu0 0.0
        %1633 = vmatprep.subr.mxu0 0.0
        %1634 = vmatpush2.msra.mxu0 0.0
        %1635 = vmatprep.subr.mxu0 0.0
        %1636 = vmatpush2.msra.mxu0 0.0
        %1637 = vmatprep.subr.mxu0 0.0
        %1638 = vmatpush2.msra.mxu0 0.0
        %1639 = vmatprep.subr.mxu0 0.0
        %1640 = vmatpush2.msra.mxu0 0.0
        %1641 = vmatprep.mubr.f32.mxu0 0.0
        %1642 = vmatmul.mubr.f32.gmra.mxu0 %v1575
        %v1643 = vpop.f32.mrf.mxu0
        %v1644 = vadd.f32 0.0, %v1643
        %v1645 = vpop.f32.mrf.mxu0
        %1646 = vdwg.mxu0
        %v1647 = vadd.f32 %v1571, %v1644
        %v1649 = vsel %vm795, %v1425, 0
        %1651 = vmatprep.subr.mxu0 0.0
        %1652 = vmatpush1.msra.mxu0 0.0
        %1653 = vmatprep.subr.mxu0 0.0
        %1654 = vmatpush1.msra.mxu0 0.0
        %1655 = vmatprep.subr.mxu0 0.0
        %1656 = vmatpush1.msra.mxu0 0.0
        %1657 = vmatprep.subr.mxu0 0.0
        %1658 = vmatpush1.msra.mxu0 0.0
        %1659 = vmatprep.subr.mxu0 0.0
        %1660 = vmatpush1.msra.mxu0 0.0
        %1661 = vmatprep.subr.mxu0 0.0
        %1662 = vmatpush1.msra.mxu0 0.0
        %1663 = vmatprep.subr.mxu0 0.0
        %1664 = vmatpush1.msra.mxu0 0.0
        %1665 = vmatprep.subr.mxu0 0.0
        %1666 = vmatpush1.msra.mxu0 0.0
        %1667 = vmatprep.subr.mxu0 0.0
        %1668 = vmatpush1.msra.mxu0 0.0
        %1669 = vmatprep.subr.mxu0 0.0
        %1670 = vmatpush1.msra.mxu0 0.0
        %1671 = vmatprep.subr.mxu0 0.0
        %1672 = vmatpush1.msra.mxu0 0.0
        %1673 = vmatprep.subr.mxu0 0.0
        %1674 = vmatpush1.msra.mxu0 0.0
        %1675 = vmatprep.subr.mxu0 0.0
        %1676 = vmatpush1.msra.mxu0 0.0
        %1677 = vmatprep.subr.mxu0 0.0
        %1678 = vmatpush1.msra.mxu0 0.0
        %1679 = vmatprep.subr.mxu0 0.0
        %1680 = vmatpush1.msra.mxu0 0.0
        %1681 = vmatprep.subr.mxu0 0.0
        %1682 = vmatpush1.msra.mxu0 %v539
        %1683 = vmatprep.subr.mxu0 0.0
        %1684 = vmatpush2.msra.mxu0 0.0
        %1685 = vmatprep.subr.mxu0 0.0
        %1686 = vmatpush2.msra.mxu0 0.0
        %1687 = vmatprep.subr.mxu0 0.0
        %1688 = vmatpush2.msra.mxu0 0.0
        %1689 = vmatprep.subr.mxu0 0.0
        %1690 = vmatpush2.msra.mxu0 0.0
        %1691 = vmatprep.subr.mxu0 0.0
        %1692 = vmatpush2.msra.mxu0 0.0
        %1693 = vmatprep.subr.mxu0 0.0
        %1694 = vmatpush2.msra.mxu0 0.0
        %1695 = vmatprep.subr.mxu0 0.0
        %1696 = vmatpush2.msra.mxu0 0.0
        %1697 = vmatprep.subr.mxu0 0.0
        %1698 = vmatpush2.msra.mxu0 0.0
        %1699 = vmatprep.subr.mxu0 0.0
        %1700 = vmatpush2.msra.mxu0 0.0
        %1701 = vmatprep.subr.mxu0 0.0
        %1702 = vmatpush2.msra.mxu0 0.0
        %1703 = vmatprep.subr.mxu0 0.0
        %1704 = vmatpush2.msra.mxu0 0.0
        %1705 = vmatprep.subr.mxu0 0.0
        %1706 = vmatpush2.msra.mxu0 0.0
        %1707 = vmatprep.subr.mxu0 0.0
        %1708 = vmatpush2.msra.mxu0 0.0
        %1709 = vmatprep.subr.mxu0 0.0
        %1710 = vmatpush2.msra.mxu0 0.0
        %1711 = vmatprep.subr.mxu0 0.0
        %1712 = vmatpush2.msra.mxu0 0.0
        %1713 = vmatprep.subr.mxu0 0.0
        %1714 = vmatpush2.msra.mxu0 0.0
        %1715 = vmatprep.mubr.f32.mxu0 0.0
        %1716 = vmatmul.mubr.f32.gmra.mxu0 %v1649
        %v1717 = vpop.f32.mrf.mxu0
        %v1718 = vadd.f32 0.0, %v1717
        %v1719 = vpop.f32.mrf.mxu0
        %1720 = vdwg.mxu0
        %v1721 = vadd.f32 %v1647, %v1718
        %v1723 = vlaneseq
        %v1724 = vshrl.u32 %v1723, 7
        %v1725 = vsub.s32 0, %v1724
        %v1726 = vrot.slane %v540, %v1725
        %v1728 = vadd.f32 %v1721, %v1726
        %v1729 = vadd.f32 %v1728, %v522
        %v1730 = vsel %vm557, %v1729, 0.0
        %1731 = vadd.xlane.f32.xlu0 %v1730
        %v1732 = vpop.xlane.xlu0 %1731
        %v1733 = vrcp.pop 32.0
        %v1734 = vmul.f32 %v1732, %v1733
        %v1735 = vsub.f32 %v1729, %v1734
        %v1736 = vmul.f32 %v1735, %v1735
        %v1737 = vsel %vm557, %v1736, 0.0
        %1738 = vadd.xlane.f32.xlu0 %v1737
        %v1739 = vpop.xlane.xlu0 %1738
        %v1740 = vmul.f32 %v1739, %v1733
        %v1741 = vadd.f32 %v1740, 1e-05
        %v1742 = vrsqrt.pop %v1741
        %v1743 = vmul.f32 %v1735, %v1742
        %v1745 = vlaneseq
        %v1746 = vshrl.u32 %v1745, 7
        %v1747 = vsub.s32 0, %v1746
        %v1748 = vrot.slane %v541, %v1747
        %v1750 = vmul.f32 %v1743, %v1748
        %v1752 = vlaneseq
        %v1753 = vshrl.u32 %v1752, 7
        %v1754 = vsub.s32 0, %v1753
        %v1755 = vrot.slane %v542, %v1754
        %v1757 = vadd.f32 %v1750, %v1755
        %v1759 = vsel %vm557, %v1757, 0
        %1761 = vmatprep.subr.mxu0 0.0
        %1762 = vmatpush1.msra.mxu0 0.0
        %1763 = vmatprep.subr.mxu0 0.0
        %1764 = vmatpush1.msra.mxu0 0.0
        %1765 = vmatprep.subr.mxu0 0.0
        %1766 = vmatpush1.msra.mxu0 0.0
        %1767 = vmatprep.subr.mxu0 0.0
        %1768 = vmatpush1.msra.mxu0 0.0
        %1769 = vmatprep.subr.mxu0 0.0
        %1770 = vmatpush1.msra.mxu0 0.0
        %1771 = vmatprep.subr.mxu0 0.0
        %1772 = vmatpush1.msra.mxu0 0.0
        %1773 = vmatprep.subr.mxu0 0.0
        %1774 = vmatpush1.msra.mxu0 0.0
        %1775 = vmatprep.subr.mxu0 0.0
        %1776 = vmatpush1.msra.mxu0 0.0
        %1777 = vmatprep.subr.mxu0 0.0
        %1778 = vmatpush1.msra.mxu0 0.0
        %1779 = vmatprep.subr.mxu0 0.0
        %1780 = vmatpush1.msra.mxu0 0.0
        %1781 = vmatprep.subr.mxu0 0.0
        %1782 = vmatpush1.msra.mxu0 0.0
        %1783 = vmatprep.subr.mxu0 0.0
        %1784 = vmatpush1.msra.mxu0 0.0
        %1785 = vmatprep.subr.mxu0 0.0
        %1786 = vmatpush1.msra.mxu0 %v527
        %1787 = vmatprep.subr.mxu0 0.0
        %1788 = vmatpush1.msra.mxu0 %v526
        %1789 = vmatprep.subr.mxu0 0.0
        %1790 = vmatpush1.msra.mxu0 %v525
        %1791 = vmatprep.subr.mxu0 0.0
        %1792 = vmatpush1.msra.mxu0 %v524
        %1793 = vmatprep.subr.mxu0 0.0
        %1794 = vmatpush2.msra.mxu0 0.0
        %1795 = vmatprep.subr.mxu0 0.0
        %1796 = vmatpush2.msra.mxu0 0.0
        %1797 = vmatprep.subr.mxu0 0.0
        %1798 = vmatpush2.msra.mxu0 0.0
        %1799 = vmatprep.subr.mxu0 0.0
        %1800 = vmatpush2.msra.mxu0 0.0
        %1801 = vmatprep.subr.mxu0 0.0
        %1802 = vmatpush2.msra.mxu0 0.0
        %1803 = vmatprep.subr.mxu0 0.0
        %1804 = vmatpush2.msra.mxu0 0.0
        %1805 = vmatprep.subr.mxu0 0.0
        %1806 = vmatpush2.msra.mxu0 0.0
        %1807 = vmatprep.subr.mxu0 0.0
        %1808 = vmatpush2.msra.mxu0 0.0
        %1809 = vmatprep.subr.mxu0 0.0
        %1810 = vmatpush2.msra.mxu0 0.0
        %1811 = vmatprep.subr.mxu0 0.0
        %1812 = vmatpush2.msra.mxu0 0.0
        %1813 = vmatprep.subr.mxu0 0.0
        %1814 = vmatpush2.msra.mxu0 0.0
        %1815 = vmatprep.subr.mxu0 0.0
        %1816 = vmatpush2.msra.mxu0 0.0
        %1817 = vmatprep.subr.mxu0 0.0
        %1818 = vmatpush2.msra.mxu0 0.0
        %1819 = vmatprep.subr.mxu0 0.0
        %1820 = vmatpush2.msra.mxu0 0.0
        %1821 = vmatprep.subr.mxu0 0.0
        %1822 = vmatpush2.msra.mxu0 0.0
        %1823 = vmatprep.subr.mxu0 0.0
        %1824 = vmatpush2.msra.mxu0 0.0
        %1825 = vmatprep.mubr.f32.mxu0 0.0
        %1826 = vmatmul.mubr.f32.gmra.mxu0 %v1759
        %v1827 = vpop.f32.mrf.mxu0
        %v1828 = vadd.f32 0.0, %v1827
        %v1829 = vpop.f32.mrf.mxu0
        %1830 = vdwg.mxu0
        %1832 = vrot.lane.b32.xlu0 %v1828, 120
        %v1833 = vpop.permute.xlu0 %1832
        %1834 = vrot.lane.b32.xlu0 %v1828, 112
        %v1835 = vpop.permute.xlu0 %1834
        %1836 = vrot.lane.b32.xlu0 %v1828, 104
        %v1837 = vpop.permute.xlu0 %1836
        %v1839 = vsel %vm557, %v523, 0
        %1841 = vmatprep.subr.mxu0 0.0
        %1842 = vmatpush1.msra.mxu0 0.0
        %1843 = vmatprep.subr.mxu0 0.0
        %1844 = vmatpush1.msra.mxu0 0.0
        %1845 = vmatprep.subr.mxu0 0.0
        %1846 = vmatpush1.msra.mxu0 0.0
        %1847 = vmatprep.subr.mxu0 0.0
        %1848 = vmatpush1.msra.mxu0 0.0
        %1849 = vmatprep.subr.mxu0 0.0
        %1850 = vmatpush1.msra.mxu0 0.0
        %1851 = vmatprep.subr.mxu0 0.0
        %1852 = vmatpush1.msra.mxu0 0.0
        %1853 = vmatprep.subr.mxu0 0.0
        %1854 = vmatpush1.msra.mxu0 0.0
        %1855 = vmatprep.subr.mxu0 0.0
        %1856 = vmatpush1.msra.mxu0 0.0
        %1857 = vmatprep.subr.mxu0 0.0
        %1858 = vmatpush1.msra.mxu0 0.0
        %1859 = vmatprep.subr.mxu0 0.0
        %1860 = vmatpush1.msra.mxu0 0.0
        %1861 = vmatprep.subr.mxu0 0.0
        %1862 = vmatpush1.msra.mxu0 0.0
        %1863 = vmatprep.subr.mxu0 0.0
        %1864 = vmatpush1.msra.mxu0 0.0
        %1865 = vmatprep.subr.mxu0 0.0
        %1866 = vmatpush1.msra.mxu0 %v531
        %1867 = vmatprep.subr.mxu0 0.0
        %1868 = vmatpush1.msra.mxu0 %v530
        %1869 = vmatprep.subr.mxu0 0.0
        %1870 = vmatpush1.msra.mxu0 %v529
        %1871 = vmatprep.subr.mxu0 0.0
        %1872 = vmatpush1.msra.mxu0 %v528
        %1873 = vmatprep.subr.mxu0 0.0
        %1874 = vmatpush2.msra.mxu0 0.0
        %1875 = vmatprep.subr.mxu0 0.0
        %1876 = vmatpush2.msra.mxu0 0.0
        %1877 = vmatprep.subr.mxu0 0.0
        %1878 = vmatpush2.msra.mxu0 0.0
        %1879 = vmatprep.subr.mxu0 0.0
        %1880 = vmatpush2.msra.mxu0 0.0
        %1881 = vmatprep.subr.mxu0 0.0
        %1882 = vmatpush2.msra.mxu0 0.0
        %1883 = vmatprep.subr.mxu0 0.0
        %1884 = vmatpush2.msra.mxu0 0.0
        %1885 = vmatprep.subr.mxu0 0.0
        %1886 = vmatpush2.msra.mxu0 0.0
        %1887 = vmatprep.subr.mxu0 0.0
        %1888 = vmatpush2.msra.mxu0 0.0
        %1889 = vmatprep.subr.mxu0 0.0
        %1890 = vmatpush2.msra.mxu0 0.0
        %1891 = vmatprep.subr.mxu0 0.0
        %1892 = vmatpush2.msra.mxu0 0.0
        %1893 = vmatprep.subr.mxu0 0.0
        %1894 = vmatpush2.msra.mxu0 0.0
        %1895 = vmatprep.subr.mxu0 0.0
        %1896 = vmatpush2.msra.mxu0 0.0
        %1897 = vmatprep.subr.mxu0 0.0
        %1898 = vmatpush2.msra.mxu0 0.0
        %1899 = vmatprep.subr.mxu0 0.0
        %1900 = vmatpush2.msra.mxu0 0.0
        %1901 = vmatprep.subr.mxu0 0.0
        %1902 = vmatpush2.msra.mxu0 0.0
        %1903 = vmatprep.subr.mxu0 0.0
        %1904 = vmatpush2.msra.mxu0 0.0
        %1905 = vmatprep.mubr.f32.mxu0 0.0
        %1906 = vmatmul.mubr.f32.gmra.mxu0 %v1839
        %v1907 = vpop.f32.mrf.mxu0
        %v1908 = vadd.f32 0.0, %v1907
        %v1909 = vpop.f32.mrf.mxu0
        %1910 = vdwg.mxu0
        %1912 = vrot.lane.b32.xlu0 %v1908, 120
        %v1913 = vpop.permute.xlu0 %1912
        %1914 = vrot.lane.b32.xlu0 %v1908, 112
        %v1915 = vpop.permute.xlu0 %1914
        %1916 = vrot.lane.b32.xlu0 %v1908, 104
        %v1917 = vpop.permute.xlu0 %1916
        %1918 = vmatprep.subr.mxu0 0.0
        %1919 = vmatpush1.msra.mxu0 0.0
        %1920 = vmatprep.subr.mxu0 0.0
        %1921 = vmatpush1.msra.mxu0 0.0
        %1922 = vmatprep.subr.mxu0 0.0
        %1923 = vmatpush1.msra.mxu0 0.0
        %1924 = vmatprep.subr.mxu0 0.0
        %1925 = vmatpush1.msra.mxu0 0.0
        %1926 = vmatprep.subr.mxu0 0.0
        %1927 = vmatpush1.msra.mxu0 0.0
        %1928 = vmatprep.subr.mxu0 0.0
        %1929 = vmatpush1.msra.mxu0 0.0
        %1930 = vmatprep.subr.mxu0 0.0
        %1931 = vmatpush1.msra.mxu0 0.0
        %1932 = vmatprep.subr.mxu0 0.0
        %1933 = vmatpush1.msra.mxu0 0.0
        %1934 = vmatprep.subr.mxu0 0.0
        %1935 = vmatpush1.msra.mxu0 0.0
        %1936 = vmatprep.subr.mxu0 0.0
        %1937 = vmatpush1.msra.mxu0 0.0
        %1938 = vmatprep.subr.mxu0 0.0
        %1939 = vmatpush1.msra.mxu0 0.0
        %1940 = vmatprep.subr.mxu0 0.0
        %1941 = vmatpush1.msra.mxu0 0.0
        %1942 = vmatprep.subr.mxu0 0.0
        %1943 = vmatpush1.msra.mxu0 %v535
        %1944 = vmatprep.subr.mxu0 0.0
        %1945 = vmatpush1.msra.mxu0 %v534
        %1946 = vmatprep.subr.mxu0 0.0
        %1947 = vmatpush1.msra.mxu0 %v533
        %1948 = vmatprep.subr.mxu0 0.0
        %1949 = vmatpush1.msra.mxu0 %v532
        %1950 = vmatprep.subr.mxu0 0.0
        %1951 = vmatpush2.msra.mxu0 0.0
        %1952 = vmatprep.subr.mxu0 0.0
        %1953 = vmatpush2.msra.mxu0 0.0
        %1954 = vmatprep.subr.mxu0 0.0
        %1955 = vmatpush2.msra.mxu0 0.0
        %1956 = vmatprep.subr.mxu0 0.0
        %1957 = vmatpush2.msra.mxu0 0.0
        %1958 = vmatprep.subr.mxu0 0.0
        %1959 = vmatpush2.msra.mxu0 0.0
        %1960 = vmatprep.subr.mxu0 0.0
        %1961 = vmatpush2.msra.mxu0 0.0
        %1962 = vmatprep.subr.mxu0 0.0
        %1963 = vmatpush2.msra.mxu0 0.0
        %1964 = vmatprep.subr.mxu0 0.0
        %1965 = vmatpush2.msra.mxu0 0.0
        %1966 = vmatprep.subr.mxu0 0.0
        %1967 = vmatpush2.msra.mxu0 0.0
        %1968 = vmatprep.subr.mxu0 0.0
        %1969 = vmatpush2.msra.mxu0 0.0
        %1970 = vmatprep.subr.mxu0 0.0
        %1971 = vmatpush2.msra.mxu0 0.0
        %1972 = vmatprep.subr.mxu0 0.0
        %1973 = vmatpush2.msra.mxu0 0.0
        %1974 = vmatprep.subr.mxu0 0.0
        %1975 = vmatpush2.msra.mxu0 0.0
        %1976 = vmatprep.subr.mxu0 0.0
        %1977 = vmatpush2.msra.mxu0 0.0
        %1978 = vmatprep.subr.mxu0 0.0
        %1979 = vmatpush2.msra.mxu0 0.0
        %1980 = vmatprep.subr.mxu0 0.0
        %1981 = vmatpush2.msra.mxu0 0.0
        %1982 = vmatprep.mubr.f32.mxu0 0.0
        %1983 = vmatmul.mubr.f32.gmra.mxu0 %v1839
        %v1984 = vpop.f32.mrf.mxu0
        %v1985 = vadd.f32 0.0, %v1984
        %v1986 = vpop.f32.mrf.mxu0
        %1987 = vdwg.mxu0
        %1989 = vrot.lane.b32.xlu0 %v1985, 120
        %v1990 = vpop.permute.xlu0 %1989
        %1992 = vrot.lane.b32.xlu0 %v1985, 112
        %v1993 = vpop.permute.xlu0 %1992
        %1995 = vrot.lane.b32.xlu0 %v1985, 104
        %v1996 = vpop.permute.xlu0 %1995
        %v1998 = vsel %vm795, %v1828, 0
        %v2000 = vsel %vm795, %v1908, 0
        %2002 = vmatprep.subr.mxu0 0.0
        %2003 = vmatpush1.xpose.msra.mxu0 0.0
        %2004 = vmatprep.subr.mxu0 0.0
        %2005 = vmatpush1.xpose.msra.mxu0 0.0
        %2006 = vmatprep.subr.mxu0 0.0
        %2007 = vmatpush1.xpose.msra.mxu0 0.0
        %2008 = vmatprep.subr.mxu0 0.0
        %2009 = vmatpush1.xpose.msra.mxu0 0.0
        %2010 = vmatprep.subr.mxu0 0.0
        %2011 = vmatpush1.xpose.msra.mxu0 0.0
        %2012 = vmatprep.subr.mxu0 0.0
        %2013 = vmatpush1.xpose.msra.mxu0 0.0
        %2014 = vmatprep.subr.mxu0 0.0
        %2015 = vmatpush1.xpose.msra.mxu0 0.0
        %2016 = vmatprep.subr.mxu0 0.0
        %2017 = vmatpush1.xpose.msra.mxu0 0.0
        %2018 = vmatprep.subr.mxu0 0.0
        %2019 = vmatpush1.xpose.msra.mxu0 0.0
        %2020 = vmatprep.subr.mxu0 0.0
        %2021 = vmatpush1.xpose.msra.mxu0 0.0
        %2022 = vmatprep.subr.mxu0 0.0
        %2023 = vmatpush1.xpose.msra.mxu0 0.0
        %2024 = vmatprep.subr.mxu0 0.0
        %2025 = vmatpush1.xpose.msra.mxu0 0.0
        %2026 = vmatprep.subr.mxu0 0.0
        %2027 = vmatpush1.xpose.msra.mxu0 0.0
        %2028 = vmatprep.subr.mxu0 0.0
        %2029 = vmatpush1.xpose.msra.mxu0 0.0
        %2030 = vmatprep.subr.mxu0 0.0
        %2031 = vmatpush1.xpose.msra.mxu0 0.0
        %2032 = vmatprep.subr.mxu0 0.0
        %2033 = vmatpush1.xpose.msra.mxu0 %v2000
        %2034 = vmatprep.subr.mxu0 0.0
        %2035 = vmatpush2.xpose.msra.mxu0 0.0
        %2036 = vmatprep.subr.mxu0 0.0
        %2037 = vmatpush2.xpose.msra.mxu0 0.0
        %2038 = vmatprep.subr.mxu0 0.0
        %2039 = vmatpush2.xpose.msra.mxu0 0.0
        %2040 = vmatprep.subr.mxu0 0.0
        %2041 = vmatpush2.xpose.msra.mxu0 0.0
        %2042 = vmatprep.subr.mxu0 0.0
        %2043 = vmatpush2.xpose.msra.mxu0 0.0
        %2044 = vmatprep.subr.mxu0 0.0
        %2045 = vmatpush2.xpose.msra.mxu0 0.0
        %2046 = vmatprep.subr.mxu0 0.0
        %2047 = vmatpush2.xpose.msra.mxu0 0.0
        %2048 = vmatprep.subr.mxu0 0.0
        %2049 = vmatpush2.xpose.msra.mxu0 0.0
        %2050 = vmatprep.subr.mxu0 0.0
        %2051 = vmatpush2.xpose.msra.mxu0 0.0
        %2052 = vmatprep.subr.mxu0 0.0
        %2053 = vmatpush2.xpose.msra.mxu0 0.0
        %2054 = vmatprep.subr.mxu0 0.0
        %2055 = vmatpush2.xpose.msra.mxu0 0.0
        %2056 = vmatprep.subr.mxu0 0.0
        %2057 = vmatpush2.xpose.msra.mxu0 0.0
        %2058 = vmatprep.subr.mxu0 0.0
        %2059 = vmatpush2.xpose.msra.mxu0 0.0
        %2060 = vmatprep.subr.mxu0 0.0
        %2061 = vmatpush2.xpose.msra.mxu0 0.0
        %2062 = vmatprep.subr.mxu0 0.0
        %2063 = vmatpush2.xpose.msra.mxu0 0.0
        %2064 = vmatprep.subr.mxu0 0.0
        %2065 = vmatpush2.xpose.msra.mxu0 0.0
        %2066 = vmatprep.mubr.f32.mxu0 0.0
        %2067 = vmatmul.mubr.f32.gmra.mxu0 %v1998
        %v2068 = vpop.f32.mrf.mxu0
        %v2069 = vadd.f32 0.0, %v2068
        %v2070 = vpop.f32.mrf.mxu0
        %2071 = vdwg.mxu0
        %v2072 = vsel %vm795, %v1833, 0
        %v2074 = vsel %vm795, %v1913, 0
        %2076 = vmatprep.subr.mxu0 0.0
        %2077 = vmatpush1.xpose.msra.mxu0 0.0
        %2078 = vmatprep.subr.mxu0 0.0
        %2079 = vmatpush1.xpose.msra.mxu0 0.0
        %2080 = vmatprep.subr.mxu0 0.0
        %2081 = vmatpush1.xpose.msra.mxu0 0.0
        %2082 = vmatprep.subr.mxu0 0.0
        %2083 = vmatpush1.xpose.msra.mxu0 0.0
        %2084 = vmatprep.subr.mxu0 0.0
        %2085 = vmatpush1.xpose.msra.mxu0 0.0
        %2086 = vmatprep.subr.mxu0 0.0
        %2087 = vmatpush1.xpose.msra.mxu0 0.0
        %2088 = vmatprep.subr.mxu0 0.0
        %2089 = vmatpush1.xpose.msra.mxu0 0.0
        %2090 = vmatprep.subr.mxu0 0.0
        %2091 = vmatpush1.xpose.msra.mxu0 0.0
        %2092 = vmatprep.subr.mxu0 0.0
        %2093 = vmatpush1.xpose.msra.mxu0 0.0
        %2094 = vmatprep.subr.mxu0 0.0
        %2095 = vmatpush1.xpose.msra.mxu0 0.0
        %2096 = vmatprep.subr.mxu0 0.0
        %2097 = vmatpush1.xpose.msra.mxu0 0.0
        %2098 = vmatprep.subr.mxu0 0.0
        %2099 = vmatpush1.xpose.msra.mxu0 0.0
        %2100 = vmatprep.subr.mxu0 0.0
        %2101 = vmatpush1.xpose.msra.mxu0 0.0
        %2102 = vmatprep.subr.mxu0 0.0
        %2103 = vmatpush1.xpose.msra.mxu0 0.0
        %2104 = vmatprep.subr.mxu0 0.0
        %2105 = vmatpush1.xpose.msra.mxu0 0.0
        %2106 = vmatprep.subr.mxu0 0.0
        %2107 = vmatpush1.xpose.msra.mxu0 %v2074
        %2108 = vmatprep.subr.mxu0 0.0
        %2109 = vmatpush2.xpose.msra.mxu0 0.0
        %2110 = vmatprep.subr.mxu0 0.0
        %2111 = vmatpush2.xpose.msra.mxu0 0.0
        %2112 = vmatprep.subr.mxu0 0.0
        %2113 = vmatpush2.xpose.msra.mxu0 0.0
        %2114 = vmatprep.subr.mxu0 0.0
        %2115 = vmatpush2.xpose.msra.mxu0 0.0
        %2116 = vmatprep.subr.mxu0 0.0
        %2117 = vmatpush2.xpose.msra.mxu0 0.0
        %2118 = vmatprep.subr.mxu0 0.0
        %2119 = vmatpush2.xpose.msra.mxu0 0.0
        %2120 = vmatprep.subr.mxu0 0.0
        %2121 = vmatpush2.xpose.msra.mxu0 0.0
        %2122 = vmatprep.subr.mxu0 0.0
        %2123 = vmatpush2.xpose.msra.mxu0 0.0
        %2124 = vmatprep.subr.mxu0 0.0
        %2125 = vmatpush2.xpose.msra.mxu0 0.0
        %2126 = vmatprep.subr.mxu0 0.0
        %2127 = vmatpush2.xpose.msra.mxu0 0.0
        %2128 = vmatprep.subr.mxu0 0.0
        %2129 = vmatpush2.xpose.msra.mxu0 0.0
        %2130 = vmatprep.subr.mxu0 0.0
        %2131 = vmatpush2.xpose.msra.mxu0 0.0
        %2132 = vmatprep.subr.mxu0 0.0
        %2133 = vmatpush2.xpose.msra.mxu0 0.0
        %2134 = vmatprep.subr.mxu0 0.0
        %2135 = vmatpush2.xpose.msra.mxu0 0.0
        %2136 = vmatprep.subr.mxu0 0.0
        %2137 = vmatpush2.xpose.msra.mxu0 0.0
        %2138 = vmatprep.subr.mxu0 0.0
        %2139 = vmatpush2.xpose.msra.mxu0 0.0
        %2140 = vmatprep.mubr.f32.mxu0 0.0
        %2141 = vmatmul.mubr.f32.gmra.mxu0 %v2072
        %v2142 = vpop.f32.mrf.mxu0
        %v2143 = vadd.f32 0.0, %v2142
        %v2144 = vpop.f32.mrf.mxu0
        %2145 = vdwg.mxu0
        %v2146 = vsel %vm795, %v1835, 0
        %v2148 = vsel %vm795, %v1915, 0
        %2150 = vmatprep.subr.mxu0 0.0
        %2151 = vmatpush1.xpose.msra.mxu0 0.0
        %2152 = vmatprep.subr.mxu0 0.0
        %2153 = vmatpush1.xpose.msra.mxu0 0.0
        %2154 = vmatprep.subr.mxu0 0.0
        %2155 = vmatpush1.xpose.msra.mxu0 0.0
        %2156 = vmatprep.subr.mxu0 0.0
        %2157 = vmatpush1.xpose.msra.mxu0 0.0
        %2158 = vmatprep.subr.mxu0 0.0
        %2159 = vmatpush1.xpose.msra.mxu0 0.0
        %2160 = vmatprep.subr.mxu0 0.0
        %2161 = vmatpush1.xpose.msra.mxu0 0.0
        %2162 = vmatprep.subr.mxu0 0.0
        %2163 = vmatpush1.xpose.msra.mxu0 0.0
        %2164 = vmatprep.subr.mxu0 0.0
        %2165 = vmatpush1.xpose.msra.mxu0 0.0
        %2166 = vmatprep.subr.mxu0 0.0
        %2167 = vmatpush1.xpose.msra.mxu0 0.0
        %2168 = vmatprep.subr.mxu0 0.0
        %2169 = vmatpush1.xpose.msra.mxu0 0.0
        %2170 = vmatprep.subr.mxu0 0.0
        %2171 = vmatpush1.xpose.msra.mxu0 0.0
        %2172 = vmatprep.subr.mxu0 0.0
        %2173 = vmatpush1.xpose.msra.mxu0 0.0
        %2174 = vmatprep.subr.mxu0 0.0
        %2175 = vmatpush1.xpose.msra.mxu0 0.0
        %2176 = vmatprep.subr.mxu0 0.0
        %2177 = vmatpush1.xpose.msra.mxu0 0.0
        %2178 = vmatprep.subr.mxu0 0.0
        %2179 = vmatpush1.xpose.msra.mxu0 0.0
        %2180 = vmatprep.subr.mxu0 0.0
        %2181 = vmatpush1.xpose.msra.mxu0 %v2148
        %2182 = vmatprep.subr.mxu0 0.0
        %2183 = vmatpush2.xpose.msra.mxu0 0.0
        %2184 = vmatprep.subr.mxu0 0.0
        %2185 = vmatpush2.xpose.msra.mxu0 0.0
        %2186 = vmatprep.subr.mxu0 0.0
        %2187 = vmatpush2.xpose.msra.mxu0 0.0
        %2188 = vmatprep.subr.mxu0 0.0
        %2189 = vmatpush2.xpose.msra.mxu0 0.0
        %2190 = vmatprep.subr.mxu0 0.0
        %2191 = vmatpush2.xpose.msra.mxu0 0.0
        %2192 = vmatprep.subr.mxu0 0.0
        %2193 = vmatpush2.xpose.msra.mxu0 0.0
        %2194 = vmatprep.subr.mxu0 0.0
        %2195 = vmatpush2.xpose.msra.mxu0 0.0
        %2196 = vmatprep.subr.mxu0 0.0
        %2197 = vmatpush2.xpose.msra.mxu0 0.0
        %2198 = vmatprep.subr.mxu0 0.0
        %2199 = vmatpush2.xpose.msra.mxu0 0.0
        %2200 = vmatprep.subr.mxu0 0.0
        %2201 = vmatpush2.xpose.msra.mxu0 0.0
        %2202 = vmatprep.subr.mxu0 0.0
        %2203 = vmatpush2.xpose.msra.mxu0 0.0
        %2204 = vmatprep.subr.mxu0 0.0
        %2205 = vmatpush2.xpose.msra.mxu0 0.0
        %2206 = vmatprep.subr.mxu0 0.0
        %2207 = vmatpush2.xpose.msra.mxu0 0.0
        %2208 = vmatprep.subr.mxu0 0.0
        %2209 = vmatpush2.xpose.msra.mxu0 0.0
        %2210 = vmatprep.subr.mxu0 0.0
        %2211 = vmatpush2.xpose.msra.mxu0 0.0
        %2212 = vmatprep.subr.mxu0 0.0
        %2213 = vmatpush2.xpose.msra.mxu0 0.0
        %2214 = vmatprep.mubr.f32.mxu0 0.0
        %2215 = vmatmul.mubr.f32.gmra.mxu0 %v2146
        %v2216 = vpop.f32.mrf.mxu0
        %v2217 = vadd.f32 0.0, %v2216
        %v2218 = vpop.f32.mrf.mxu0
        %2219 = vdwg.mxu0
        %v2220 = vsel %vm795, %v1837, 0
        %v2222 = vsel %vm795, %v1917, 0
        %2224 = vmatprep.subr.mxu0 0.0
        %2225 = vmatpush1.xpose.msra.mxu0 0.0
        %2226 = vmatprep.subr.mxu0 0.0
        %2227 = vmatpush1.xpose.msra.mxu0 0.0
        %2228 = vmatprep.subr.mxu0 0.0
        %2229 = vmatpush1.xpose.msra.mxu0 0.0
        %2230 = vmatprep.subr.mxu0 0.0
        %2231 = vmatpush1.xpose.msra.mxu0 0.0
        %2232 = vmatprep.subr.mxu0 0.0
        %2233 = vmatpush1.xpose.msra.mxu0 0.0
        %2234 = vmatprep.subr.mxu0 0.0
        %2235 = vmatpush1.xpose.msra.mxu0 0.0
        %2236 = vmatprep.subr.mxu0 0.0
        %2237 = vmatpush1.xpose.msra.mxu0 0.0
        %2238 = vmatprep.subr.mxu0 0.0
        %2239 = vmatpush1.xpose.msra.mxu0 0.0
        %2240 = vmatprep.subr.mxu0 0.0
        %2241 = vmatpush1.xpose.msra.mxu0 0.0
        %2242 = vmatprep.subr.mxu0 0.0
        %2243 = vmatpush1.xpose.msra.mxu0 0.0
        %2244 = vmatprep.subr.mxu0 0.0
        %2245 = vmatpush1.xpose.msra.mxu0 0.0
        %2246 = vmatprep.subr.mxu0 0.0
        %2247 = vmatpush1.xpose.msra.mxu0 0.0
        %2248 = vmatprep.subr.mxu0 0.0
        %2249 = vmatpush1.xpose.msra.mxu0 0.0
        %2250 = vmatprep.subr.mxu0 0.0
        %2251 = vmatpush1.xpose.msra.mxu0 0.0
        %2252 = vmatprep.subr.mxu0 0.0
        %2253 = vmatpush1.xpose.msra.mxu0 0.0
        %2254 = vmatprep.subr.mxu0 0.0
        %2255 = vmatpush1.xpose.msra.mxu0 %v2222
        %2256 = vmatprep.subr.mxu0 0.0
        %2257 = vmatpush2.xpose.msra.mxu0 0.0
        %2258 = vmatprep.subr.mxu0 0.0
        %2259 = vmatpush2.xpose.msra.mxu0 0.0
        %2260 = vmatprep.subr.mxu0 0.0
        %2261 = vmatpush2.xpose.msra.mxu0 0.0
        %2262 = vmatprep.subr.mxu0 0.0
        %2263 = vmatpush2.xpose.msra.mxu0 0.0
        %2264 = vmatprep.subr.mxu0 0.0
        %2265 = vmatpush2.xpose.msra.mxu0 0.0
        %2266 = vmatprep.subr.mxu0 0.0
        %2267 = vmatpush2.xpose.msra.mxu0 0.0
        %2268 = vmatprep.subr.mxu0 0.0
        %2269 = vmatpush2.xpose.msra.mxu0 0.0
        %2270 = vmatprep.subr.mxu0 0.0
        %2271 = vmatpush2.xpose.msra.mxu0 0.0
        %2272 = vmatprep.subr.mxu0 0.0
        %2273 = vmatpush2.xpose.msra.mxu0 0.0
        %2274 = vmatprep.subr.mxu0 0.0
        %2275 = vmatpush2.xpose.msra.mxu0 0.0
        %2276 = vmatprep.subr.mxu0 0.0
        %2277 = vmatpush2.xpose.msra.mxu0 0.0
        %2278 = vmatprep.subr.mxu0 0.0
        %2279 = vmatpush2.xpose.msra.mxu0 0.0
        %2280 = vmatprep.subr.mxu0 0.0
        %2281 = vmatpush2.xpose.msra.mxu0 0.0
        %2282 = vmatprep.subr.mxu0 0.0
        %2283 = vmatpush2.xpose.msra.mxu0 0.0
        %2284 = vmatprep.subr.mxu0 0.0
        %2285 = vmatpush2.xpose.msra.mxu0 0.0
        %2286 = vmatprep.subr.mxu0 0.0
        %2287 = vmatpush2.xpose.msra.mxu0 0.0
        %2288 = vmatprep.mubr.f32.mxu0 0.0
        %2289 = vmatmul.mubr.f32.gmra.mxu0 %v2220
        %v2290 = vpop.f32.mrf.mxu0
        %v2291 = vadd.f32 0.0, %v2290
        %v2292 = vpop.f32.mrf.mxu0
        %2293 = vdwg.mxu0
        %v2294 = vsel %vm795, %v2069, -inf
        %2295 = vmax.xlane.f32.xlu0 %v2294
        %v2296 = vpop.xlane.xlu0 %2295
        %v2297 = vsel %vm795, %v2143, -inf
        %2298 = vmax.xlane.f32.xlu0 %v2297
        %v2299 = vpop.xlane.xlu0 %2298
        %v2300 = vsel %vm795, %v2217, -inf
        %2301 = vmax.xlane.f32.xlu0 %v2300
        %v2302 = vpop.xlane.xlu0 %2301
        %v2303 = vsel %vm795, %v2291, -inf
        %2304 = vmax.xlane.f32.xlu0 %v2303
        %v2305 = vpop.xlane.xlu0 %2304
        %v2306 = vsub.f32 %v2069, %v2296
        %v2307 = vsub.f32 %v2143, %v2299
        %v2308 = vsub.f32 %v2217, %v2302
        %v2309 = vsub.f32 %v2291, %v2305
        %v2310 = vmul.f32 %v2306, 1.442695
        %v2311 = vpow.pop %v2310
        %v2312 = vmul.f32 %v2307, 1.442695
        %v2313 = vpow.pop %v2312
        %v2314 = vmul.f32 %v2308, 1.442695
        %v2315 = vpow.pop %v2314
        %v2316 = vmul.f32 %v2309, 1.442695
        %v2317 = vpow.pop %v2316
        %v2318 = vsel %vm795, %v2311, 0.0
        %2319 = vadd.xlane.f32.xlu0 %v2318
        %v2320 = vpop.xlane.xlu0 %2319
        %v2321 = vsel %vm795, %v2313, 0.0
        %2322 = vadd.xlane.f32.xlu0 %v2321
        %v2323 = vpop.xlane.xlu0 %2322
        %v2324 = vsel %vm795, %v2315, 0.0
        %2325 = vadd.xlane.f32.xlu0 %v2324
        %v2326 = vpop.xlane.xlu0 %2325
        %v2327 = vsel %vm795, %v2317, 0.0
        %2328 = vadd.xlane.f32.xlu0 %v2327
        %v2329 = vpop.xlane.xlu0 %2328
        %v2330 = vrcp.pop %v2320
        %v2331 = vrcp.pop %v2323
        %v2332 = vrcp.pop %v2326
        %v2333 = vrcp.pop %v2329
        %v2334 = vmul.f32 %v2311, %v2330
        %v2335 = vmul.f32 %v2313, %v2331
        %v2336 = vmul.f32 %v2315, %v2332
        %v2337 = vmul.f32 %v2317, %v2333
        %v2339 = vsel %vm795, %v2334, 0
        %2341 = vmatprep.subr.mxu0 0.0
        %2342 = vmatpush1.msra.mxu0 0.0
        %2343 = vmatprep.subr.mxu0 0.0
        %2344 = vmatpush1.msra.mxu0 0.0
        %2345 = vmatprep.subr.mxu0 0.0
        %2346 = vmatpush1.msra.mxu0 0.0
        %2347 = vmatprep.subr.mxu0 0.0
        %2348 = vmatpush1.msra.mxu0 0.0
        %2349 = vmatprep.subr.mxu0 0.0
        %2350 = vmatpush1.msra.mxu0 0.0
        %2351 = vmatprep.subr.mxu0 0.0
        %2352 = vmatpush1.msra.mxu0 0.0
        %2353 = vmatprep.subr.mxu0 0.0
        %2354 = vmatpush1.msra.mxu0 0.0
        %2355 = vmatprep.subr.mxu0 0.0
        %2356 = vmatpush1.msra.mxu0 0.0
        %2357 = vmatprep.subr.mxu0 0.0
        %2358 = vmatpush1.msra.mxu0 0.0
        %2359 = vmatprep.subr.mxu0 0.0
        %2360 = vmatpush1.msra.mxu0 0.0
        %2361 = vmatprep.subr.mxu0 0.0
        %2362 = vmatpush1.msra.mxu0 0.0
        %2363 = vmatprep.subr.mxu0 0.0
        %2364 = vmatpush1.msra.mxu0 0.0
        %2365 = vmatprep.subr.mxu0 0.0
        %2366 = vmatpush1.msra.mxu0 0.0
        %2367 = vmatprep.subr.mxu0 0.0
        %2368 = vmatpush1.msra.mxu0 0.0
        %2369 = vmatprep.subr.mxu0 0.0
        %2370 = vmatpush1.msra.mxu0 0.0
        %2371 = vmatprep.subr.mxu0 0.0
        %2372 = vmatpush1.msra.mxu0 %v1985
        %2373 = vmatprep.subr.mxu0 0.0
        %2374 = vmatpush2.msra.mxu0 0.0
        %2375 = vmatprep.subr.mxu0 0.0
        %2376 = vmatpush2.msra.mxu0 0.0
        %2377 = vmatprep.subr.mxu0 0.0
        %2378 = vmatpush2.msra.mxu0 0.0
        %2379 = vmatprep.subr.mxu0 0.0
        %2380 = vmatpush2.msra.mxu0 0.0
        %2381 = vmatprep.subr.mxu0 0.0
        %2382 = vmatpush2.msra.mxu0 0.0
        %2383 = vmatprep.subr.mxu0 0.0
        %2384 = vmatpush2.msra.mxu0 0.0
        %2385 = vmatprep.subr.mxu0 0.0
        %2386 = vmatpush2.msra.mxu0 0.0
        %2387 = vmatprep.subr.mxu0 0.0
        %2388 = vmatpush2.msra.mxu0 0.0
        %2389 = vmatprep.subr.mxu0 0.0
        %2390 = vmatpush2.msra.mxu0 0.0
        %2391 = vmatprep.subr.mxu0 0.0
        %2392 = vmatpush2.msra.mxu0 0.0
        %2393 = vmatprep.subr.mxu0 0.0
        %2394 = vmatpush2.msra.mxu0 0.0
        %2395 = vmatprep.subr.mxu0 0.0
        %2396 = vmatpush2.msra.mxu0 0.0
        %2397 = vmatprep.subr.mxu0 0.0
        %2398 = vmatpush2.msra.mxu0 0.0
        %2399 = vmatprep.subr.mxu0 0.0
        %2400 = vmatpush2.msra.mxu0 0.0
        %2401 = vmatprep.subr.mxu0 0.0
        %2402 = vmatpush2.msra.mxu0 0.0
        %2403 = vmatprep.subr.mxu0 0.0
        %2404 = vmatpush2.msra.mxu0 0.0
        %2405 = vmatprep.mubr.f32.mxu0 0.0
        %2406 = vmatmul.mubr.f32.gmra.mxu0 %v2339
        %v2407 = vpop.f32.mrf.mxu0
        %v2408 = vadd.f32 0.0, %v2407
        %v2409 = vpop.f32.mrf.mxu0
        %2410 = vdwg.mxu0
        %v2412 = vsel %vm795, %v2335, 0
        %2414 = vmatprep.subr.mxu0 0.0
        %2415 = vmatpush1.msra.mxu0 0.0
        %2416 = vmatprep.subr.mxu0 0.0
        %2417 = vmatpush1.msra.mxu0 0.0
        %2418 = vmatprep.subr.mxu0 0.0
        %2419 = vmatpush1.msra.mxu0 0.0
        %2420 = vmatprep.subr.mxu0 0.0
        %2421 = vmatpush1.msra.mxu0 0.0
        %2422 = vmatprep.subr.mxu0 0.0
        %2423 = vmatpush1.msra.mxu0 0.0
        %2424 = vmatprep.subr.mxu0 0.0
        %2425 = vmatpush1.msra.mxu0 0.0
        %2426 = vmatprep.subr.mxu0 0.0
        %2427 = vmatpush1.msra.mxu0 0.0
        %2428 = vmatprep.subr.mxu0 0.0
        %2429 = vmatpush1.msra.mxu0 0.0
        %2430 = vmatprep.subr.mxu0 0.0
        %2431 = vmatpush1.msra.mxu0 0.0
        %2432 = vmatprep.subr.mxu0 0.0
        %2433 = vmatpush1.msra.mxu0 0.0
        %2434 = vmatprep.subr.mxu0 0.0
        %2435 = vmatpush1.msra.mxu0 0.0
        %2436 = vmatprep.subr.mxu0 0.0
        %2437 = vmatpush1.msra.mxu0 0.0
        %2438 = vmatprep.subr.mxu0 0.0
        %2439 = vmatpush1.msra.mxu0 0.0
        %2440 = vmatprep.subr.mxu0 0.0
        %2441 = vmatpush1.msra.mxu0 0.0
        %2442 = vmatprep.subr.mxu0 0.0
        %2443 = vmatpush1.msra.mxu0 0.0
        %2444 = vmatprep.subr.mxu0 0.0
        %2445 = vmatpush1.msra.mxu0 %v1990
        %2446 = vmatprep.subr.mxu0 0.0
        %2447 = vmatpush2.msra.mxu0 0.0
        %2448 = vmatprep.subr.mxu0 0.0
        %2449 = vmatpush2.msra.mxu0 0.0
        %2450 = vmatprep.subr.mxu0 0.0
        %2451 = vmatpush2.msra.mxu0 0.0
        %2452 = vmatprep.subr.mxu0 0.0
        %2453 = vmatpush2.msra.mxu0 0.0
        %2454 = vmatprep.subr.mxu0 0.0
        %2455 = vmatpush2.msra.mxu0 0.0
        %2456 = vmatprep.subr.mxu0 0.0
        %2457 = vmatpush2.msra.mxu0 0.0
        %2458 = vmatprep.subr.mxu0 0.0
        %2459 = vmatpush2.msra.mxu0 0.0
        %2460 = vmatprep.subr.mxu0 0.0
        %2461 = vmatpush2.msra.mxu0 0.0
        %2462 = vmatprep.subr.mxu0 0.0
        %2463 = vmatpush2.msra.mxu0 0.0
        %2464 = vmatprep.subr.mxu0 0.0
        %2465 = vmatpush2.msra.mxu0 0.0
        %2466 = vmatprep.subr.mxu0 0.0
        %2467 = vmatpush2.msra.mxu0 0.0
        %2468 = vmatprep.subr.mxu0 0.0
        %2469 = vmatpush2.msra.mxu0 0.0
        %2470 = vmatprep.subr.mxu0 0.0
        %2471 = vmatpush2.msra.mxu0 0.0
        %2472 = vmatprep.subr.mxu0 0.0
        %2473 = vmatpush2.msra.mxu0 0.0
        %2474 = vmatprep.subr.mxu0 0.0
        %2475 = vmatpush2.msra.mxu0 0.0
        %2476 = vmatprep.subr.mxu0 0.0
        %2477 = vmatpush2.msra.mxu0 0.0
        %2478 = vmatprep.mubr.f32.mxu0 0.0
        %2479 = vmatmul.mubr.f32.gmra.mxu0 %v2412
        %v2480 = vpop.f32.mrf.mxu0
        %v2481 = vadd.f32 0.0, %v2480
        %v2482 = vpop.f32.mrf.mxu0
        %2483 = vdwg.mxu0
        %v2485 = vsel %vm795, %v2336, 0
        %2487 = vmatprep.subr.mxu0 0.0
        %2488 = vmatpush1.msra.mxu0 0.0
        %2489 = vmatprep.subr.mxu0 0.0
        %2490 = vmatpush1.msra.mxu0 0.0
        %2491 = vmatprep.subr.mxu0 0.0
        %2492 = vmatpush1.msra.mxu0 0.0
        %2493 = vmatprep.subr.mxu0 0.0
        %2494 = vmatpush1.msra.mxu0 0.0
        %2495 = vmatprep.subr.mxu0 0.0
        %2496 = vmatpush1.msra.mxu0 0.0
        %2497 = vmatprep.subr.mxu0 0.0
        %2498 = vmatpush1.msra.mxu0 0.0
        %2499 = vmatprep.subr.mxu0 0.0
        %2500 = vmatpush1.msra.mxu0 0.0
        %2501 = vmatprep.subr.mxu0 0.0
        %2502 = vmatpush1.msra.mxu0 0.0
        %2503 = vmatprep.subr.mxu0 0.0
        %2504 = vmatpush1.msra.mxu0 0.0
        %2505 = vmatprep.subr.mxu0 0.0
        %2506 = vmatpush1.msra.mxu0 0.0
        %2507 = vmatprep.subr.mxu0 0.0
        %2508 = vmatpush1.msra.mxu0 0.0
        %2509 = vmatprep.subr.mxu0 0.0
        %2510 = vmatpush1.msra.mxu0 0.0
        %2511 = vmatprep.subr.mxu0 0.0
        %2512 = vmatpush1.msra.mxu0 0.0
        %2513 = vmatprep.subr.mxu0 0.0
        %2514 = vmatpush1.msra.mxu0 0.0
        %2515 = vmatprep.subr.mxu0 0.0
        %2516 = vmatpush1.msra.mxu0 0.0
        %2517 = vmatprep.subr.mxu0 0.0
        %2518 = vmatpush1.msra.mxu0 %v1993
        %2519 = vmatprep.subr.mxu0 0.0
        %2520 = vmatpush2.msra.mxu0 0.0
        %2521 = vmatprep.subr.mxu0 0.0
        %2522 = vmatpush2.msra.mxu0 0.0
        %2523 = vmatprep.subr.mxu0 0.0
        %2524 = vmatpush2.msra.mxu0 0.0
        %2525 = vmatprep.subr.mxu0 0.0
        %2526 = vmatpush2.msra.mxu0 0.0
        %2527 = vmatprep.subr.mxu0 0.0
        %2528 = vmatpush2.msra.mxu0 0.0
        %2529 = vmatprep.subr.mxu0 0.0
        %2530 = vmatpush2.msra.mxu0 0.0
        %2531 = vmatprep.subr.mxu0 0.0
        %2532 = vmatpush2.msra.mxu0 0.0
        %2533 = vmatprep.subr.mxu0 0.0
        %2534 = vmatpush2.msra.mxu0 0.0
        %2535 = vmatprep.subr.mxu0 0.0
        %2536 = vmatpush2.msra.mxu0 0.0
        %2537 = vmatprep.subr.mxu0 0.0
        %2538 = vmatpush2.msra.mxu0 0.0
        %2539 = vmatprep.subr.mxu0 0.0
        %2540 = vmatpush2.msra.mxu0 0.0
        %2541 = vmatprep.subr.mxu0 0.0
        %2542 = vmatpush2.msra.mxu0 0.0
        %2543 = vmatprep.subr.mxu0 0.0
        %2544 = vmatpush2.msra.mxu0 0.0
        %2545 = vmatprep.subr.mxu0 0.0
        %2546 = vmatpush2.msra.mxu0 0.0
        %2547 = vmatprep.subr.mxu0 0.0
        %2548 = vmatpush2.msra.mxu0 0.0
        %2549 = vmatprep.subr.mxu0 0.0
        %2550 = vmatpush2.msra.mxu0 0.0
        %2551 = vmatprep.mubr.f32.mxu0 0.0
        %2552 = vmatmul.mubr.f32.gmra.mxu0 %v2485
        %v2553 = vpop.f32.mrf.mxu0
        %v2554 = vadd.f32 0.0, %v2553
        %v2555 = vpop.f32.mrf.mxu0
        %2556 = vdwg.mxu0
        %v2558 = vsel %vm795, %v2337, 0
        %2560 = vmatprep.subr.mxu0 0.0
        %2561 = vmatpush1.msra.mxu0 0.0
        %2562 = vmatprep.subr.mxu0 0.0
        %2563 = vmatpush1.msra.mxu0 0.0
        %2564 = vmatprep.subr.mxu0 0.0
        %2565 = vmatpush1.msra.mxu0 0.0
        %2566 = vmatprep.subr.mxu0 0.0
        %2567 = vmatpush1.msra.mxu0 0.0
        %2568 = vmatprep.subr.mxu0 0.0
        %2569 = vmatpush1.msra.mxu0 0.0
        %2570 = vmatprep.subr.mxu0 0.0
        %2571 = vmatpush1.msra.mxu0 0.0
        %2572 = vmatprep.subr.mxu0 0.0
        %2573 = vmatpush1.msra.mxu0 0.0
        %2574 = vmatprep.subr.mxu0 0.0
        %2575 = vmatpush1.msra.mxu0 0.0
        %2576 = vmatprep.subr.mxu0 0.0
        %2577 = vmatpush1.msra.mxu0 0.0
        %2578 = vmatprep.subr.mxu0 0.0
        %2579 = vmatpush1.msra.mxu0 0.0
        %2580 = vmatprep.subr.mxu0 0.0
        %2581 = vmatpush1.msra.mxu0 0.0
        %2582 = vmatprep.subr.mxu0 0.0
        %2583 = vmatpush1.msra.mxu0 0.0
        %2584 = vmatprep.subr.mxu0 0.0
        %2585 = vmatpush1.msra.mxu0 0.0
        %2586 = vmatprep.subr.mxu0 0.0
        %2587 = vmatpush1.msra.mxu0 0.0
        %2588 = vmatprep.subr.mxu0 0.0
        %2589 = vmatpush1.msra.mxu0 0.0
        %2590 = vmatprep.subr.mxu0 0.0
        %2591 = vmatpush1.msra.mxu0 %v1996
        %2592 = vmatprep.subr.mxu0 0.0
        %2593 = vmatpush2.msra.mxu0 0.0
        %2594 = vmatprep.subr.mxu0 0.0
        %2595 = vmatpush2.msra.mxu0 0.0
        %2596 = vmatprep.subr.mxu0 0.0
        %2597 = vmatpush2.msra.mxu0 0.0
        %2598 = vmatprep.subr.mxu0 0.0
        %2599 = vmatpush2.msra.mxu0 0.0
        %2600 = vmatprep.subr.mxu0 0.0
        %2601 = vmatpush2.msra.mxu0 0.0
        %2602 = vmatprep.subr.mxu0 0.0
        %2603 = vmatpush2.msra.mxu0 0.0
        %2604 = vmatprep.subr.mxu0 0.0
        %2605 = vmatpush2.msra.mxu0 0.0
        %2606 = vmatprep.subr.mxu0 0.0
        %2607 = vmatpush2.msra.mxu0 0.0
        %2608 = vmatprep.subr.mxu0 0.0
        %2609 = vmatpush2.msra.mxu0 0.0
        %2610 = vmatprep.subr.mxu0 0.0
        %2611 = vmatpush2.msra.mxu0 0.0
        %2612 = vmatprep.subr.mxu0 0.0
        %2613 = vmatpush2.msra.mxu0 0.0
        %2614 = vmatprep.subr.mxu0 0.0
        %2615 = vmatpush2.msra.mxu0 0.0
        %2616 = vmatprep.subr.mxu0 0.0
        %2617 = vmatpush2.msra.mxu0 0.0
        %2618 = vmatprep.subr.mxu0 0.0
        %2619 = vmatpush2.msra.mxu0 0.0
        %2620 = vmatprep.subr.mxu0 0.0
        %2621 = vmatpush2.msra.mxu0 0.0
        %2622 = vmatprep.subr.mxu0 0.0
        %2623 = vmatpush2.msra.mxu0 0.0
        %2624 = vmatprep.mubr.f32.mxu0 0.0
        %2625 = vmatmul.mubr.f32.gmra.mxu0 %v2558
        %v2626 = vpop.f32.mrf.mxu0
        %v2627 = vadd.f32 0.0, %v2626
        %v2628 = vpop.f32.mrf.mxu0
        %2629 = vdwg.mxu0
        %v2631 = vsel %vm795, %v2481, 0
        %2633 = vmatprep.subr.mxu0 0.0
        %2634 = vmatpush1.msra.mxu0 0.0
        %2635 = vmatprep.subr.mxu0 0.0
        %2636 = vmatpush1.msra.mxu0 0.0
        %2637 = vmatprep.subr.mxu0 0.0
        %2638 = vmatpush1.msra.mxu0 0.0
        %2639 = vmatprep.subr.mxu0 0.0
        %2640 = vmatpush1.msra.mxu0 0.0
        %2641 = vmatprep.subr.mxu0 0.0
        %2642 = vmatpush1.msra.mxu0 0.0
        %2643 = vmatprep.subr.mxu0 0.0
        %2644 = vmatpush1.msra.mxu0 0.0
        %2645 = vmatprep.subr.mxu0 0.0
        %2646 = vmatpush1.msra.mxu0 0.0
        %2647 = vmatprep.subr.mxu0 0.0
        %2648 = vmatpush1.msra.mxu0 0.0
        %2649 = vmatprep.subr.mxu0 0.0
        %2650 = vmatpush1.msra.mxu0 0.0
        %2651 = vmatprep.subr.mxu0 0.0
        %2652 = vmatpush1.msra.mxu0 0.0
        %2653 = vmatprep.subr.mxu0 0.0
        %2654 = vmatpush1.msra.mxu0 0.0
        %2655 = vmatprep.subr.mxu0 0.0
        %2656 = vmatpush1.msra.mxu0 0.0
        %2657 = vmatprep.subr.mxu0 0.0
        %2658 = vmatpush1.msra.mxu0 0.0
        %2659 = vmatprep.subr.mxu0 0.0
        %2660 = vmatpush1.msra.mxu0 0.0
        %2661 = vmatprep.subr.mxu0 0.0
        %2662 = vmatpush1.msra.mxu0 0.0
        %2663 = vmatprep.subr.mxu0 0.0
        %2664 = vmatpush1.msra.mxu0 %v537
        %2665 = vmatprep.subr.mxu0 0.0
        %2666 = vmatpush2.msra.mxu0 0.0
        %2667 = vmatprep.subr.mxu0 0.0
        %2668 = vmatpush2.msra.mxu0 0.0
        %2669 = vmatprep.subr.mxu0 0.0
        %2670 = vmatpush2.msra.mxu0 0.0
        %2671 = vmatprep.subr.mxu0 0.0
        %2672 = vmatpush2.msra.mxu0 0.0
        %2673 = vmatprep.subr.mxu0 0.0
        %2674 = vmatpush2.msra.mxu0 0.0
        %2675 = vmatprep.subr.mxu0 0.0
        %2676 = vmatpush2.msra.mxu0 0.0
        %2677 = vmatprep.subr.mxu0 0.0
        %2678 = vmatpush2.msra.mxu0 0.0
        %2679 = vmatprep.subr.mxu0 0.0
        %2680 = vmatpush2.msra.mxu0 0.0
        %2681 = vmatprep.subr.mxu0 0.0
        %2682 = vmatpush2.msra.mxu0 0.0
        %2683 = vmatprep.subr.mxu0 0.0
        %2684 = vmatpush2.msra.mxu0 0.0
        %2685 = vmatprep.subr.mxu0 0.0
        %2686 = vmatpush2.msra.mxu0 0.0
        %2687 = vmatprep.subr.mxu0 0.0
        %2688 = vmatpush2.msra.mxu0 0.0
        %2689 = vmatprep.subr.mxu0 0.0
        %2690 = vmatpush2.msra.mxu0 0.0
        %2691 = vmatprep.subr.mxu0 0.0
        %2692 = vmatpush2.msra.mxu0 0.0
        %2693 = vmatprep.subr.mxu0 0.0
        %2694 = vmatpush2.msra.mxu0 0.0
        %2695 = vmatprep.subr.mxu0 0.0
        %2696 = vmatpush2.msra.mxu0 0.0
        %2697 = vmatprep.mubr.f32.mxu0 0.0
        %2698 = vmatmul.mubr.f32.gmra.mxu0 %v2631
        %v2699 = vpop.f32.mrf.mxu0
        %v2700 = vadd.f32 0.0, %v2699
        %v2701 = vpop.f32.mrf.mxu0
        %2702 = vdwg.mxu0
        %v2704 = vsel %vm795, %v2408, 0
        %2706 = vmatprep.subr.mxu0 0.0
        %2707 = vmatpush1.msra.mxu0 0.0
        %2708 = vmatprep.subr.mxu0 0.0
        %2709 = vmatpush1.msra.mxu0 0.0
        %2710 = vmatprep.subr.mxu0 0.0
        %2711 = vmatpush1.msra.mxu0 0.0
        %2712 = vmatprep.subr.mxu0 0.0
        %2713 = vmatpush1.msra.mxu0 0.0
        %2714 = vmatprep.subr.mxu0 0.0
        %2715 = vmatpush1.msra.mxu0 0.0
        %2716 = vmatprep.subr.mxu0 0.0
        %2717 = vmatpush1.msra.mxu0 0.0
        %2718 = vmatprep.subr.mxu0 0.0
        %2719 = vmatpush1.msra.mxu0 0.0
        %2720 = vmatprep.subr.mxu0 0.0
        %2721 = vmatpush1.msra.mxu0 0.0
        %2722 = vmatprep.subr.mxu0 0.0
        %2723 = vmatpush1.msra.mxu0 0.0
        %2724 = vmatprep.subr.mxu0 0.0
        %2725 = vmatpush1.msra.mxu0 0.0
        %2726 = vmatprep.subr.mxu0 0.0
        %2727 = vmatpush1.msra.mxu0 0.0
        %2728 = vmatprep.subr.mxu0 0.0
        %2729 = vmatpush1.msra.mxu0 0.0
        %2730 = vmatprep.subr.mxu0 0.0
        %2731 = vmatpush1.msra.mxu0 0.0
        %2732 = vmatprep.subr.mxu0 0.0
        %2733 = vmatpush1.msra.mxu0 0.0
        %2734 = vmatprep.subr.mxu0 0.0
        %2735 = vmatpush1.msra.mxu0 0.0
        %2736 = vmatprep.subr.mxu0 0.0
        %2737 = vmatpush1.msra.mxu0 %v536
        %2738 = vmatprep.subr.mxu0 0.0
        %2739 = vmatpush2.msra.mxu0 0.0
        %2740 = vmatprep.subr.mxu0 0.0
        %2741 = vmatpush2.msra.mxu0 0.0
        %2742 = vmatprep.subr.mxu0 0.0
        %2743 = vmatpush2.msra.mxu0 0.0
        %2744 = vmatprep.subr.mxu0 0.0
        %2745 = vmatpush2.msra.mxu0 0.0
        %2746 = vmatprep.subr.mxu0 0.0
        %2747 = vmatpush2.msra.mxu0 0.0
        %2748 = vmatprep.subr.mxu0 0.0
        %2749 = vmatpush2.msra.mxu0 0.0
        %2750 = vmatprep.subr.mxu0 0.0
        %2751 = vmatpush2.msra.mxu0 0.0
        %2752 = vmatprep.subr.mxu0 0.0
        %2753 = vmatpush2.msra.mxu0 0.0
        %2754 = vmatprep.subr.mxu0 0.0
        %2755 = vmatpush2.msra.mxu0 0.0
        %2756 = vmatprep.subr.mxu0 0.0
        %2757 = vmatpush2.msra.mxu0 0.0
        %2758 = vmatprep.subr.mxu0 0.0
        %2759 = vmatpush2.msra.mxu0 0.0
        %2760 = vmatprep.subr.mxu0 0.0
        %2761 = vmatpush2.msra.mxu0 0.0
        %2762 = vmatprep.subr.mxu0 0.0
        %2763 = vmatpush2.msra.mxu0 0.0
        %2764 = vmatprep.subr.mxu0 0.0
        %2765 = vmatpush2.msra.mxu0 0.0
        %2766 = vmatprep.subr.mxu0 0.0
        %2767 = vmatpush2.msra.mxu0 0.0
        %2768 = vmatprep.subr.mxu0 0.0
        %2769 = vmatpush2.msra.mxu0 0.0
        %2770 = vmatprep.mubr.f32.mxu0 0.0
        %2771 = vmatmul.mubr.f32.gmra.mxu0 %v2704
        %v2772 = vpop.f32.mrf.mxu0
        %v2773 = vadd.f32 %v2700, %v2772
        %v2774 = vpop.f32.mrf.mxu0
        %2775 = vdwg.mxu0
        %v2777 = vsel %vm795, %v2554, 0
        %2779 = vmatprep.subr.mxu0 0.0
        %2780 = vmatpush1.msra.mxu0 0.0
        %2781 = vmatprep.subr.mxu0 0.0
        %2782 = vmatpush1.msra.mxu0 0.0
        %2783 = vmatprep.subr.mxu0 0.0
        %2784 = vmatpush1.msra.mxu0 0.0
        %2785 = vmatprep.subr.mxu0 0.0
        %2786 = vmatpush1.msra.mxu0 0.0
        %2787 = vmatprep.subr.mxu0 0.0
        %2788 = vmatpush1.msra.mxu0 0.0
        %2789 = vmatprep.subr.mxu0 0.0
        %2790 = vmatpush1.msra.mxu0 0.0
        %2791 = vmatprep.subr.mxu0 0.0
        %2792 = vmatpush1.msra.mxu0 0.0
        %2793 = vmatprep.subr.mxu0 0.0
        %2794 = vmatpush1.msra.mxu0 0.0
        %2795 = vmatprep.subr.mxu0 0.0
        %2796 = vmatpush1.msra.mxu0 0.0
        %2797 = vmatprep.subr.mxu0 0.0
        %2798 = vmatpush1.msra.mxu0 0.0
        %2799 = vmatprep.subr.mxu0 0.0
        %2800 = vmatpush1.msra.mxu0 0.0
        %2801 = vmatprep.subr.mxu0 0.0
        %2802 = vmatpush1.msra.mxu0 0.0
        %2803 = vmatprep.subr.mxu0 0.0
        %2804 = vmatpush1.msra.mxu0 0.0
        %2805 = vmatprep.subr.mxu0 0.0
        %2806 = vmatpush1.msra.mxu0 0.0
        %2807 = vmatprep.subr.mxu0 0.0
        %2808 = vmatpush1.msra.mxu0 0.0
        %2809 = vmatprep.subr.mxu0 0.0
        %2810 = vmatpush1.msra.mxu0 %v538
        %2811 = vmatprep.subr.mxu0 0.0
        %2812 = vmatpush2.msra.mxu0 0.0
        %2813 = vmatprep.subr.mxu0 0.0
        %2814 = vmatpush2.msra.mxu0 0.0
        %2815 = vmatprep.subr.mxu0 0.0
        %2816 = vmatpush2.msra.mxu0 0.0
        %2817 = vmatprep.subr.mxu0 0.0
        %2818 = vmatpush2.msra.mxu0 0.0
        %2819 = vmatprep.subr.mxu0 0.0
        %2820 = vmatpush2.msra.mxu0 0.0
        %2821 = vmatprep.subr.mxu0 0.0
        %2822 = vmatpush2.msra.mxu0 0.0
        %2823 = vmatprep.subr.mxu0 0.0
        %2824 = vmatpush2.msra.mxu0 0.0
        %2825 = vmatprep.subr.mxu0 0.0
        %2826 = vmatpush2.msra.mxu0 0.0
        %2827 = vmatprep.subr.mxu0 0.0
        %2828 = vmatpush2.msra.mxu0 0.0
        %2829 = vmatprep.subr.mxu0 0.0
        %2830 = vmatpush2.msra.mxu0 0.0
        %2831 = vmatprep.subr.mxu0 0.0
        %2832 = vmatpush2.msra.mxu0 0.0
        %2833 = vmatprep.subr.mxu0 0.0
        %2834 = vmatpush2.msra.mxu0 0.0
        %2835 = vmatprep.subr.mxu0 0.0
        %2836 = vmatpush2.msra.mxu0 0.0
        %2837 = vmatprep.subr.mxu0 0.0
        %2838 = vmatpush2.msra.mxu0 0.0
        %2839 = vmatprep.subr.mxu0 0.0
        %2840 = vmatpush2.msra.mxu0 0.0
        %2841 = vmatprep.subr.mxu0 0.0
        %2842 = vmatpush2.msra.mxu0 0.0
        %2843 = vmatprep.mubr.f32.mxu0 0.0
        %2844 = vmatmul.mubr.f32.gmra.mxu0 %v2777
        %v2845 = vpop.f32.mrf.mxu0
        %v2846 = vadd.f32 0.0, %v2845
        %v2847 = vpop.f32.mrf.mxu0
        %2848 = vdwg.mxu0
        %v2849 = vadd.f32 %v2773, %v2846
        %v2851 = vsel %vm795, %v2627, 0
        %2853 = vmatprep.subr.mxu0 0.0
        %2854 = vmatpush1.msra.mxu0 0.0
        %2855 = vmatprep.subr.mxu0 0.0
        %2856 = vmatpush1.msra.mxu0 0.0
        %2857 = vmatprep.subr.mxu0 0.0
        %2858 = vmatpush1.msra.mxu0 0.0
        %2859 = vmatprep.subr.mxu0 0.0
        %2860 = vmatpush1.msra.mxu0 0.0
        %2861 = vmatprep.subr.mxu0 0.0
        %2862 = vmatpush1.msra.mxu0 0.0
        %2863 = vmatprep.subr.mxu0 0.0
        %2864 = vmatpush1.msra.mxu0 0.0
        %2865 = vmatprep.subr.mxu0 0.0
        %2866 = vmatpush1.msra.mxu0 0.0
        %2867 = vmatprep.subr.mxu0 0.0
        %2868 = vmatpush1.msra.mxu0 0.0
        %2869 = vmatprep.subr.mxu0 0.0
        %2870 = vmatpush1.msra.mxu0 0.0
        %2871 = vmatprep.subr.mxu0 0.0
        %2872 = vmatpush1.msra.mxu0 0.0
        %2873 = vmatprep.subr.mxu0 0.0
        %2874 = vmatpush1.msra.mxu0 0.0
        %2875 = vmatprep.subr.mxu0 0.0
        %2876 = vmatpush1.msra.mxu0 0.0
        %2877 = vmatprep.subr.mxu0 0.0
        %2878 = vmatpush1.msra.mxu0 0.0
        %2879 = vmatprep.subr.mxu0 0.0
        %2880 = vmatpush1.msra.mxu0 0.0
        %2881 = vmatprep.subr.mxu0 0.0
        %2882 = vmatpush1.msra.mxu0 0.0
        %2883 = vmatprep.subr.mxu0 0.0
        %2884 = vmatpush1.msra.mxu0 %v539
        %2885 = vmatprep.subr.mxu0 0.0
        %2886 = vmatpush2.msra.mxu0 0.0
        %2887 = vmatprep.subr.mxu0 0.0
        %2888 = vmatpush2.msra.mxu0 0.0
        %2889 = vmatprep.subr.mxu0 0.0
        %2890 = vmatpush2.msra.mxu0 0.0
        %2891 = vmatprep.subr.mxu0 0.0
        %2892 = vmatpush2.msra.mxu0 0.0
        %2893 = vmatprep.subr.mxu0 0.0
        %2894 = vmatpush2.msra.mxu0 0.0
        %2895 = vmatprep.subr.mxu0 0.0
        %2896 = vmatpush2.msra.mxu0 0.0
        %2897 = vmatprep.subr.mxu0 0.0
        %2898 = vmatpush2.msra.mxu0 0.0
        %2899 = vmatprep.subr.mxu0 0.0
        %2900 = vmatpush2.msra.mxu0 0.0
        %2901 = vmatprep.subr.mxu0 0.0
        %2902 = vmatpush2.msra.mxu0 0.0
        %2903 = vmatprep.subr.mxu0 0.0
        %2904 = vmatpush2.msra.mxu0 0.0
        %2905 = vmatprep.subr.mxu0 0.0
        %2906 = vmatpush2.msra.mxu0 0.0
        %2907 = vmatprep.subr.mxu0 0.0
        %2908 = vmatpush2.msra.mxu0 0.0
        %2909 = vmatprep.subr.mxu0 0.0
        %2910 = vmatpush2.msra.mxu0 0.0
        %2911 = vmatprep.subr.mxu0 0.0
        %2912 = vmatpush2.msra.mxu0 0.0
        %2913 = vmatprep.subr.mxu0 0.0
        %2914 = vmatpush2.msra.mxu0 0.0
        %2915 = vmatprep.subr.mxu0 0.0
        %2916 = vmatpush2.msra.mxu0 0.0
        %2917 = vmatprep.mubr.f32.mxu0 0.0
        %2918 = vmatmul.mubr.f32.gmra.mxu0 %v2851
        %v2919 = vpop.f32.mrf.mxu0
        %v2920 = vadd.f32 0.0, %v2919
        %v2921 = vpop.f32.mrf.mxu0
        %2922 = vdwg.mxu0
        %v2923 = vadd.f32 %v2849, %v2920
        %v2924 = vadd.f32 %v2923, %v1726
        %v2925 = vmax.f32 %v2924, 0.0
        %v2926 = vadd.f32 %v2925, %v1757
        %v2927 = vsel %vm557, %v2926, 0.0
        %2928 = vadd.xlane.f32.xlu0 %v2927
        %v2929 = vpop.xlane.xlu0 %2928
        %v2930 = vmul.f32 %v2929, %v1733
        %v2931 = vsub.f32 %v2926, %v2930
        %v2932 = vmul.f32 %v2931, %v2931
        %v2933 = vsel %vm557, %v2932, 0.0
        %2934 = vadd.xlane.f32.xlu0 %v2933
        %v2935 = vpop.xlane.xlu0 %2934
        %v2936 = vmul.f32 %v2935, %v1733
        %v2937 = vadd.f32 %v2936, 1e-05
        %v2938 = vrsqrt.pop %v2937
        %v2939 = vmul.f32 %v2931, %v2938
        %v2940 = vmul.f32 %v2939, %v1748
        %v2941 = vadd.f32 %v2940, %v1755
        %v2943 = vlaneseq
        %v2944 = vshrl.u32 %v2943, 7
        %v2945 = vsub.s32 0, %v2944
        %v2946 = vrot.slane %v547, %v2945
        %v2949 = vsel %vm557, %v2941, 0
        %2951 = vmatprep.subr.mxu0 0.0
        %2952 = vmatpush1.msra.mxu0 0.0
        %2953 = vmatprep.subr.mxu0 0.0
        %2954 = vmatpush1.msra.mxu0 0.0
        %2955 = vmatprep.subr.mxu0 0.0
        %2956 = vmatpush1.msra.mxu0 0.0
        %2957 = vmatprep.subr.mxu0 0.0
        %2958 = vmatpush1.msra.mxu0 0.0
        %2959 = vmatprep.subr.mxu0 0.0
        %2960 = vmatpush1.msra.mxu0 0.0
        %2961 = vmatprep.subr.mxu0 0.0
        %2962 = vmatpush1.msra.mxu0 0.0
        %2963 = vmatprep.subr.mxu0 0.0
        %2964 = vmatpush1.msra.mxu0 0.0
        %2965 = vmatprep.subr.mxu0 0.0
        %2966 = vmatpush1.msra.mxu0 0.0
        %2967 = vmatprep.subr.mxu0 0.0
        %2968 = vmatpush1.msra.mxu0 0.0
        %2969 = vmatprep.subr.mxu0 0.0
        %2970 = vmatpush1.msra.mxu0 0.0
        %2971 = vmatprep.subr.mxu0 0.0
        %2972 = vmatpush1.msra.mxu0 0.0
        %2973 = vmatprep.subr.mxu0 0.0
        %2974 = vmatpush1.msra.mxu0 0.0
        %2975 = vmatprep.subr.mxu0 0.0
        %2976 = vmatpush1.msra.mxu0 %v546
        %2977 = vmatprep.subr.mxu0 0.0
        %2978 = vmatpush1.msra.mxu0 %v545
        %2979 = vmatprep.subr.mxu0 0.0
        %2980 = vmatpush1.msra.mxu0 %v544
        %2981 = vmatprep.subr.mxu0 0.0
        %2982 = vmatpush1.msra.mxu0 %v543
        %2983 = vmatprep.subr.mxu0 0.0
        %2984 = vmatpush2.msra.mxu0 0.0
        %2985 = vmatprep.subr.mxu0 0.0
        %2986 = vmatpush2.msra.mxu0 0.0
        %2987 = vmatprep.subr.mxu0 0.0
        %2988 = vmatpush2.msra.mxu0 0.0
        %2989 = vmatprep.subr.mxu0 0.0
        %2990 = vmatpush2.msra.mxu0 0.0
        %2991 = vmatprep.subr.mxu0 0.0
        %2992 = vmatpush2.msra.mxu0 0.0
        %2993 = vmatprep.subr.mxu0 0.0
        %2994 = vmatpush2.msra.mxu0 0.0
        %2995 = vmatprep.subr.mxu0 0.0
        %2996 = vmatpush2.msra.mxu0 0.0
        %2997 = vmatprep.subr.mxu0 0.0
        %2998 = vmatpush2.msra.mxu0 0.0
        %2999 = vmatprep.subr.mxu0 0.0
        %3000 = vmatpush2.msra.mxu0 0.0
        %3001 = vmatprep.subr.mxu0 0.0
        %3002 = vmatpush2.msra.mxu0 0.0
        %3003 = vmatprep.subr.mxu0 0.0
        %3004 = vmatpush2.msra.mxu0 0.0
        %3005 = vmatprep.subr.mxu0 0.0
        %3006 = vmatpush2.msra.mxu0 0.0
        %3007 = vmatprep.subr.mxu0 0.0
        %3008 = vmatpush2.msra.mxu0 0.0
        %3009 = vmatprep.subr.mxu0 0.0
        %3010 = vmatpush2.msra.mxu0 0.0
        %3011 = vmatprep.subr.mxu0 0.0
        %3012 = vmatpush2.msra.mxu0 0.0
        %3013 = vmatprep.subr.mxu0 0.0
        %3014 = vmatpush2.msra.mxu0 0.0
        %3015 = vmatprep.mubr.f32.mxu0 0.0
        %3016 = vmatmul.mubr.f32.gmra.mxu0 %v2949
        %v3017 = vpop.f32.mrf.mxu0
        %v3018 = vadd.f32 %v2946, %v3017
        %v3019 = vpop.f32.mrf.mxu0
        %3020 = vdwg.mxu0
        %v3021 = vmax.f32 %v3018, 0.0
        %v3023 = vlaneseq
        %v3024 = vshrl.u32 %v3023, 7
        %v3025 = vsub.s32 0, %v3024
        %v3026 = vrot.slane %v556, %v3025
        %vm3028 = vcmask 523264
        %v3030 = vsel %vm3028, %v3021, 0
        %3032 = vmatprep.subr.mxu0 0.0
        %3033 = vmatpush1.msra.mxu0 0.0
        %3034 = vmatprep.subr.mxu0 0.0
        %3035 = vmatpush1.msra.mxu0 0.0
        %3036 = vmatprep.subr.mxu0 0.0
        %3037 = vmatpush1.msra.mxu0 0.0
        %3038 = vmatprep.subr.mxu0 0.0
        %3039 = vmatpush1.msra.mxu0 0.0
        %3040 = vmatprep.subr.mxu0 0.0
        %3041 = vmatpush1.msra.mxu0 0.0
        %3042 = vmatprep.subr.mxu0 0.0
        %3043 = vmatpush1.msra.mxu0 0.0
        %3044 = vmatprep.subr.mxu0 0.0
        %3045 = vmatpush1.msra.mxu0 0.0
        %3046 = vmatprep.subr.mxu0 0.0
        %3047 = vmatpush1.msra.mxu0 0.0
        %3048 = vmatprep.subr.mxu0 0.0
        %3049 = vmatpush1.msra.mxu0 %v555
        %3050 = vmatprep.subr.mxu0 0.0
        %3051 = vmatpush1.msra.mxu0 %v554
        %3052 = vmatprep.subr.mxu0 0.0
        %3053 = vmatpush1.msra.mxu0 %v553
        %3054 = vmatprep.subr.mxu0 0.0
        %3055 = vmatpush1.msra.mxu0 %v552
        %3056 = vmatprep.subr.mxu0 0.0
        %3057 = vmatpush1.msra.mxu0 %v551
        %3058 = vmatprep.subr.mxu0 0.0
        %3059 = vmatpush1.msra.mxu0 %v550
        %3060 = vmatprep.subr.mxu0 0.0
        %3061 = vmatpush1.msra.mxu0 %v549
        %3062 = vmatprep.subr.mxu0 0.0
        %3063 = vmatpush1.msra.mxu0 %v548
        %3064 = vmatprep.subr.mxu0 0.0
        %3065 = vmatpush2.msra.mxu0 0.0
        %3066 = vmatprep.subr.mxu0 0.0
        %3067 = vmatpush2.msra.mxu0 0.0
        %3068 = vmatprep.subr.mxu0 0.0
        %3069 = vmatpush2.msra.mxu0 0.0
        %3070 = vmatprep.subr.mxu0 0.0
        %3071 = vmatpush2.msra.mxu0 0.0
        %3072 = vmatprep.subr.mxu0 0.0
        %3073 = vmatpush2.msra.mxu0 0.0
        %3074 = vmatprep.subr.mxu0 0.0
        %3075 = vmatpush2.msra.mxu0 0.0
        %3076 = vmatprep.subr.mxu0 0.0
        %3077 = vmatpush2.msra.mxu0 0.0
        %3078 = vmatprep.subr.mxu0 0.0
        %3079 = vmatpush2.msra.mxu0 0.0
        %3080 = vmatprep.subr.mxu0 0.0
        %3081 = vmatpush2.msra.mxu0 0.0
        %3082 = vmatprep.subr.mxu0 0.0
        %3083 = vmatpush2.msra.mxu0 0.0
        %3084 = vmatprep.subr.mxu0 0.0
        %3085 = vmatpush2.msra.mxu0 0.0
        %3086 = vmatprep.subr.mxu0 0.0
        %3087 = vmatpush2.msra.mxu0 0.0
        %3088 = vmatprep.subr.mxu0 0.0
        %3089 = vmatpush2.msra.mxu0 0.0
        %3090 = vmatprep.subr.mxu0 0.0
        %3091 = vmatpush2.msra.mxu0 0.0
        %3092 = vmatprep.subr.mxu0 0.0
        %3093 = vmatpush2.msra.mxu0 0.0
        %3094 = vmatprep.subr.mxu0 0.0
        %3095 = vmatpush2.msra.mxu0 0.0
        %3096 = vmatprep.mubr.f32.mxu0 0.0
        %3097 = vmatmul.mubr.f32.gmra.mxu0 %v3030
        %v3098 = vpop.f32.mrf.mxu0
        %v3099 = vadd.f32 %v3026, %v3098
        %v3100 = vpop.f32.mrf.mxu0
        %3101 = vdwg.mxu0
        %v3102 = vadd.f32 %v3099, %v2941
        %v3103 = vsel %vm557, %v3102, 0.0
        %3104 = vadd.xlane.f32.xlu0 %v3103
        %v3105 = vpop.xlane.xlu0 %3104
        %v3106 = vmul.f32 %v3105, %v1733
        %v3107 = vsub.f32 %v3102, %v3106
        %v3108 = vmul.f32 %v3107, %v3107
        %v3109 = vsel %vm557, %v3108, 0.0
        %3110 = vadd.xlane.f32.xlu0 %v3109
        %v3111 = vpop.xlane.xlu0 %3110
        %v3112 = vmul.f32 %v3111, %v1733
        %v3113 = vadd.f32 %v3112, 1e-05
        %v3114 = vrsqrt.pop %v3113
        %v3115 = vmul.f32 %v3107, %v3114
        %v3116 = vmul.f32 %v3115, %v1748
        %v3117 = vadd.f32 %v3116, %v1755
        %3118 = vst.msk [vmem:[%s521] sm:$0xff] %vm557, %v3117
        %s3119 = sand.u32 %s325, 1
        %s3120 = scalar_lea.sflag [#allocation4], %s3119
        %s3121 = sand.u32 %s325, 1
        %s3122 = smul.addr %s3121, 8
        %s3123 = scalar_lea.vmem [#allocation10], %s3122
        // Predicated region
        $region89: #{tpu_custom_call.1} parent=71 // pred_check
          %p3124 = pneg %p335
        $region90: #{tpu_custom_call.1} parent=71 // pred_check_branch
          %3126 = sbr.rel (%p3124) target = $region92
        $region91: #{tpu_custom_call.1} parent=71 // pred_region
          %s3128 = ssub.s32 128, 128
          %3129 = vsyncadd %s3120, %s3128
          %s3130 = smul.addr %s34, 128
          %s3131 = scalar_lea.hbm %s13, %s3130
          %s3133 = sshll.u32 %s3123, 4
          %s3134 = int_to_ptr.vmem [resolvable:$true] %s3133
          %3136 = dma.vmem_to_hbm [thread:$0]  %s3134, 128, %s3131, %s3120
        $region92: #{tpu_custom_call.1} parent=71 // pred_fallthru
          _
      $region72: #{tpu_custom_call.1} parent=5 // pred_fallthru
        _
      %p3137 = scmp.le.s32.totalorder 2, %s29
      // Predicated region
      $region93: #{tpu_custom_call.1} parent=5 // pred_check
        %p3138 = pneg %p3137
      $region94: #{tpu_custom_call.1} parent=5 // pred_check_branch
        %3140 = sbr.rel (%p3138) target = $region96
      $region95: #{tpu_custom_call.1} parent=5 // pred_region
        %s3141 = ssub.s32 %s29, 2
        // Predicated region
        $region97: #{tpu_custom_call.1} parent=95 // pred_check
          %p3142 = pneg %p341
        $region98: #{tpu_custom_call.1} parent=95 // pred_check_branch
          %3144 = sbr.rel (%p3142) target = $region100
        $region99: #{tpu_custom_call.1} parent=95 // pred_region
          %s3145 = sand.u32 %s326, 1
          %s3146 = scalar_lea.sflag [#allocation4], %s3145
          %s3147 = sand.u32 %s326, 1
          %s3148 = smul.addr %s3147, 8
          %s3149 = scalar_lea.vmem [#allocation10], %s3148
          %3150 = dma.done %s3146, 128
        $region100: #{tpu_custom_call.1} parent=95 // pred_fallthru
          _
      $region96: #{tpu_custom_call.1} parent=5 // pred_fallthru
        _
    $region6: #{tpu_custom_call.1} parent=1 // loop_footer
      %s33 = sadd.s32 1, %s29
    $region7: #{tpu_custom_call.1} parent=1 // loop_footer_branch
      %28 = sbr.rel target = $region3
    $region8: #{tpu_custom_call.1} parent=1 // loop_exit
      _
    %3151 = vsyncpa [#allocation3], 1
    %s3152 = scalar_lea.sflag [#allocation3], 1
    %3153 = vsyncpa %s3152, 1
    %3154 = vsyncpa [#allocation6], 1
    %s3155 = scalar_lea.sflag [#allocation6], 1
    %3156 = vsyncpa %s3155, 1
    %3157 = vsyncpa [#allocation9], 1
    %3158 = vsyncpa [#allocation4], 1
    %s3159 = scalar_lea.sflag [#allocation4], 1
    %3160 = vsyncpa %s3159, 1

</llo_original>
